<compile_context>
chip_gen: v6e
topology: v6e:2x2x1
jax: 0.10.0
libtpu: 0.0.40
codegen_flags: <defaults>
</compile_context>

<pallas_src>
import functools

import jax
import jax.numpy as jnp
from jax.experimental import pallas as pl
from jax.experimental.pallas import tpu as pltpu

_BN_EPS = 1e-5
_VMEM_LIMIT = 32 * 1024 * 1024  # safe on v5e/v6e/v7x


# ---------------------------------------------------------------------------
# Kernel 1: one GIN layer = (A @ h + h) -> Linear -> ReLU -> Linear -> act
# Grid: (rows "parallel", contraction "arbitrary"); A streamed as bf16 tiles.
# ---------------------------------------------------------------------------
def gin_layer_kernel(a_ref, hk_ref, hm_ref, w1_ref, b1_ref, w2_ref, b2_ref,
                     out_ref, acc_ref, *, act):
    k = pl.program_id(1)

    @pl.when(k == 0)
    def _():
        acc_ref[...] = jnp.zeros_like(acc_ref)

    a = a_ref[...].astype(jnp.float32)            # bf16 (exact 0/1) -> f32
    acc_ref[...] += jnp.dot(a, hk_ref[...], preferred_element_type=jnp.float32)

    @pl.when(k == pl.num_programs(1) - 1)
    def _():
        # GINConv eps=0: (1+eps)*x_i + sum_{j in N(i)} x_j
        z = acc_ref[...] + hm_ref[...]
        h = jnp.dot(z, w1_ref[...], preferred_element_type=jnp.float32) + b1_ref[...]
        h = jnp.maximum(h, 0.0)
        h = jnp.dot(h, w2_ref[...], preferred_element_type=jnp.float32) + b2_ref[...]
        if act == "elu":
            h = jnp.where(h > 0, h, jnp.exp(jnp.minimum(h, 0.0)) - 1.0)
        else:  # relu
            h = jnp.maximum(h, 0.0)
        out_ref[...] = h


def _gin_layer(a, h, w1, b1, w2, b2, act, tile):
    n_pad = h.shape[0]
    grid = (n_pad // tile, n_pad // tile)
    kernel = functools.partial(gin_layer_kernel, act=act)
    return pl.pallas_call(
        kernel,
        out_shape=jax.ShapeDtypeStruct((n_pad, 128), jnp.float32),
        grid=grid,
        in_specs=[
            pl.BlockSpec((tile, tile), lambda i, k: (i, k)),   # A tile (bf16)
            pl.BlockSpec((tile, 128), lambda i, k: (k, 0)),    # h contraction tile
            pl.BlockSpec((tile, 128), lambda i, k: (i, 0)),    # h self-loop tile
            pl.BlockSpec((128, 128), lambda i, k: (0, 0)),     # w1 (resident)
            pl.BlockSpec((1, 128), lambda i, k: (0, 0)),       # b1
            pl.BlockSpec((128, 128), lambda i, k: (0, 0)),     # w2
            pl.BlockSpec((1, 128), lambda i, k: (0, 0)),       # b2
        ],
        out_specs=pl.BlockSpec((tile, 128), lambda i, k: (i, 0)),
        scratch_shapes=[pltpu.VMEM((tile, 128), jnp.float32)],
        compiler_params=pltpu.CompilerParams(
            dimension_semantics=("parallel", "arbitrary"),
            vmem_limit_bytes=_VMEM_LIMIT,
        ),
    )(a, h, h, w1, b1, w2, b2)


# ---------------------------------------------------------------------------
# Kernel 2: BatchNorm1d over real node rows (one-pass stats, padded rows
# masked out via a pre-scaled row mask carrying 1/N on real rows, 0 on pads).
# ---------------------------------------------------------------------------
def batchnorm_kernel(h_ref, mask_ref, out_ref):
    h = h_ref[...]
    m = mask_ref[...]                                   # (N_pad, 1), value 1/N or 0
    mean = jnp.sum(h * m, axis=0, keepdims=True)        # E[x]
    ex2 = jnp.sum((h * h) * m, axis=0, keepdims=True)   # E[x^2]
    var = jnp.maximum(ex2 - mean * mean, 0.0)           # biased variance (torch train)
    out_ref[...] = (h - mean) * jax.lax.rsqrt(var + _BN_EPS)


def _batchnorm(h, row_mask):
    n_pad = h.shape[0]
    return pl.pallas_call(
        batchnorm_kernel,
        out_shape=jax.ShapeDtypeStruct((n_pad, 128), jnp.float32),
        in_specs=[pl.BlockSpec(memory_space=pltpu.MemorySpace.VMEM)] * 2,
        out_specs=pl.BlockSpec(memory_space=pltpu.MemorySpace.VMEM),
        compiler_params=pltpu.CompilerParams(vmem_limit_bytes=_VMEM_LIMIT),
    )(h, row_mask)


# ---------------------------------------------------------------------------
# Kernel 3: global_add_pool (streamed over node tiles) + fc(32->128) + full
# head (protein BN -> Linear -> Linear -> softmax, concat-linear, sigmoid),
# all fused into one launch.
# ---------------------------------------------------------------------------
def pool_head_kernel(pool_ref, h_ref, target_ref,
                     wn2_ref, bn2_ref,
                     w31_ref, b31_ref, w32_ref, b32_ref,
                     w4t_ref, w4b_ref, b4_ref, w5_ref, b5_ref,
                     xg_ref, out_ref, acc_ref):
    k = pl.program_id(0)

    @pl.when(k == 0)
    def _():
        acc_ref[...] = jnp.zeros_like(acc_ref)

    p = pool_ref[...].astype(jnp.float32)          # bf16 (exact 0/1) -> f32
    acc_ref[...] += jnp.dot(p, h_ref[...], preferred_element_type=jnp.float32)

    @pl.when(k == pl.num_programs(0) - 1)
    def _():
        # --- graph branch: Linear(32,128) + ReLU (dropout = identity) ---
        xg = jnp.dot(acc_ref[...], wn2_ref[...],
                     preferred_element_type=jnp.float32) + bn2_ref[...]
        xg = jnp.maximum(xg, 0.0)
        xg_ref[...] = xg

        # --- protein branch: BN(208) -> Linear(208,170) -> Linear(170,128) ---
        t = target_ref[...]
        mean = jnp.mean(t, axis=0, keepdims=True)
        var = jnp.maximum(jnp.mean(t * t, axis=0, keepdims=True) - mean * mean, 0.0)
        t = (t - mean) * jax.lax.rsqrt(var + _BN_EPS)
        ct = jnp.dot(t, w31_ref[...], preferred_element_type=jnp.float32) + b31_ref[...]
        ct = jnp.dot(ct, w32_ref[...], preferred_element_type=jnp.float32) + b32_ref[...]
        # softmax(dim=1) with EUP reciprocal
        mmax = jnp.max(ct, axis=-1, keepdims=True)
        e = jnp.exp(ct - mmax)
        ct = e * pl.reciprocal(jnp.sum(e, axis=-1, keepdims=True), approx=True)

        # --- cat([xg, ct], 1) @ W4  ==  xg @ W4[:128] + ct @ W4[128:] ---
        xc = (jnp.dot(xg, w4t_ref[...], preferred_element_type=jnp.float32)
              + jnp.dot(ct, w4b_ref[...], preferred_element_type=jnp.float32)
              + b4_ref[...])
        xc = jnp.maximum(xc, 0.0)
        # dropout(0.5): identity (inference semantics)

        # --- Linear(128,1) as VPU multiply + lane reduce; sigmoid via EUP ---
        o = jnp.sum(xc * w5_ref[...], axis=-1, keepdims=True) + b5_ref[...]
        out_ref[...] = pl.reciprocal(1.0 + jnp.exp(-o), approx=True)


def _pool_head(pool, h, target, params, tile):
    num_graphs = pool.shape[0]
    n_pad = h.shape[0]
    grid = (n_pad // tile,)
    full = lambda shape: pl.BlockSpec(shape, lambda k: tuple(0 for _ in shape))
    args = (pool, h, target,
            params["wn2"], params["bn2"],
            params["w31"], params["b31"], params["w32"], params["b32"],
            params["w4_top"], params["w4_bot"], params["b4"],
            params["w5_row"], params["b5"])
    xg, out = pl.pallas_call(
        pool_head_kernel,
        out_shape=(jax.ShapeDtypeStruct((num_graphs, 128), jnp.float32),
                   jax.ShapeDtypeStruct((num_graphs, 1), jnp.float32)),
        grid=grid,
        in_specs=[
            pl.BlockSpec((num_graphs, tile), lambda k: (0, k)),  # pool tile (bf16)
            pl.BlockSpec((tile, 128), lambda k: (k, 0)),         # h tile
            full((num_graphs, 256)),                             # target (padded)
            full((128, 128)), full((1, 128)),                    # n2
            full((256, 256)), full((1, 256)),                    # n31 (padded)
            full((256, 128)), full((1, 128)),                    # n32 (padded)
            full((128, 128)), full((128, 128)), full((1, 128)),  # n4 split
            full((1, 128)), full((1, 1)),                        # n5
        ],
        out_specs=(pl.BlockSpec((num_graphs, 128), lambda k: (0, 0)),
                   pl.BlockSpec((num_graphs, 1), lambda k: (0, 0))),
        scratch_shapes=[pltpu.VMEM((num_graphs, 128), jnp.float32)],
        compiler_params=pltpu.CompilerParams(
            dimension_semantics=("arbitrary",),
            vmem_limit_bytes=_VMEM_LIMIT,
        ),
    )(*args)
    return xg, out


# ---------------------------------------------------------------------------
# Forward wrapper (jitted so A / pool construction fuses with the launches)
# ---------------------------------------------------------------------------
@functools.partial(jax.jit, static_argnames=("num_graphs", "tile"))
def gin_forward(x, edge_index, batch_idx, target, params, num_graphs, *, tile=256):
    """Returns (out (B,1), x_graph (B,128)) matching the PyTorch forward."""
    n, f_in = x.shape
    n_pad = ((n + tile - 1) // tile) * tile

    src, dst = edge_index[0], edge_index[1]
    # dense neighbor matrix WITHOUT self loops (self loop added in-kernel),
    # bf16 (0/1 exact), padded rows/cols are zero.
    a = (jnp.zeros((n_pad, n_pad), jnp.float32)
         .at[dst, src].add(1.0)).astype(jnp.bfloat16)
    # pooling indicator Pool[b, n] = 1 iff batch[n] == b, bf16, zero on pads
    pool = (jnp.zeros((num_graphs, n_pad), jnp.float32)
            .at[batch_idx, jnp.arange(n)].set(1.0)).astype(jnp.bfloat16)
    # node features padded to lane-dense (N_pad, 128)
    h = jnp.zeros((n_pad, 128), jnp.float32).at[:n, :f_in].set(x)
    # BN row mask carrying 1/N on real rows (padded rows excluded from stats)
    row_mask = ((jnp.arange(n_pad) < n).astype(jnp.float32) / float(n))[:, None]
    # protein features padded to (B, 256)
    t_pad = jnp.zeros((num_graphs, 256), jnp.float32).at[:, :target.shape[1]].set(target)

    layers = [
        (params["w11a"], params["b11a"], params["w11b"], params["b11b"], "elu"),
        (params["w12a"], params["b12a"], params["w12b"], params["b12b"], "relu"),
        (params["w13a"], params["b13a"], params["w13b"], params["b13b"], "relu"),
    ]
    for w1, b1, w2, b2, act in layers:
        h = _gin_layer(a, h, w1, b1, w2, b2, act, tile)
        h = _batchnorm(h, row_mask)

    xg, out = _pool_head(pool, h, t_pad, params, tile)
    return out, xg


# ---------------------------------------------------------------------------
# Parameter init (PyTorch nn.Linear default init on TRUE shapes, zero-padded
# to lane-dense 128-multiples so padded columns stay exactly zero).
# ---------------------------------------------------------------------------
def _linear_params(key, fan_in, fan_out):
    k1, k2 = jax.random.split(key)
    bound = 1.0 / (fan_in ** 0.5)
    w = jax.random.uniform(k1, (fan_in, fan_out), jnp.float32, -bound, bound)
    b = jax.random.uniform(k2, (1, fan_out), jnp.float32, -bound, bound)
    return w, b


def _pad2(w, rows, cols):
    out = jnp.zeros((rows, cols), jnp.float32)
    return out.at[:w.shape[0], :w.shape[1]].set(w)


def init_params(key):
    ks = jax.random.split(key, 12)
    p = {}
    w, b = _linear_params(ks[0], 78, 32);  p["w11a"], p["b11a"] = _pad2(w, 128, 128), _pad2(b, 1, 128)
    w, b = _linear_params(ks[1], 32, 32);  p["w11b"], p["b11b"] = _pad2(w, 128, 128), _pad2(b, 1, 128)
    w, b = _linear_params(ks[2], 32, 32);  p["w12a"], p["b12a"] = _pad2(w, 128, 128), _pad2(b, 1, 128)
    w, b = _linear_params(ks[3], 32, 32);  p["w12b"], p["b12b"] = _pad2(w, 128, 128), _pad2(b, 1, 128)
    w, b = _linear_params(ks[4], 32, 32);  p["w13a"], p["b13a"] = _pad2(w, 128, 128), _pad2(b, 1, 128)
    w, b = _linear_params(ks[5], 32, 32);  p["w13b"], p["b13b"] = _pad2(w, 128, 128), _pad2(b, 1, 128)
    w, b = _linear_params(ks[6], 32, 128); p["wn2"], p["bn2"] = _pad2(w, 128, 128), b          # n2
    w, b = _linear_params(ks[7], 208, 170); p["w31"], p["b31"] = _pad2(w, 256, 256), _pad2(b, 1, 256)  # n31
    w, b = _linear_params(ks[8], 170, 128); p["w32"], p["b32"] = _pad2(w, 256, 128), b          # n32
    w4, p["b4"] = _linear_params(ks[9], 256, 128)                                               # n4
    p["w4_top"], p["w4_bot"] = w4[:128], w4[128:]
    w5, b5 = _linear_params(ks[10], 128, 1)                                                     # n5
    p["w5_row"], p["b5"] = w5.T, b5                                                             # (1,128), (1,1)
    return p


if __name__ == "__main__":
    key = jax.random.PRNGKey(0)
    k_x, k_t, k_p = jax.random.split(key, 3)

    # synthetic batch: 4 chain graphs of 65 nodes each, 78-d node features.
    num_graphs, nodes_per_graph = 4, 65
    n = num_graphs * nodes_per_graph                 # 260 nodes -> padded to 512
    x = jax.random.normal(k_x, (n, 78), jnp.float32)
    src_list, dst_list = [], []
    for g in range(num_graphs):
        off = g * nodes_per_graph
        for i in range(nodes_per_graph - 1):
            src_list += [off + i, off + i + 1]
            dst_list += [off + i + 1, off + i]
    edge_index = jnp.array([src_list, dst_list], jnp.int32)
    batch_idx = jnp.repeat(jnp.arange(num_graphs, dtype=jnp.int32), nodes_per_graph)
    target = jax.random.normal(k_t, (num_graphs, 208), jnp.float32)

    params = init_params(k_p)

    out, x_graph = gin_forward(x, edge_index, batch_idx, target, params, num_graphs)
    jax.block_until_ready((out, x_graph))
    assert out.shape == (num_graphs, 1) and x_graph.shape == (num_graphs, 128)
    assert bool(jnp.all(jnp.isfinite(out))) and bool(jnp.all(jnp.isfinite(x_graph)))
    print("KERNEL_OK")
</pallas_src>

<mosaic_0001>
module attributes {stable_mosaic.version = 11 : i64} {
  func.func private @main(%arg0: i32) attributes {dimension_semantics = [#tpu.dimension_semantics<core_parallel>], iteration_bounds = array<i64: 2>, tpu.core_type = #tpu.core_type<sc_scalar_subcore>, window_params = []} {
    return
  }
}

module attributes {stable_mosaic.version = 11 : i64} {
  func.func private @main(%arg0: i32) attributes {dimension_semantics = [#tpu.dimension_semantics<core_parallel>], iteration_bounds = array<i64: 2>, tpu.core_type = #tpu.core_type<sc_scalar_subcore>, window_params = []} {
    return
  }
}

module attributes {stable_mosaic.version = 11 : i64} {
  func.func @gin_layer_kernel(%arg0: i32, %arg1: i32, %arg2: memref<256x256xbf16, #tpu.memory_space<vmem>>, %arg3: memref<256x128xf32, #tpu.memory_space<vmem>>, %arg4: memref<256x128xf32, #tpu.memory_space<vmem>>, %arg5: memref<128x128xf32, #tpu.memory_space<vmem>>, %arg6: memref<1x128xf32, #tpu.memory_space<vmem>>, %arg7: memref<128x128xf32, #tpu.memory_space<vmem>>, %arg8: memref<1x128xf32, #tpu.memory_space<vmem>>, %arg9: memref<256x128xf32, #tpu.memory_space<vmem>>, %arg10: memref<256x128xf32, #tpu.memory_space<vmem>>) attributes {dimension_semantics = [#tpu.dimension_semantics<parallel>, #tpu.dimension_semantics<arbitrary>], iteration_bounds = array<i64: 2, 2>, scalar_prefetch = 0 : i64, scratch_operands = 1 : i64, tpu.core_type = #tpu.core_type<tc>, window_params = [{transform_indices = @transform_0, window_bounds = array<i64: 256, 256>}, {transform_indices = @transform_1, window_bounds = array<i64: 256, 128>}, {transform_indices = @transform_2, window_bounds = array<i64: 256, 128>}, {pipeline_mode = #tpu.pipeline_mode<synchronous>, transform_indices = @transform_3, window_bounds = array<i64: 128, 128>}, {pipeline_mode = #tpu.pipeline_mode<synchronous>, transform_indices = @transform_4, window_bounds = array<i64: 1, 128>}, {pipeline_mode = #tpu.pipeline_mode<synchronous>, transform_indices = @transform_5, window_bounds = array<i64: 128, 128>}, {pipeline_mode = #tpu.pipeline_mode<synchronous>, transform_indices = @transform_6, window_bounds = array<i64: 1, 128>}, {transform_indices = @transform_7, window_bounds = array<i64: 256, 128>}]} {
    %c0_i32 = arith.constant 0 : i32
    %0 = arith.cmpi eq, %arg1, %c0_i32 : i32
    %1 = arith.extui %0 : i1 to i32
    %c0_i32_0 = arith.constant 0 : i32
    %2 = arith.cmpi ne, %1, %c0_i32_0 : i32
    scf.if %2 {
      %cst_9 = arith.constant 0.000000e+00 : f32
      %13 = vector.broadcast %cst_9 : f32 to vector<256x128xf32>
      %c0_10 = arith.constant 0 : index
      %c0_11 = arith.constant 0 : index
      %14 = vector.load %arg10[%c0_10, %c0_11] : memref<256x128xf32, #tpu.memory_space<vmem>>, vector<256x128xf32>
      tpu.vector_store %arg10[%c0_10, %c0_11], %13 {strides = array<i32>} : memref<256x128xf32, #tpu.memory_space<vmem>>, vector<256x128xf32>,
    } else {
    }
    %c0 = arith.constant 0 : index
    %c0_1 = arith.constant 0 : index
    %3 = vector.load %arg2[%c0, %c0_1] : memref<256x256xbf16, #tpu.memory_space<vmem>>, vector<256x256xbf16>
    %4 = arith.extf %3 : vector<256x256xbf16> to vector<256x256xf32>
    %c0_2 = arith.constant 0 : index
    %c0_3 = arith.constant 0 : index
    %5 = vector.load %arg10[%c0_2, %c0_3] : memref<256x128xf32, #tpu.memory_space<vmem>>, vector<256x128xf32>
    %c0_4 = arith.constant 0 : index
    %c0_5 = arith.constant 0 : index
    %6 = vector.load %arg3[%c0_4, %c0_5] : memref<256x128xf32, #tpu.memory_space<vmem>>, vector<256x128xf32>
    %cst = arith.constant dense<0.000000e+00> : vector<256x128xf32>
    %7 = tpu.matmul %4, %6, %cst {dimension_numbers = #tpu.dot_dimension_numbers<[1], [0], [0], [1], [0, 0, 1, 1], [], []>} : vector<256x256xf32>, vector<256x128xf32>, vector<256x128xf32> -> vector<256x128xf32>
    %8 = arith.addf %5, %7 : vector<256x128xf32>
    %c0_6 = arith.constant 0 : index
    %c0_7 = arith.constant 0 : index
    %9 = vector.load %arg10[%c0_6, %c0_7] : memref<256x128xf32, #tpu.memory_space<vmem>>, vector<256x128xf32>
    tpu.vector_store %arg10[%c0_6, %c0_7], %8 {strides = array<i32>} : memref<256x128xf32, #tpu.memory_space<vmem>>, vector<256x128xf32>,
    %c1_i32 = arith.constant 1 : i32
    %10 = arith.cmpi eq, %arg1, %c1_i32 : i32
    %11 = arith.extui %10 : i1 to i32
    %c0_i32_8 = arith.constant 0 : i32
    %12 = arith.cmpi ne, %11, %c0_i32_8 : i32
    scf.if %12 {
      %c0_9 = arith.constant 0 : index
      %c0_10 = arith.constant 0 : index
      %13 = vector.load %arg10[%c0_9, %c0_10] : memref<256x128xf32, #tpu.memory_space<vmem>>, vector<256x128xf32>
      %c0_11 = arith.constant 0 : index
      %c0_12 = arith.constant 0 : index
      %14 = vector.load %arg4[%c0_11, %c0_12] : memref<256x128xf32, #tpu.memory_space<vmem>>, vector<256x128xf32>
      %15 = arith.addf %13, %14 : vector<256x128xf32>
      %c0_13 = arith.constant 0 : index
      %c0_14 = arith.constant 0 : index
      %16 = vector.load %arg5[%c0_13, %c0_14] : memref<128x128xf32, #tpu.memory_space<vmem>>, vector<128x128xf32>
      %cst_15 = arith.constant dense<0.000000e+00> : vector<256x128xf32>
      %17 = tpu.matmul %15, %16, %cst_15 {dimension_numbers = #tpu.dot_dimension_numbers<[1], [0], [0], [1], [0, 0, 1, 1], [], []>} : vector<256x128xf32>, vector<128x128xf32>, vector<256x128xf32> -> vector<256x128xf32>
      %c0_16 = arith.constant 0 : index
      %c0_17 = arith.constant 0 : index
      %18 = vector.load %arg6[%c0_16, %c0_17] : memref<1x128xf32, #tpu.memory_space<vmem>>, vector<1x128xf32>
      %19 = vector.broadcast %18 : vector<1x128xf32> to vector<256x128xf32>
      %20 = arith.addf %17, %19 : vector<256x128xf32>
      %cst_18 = arith.constant 0.000000e+00 : f32
      %21 = vector.broadcast %cst_18 : f32 to vector<256x128xf32>
      %22 = arith.maximumf %20, %21 : vector<256x128xf32>
      %c0_19 = arith.constant 0 : index
      %c0_20 = arith.constant 0 : index
      %23 = vector.load %arg7[%c0_19, %c0_20] : memref<128x128xf32, #tpu.memory_space<vmem>>, vector<128x128xf32>
      %cst_21 = arith.constant dense<0.000000e+00> : vector<256x128xf32>
      %24 = tpu.matmul %22, %23, %cst_21 {dimension_numbers = #tpu.dot_dimension_numbers<[1], [0], [0], [1], [0, 0, 1, 1], [], []>} : vector<256x128xf32>, vector<128x128xf32>, vector<256x128xf32> -> vector<256x128xf32>
      %c0_22 = arith.constant 0 : index
      %c0_23 = arith.constant 0 : index
      %25 = vector.load %arg8[%c0_22, %c0_23] : memref<1x128xf32, #tpu.memory_space<vmem>>, vector<1x128xf32>
      %26 = vector.broadcast %25 : vector<1x128xf32> to vector<256x128xf32>
      %27 = arith.addf %24, %26 : vector<256x128xf32>
      %cst_24 = arith.constant 0.000000e+00 : f32
      %28 = vector.broadcast %cst_24 : f32 to vector<256x128xf32>
      %29 = arith.cmpf ogt, %27, %28 : vector<256x128xf32>
      %cst_25 = arith.constant 0.000000e+00 : f32
      %30 = vector.broadcast %cst_25 : f32 to vector<256x128xf32>
      %31 = arith.minimumf %27, %30 : vector<256x128xf32>
      %32 = math.exp %31 : vector<256x128xf32>
      %cst_26 = arith.constant 1.000000e+00 : f32
      %33 = vector.broadcast %cst_26 : f32 to vector<256x128xf32>
      %34 = arith.subf %32, %33 : vector<256x128xf32>
      %35 = arith.select %29, %27, %34 : vector<256x128xi1>, vector<256x128xf32>
      %c0_27 = arith.constant 0 : index
      %c0_28 = arith.constant 0 : index
      %36 = vector.load %arg9[%c0_27, %c0_28] : memref<256x128xf32, #tpu.memory_space<vmem>>, vector<256x128xf32>
      tpu.vector_store %arg9[%c0_27, %c0_28], %35 {strides = array<i32>} : memref<256x128xf32, #tpu.memory_space<vmem>>, vector<256x128xf32>,
    } else {
    }
    return
  }
  func.func @transform_0(%arg0: i32, %arg1: i32) -> (i32, i32) {
    %c0_i32 = arith.constant 0 : i32
    return %arg0, %arg1 : i32, i32
  }
  func.func @transform_1(%arg0: i32, %arg1: i32) -> (i32, i32) {
    %c0_i32 = arith.constant 0 : i32
    %c0_i32_0 = arith.constant 0 : i32
    return %arg1, %c0_i32 : i32, i32
  }
  func.func @transform_2(%arg0: i32, %arg1: i32) -> (i32, i32) {
    %c0_i32 = arith.constant 0 : i32
    %c0_i32_0 = arith.constant 0 : i32
    return %arg0, %c0_i32 : i32, i32
  }
  func.func @transform_3(%arg0: i32, %arg1: i32) -> (i32, i32) {
    %c0_i32 = arith.constant 0 : i32
    %c0_i32_0 = arith.constant 0 : i32
    %c0_i32_1 = arith.constant 0 : i32
    return %c0_i32, %c0_i32_0 : i32, i32
  }
  func.func @transform_4(%arg0: i32, %arg1: i32) -> (i32, i32) {
    %c0_i32 = arith.constant 0 : i32
    %c0_i32_0 = arith.constant 0 : i32
    %c0_i32_1 = arith.constant 0 : i32
    return %c0_i32, %c0_i32_0 : i32, i32
  }
  func.func @transform_5(%arg0: i32, %arg1: i32) -> (i32, i32) {
    %c0_i32 = arith.constant 0 : i32
    %c0_i32_0 = arith.constant 0 : i32
    %c0_i32_1 = arith.constant 0 : i32
    return %c0_i32, %c0_i32_0 : i32, i32
  }
  func.func @transform_6(%arg0: i32, %arg1: i32) -> (i32, i32) {
    %c0_i32 = arith.constant 0 : i32
    %c0_i32_0 = arith.constant 0 : i32
    %c0_i32_1 = arith.constant 0 : i32
    return %c0_i32, %c0_i32_0 : i32, i32
  }
  func.func @transform_7(%arg0: i32, %arg1: i32) -> (i32, i32) {
    %c0_i32 = arith.constant 0 : i32
    %c0_i32_0 = arith.constant 0 : i32
    return %arg0, %c0_i32 : i32, i32
  }
}

module attributes {stable_mosaic.version = 11 : i64} {
  func.func @batchnorm_kernel(%arg0: memref<512x128xf32, #tpu.memory_space<vmem>>, %arg1: memref<512x1xf32, #tpu.memory_space<vmem>>, %arg2: memref<512x128xf32, #tpu.memory_space<vmem>>) attributes {dimension_semantics = [], scalar_prefetch = 0 : i64, scratch_operands = 0 : i64, tpu.core_type = #tpu.core_type<tc>} {
    %c0 = arith.constant 0 : index
    %c0_0 = arith.constant 0 : index
    %0 = vector.load %arg0[%c0, %c0_0] : memref<512x128xf32, #tpu.memory_space<vmem>>, vector<512x128xf32>
    %c0_1 = arith.constant 0 : index
    %c0_2 = arith.constant 0 : index
    %1 = vector.load %arg1[%c0_1, %c0_2] : memref<512x1xf32, #tpu.memory_space<vmem>>, vector<512x1xf32>
    %2 = vector.broadcast %1 : vector<512x1xf32> to vector<512x128xf32>
    %3 = arith.mulf %0, %2 : vector<512x128xf32>
    %cst = arith.constant dense<0.000000e+00> : vector<128xf32>
    %4 = vector.multi_reduction <add>, %3, %cst [0] : vector<512x128xf32> to vector<128xf32>
    %5 = vector.shape_cast %4 : vector<128xf32> to vector<1x128xf32>
    %6 = arith.mulf %0, %0 : vector<512x128xf32>
    %7 = vector.broadcast %1 : vector<512x1xf32> to vector<512x128xf32>
    %8 = arith.mulf %6, %7 : vector<512x128xf32>
    %cst_3 = arith.constant dense<0.000000e+00> : vector<128xf32>
    %9 = vector.multi_reduction <add>, %8, %cst_3 [0] : vector<512x128xf32> to vector<128xf32>
    %10 = vector.shape_cast %9 : vector<128xf32> to vector<1x128xf32>
    %11 = arith.mulf %5, %5 : vector<1x128xf32>
    %12 = arith.subf %10, %11 : vector<1x128xf32>
    %cst_4 = arith.constant 0.000000e+00 : f32
    %13 = vector.broadcast %cst_4 : f32 to vector<1x128xf32>
    %14 = arith.maximumf %12, %13 : vector<1x128xf32>
    %15 = vector.broadcast %5 : vector<1x128xf32> to vector<512x128xf32>
    %16 = arith.subf %0, %15 : vector<512x128xf32>
    %cst_5 = arith.constant 9.99999974E-6 : f32
    %17 = vector.broadcast %cst_5 : f32 to vector<1x128xf32>
    %18 = arith.addf %14, %17 : vector<1x128xf32>
    %19 = math.rsqrt %18 : vector<1x128xf32>
    %20 = vector.broadcast %19 : vector<1x128xf32> to vector<512x128xf32>
    %21 = arith.mulf %16, %20 : vector<512x128xf32>
    %c0_6 = arith.constant 0 : index
    %c0_7 = arith.constant 0 : index
    %22 = vector.load %arg2[%c0_6, %c0_7] : memref<512x128xf32, #tpu.memory_space<vmem>>, vector<512x128xf32>
    tpu.vector_store %arg2[%c0_6, %c0_7], %21 {strides = array<i32>} : memref<512x128xf32, #tpu.memory_space<vmem>>, vector<512x128xf32>,
    return
  }
}

module attributes {stable_mosaic.version = 11 : i64} {
  func.func @gin_layer_kernel(%arg0: i32, %arg1: i32, %arg2: memref<256x256xbf16, #tpu.memory_space<vmem>>, %arg3: memref<256x128xf32, #tpu.memory_space<vmem>>, %arg4: memref<256x128xf32, #tpu.memory_space<vmem>>, %arg5: memref<128x128xf32, #tpu.memory_space<vmem>>, %arg6: memref<1x128xf32, #tpu.memory_space<vmem>>, %arg7: memref<128x128xf32, #tpu.memory_space<vmem>>, %arg8: memref<1x128xf32, #tpu.memory_space<vmem>>, %arg9: memref<256x128xf32, #tpu.memory_space<vmem>>, %arg10: memref<256x128xf32, #tpu.memory_space<vmem>>) attributes {dimension_semantics = [#tpu.dimension_semantics<parallel>, #tpu.dimension_semantics<arbitrary>], iteration_bounds = array<i64: 2, 2>, scalar_prefetch = 0 : i64, scratch_operands = 1 : i64, tpu.core_type = #tpu.core_type<tc>, window_params = [{transform_indices = @transform_0, window_bounds = array<i64: 256, 256>}, {transform_indices = @transform_1, window_bounds = array<i64: 256, 128>}, {transform_indices = @transform_2, window_bounds = array<i64: 256, 128>}, {pipeline_mode = #tpu.pipeline_mode<synchronous>, transform_indices = @transform_3, window_bounds = array<i64: 128, 128>}, {pipeline_mode = #tpu.pipeline_mode<synchronous>, transform_indices = @transform_4, window_bounds = array<i64: 1, 128>}, {pipeline_mode = #tpu.pipeline_mode<synchronous>, transform_indices = @transform_5, window_bounds = array<i64: 128, 128>}, {pipeline_mode = #tpu.pipeline_mode<synchronous>, transform_indices = @transform_6, window_bounds = array<i64: 1, 128>}, {transform_indices = @transform_7, window_bounds = array<i64: 256, 128>}]} {
    %c0_i32 = arith.constant 0 : i32
    %0 = arith.cmpi eq, %arg1, %c0_i32 : i32
    %1 = arith.extui %0 : i1 to i32
    %c0_i32_0 = arith.constant 0 : i32
    %2 = arith.cmpi ne, %1, %c0_i32_0 : i32
    scf.if %2 {
      %cst_9 = arith.constant 0.000000e+00 : f32
      %13 = vector.broadcast %cst_9 : f32 to vector<256x128xf32>
      %c0_10 = arith.constant 0 : index
      %c0_11 = arith.constant 0 : index
      %14 = vector.load %arg10[%c0_10, %c0_11] : memref<256x128xf32, #tpu.memory_space<vmem>>, vector<256x128xf32>
      tpu.vector_store %arg10[%c0_10, %c0_11], %13 {strides = array<i32>} : memref<256x128xf32, #tpu.memory_space<vmem>>, vector<256x128xf32>,
    } else {
    }
    %c0 = arith.constant 0 : index
    %c0_1 = arith.constant 0 : index
    %3 = vector.load %arg2[%c0, %c0_1] : memref<256x256xbf16, #tpu.memory_space<vmem>>, vector<256x256xbf16>
    %4 = arith.extf %3 : vector<256x256xbf16> to vector<256x256xf32>
    %c0_2 = arith.constant 0 : index
    %c0_3 = arith.constant 0 : index
    %5 = vector.load %arg10[%c0_2, %c0_3] : memref<256x128xf32, #tpu.memory_space<vmem>>, vector<256x128xf32>
    %c0_4 = arith.constant 0 : index
    %c0_5 = arith.constant 0 : index
    %6 = vector.load %arg3[%c0_4, %c0_5] : memref<256x128xf32, #tpu.memory_space<vmem>>, vector<256x128xf32>
    %cst = arith.constant dense<0.000000e+00> : vector<256x128xf32>
    %7 = tpu.matmul %4, %6, %cst {dimension_numbers = #tpu.dot_dimension_numbers<[1], [0], [0], [1], [0, 0, 1, 1], [], []>} : vector<256x256xf32>, vector<256x128xf32>, vector<256x128xf32> -> vector<256x128xf32>
    %8 = arith.addf %5, %7 : vector<256x128xf32>
    %c0_6 = arith.constant 0 : index
    %c0_7 = arith.constant 0 : index
    %9 = vector.load %arg10[%c0_6, %c0_7] : memref<256x128xf32, #tpu.memory_space<vmem>>, vector<256x128xf32>
    tpu.vector_store %arg10[%c0_6, %c0_7], %8 {strides = array<i32>} : memref<256x128xf32, #tpu.memory_space<vmem>>, vector<256x128xf32>,
    %c1_i32 = arith.constant 1 : i32
    %10 = arith.cmpi eq, %arg1, %c1_i32 : i32
    %11 = arith.extui %10 : i1 to i32
    %c0_i32_8 = arith.constant 0 : i32
    %12 = arith.cmpi ne, %11, %c0_i32_8 : i32
    scf.if %12 {
      %c0_9 = arith.constant 0 : index
      %c0_10 = arith.constant 0 : index
      %13 = vector.load %arg10[%c0_9, %c0_10] : memref<256x128xf32, #tpu.memory_space<vmem>>, vector<256x128xf32>
      %c0_11 = arith.constant 0 : index
      %c0_12 = arith.constant 0 : index
      %14 = vector.load %arg4[%c0_11, %c0_12] : memref<256x128xf32, #tpu.memory_space<vmem>>, vector<256x128xf32>
      %15 = arith.addf %13, %14 : vector<256x128xf32>
      %c0_13 = arith.constant 0 : index
      %c0_14 = arith.constant 0 : index
      %16 = vector.load %arg5[%c0_13, %c0_14] : memref<128x128xf32, #tpu.memory_space<vmem>>, vector<128x128xf32>
      %cst_15 = arith.constant dense<0.000000e+00> : vector<256x128xf32>
      %17 = tpu.matmul %15, %16, %cst_15 {dimension_numbers = #tpu.dot_dimension_numbers<[1], [0], [0], [1], [0, 0, 1, 1], [], []>} : vector<256x128xf32>, vector<128x128xf32>, vector<256x128xf32> -> vector<256x128xf32>
      %c0_16 = arith.constant 0 : index
      %c0_17 = arith.constant 0 : index
      %18 = vector.load %arg6[%c0_16, %c0_17] : memref<1x128xf32, #tpu.memory_space<vmem>>, vector<1x128xf32>
      %19 = vector.broadcast %18 : vector<1x128xf32> to vector<256x128xf32>
      %20 = arith.addf %17, %19 : vector<256x128xf32>
      %cst_18 = arith.constant 0.000000e+00 : f32
      %21 = vector.broadcast %cst_18 : f32 to vector<256x128xf32>
      %22 = arith.maximumf %20, %21 : vector<256x128xf32>
      %c0_19 = arith.constant 0 : index
      %c0_20 = arith.constant 0 : index
      %23 = vector.load %arg7[%c0_19, %c0_20] : memref<128x128xf32, #tpu.memory_space<vmem>>, vector<128x128xf32>
      %cst_21 = arith.constant dense<0.000000e+00> : vector<256x128xf32>
      %24 = tpu.matmul %22, %23, %cst_21 {dimension_numbers = #tpu.dot_dimension_numbers<[1], [0], [0], [1], [0, 0, 1, 1], [], []>} : vector<256x128xf32>, vector<128x128xf32>, vector<256x128xf32> -> vector<256x128xf32>
      %c0_22 = arith.constant 0 : index
      %c0_23 = arith.constant 0 : index
      %25 = vector.load %arg8[%c0_22, %c0_23] : memref<1x128xf32, #tpu.memory_space<vmem>>, vector<1x128xf32>
      %26 = vector.broadcast %25 : vector<1x128xf32> to vector<256x128xf32>
      %27 = arith.addf %24, %26 : vector<256x128xf32>
      %cst_24 = arith.constant 0.000000e+00 : f32
      %28 = vector.broadcast %cst_24 : f32 to vector<256x128xf32>
      %29 = arith.maximumf %27, %28 : vector<256x128xf32>
      %c0_25 = arith.constant 0 : index
      %c0_26 = arith.constant 0 : index
      %30 = vector.load %arg9[%c0_25, %c0_26] : memref<256x128xf32, #tpu.memory_space<vmem>>, vector<256x128xf32>
      tpu.vector_store %arg9[%c0_25, %c0_26], %29 {strides = array<i32>} : memref<256x128xf32, #tpu.memory_space<vmem>>, vector<256x128xf32>,
    } else {
    }
    return
  }
  func.func @transform_0(%arg0: i32, %arg1: i32) -> (i32, i32) {
    %c0_i32 = arith.constant 0 : i32
    return %arg0, %arg1 : i32, i32
  }
  func.func @transform_1(%arg0: i32, %arg1: i32) -> (i32, i32) {
    %c0_i32 = arith.constant 0 : i32
    %c0_i32_0 = arith.constant 0 : i32
    return %arg1, %c0_i32 : i32, i32
  }
  func.func @transform_2(%arg0: i32, %arg1: i32) -> (i32, i32) {
    %c0_i32 = arith.constant 0 : i32
    %c0_i32_0 = arith.constant 0 : i32
    return %arg0, %c0_i32 : i32, i32
  }
  func.func @transform_3(%arg0: i32, %arg1: i32) -> (i32, i32) {
    %c0_i32 = arith.constant 0 : i32
    %c0_i32_0 = arith.constant 0 : i32
    %c0_i32_1 = arith.constant 0 : i32
    return %c0_i32, %c0_i32_0 : i32, i32
  }
  func.func @transform_4(%arg0: i32, %arg1: i32) -> (i32, i32) {
    %c0_i32 = arith.constant 0 : i32
    %c0_i32_0 = arith.constant 0 : i32
    %c0_i32_1 = arith.constant 0 : i32
    return %c0_i32, %c0_i32_0 : i32, i32
  }
  func.func @transform_5(%arg0: i32, %arg1: i32) -> (i32, i32) {
    %c0_i32 = arith.constant 0 : i32
    %c0_i32_0 = arith.constant 0 : i32
    %c0_i32_1 = arith.constant 0 : i32
    return %c0_i32, %c0_i32_0 : i32, i32
  }
  func.func @transform_6(%arg0: i32, %arg1: i32) -> (i32, i32) {
    %c0_i32 = arith.constant 0 : i32
    %c0_i32_0 = arith.constant 0 : i32
    %c0_i32_1 = arith.constant 0 : i32
    return %c0_i32, %c0_i32_0 : i32, i32
  }
  func.func @transform_7(%arg0: i32, %arg1: i32) -> (i32, i32) {
    %c0_i32 = arith.constant 0 : i32
    %c0_i32_0 = arith.constant 0 : i32
    return %arg0, %c0_i32 : i32, i32
  }
}

module attributes {stable_mosaic.version = 11 : i64} {
  func.func @pool_head_kernel(%arg0: i32, %arg1: memref<4x256xbf16, #tpu.memory_space<vmem>>, %arg2: memref<256x128xf32, #tpu.memory_space<vmem>>, %arg3: memref<4x256xf32, #tpu.memory_space<vmem>>, %arg4: memref<128x128xf32, #tpu.memory_space<vmem>>, %arg5: memref<1x128xf32, #tpu.memory_space<vmem>>, %arg6: memref<256x256xf32, #tpu.memory_space<vmem>>, %arg7: memref<1x256xf32, #tpu.memory_space<vmem>>, %arg8: memref<256x128xf32, #tpu.memory_space<vmem>>, %arg9: memref<1x128xf32, #tpu.memory_space<vmem>>, %arg10: memref<128x128xf32, #tpu.memory_space<vmem>>, %arg11: memref<128x128xf32, #tpu.memory_space<vmem>>, %arg12: memref<1x128xf32, #tpu.memory_space<vmem>>, %arg13: memref<1x128xf32, #tpu.memory_space<vmem>>, %arg14: memref<1x1xf32, #tpu.memory_space<vmem>>, %arg15: memref<4x128xf32, #tpu.memory_space<vmem>>, %arg16: memref<4x1xf32, #tpu.memory_space<vmem>>, %arg17: memref<4x128xf32, #tpu.memory_space<vmem>>) attributes {dimension_semantics = [#tpu.dimension_semantics<arbitrary>], iteration_bounds = array<i64: 2>, scalar_prefetch = 0 : i64, scratch_operands = 1 : i64, tpu.core_type = #tpu.core_type<tc>, window_params = [{transform_indices = @transform_0, window_bounds = array<i64: 4, 256>}, {transform_indices = @transform_1, window_bounds = array<i64: 256, 128>}, {pipeline_mode = #tpu.pipeline_mode<synchronous>, transform_indices = @transform_2, window_bounds = array<i64: 4, 256>}, {pipeline_mode = #tpu.pipeline_mode<synchronous>, transform_indices = @transform_3, window_bounds = array<i64: 128, 128>}, {pipeline_mode = #tpu.pipeline_mode<synchronous>, transform_indices = @transform_4, window_bounds = array<i64: 1, 128>}, {pipeline_mode = #tpu.pipeline_mode<synchronous>, transform_indices = @transform_5, window_bounds = array<i64: 256, 256>}, {pipeline_mode = #tpu.pipeline_mode<synchronous>, transform_indices = @transform_6, window_bounds = array<i64: 1, 256>}, {pipeline_mode = #tpu.pipeline_mode<synchronous>, transform_indices = @transform_7, window_bounds = array<i64: 256, 128>}, {pipeline_mode = #tpu.pipeline_mode<synchronous>, transform_indices = @transform_8, window_bounds = array<i64: 1, 128>}, {pipeline_mode = #tpu.pipeline_mode<synchronous>, transform_indices = @transform_9, window_bounds = array<i64: 128, 128>}, {pipeline_mode = #tpu.pipeline_mode<synchronous>, transform_indices = @transform_10, window_bounds = array<i64: 128, 128>}, {pipeline_mode = #tpu.pipeline_mode<synchronous>, transform_indices = @transform_11, window_bounds = array<i64: 1, 128>}, {pipeline_mode = #tpu.pipeline_mode<synchronous>, transform_indices = @transform_12, window_bounds = array<i64: 1, 128>}, {pipeline_mode = #tpu.pipeline_mode<synchronous>, transform_indices = @transform_13, window_bounds = array<i64: 1, 1>}, {pipeline_mode = #tpu.pipeline_mode<synchronous>, transform_indices = @transform_14, window_bounds = array<i64: 4, 128>}, {pipeline_mode = #tpu.pipeline_mode<synchronous>, transform_indices = @transform_15, window_bounds = array<i64: 4, 1>}]} {
    %c0_i32 = arith.constant 0 : i32
    %0 = arith.cmpi eq, %arg0, %c0_i32 : i32
    %1 = arith.extui %0 : i1 to i32
    %c0_i32_0 = arith.constant 0 : i32
    %2 = arith.cmpi ne, %1, %c0_i32_0 : i32
    scf.if %2 {
      %cst_9 = arith.constant 0.000000e+00 : f32
      %13 = vector.broadcast %cst_9 : f32 to vector<4x128xf32>
      %c0_10 = arith.constant 0 : index
      %c0_11 = arith.constant 0 : index
      %14 = vector.load %arg17[%c0_10, %c0_11] : memref<4x128xf32, #tpu.memory_space<vmem>>, vector<4x128xf32>
      tpu.vector_store %arg17[%c0_10, %c0_11], %13 {strides = array<i32>} : memref<4x128xf32, #tpu.memory_space<vmem>>, vector<4x128xf32>,
    } else {
    }
    %c0 = arith.constant 0 : index
    %c0_1 = arith.constant 0 : index
    %3 = vector.load %arg1[%c0, %c0_1] : memref<4x256xbf16, #tpu.memory_space<vmem>>, vector<4x256xbf16>
    %4 = arith.extf %3 : vector<4x256xbf16> to vector<4x256xf32>
    %c0_2 = arith.constant 0 : index
    %c0_3 = arith.constant 0 : index
    %5 = vector.load %arg17[%c0_2, %c0_3] : memref<4x128xf32, #tpu.memory_space<vmem>>, vector<4x128xf32>
    %c0_4 = arith.constant 0 : index
    %c0_5 = arith.constant 0 : index
    %6 = vector.load %arg2[%c0_4, %c0_5] : memref<256x128xf32, #tpu.memory_space<vmem>>, vector<256x128xf32>
    %cst = arith.constant dense<0.000000e+00> : vector<4x128xf32>
    %7 = tpu.matmul %4, %6, %cst {dimension_numbers = #tpu.dot_dimension_numbers<[1], [0], [0], [1], [0, 0, 1, 1], [], []>} : vector<4x256xf32>, vector<256x128xf32>, vector<4x128xf32> -> vector<4x128xf32>
    %8 = arith.addf %5, %7 : vector<4x128xf32>
    %c0_6 = arith.constant 0 : index
    %c0_7 = arith.constant 0 : index
    %9 = vector.load %arg17[%c0_6, %c0_7] : memref<4x128xf32, #tpu.memory_space<vmem>>, vector<4x128xf32>
    tpu.vector_store %arg17[%c0_6, %c0_7], %8 {strides = array<i32>} : memref<4x128xf32, #tpu.memory_space<vmem>>, vector<4x128xf32>,
    %c1_i32 = arith.constant 1 : i32
    %10 = arith.cmpi eq, %arg0, %c1_i32 : i32
    %11 = arith.extui %10 : i1 to i32
    %c0_i32_8 = arith.constant 0 : i32
    %12 = arith.cmpi ne, %11, %c0_i32_8 : i32
    scf.if %12 {
      %c0_9 = arith.constant 0 : index
      %c0_10 = arith.constant 0 : index
      %13 = vector.load %arg17[%c0_9, %c0_10] : memref<4x128xf32, #tpu.memory_space<vmem>>, vector<4x128xf32>
      %c0_11 = arith.constant 0 : index
      %c0_12 = arith.constant 0 : index
      %14 = vector.load %arg4[%c0_11, %c0_12] : memref<128x128xf32, #tpu.memory_space<vmem>>, vector<128x128xf32>
      %cst_13 = arith.constant dense<0.000000e+00> : vector<4x128xf32>
      %15 = tpu.matmul %13, %14, %cst_13 {dimension_numbers = #tpu.dot_dimension_numbers<[1], [0], [0], [1], [0, 0, 1, 1], [], []>} : vector<4x128xf32>, vector<128x128xf32>, vector<4x128xf32> -> vector<4x128xf32>
      %c0_14 = arith.constant 0 : index
      %c0_15 = arith.constant 0 : index
      %16 = vector.load %arg5[%c0_14, %c0_15] : memref<1x128xf32, #tpu.memory_space<vmem>>, vector<1x128xf32>
      %17 = vector.broadcast %16 : vector<1x128xf32> to vector<4x128xf32>
      %18 = arith.addf %15, %17 : vector<4x128xf32>
      %cst_16 = arith.constant 0.000000e+00 : f32
      %19 = vector.broadcast %cst_16 : f32 to vector<4x128xf32>
      %20 = arith.maximumf %18, %19 : vector<4x128xf32>
      %c0_17 = arith.constant 0 : index
      %c0_18 = arith.constant 0 : index
      %21 = vector.load %arg15[%c0_17, %c0_18] : memref<4x128xf32, #tpu.memory_space<vmem>>, vector<4x128xf32>
      tpu.vector_store %arg15[%c0_17, %c0_18], %20 {strides = array<i32>} : memref<4x128xf32, #tpu.memory_space<vmem>>, vector<4x128xf32>,
      %c0_19 = arith.constant 0 : index
      %c0_20 = arith.constant 0 : index
      %22 = vector.load %arg3[%c0_19, %c0_20] : memref<4x256xf32, #tpu.memory_space<vmem>>, vector<4x256xf32>
      %cst_21 = arith.constant dense<0.000000e+00> : vector<256xf32>
      %23 = vector.multi_reduction <add>, %22, %cst_21 [0] : vector<4x256xf32> to vector<256xf32>
      %24 = vector.shape_cast %23 : vector<256xf32> to vector<1x256xf32>
      %cst_22 = arith.constant 4.000000e+00 : f32
      %25 = vector.broadcast %cst_22 : f32 to vector<1x256xf32>
      %26 = arith.divf %24, %25 : vector<1x256xf32>
      %27 = arith.mulf %22, %22 : vector<4x256xf32>
      %cst_23 = arith.constant dense<0.000000e+00> : vector<256xf32>
      %28 = vector.multi_reduction <add>, %27, %cst_23 [0] : vector<4x256xf32> to vector<256xf32>
      %29 = vector.shape_cast %28 : vector<256xf32> to vector<1x256xf32>
      %cst_24 = arith.constant 4.000000e+00 : f32
      %30 = vector.broadcast %cst_24 : f32 to vector<1x256xf32>
      %31 = arith.divf %29, %30 : vector<1x256xf32>
      %32 = arith.mulf %26, %26 : vector<1x256xf32>
      %33 = arith.subf %31, %32 : vector<1x256xf32>
      %cst_25 = arith.constant 0.000000e+00 : f32
      %34 = vector.broadcast %cst_25 : f32 to vector<1x256xf32>
      %35 = arith.maximumf %33, %34 : vector<1x256xf32>
      %36 = vector.broadcast %26 : vector<1x256xf32> to vector<4x256xf32>
      %37 = arith.subf %22, %36 : vector<4x256xf32>
      %cst_26 = arith.constant 9.99999974E-6 : f32
      %38 = vector.broadcast %cst_26 : f32 to vector<1x256xf32>
      %39 = arith.addf %35, %38 : vector<1x256xf32>
      %40 = math.rsqrt %39 : vector<1x256xf32>
      %41 = vector.broadcast %40 : vector<1x256xf32> to vector<4x256xf32>
      %42 = arith.mulf %37, %41 : vector<4x256xf32>
      %c0_27 = arith.constant 0 : index
      %c0_28 = arith.constant 0 : index
      %43 = vector.load %arg6[%c0_27, %c0_28] : memref<256x256xf32, #tpu.memory_space<vmem>>, vector<256x256xf32>
      %cst_29 = arith.constant dense<0.000000e+00> : vector<4x256xf32>
      %44 = tpu.matmul %42, %43, %cst_29 {dimension_numbers = #tpu.dot_dimension_numbers<[1], [0], [0], [1], [0, 0, 1, 1], [], []>} : vector<4x256xf32>, vector<256x256xf32>, vector<4x256xf32> -> vector<4x256xf32>
      %c0_30 = arith.constant 0 : index
      %c0_31 = arith.constant 0 : index
      %45 = vector.load %arg7[%c0_30, %c0_31] : memref<1x256xf32, #tpu.memory_space<vmem>>, vector<1x256xf32>
      %46 = vector.broadcast %45 : vector<1x256xf32> to vector<4x256xf32>
      %47 = arith.addf %44, %46 : vector<4x256xf32>
      %c0_32 = arith.constant 0 : index
      %c0_33 = arith.constant 0 : index
      %48 = vector.load %arg8[%c0_32, %c0_33] : memref<256x128xf32, #tpu.memory_space<vmem>>, vector<256x128xf32>
      %cst_34 = arith.constant dense<0.000000e+00> : vector<4x128xf32>
      %49 = tpu.matmul %47, %48, %cst_34 {dimension_numbers = #tpu.dot_dimension_numbers<[1], [0], [0], [1], [0, 0, 1, 1], [], []>} : vector<4x256xf32>, vector<256x128xf32>, vector<4x128xf32> -> vector<4x128xf32>
      %c0_35 = arith.constant 0 : index
      %c0_36 = arith.constant 0 : index
      %50 = vector.load %arg9[%c0_35, %c0_36] : memref<1x128xf32, #tpu.memory_space<vmem>>, vector<1x128xf32>
      %51 = vector.broadcast %50 : vector<1x128xf32> to vector<4x128xf32>
      %52 = arith.addf %49, %51 : vector<4x128xf32>
      %cst_37 = arith.constant dense<0xFF800000> : vector<4xf32>
      %53 = vector.multi_reduction <maximumf>, %52, %cst_37 [1] : vector<4x128xf32> to vector<4xf32>
      %54 = vector.shape_cast %53 : vector<4xf32> to vector<4x1xf32>
      %55 = vector.broadcast %54 : vector<4x1xf32> to vector<4x128xf32>
      %56 = arith.subf %52, %55 : vector<4x128xf32>
      %57 = math.exp %56 : vector<4x128xf32>
      %cst_38 = arith.constant dense<0.000000e+00> : vector<4xf32>
      %58 = vector.multi_reduction <add>, %57, %cst_38 [1] : vector<4x128xf32> to vector<4xf32>
      %59 = vector.shape_cast %58 : vector<4xf32> to vector<4x1xf32>
      %60 = tpu.reciprocal %59 {approx = true} : vector<4x1xf32> -> vector<4x1xf32>
      %61 = vector.broadcast %60 : vector<4x1xf32> to vector<4x128xf32>
      %62 = arith.mulf %57, %61 : vector<4x128xf32>
      %c0_39 = arith.constant 0 : index
      %c0_40 = arith.constant 0 : index
      %63 = vector.load %arg10[%c0_39, %c0_40] : memref<128x128xf32, #tpu.memory_space<vmem>>, vector<128x128xf32>
      %cst_41 = arith.constant dense<0.000000e+00> : vector<4x128xf32>
      %64 = tpu.matmul %20, %63, %cst_41 {dimension_numbers = #tpu.dot_dimension_numbers<[1], [0], [0], [1], [0, 0, 1, 1], [], []>} : vector<4x128xf32>, vector<128x128xf32>, vector<4x128xf32> -> vector<4x128xf32>
      %c0_42 = arith.constant 0 : index
      %c0_43 = arith.constant 0 : index
      %65 = vector.load %arg11[%c0_42, %c0_43] : memref<128x128xf32, #tpu.memory_space<vmem>>, vector<128x128xf32>
      %cst_44 = arith.constant dense<0.000000e+00> : vector<4x128xf32>
      %66 = tpu.matmul %62, %65, %cst_44 {dimension_numbers = #tpu.dot_dimension_numbers<[1], [0], [0], [1], [0, 0, 1, 1], [], []>} : vector<4x128xf32>, vector<128x128xf32>, vector<4x128xf32> -> vector<4x128xf32>
      %67 = arith.addf %64, %66 : vector<4x128xf32>
      %c0_45 = arith.constant 0 : index
      %c0_46 = arith.constant 0 : index
      %68 = vector.load %arg12[%c0_45, %c0_46] : memref<1x128xf32, #tpu.memory_space<vmem>>, vector<1x128xf32>
      %69 = vector.broadcast %68 : vector<1x128xf32> to vector<4x128xf32>
      %70 = arith.addf %67, %69 : vector<4x128xf32>
      %cst_47 = arith.constant 0.000000e+00 : f32
      %71 = vector.broadcast %cst_47 : f32 to vector<4x128xf32>
      %72 = arith.maximumf %70, %71 : vector<4x128xf32>
      %c0_48 = arith.constant 0 : index
      %c0_49 = arith.constant 0 : index
      %73 = vector.load %arg13[%c0_48, %c0_49] : memref<1x128xf32, #tpu.memory_space<vmem>>, vector<1x128xf32>
      %74 = vector.broadcast %73 : vector<1x128xf32> to vector<4x128xf32>
      %75 = arith.mulf %72, %74 : vector<4x128xf32>
      %cst_50 = arith.constant dense<0.000000e+00> : vector<4xf32>
      %76 = vector.multi_reduction <add>, %75, %cst_50 [1] : vector<4x128xf32> to vector<4xf32>
      %77 = vector.shape_cast %76 : vector<4xf32> to vector<4x1xf32>
      %c0_51 = arith.constant 0 : index
      %c0_52 = arith.constant 0 : index
      %78 = vector.load %arg14[%c0_51, %c0_52] : memref<1x1xf32, #tpu.memory_space<vmem>>, vector<1x1xf32>
      %79 = vector.broadcast %78 : vector<1x1xf32> to vector<4x1xf32>
      %80 = arith.addf %77, %79 : vector<4x1xf32>
      %cst_53 = arith.constant 0.000000e+00 : f32
      %81 = vector.broadcast %cst_53 : f32 to vector<4x1xf32>
      %82 = arith.subf %81, %80 : vector<4x1xf32>
      %83 = math.exp %82 : vector<4x1xf32>
      %cst_54 = arith.constant 1.000000e+00 : f32
      %84 = vector.broadcast %cst_54 : f32 to vector<4x1xf32>
      %85 = arith.addf %84, %83 : vector<4x1xf32>
      %86 = tpu.reciprocal %85 {approx = true} : vector<4x1xf32> -> vector<4x1xf32>
      %c0_55 = arith.constant 0 : index
      %c0_56 = arith.constant 0 : index
      %87 = vector.load %arg16[%c0_55, %c0_56] : memref<4x1xf32, #tpu.memory_space<vmem>>, vector<4x1xf32>
      tpu.vector_store %arg16[%c0_55, %c0_56], %86 {strides = array<i32>} : memref<4x1xf32, #tpu.memory_space<vmem>>, vector<4x1xf32>,
    } else {
    }
    return
  }
  func.func @transform_0(%arg0: i32) -> (i32, i32) {
    %c0_i32 = arith.constant 0 : i32
    %c0_i32_0 = arith.constant 0 : i32
    return %c0_i32, %arg0 : i32, i32
  }
  func.func @transform_1(%arg0: i32) -> (i32, i32) {
    %c0_i32 = arith.constant 0 : i32
    %c0_i32_0 = arith.constant 0 : i32
    return %arg0, %c0_i32 : i32, i32
  }
  func.func @transform_2(%arg0: i32) -> (i32, i32) {
    %c0_i32 = arith.constant 0 : i32
    %c0_i32_0 = arith.constant 0 : i32
    %c0_i32_1 = arith.constant 0 : i32
    return %c0_i32, %c0_i32_0 : i32, i32
  }
  func.func @transform_3(%arg0: i32) -> (i32, i32) {
    %c0_i32 = arith.constant 0 : i32
    %c0_i32_0 = arith.constant 0 : i32
    %c0_i32_1 = arith.constant 0 : i32
    return %c0_i32, %c0_i32_0 : i32, i32
  }
  func.func @transform_4(%arg0: i32) -> (i32, i32) {
    %c0_i32 = arith.constant 0 : i32
    %c0_i32_0 = arith.constant 0 : i32
    %c0_i32_1 = arith.constant 0 : i32
    return %c0_i32, %c0_i32_0 : i32, i32
  }
  func.func @transform_5(%arg0: i32) -> (i32, i32) {
    %c0_i32 = arith.constant 0 : i32
    %c0_i32_0 = arith.constant 0 : i32
    %c0_i32_1 = arith.constant 0 : i32
    return %c0_i32, %c0_i32_0 : i32, i32
  }
  func.func @transform_6(%arg0: i32) -> (i32, i32) {
    %c0_i32 = arith.constant 0 : i32
    %c0_i32_0 = arith.constant 0 : i32
    %c0_i32_1 = arith.constant 0 : i32
    return %c0_i32, %c0_i32_0 : i32, i32
  }
  func.func @transform_7(%arg0: i32) -> (i32, i32) {
    %c0_i32 = arith.constant 0 : i32
    %c0_i32_0 = arith.constant 0 : i32
    %c0_i32_1 = arith.constant 0 : i32
    return %c0_i32, %c0_i32_0 : i32, i32
  }
  func.func @transform_8(%arg0: i32) -> (i32, i32) {
    %c0_i32 = arith.constant 0 : i32
    %c0_i32_0 = arith.constant 0 : i32
    %c0_i32_1 = arith.constant 0 : i32
    return %c0_i32, %c0_i32_0 : i32, i32
  }
  func.func @transform_9(%arg0: i32) -> (i32, i32) {
    %c0_i32 = arith.constant 0 : i32
    %c0_i32_0 = arith.constant 0 : i32
    %c0_i32_1 = arith.constant 0 : i32
    return %c0_i32, %c0_i32_0 : i32, i32
  }
  func.func @transform_10(%arg0: i32) -> (i32, i32) {
    %c0_i32 = arith.constant 0 : i32
    %c0_i32_0 = arith.constant 0 : i32
    %c0_i32_1 = arith.constant 0 : i32
    return %c0_i32, %c0_i32_0 : i32, i32
  }
  func.func @transform_11(%arg0: i32) -> (i32, i32) {
    %c0_i32 = arith.constant 0 : i32
    %c0_i32_0 = arith.constant 0 : i32
    %c0_i32_1 = arith.constant 0 : i32
    return %c0_i32, %c0_i32_0 : i32, i32
  }
  func.func @transform_12(%arg0: i32) -> (i32, i32) {
    %c0_i32 = arith.constant 0 : i32
    %c0_i32_0 = arith.constant 0 : i32
    %c0_i32_1 = arith.constant 0 : i32
    return %c0_i32, %c0_i32_0 : i32, i32
  }
  func.func @transform_13(%arg0: i32) -> (i32, i32) {
    %c0_i32 = arith.constant 0 : i32
    %c0_i32_0 = arith.constant 0 : i32
    %c0_i32_1 = arith.constant 0 : i32
    return %c0_i32, %c0_i32_0 : i32, i32
  }
  func.func @transform_14(%arg0: i32) -> (i32, i32) {
    %c0_i32 = arith.constant 0 : i32
    %c0_i32_0 = arith.constant 0 : i32
    %c0_i32_1 = arith.constant 0 : i32
    return %c0_i32, %c0_i32_0 : i32, i32
  }
  func.func @transform_15(%arg0: i32) -> (i32, i32) {
    %c0_i32 = arith.constant 0 : i32
    %c0_i32_0 = arith.constant 0 : i32
    %c0_i32_1 = arith.constant 0 : i32
    return %c0_i32, %c0_i32_0 : i32, i32
  }
}

</mosaic_0001>

<llo_original>
// kernel: gin_forward.8
$region0: #{gin_forward.8}
  #allocation0 [shape = 'u32[]', space=smem, size = 0x4, offset = 0x4, fixed_abs, tag = 'smem constant byte address 0x4 - core index']
  #allocation1 [shape = 'u32[144,128]{1,0:T(1,128)}', space=vmem, size = 0x12000, scoped, tag = 'internal scratch']
  %s0 = inlined_call_operand.vmem [shape: f32[512,128], index: 0, kind: input, shape index: {}]
  %s1 = inlined_call_operand.vmem [shape: f32[512,1], index: 1, kind: input, shape index: {}]
  %s2 = inlined_call_operand.vmem [shape: f32[512,128], index: 2, kind: output, shape index: {}]
  %s3 = sld [smem:[#allocation0]]
  $region18: #{gin_forward.8} parent=0
    _
  %s5 = ssub.s32 1, %s3
  %s6 = scalar_select 0, %s5, %s3
  // Predicated region
  $region2: #{gin_forward.8} parent=0 // pred_check
    _
  $region3: #{gin_forward.8} parent=0 // pred_check_branch
    %8 = sbr.rel (0) target = $region5
  $region4: #{gin_forward.8} parent=0 // pred_region
    _
  $region5: #{gin_forward.8} parent=0 // pred_fallthru
    _
  // Predicated region
  $region6: #{gin_forward.8} parent=0 // pred_check
    _
  $region7: #{gin_forward.8} parent=0 // pred_check_branch
    %10 = sbr.rel (0) target = $region9
  $region8: #{gin_forward.8} parent=0 // pred_region
    _
  $region9: #{gin_forward.8} parent=0 // pred_fallthru
    _
  %v11 = vld [vmem:[%s0] sm:$0xff]
  %v12 = vld [vmem:[%s0 + $0x8] sm:$0xff]
  %v13 = vld [vmem:[%s0 + $0x10] sm:$0xff]
  %v14 = vld [vmem:[%s0 + $0x18] sm:$0xff]
  %v15 = vld [vmem:[%s0 + $0x20] sm:$0xff]
  %v16 = vld [vmem:[%s0 + $0x28] sm:$0xff]
  %v17 = vld [vmem:[%s0 + $0x30] sm:$0xff]
  %v18 = vld [vmem:[%s0 + $0x38] sm:$0xff]
  %v19 = vld [vmem:[%s0 + $0x40] sm:$0xff]
  %v20 = vld [vmem:[%s0 + $0x48] sm:$0xff]
  %v21 = vld [vmem:[%s0 + $0x50] sm:$0xff]
  %v22 = vld [vmem:[%s0 + $0x58] sm:$0xff]
  %v23 = vld [vmem:[%s0 + $0x60] sm:$0xff]
  %v24 = vld [vmem:[%s0 + $0x68] sm:$0xff]
  %v25 = vld [vmem:[%s0 + $0x70] sm:$0xff]
  %v26 = vld [vmem:[%s0 + $0x78] sm:$0xff]
  %v27 = vld [vmem:[%s0 + $0x80] sm:$0xff]
  %v28 = vld [vmem:[%s0 + $0x88] sm:$0xff]
  %v29 = vld [vmem:[%s0 + $0x90] sm:$0xff]
  %v30 = vld [vmem:[%s0 + $0x98] sm:$0xff]
  %v31 = vld [vmem:[%s0 + $0xa0] sm:$0xff]
  %v32 = vld [vmem:[%s0 + $0xa8] sm:$0xff]
  %v33 = vld [vmem:[%s0 + $0xb0] sm:$0xff]
  %v34 = vld [vmem:[%s0 + $0xb8] sm:$0xff]
  %v35 = vld [vmem:[%s0 + $0xc0] sm:$0xff]
  %v36 = vld [vmem:[%s0 + $0xc8] sm:$0xff]
  %v37 = vld [vmem:[%s0 + $0xd0] sm:$0xff]
  %v38 = vld [vmem:[%s0 + $0xd8] sm:$0xff]
  %v39 = vld [vmem:[%s0 + $0xe0] sm:$0xff]
  %v40 = vld [vmem:[%s0 + $0xe8] sm:$0xff]
  %v41 = vld [vmem:[%s0 + $0xf0] sm:$0xff]
  %v42 = vld [vmem:[%s0 + $0xf8] sm:$0xff]
  %v43 = vld [vmem:[%s0 + $0x100] sm:$0xff]
  %v44 = vld [vmem:[%s0 + $0x108] sm:$0xff]
  %v45 = vld [vmem:[%s0 + $0x110] sm:$0xff]
  %v46 = vld [vmem:[%s0 + $0x118] sm:$0xff]
  %v47 = vld [vmem:[%s0 + $0x120] sm:$0xff]
  %v48 = vld [vmem:[%s0 + $0x128] sm:$0xff]
  %v49 = vld [vmem:[%s0 + $0x130] sm:$0xff]
  %v50 = vld [vmem:[%s0 + $0x138] sm:$0xff]
  %v51 = vld [vmem:[%s0 + $0x140] sm:$0xff]
  %v52 = vld [vmem:[%s0 + $0x148] sm:$0xff]
  %v53 = vld [vmem:[%s0 + $0x150] sm:$0xff]
  %v54 = vld [vmem:[%s0 + $0x158] sm:$0xff]
  %v55 = vld [vmem:[%s0 + $0x160] sm:$0xff]
  %v56 = vld [vmem:[%s0 + $0x168] sm:$0xff]
  %v57 = vld [vmem:[%s0 + $0x170] sm:$0xff]
  %v58 = vld [vmem:[%s0 + $0x178] sm:$0xff]
  %v59 = vld [vmem:[%s0 + $0x180] sm:$0xff]
  %v60 = vld [vmem:[%s0 + $0x188] sm:$0xff]
  %v61 = vld [vmem:[%s0 + $0x190] sm:$0xff]
  %v62 = vld [vmem:[%s0 + $0x198] sm:$0xff]
  %v63 = vld [vmem:[%s0 + $0x1a0] sm:$0xff]
  %v64 = vld [vmem:[%s0 + $0x1a8] sm:$0xff]
  %v65 = vld [vmem:[%s0 + $0x1b0] sm:$0xff]
  %v66 = vld [vmem:[%s0 + $0x1b8] sm:$0xff]
  %v67 = vld [vmem:[%s0 + $0x1c0] sm:$0xff]
  %v68 = vld [vmem:[%s0 + $0x1c8] sm:$0xff]
  %v69 = vld [vmem:[%s0 + $0x1d0] sm:$0xff]
  %v70 = vld [vmem:[%s0 + $0x1d8] sm:$0xff]
  %v71 = vld [vmem:[%s0 + $0x1e0] sm:$0xff]
  %v72 = vld [vmem:[%s0 + $0x1e8] sm:$0xff]
  %v73 = vld [vmem:[%s0 + $0x1f0] sm:$0xff]
  %v74 = vld [vmem:[%s0 + $0x1f8] sm:$0xff]
  %v75 = vld [vmem:[%s1] sm:$0xff]
  %v76 = vld [vmem:[%s1 + $0x8] sm:$0xff]
  %v77 = vld [vmem:[%s1 + $0x10] sm:$0xff]
  %v78 = vld [vmem:[%s1 + $0x18] sm:$0xff]
  %v79 = vld [vmem:[%s1 + $0x20] sm:$0xff]
  %v80 = vld [vmem:[%s1 + $0x28] sm:$0xff]
  %v81 = vld [vmem:[%s1 + $0x30] sm:$0xff]
  %v82 = vld [vmem:[%s1 + $0x38] sm:$0xff]
  %v83 = vld [vmem:[%s1 + $0x40] sm:$0xff]
  %v84 = vld [vmem:[%s1 + $0x48] sm:$0xff]
  %v85 = vld [vmem:[%s1 + $0x50] sm:$0xff]
  %v86 = vld [vmem:[%s1 + $0x58] sm:$0xff]
  %v87 = vld [vmem:[%s1 + $0x60] sm:$0xff]
  %v88 = vld [vmem:[%s1 + $0x68] sm:$0xff]
  %v89 = vld [vmem:[%s1 + $0x70] sm:$0xff]
  %v90 = vld [vmem:[%s1 + $0x78] sm:$0xff]
  %v91 = vld [vmem:[%s1 + $0x80] sm:$0xff]
  %v92 = vld [vmem:[%s1 + $0x88] sm:$0xff]
  %v93 = vld [vmem:[%s1 + $0x90] sm:$0xff]
  %v94 = vld [vmem:[%s1 + $0x98] sm:$0xff]
  %v95 = vld [vmem:[%s1 + $0xa0] sm:$0xff]
  %v96 = vld [vmem:[%s1 + $0xa8] sm:$0xff]
  %v97 = vld [vmem:[%s1 + $0xb0] sm:$0xff]
  %v98 = vld [vmem:[%s1 + $0xb8] sm:$0xff]
  %v99 = vld [vmem:[%s1 + $0xc0] sm:$0xff]
  %v100 = vld [vmem:[%s1 + $0xc8] sm:$0xff]
  %v101 = vld [vmem:[%s1 + $0xd0] sm:$0xff]
  %v102 = vld [vmem:[%s1 + $0xd8] sm:$0xff]
  %v103 = vld [vmem:[%s1 + $0xe0] sm:$0xff]
  %v104 = vld [vmem:[%s1 + $0xe8] sm:$0xff]
  %v105 = vld [vmem:[%s1 + $0xf0] sm:$0xff]
  %v106 = vld [vmem:[%s1 + $0xf8] sm:$0xff]
  %v107 = vld [vmem:[%s1 + $0x100] sm:$0xff]
  %v108 = vld [vmem:[%s1 + $0x108] sm:$0xff]
  %v109 = vld [vmem:[%s1 + $0x110] sm:$0xff]
  %v110 = vld [vmem:[%s1 + $0x118] sm:$0xff]
  %v111 = vld [vmem:[%s1 + $0x120] sm:$0xff]
  %v112 = vld [vmem:[%s1 + $0x128] sm:$0xff]
  %v113 = vld [vmem:[%s1 + $0x130] sm:$0xff]
  %v114 = vld [vmem:[%s1 + $0x138] sm:$0xff]
  %v115 = vld [vmem:[%s1 + $0x140] sm:$0xff]
  %v116 = vld [vmem:[%s1 + $0x148] sm:$0xff]
  %v117 = vld [vmem:[%s1 + $0x150] sm:$0xff]
  %v118 = vld [vmem:[%s1 + $0x158] sm:$0xff]
  %v119 = vld [vmem:[%s1 + $0x160] sm:$0xff]
  %v120 = vld [vmem:[%s1 + $0x168] sm:$0xff]
  %v121 = vld [vmem:[%s1 + $0x170] sm:$0xff]
  %v122 = vld [vmem:[%s1 + $0x178] sm:$0xff]
  %v123 = vld [vmem:[%s1 + $0x180] sm:$0xff]
  %v124 = vld [vmem:[%s1 + $0x188] sm:$0xff]
  %v125 = vld [vmem:[%s1 + $0x190] sm:$0xff]
  %v126 = vld [vmem:[%s1 + $0x198] sm:$0xff]
  %v127 = vld [vmem:[%s1 + $0x1a0] sm:$0xff]
  %v128 = vld [vmem:[%s1 + $0x1a8] sm:$0xff]
  %v129 = vld [vmem:[%s1 + $0x1b0] sm:$0xff]
  %v130 = vld [vmem:[%s1 + $0x1b8] sm:$0xff]
  %v131 = vld [vmem:[%s1 + $0x1c0] sm:$0xff]
  %v132 = vld [vmem:[%s1 + $0x1c8] sm:$0xff]
  %v133 = vld [vmem:[%s1 + $0x1d0] sm:$0xff]
  %v134 = vld [vmem:[%s1 + $0x1d8] sm:$0xff]
  %v135 = vld [vmem:[%s1 + $0x1e0] sm:$0xff]
  %v136 = vld [vmem:[%s1 + $0x1e8] sm:$0xff]
  %v137 = vld [vmem:[%s1 + $0x1f0] sm:$0xff]
  %v138 = vld [vmem:[%s1 + $0x1f8] sm:$0xff]
  %140 = vset.pattern.permute.xlu0 0
  %141 = vperm.xlu0 %140, %v75
  %v142 = vpop.permute.xlu0 %141
  %145 = vset.pattern.permute.xlu0 0
  %146 = vperm.xlu0 %145, %v76
  %v147 = vpop.permute.xlu0 %146
  %150 = vset.pattern.permute.xlu0 0
  %151 = vperm.xlu0 %150, %v77
  %v152 = vpop.permute.xlu0 %151
  %155 = vset.pattern.permute.xlu0 0
  %156 = vperm.xlu0 %155, %v78
  %v157 = vpop.permute.xlu0 %156
  %160 = vset.pattern.permute.xlu0 0
  %161 = vperm.xlu0 %160, %v79
  %v162 = vpop.permute.xlu0 %161
  %165 = vset.pattern.permute.xlu0 0
  %166 = vperm.xlu0 %165, %v80
  %v167 = vpop.permute.xlu0 %166
  %170 = vset.pattern.permute.xlu0 0
  %171 = vperm.xlu0 %170, %v81
  %v172 = vpop.permute.xlu0 %171
  %175 = vset.pattern.permute.xlu0 0
  %176 = vperm.xlu0 %175, %v82
  %v177 = vpop.permute.xlu0 %176
  %180 = vset.pattern.permute.xlu0 0
  %181 = vperm.xlu0 %180, %v83
  %v182 = vpop.permute.xlu0 %181
  %185 = vset.pattern.permute.xlu0 0
  %186 = vperm.xlu0 %185, %v84
  %v187 = vpop.permute.xlu0 %186
  %190 = vset.pattern.permute.xlu0 0
  %191 = vperm.xlu0 %190, %v85
  %v192 = vpop.permute.xlu0 %191
  %195 = vset.pattern.permute.xlu0 0
  %196 = vperm.xlu0 %195, %v86
  %v197 = vpop.permute.xlu0 %196
  %200 = vset.pattern.permute.xlu0 0
  %201 = vperm.xlu0 %200, %v87
  %v202 = vpop.permute.xlu0 %201
  %205 = vset.pattern.permute.xlu0 0
  %206 = vperm.xlu0 %205, %v88
  %v207 = vpop.permute.xlu0 %206
  %210 = vset.pattern.permute.xlu0 0
  %211 = vperm.xlu0 %210, %v89
  %v212 = vpop.permute.xlu0 %211
  %215 = vset.pattern.permute.xlu0 0
  %216 = vperm.xlu0 %215, %v90
  %v217 = vpop.permute.xlu0 %216
  %220 = vset.pattern.permute.xlu0 0
  %221 = vperm.xlu0 %220, %v91
  %v222 = vpop.permute.xlu0 %221
  %225 = vset.pattern.permute.xlu0 0
  %226 = vperm.xlu0 %225, %v92
  %v227 = vpop.permute.xlu0 %226
  %230 = vset.pattern.permute.xlu0 0
  %231 = vperm.xlu0 %230, %v93
  %v232 = vpop.permute.xlu0 %231
  %235 = vset.pattern.permute.xlu0 0
  %236 = vperm.xlu0 %235, %v94
  %v237 = vpop.permute.xlu0 %236
  %240 = vset.pattern.permute.xlu0 0
  %241 = vperm.xlu0 %240, %v95
  %v242 = vpop.permute.xlu0 %241
  %245 = vset.pattern.permute.xlu0 0
  %246 = vperm.xlu0 %245, %v96
  %v247 = vpop.permute.xlu0 %246
  %250 = vset.pattern.permute.xlu0 0
  %251 = vperm.xlu0 %250, %v97
  %v252 = vpop.permute.xlu0 %251
  %255 = vset.pattern.permute.xlu0 0
  %256 = vperm.xlu0 %255, %v98
  %v257 = vpop.permute.xlu0 %256
  %260 = vset.pattern.permute.xlu0 0
  %261 = vperm.xlu0 %260, %v99
  %v262 = vpop.permute.xlu0 %261
  %265 = vset.pattern.permute.xlu0 0
  %266 = vperm.xlu0 %265, %v100
  %v267 = vpop.permute.xlu0 %266
  %270 = vset.pattern.permute.xlu0 0
  %271 = vperm.xlu0 %270, %v101
  %v272 = vpop.permute.xlu0 %271
  %275 = vset.pattern.permute.xlu0 0
  %276 = vperm.xlu0 %275, %v102
  %v277 = vpop.permute.xlu0 %276
  %280 = vset.pattern.permute.xlu0 0
  %281 = vperm.xlu0 %280, %v103
  %v282 = vpop.permute.xlu0 %281
  %285 = vset.pattern.permute.xlu0 0
  %286 = vperm.xlu0 %285, %v104
  %v287 = vpop.permute.xlu0 %286
  %290 = vset.pattern.permute.xlu0 0
  %291 = vperm.xlu0 %290, %v105
  %v292 = vpop.permute.xlu0 %291
  %295 = vset.pattern.permute.xlu0 0
  %296 = vperm.xlu0 %295, %v106
  %v297 = vpop.permute.xlu0 %296
  %300 = vset.pattern.permute.xlu0 0
  %301 = vperm.xlu0 %300, %v107
  %v302 = vpop.permute.xlu0 %301
  %305 = vset.pattern.permute.xlu0 0
  %306 = vperm.xlu0 %305, %v108
  %v307 = vpop.permute.xlu0 %306
  %310 = vset.pattern.permute.xlu0 0
  %311 = vperm.xlu0 %310, %v109
  %v312 = vpop.permute.xlu0 %311
  %315 = vset.pattern.permute.xlu0 0
  %316 = vperm.xlu0 %315, %v110
  %v317 = vpop.permute.xlu0 %316
  %320 = vset.pattern.permute.xlu0 0
  %321 = vperm.xlu0 %320, %v111
  %v322 = vpop.permute.xlu0 %321
  %325 = vset.pattern.permute.xlu0 0
  %326 = vperm.xlu0 %325, %v112
  %v327 = vpop.permute.xlu0 %326
  %330 = vset.pattern.permute.xlu0 0
  %331 = vperm.xlu0 %330, %v113
  %v332 = vpop.permute.xlu0 %331
  %335 = vset.pattern.permute.xlu0 0
  %336 = vperm.xlu0 %335, %v114
  %v337 = vpop.permute.xlu0 %336
  %340 = vset.pattern.permute.xlu0 0
  %341 = vperm.xlu0 %340, %v115
  %v342 = vpop.permute.xlu0 %341
  %345 = vset.pattern.permute.xlu0 0
  %346 = vperm.xlu0 %345, %v116
  %v347 = vpop.permute.xlu0 %346
  %350 = vset.pattern.permute.xlu0 0
  %351 = vperm.xlu0 %350, %v117
  %v352 = vpop.permute.xlu0 %351
  %355 = vset.pattern.permute.xlu0 0
  %356 = vperm.xlu0 %355, %v118
  %v357 = vpop.permute.xlu0 %356
  %360 = vset.pattern.permute.xlu0 0
  %361 = vperm.xlu0 %360, %v119
  %v362 = vpop.permute.xlu0 %361
  %365 = vset.pattern.permute.xlu0 0
  %366 = vperm.xlu0 %365, %v120
  %v367 = vpop.permute.xlu0 %366
  %370 = vset.pattern.permute.xlu0 0
  %371 = vperm.xlu0 %370, %v121
  %v372 = vpop.permute.xlu0 %371
  %375 = vset.pattern.permute.xlu0 0
  %376 = vperm.xlu0 %375, %v122
  %v377 = vpop.permute.xlu0 %376
  %380 = vset.pattern.permute.xlu0 0
  %381 = vperm.xlu0 %380, %v123
  %v382 = vpop.permute.xlu0 %381
  %385 = vset.pattern.permute.xlu0 0
  %386 = vperm.xlu0 %385, %v124
  %v387 = vpop.permute.xlu0 %386
  %390 = vset.pattern.permute.xlu0 0
  %391 = vperm.xlu0 %390, %v125
  %v392 = vpop.permute.xlu0 %391
  %395 = vset.pattern.permute.xlu0 0
  %396 = vperm.xlu0 %395, %v126
  %v397 = vpop.permute.xlu0 %396
  %400 = vset.pattern.permute.xlu0 0
  %401 = vperm.xlu0 %400, %v127
  %v402 = vpop.permute.xlu0 %401
  %405 = vset.pattern.permute.xlu0 0
  %406 = vperm.xlu0 %405, %v128
  %v407 = vpop.permute.xlu0 %406
  %410 = vset.pattern.permute.xlu0 0
  %411 = vperm.xlu0 %410, %v129
  %v412 = vpop.permute.xlu0 %411
  %415 = vset.pattern.permute.xlu0 0
  %416 = vperm.xlu0 %415, %v130
  %v417 = vpop.permute.xlu0 %416
  %420 = vset.pattern.permute.xlu0 0
  %421 = vperm.xlu0 %420, %v131
  %v422 = vpop.permute.xlu0 %421
  %425 = vset.pattern.permute.xlu0 0
  %426 = vperm.xlu0 %425, %v132
  %v427 = vpop.permute.xlu0 %426
  %430 = vset.pattern.permute.xlu0 0
  %431 = vperm.xlu0 %430, %v133
  %v432 = vpop.permute.xlu0 %431
  %435 = vset.pattern.permute.xlu0 0
  %436 = vperm.xlu0 %435, %v134
  %v437 = vpop.permute.xlu0 %436
  %440 = vset.pattern.permute.xlu0 0
  %441 = vperm.xlu0 %440, %v135
  %v442 = vpop.permute.xlu0 %441
  %445 = vset.pattern.permute.xlu0 0
  %446 = vperm.xlu0 %445, %v136
  %v447 = vpop.permute.xlu0 %446
  %450 = vset.pattern.permute.xlu0 0
  %451 = vperm.xlu0 %450, %v137
  %v452 = vpop.permute.xlu0 %451
  %455 = vset.pattern.permute.xlu0 0
  %456 = vperm.xlu0 %455, %v138
  %v457 = vpop.permute.xlu0 %456
  %v459 = vmul.f32 %v11, %v142
  %v460 = vmul.f32 %v12, %v147
  %v461 = vmul.f32 %v13, %v152
  %v462 = vmul.f32 %v14, %v157
  %v463 = vmul.f32 %v15, %v162
  %v464 = vmul.f32 %v16, %v167
  %v465 = vmul.f32 %v17, %v172
  %v466 = vmul.f32 %v18, %v177
  %v467 = vmul.f32 %v19, %v182
  %v468 = vmul.f32 %v20, %v187
  %v469 = vmul.f32 %v21, %v192
  %v470 = vmul.f32 %v22, %v197
  %v471 = vmul.f32 %v23, %v202
  %v472 = vmul.f32 %v24, %v207
  %v473 = vmul.f32 %v25, %v212
  %v474 = vmul.f32 %v26, %v217
  %v475 = vmul.f32 %v27, %v222
  %v476 = vmul.f32 %v28, %v227
  %v477 = vmul.f32 %v29, %v232
  %v478 = vmul.f32 %v30, %v237
  %v479 = vmul.f32 %v31, %v242
  %v480 = vmul.f32 %v32, %v247
  %v481 = vmul.f32 %v33, %v252
  %v482 = vmul.f32 %v34, %v257
  %v483 = vmul.f32 %v35, %v262
  %v484 = vmul.f32 %v36, %v267
  %v485 = vmul.f32 %v37, %v272
  %v486 = vmul.f32 %v38, %v277
  %v487 = vmul.f32 %v39, %v282
  %v488 = vmul.f32 %v40, %v287
  %v489 = vmul.f32 %v41, %v292
  %v490 = vmul.f32 %v42, %v297
  %v491 = vmul.f32 %v43, %v302
  %v492 = vmul.f32 %v44, %v307
  %v493 = vmul.f32 %v45, %v312
  %v494 = vmul.f32 %v46, %v317
  %v495 = vmul.f32 %v47, %v322
  %v496 = vmul.f32 %v48, %v327
  %v497 = vmul.f32 %v49, %v332
  %v498 = vmul.f32 %v50, %v337
  %v499 = vmul.f32 %v51, %v342
  %v500 = vmul.f32 %v52, %v347
  %v501 = vmul.f32 %v53, %v352
  %v502 = vmul.f32 %v54, %v357
  %v503 = vmul.f32 %v55, %v362
  %v504 = vmul.f32 %v56, %v367
  %v505 = vmul.f32 %v57, %v372
  %v506 = vmul.f32 %v58, %v377
  %v507 = vmul.f32 %v59, %v382
  %v508 = vmul.f32 %v60, %v387
  %v509 = vmul.f32 %v61, %v392
  %v510 = vmul.f32 %v62, %v397
  %v511 = vmul.f32 %v63, %v402
  %v512 = vmul.f32 %v64, %v407
  %v513 = vmul.f32 %v65, %v412
  %v514 = vmul.f32 %v66, %v417
  %v515 = vmul.f32 %v67, %v422
  %v516 = vmul.f32 %v68, %v427
  %v517 = vmul.f32 %v69, %v432
  %v518 = vmul.f32 %v70, %v437
  %v519 = vmul.f32 %v71, %v442
  %v520 = vmul.f32 %v72, %v447
  %v521 = vmul.f32 %v73, %v452
  %v522 = vmul.f32 %v74, %v457
  %v523 = vadd.f32 %v459, %v460
  %v524 = vadd.f32 %v523, %v461
  %v525 = vadd.f32 %v524, %v462
  %v526 = vadd.f32 %v525, %v463
  %v527 = vadd.f32 %v526, %v464
  %v528 = vadd.f32 %v527, %v465
  %v529 = vadd.f32 %v528, %v466
  %v530 = vadd.f32 %v529, %v467
  %v531 = vadd.f32 %v530, %v468
  %v532 = vadd.f32 %v531, %v469
  %v533 = vadd.f32 %v532, %v470
  %v534 = vadd.f32 %v533, %v471
  %v535 = vadd.f32 %v534, %v472
  %v536 = vadd.f32 %v535, %v473
  %v537 = vadd.f32 %v536, %v474
  %v538 = vadd.f32 %v537, %v475
  %v539 = vadd.f32 %v538, %v476
  %v540 = vadd.f32 %v539, %v477
  %v541 = vadd.f32 %v540, %v478
  %v542 = vadd.f32 %v541, %v479
  %v543 = vadd.f32 %v542, %v480
  %v544 = vadd.f32 %v543, %v481
  %v545 = vadd.f32 %v544, %v482
  %v546 = vadd.f32 %v545, %v483
  %v547 = vadd.f32 %v546, %v484
  %v548 = vadd.f32 %v547, %v485
  %v549 = vadd.f32 %v548, %v486
  %v550 = vadd.f32 %v549, %v487
  %v551 = vadd.f32 %v550, %v488
  %v552 = vadd.f32 %v551, %v489
  %v553 = vadd.f32 %v552, %v490
  %v554 = vadd.f32 %v553, %v491
  %v555 = vadd.f32 %v554, %v492
  %v556 = vadd.f32 %v555, %v493
  %v557 = vadd.f32 %v556, %v494
  %v558 = vadd.f32 %v557, %v495
  %v559 = vadd.f32 %v558, %v496
  %v560 = vadd.f32 %v559, %v497
  %v561 = vadd.f32 %v560, %v498
  %v562 = vadd.f32 %v561, %v499
  %v563 = vadd.f32 %v562, %v500
  %v564 = vadd.f32 %v563, %v501
  %v565 = vadd.f32 %v564, %v502
  %v566 = vadd.f32 %v565, %v503
  %v567 = vadd.f32 %v566, %v504
  %v568 = vadd.f32 %v567, %v505
  %v569 = vadd.f32 %v568, %v506
  %v570 = vadd.f32 %v569, %v507
  %v571 = vadd.f32 %v570, %v508
  %v572 = vadd.f32 %v571, %v509
  %v573 = vadd.f32 %v572, %v510
  %v574 = vadd.f32 %v573, %v511
  %v575 = vadd.f32 %v574, %v512
  %v576 = vadd.f32 %v575, %v513
  %v577 = vadd.f32 %v576, %v514
  %v578 = vadd.f32 %v577, %v515
  %v579 = vadd.f32 %v578, %v516
  %v580 = vadd.f32 %v579, %v517
  %v581 = vadd.f32 %v580, %v518
  %v582 = vadd.f32 %v581, %v519
  %v583 = vadd.f32 %v582, %v520
  %v584 = vadd.f32 %v583, %v521
  %v585 = vadd.f32 %v584, %v522
  %v586 = vrot.slane %v585, 4
  %v587 = vadd.f32 %v585, %v586
  %v588 = vrot.slane %v587, 2
  %v589 = vadd.f32 %v587, %v588
  %v590 = vrot.slane %v589, 1
  %v591 = vadd.f32 %v589, %v590
  %v592 = vmul.f32 %v11, %v11
  %v593 = vmul.f32 %v12, %v12
  %v594 = vmul.f32 %v13, %v13
  %v595 = vmul.f32 %v14, %v14
  %v596 = vmul.f32 %v15, %v15
  %v597 = vmul.f32 %v16, %v16
  %v598 = vmul.f32 %v17, %v17
  %v599 = vmul.f32 %v18, %v18
  %v600 = vmul.f32 %v19, %v19
  %v601 = vmul.f32 %v20, %v20
  %v602 = vmul.f32 %v21, %v21
  %v603 = vmul.f32 %v22, %v22
  %v604 = vmul.f32 %v23, %v23
  %v605 = vmul.f32 %v24, %v24
  %v606 = vmul.f32 %v25, %v25
  %v607 = vmul.f32 %v26, %v26
  %v608 = vmul.f32 %v27, %v27
  %v609 = vmul.f32 %v28, %v28
  %v610 = vmul.f32 %v29, %v29
  %v611 = vmul.f32 %v30, %v30
  %v612 = vmul.f32 %v31, %v31
  %v613 = vmul.f32 %v32, %v32
  %v614 = vmul.f32 %v33, %v33
  %v615 = vmul.f32 %v34, %v34
  %v616 = vmul.f32 %v35, %v35
  %v617 = vmul.f32 %v36, %v36
  %v618 = vmul.f32 %v37, %v37
  %v619 = vmul.f32 %v38, %v38
  %v620 = vmul.f32 %v39, %v39
  %v621 = vmul.f32 %v40, %v40
  %v622 = vmul.f32 %v41, %v41
  %v623 = vmul.f32 %v42, %v42
  %v624 = vmul.f32 %v43, %v43
  %v625 = vmul.f32 %v44, %v44
  %v626 = vmul.f32 %v45, %v45
  %v627 = vmul.f32 %v46, %v46
  %v628 = vmul.f32 %v47, %v47
  %v629 = vmul.f32 %v48, %v48
  %v630 = vmul.f32 %v49, %v49
  %v631 = vmul.f32 %v50, %v50
  %v632 = vmul.f32 %v51, %v51
  %v633 = vmul.f32 %v52, %v52
  %v634 = vmul.f32 %v53, %v53
  %v635 = vmul.f32 %v54, %v54
  %v636 = vmul.f32 %v55, %v55
  %v637 = vmul.f32 %v56, %v56
  %v638 = vmul.f32 %v57, %v57
  %v639 = vmul.f32 %v58, %v58
  %v640 = vmul.f32 %v59, %v59
  %v641 = vmul.f32 %v60, %v60
  %v642 = vmul.f32 %v61, %v61
  %v643 = vmul.f32 %v62, %v62
  %v644 = vmul.f32 %v63, %v63
  %v645 = vmul.f32 %v64, %v64
  %v646 = vmul.f32 %v65, %v65
  %v647 = vmul.f32 %v66, %v66
  %v648 = vmul.f32 %v67, %v67
  %v649 = vmul.f32 %v68, %v68
  %v650 = vmul.f32 %v69, %v69
  %v651 = vmul.f32 %v70, %v70
  %v652 = vmul.f32 %v71, %v71
  %v653 = vmul.f32 %v72, %v72
  %v654 = vmul.f32 %v73, %v73
  %v655 = vmul.f32 %v74, %v74
  %v656 = vmul.f32 %v592, %v142
  %v657 = vmul.f32 %v593, %v147
  %v658 = vmul.f32 %v594, %v152
  %v659 = vmul.f32 %v595, %v157
  %v660 = vmul.f32 %v596, %v162
  %v661 = vmul.f32 %v597, %v167
  %v662 = vmul.f32 %v598, %v172
  %v663 = vmul.f32 %v599, %v177
  %v664 = vmul.f32 %v600, %v182
  %v665 = vmul.f32 %v601, %v187
  %v666 = vmul.f32 %v602, %v192
  %v667 = vmul.f32 %v603, %v197
  %v668 = vmul.f32 %v604, %v202
  %v669 = vmul.f32 %v605, %v207
  %v670 = vmul.f32 %v606, %v212
  %v671 = vmul.f32 %v607, %v217
  %v672 = vmul.f32 %v608, %v222
  %v673 = vmul.f32 %v609, %v227
  %v674 = vmul.f32 %v610, %v232
  %v675 = vmul.f32 %v611, %v237
  %v676 = vmul.f32 %v612, %v242
  %v677 = vmul.f32 %v613, %v247
  %v678 = vmul.f32 %v614, %v252
  %v679 = vmul.f32 %v615, %v257
  %v680 = vmul.f32 %v616, %v262
  %v681 = vmul.f32 %v617, %v267
  %v682 = vmul.f32 %v618, %v272
  %v683 = vmul.f32 %v619, %v277
  %v684 = vmul.f32 %v620, %v282
  %v685 = vmul.f32 %v621, %v287
  %v686 = vmul.f32 %v622, %v292
  %v687 = vmul.f32 %v623, %v297
  %v688 = vmul.f32 %v624, %v302
  %v689 = vmul.f32 %v625, %v307
  %v690 = vmul.f32 %v626, %v312
  %v691 = vmul.f32 %v627, %v317
  %v692 = vmul.f32 %v628, %v322
  %v693 = vmul.f32 %v629, %v327
  %v694 = vmul.f32 %v630, %v332
  %v695 = vmul.f32 %v631, %v337
  %v696 = vmul.f32 %v632, %v342
  %v697 = vmul.f32 %v633, %v347
  %v698 = vmul.f32 %v634, %v352
  %v699 = vmul.f32 %v635, %v357
  %v700 = vmul.f32 %v636, %v362
  %v701 = vmul.f32 %v637, %v367
  %v702 = vmul.f32 %v638, %v372
  %v703 = vmul.f32 %v639, %v377
  %v704 = vmul.f32 %v640, %v382
  %v705 = vmul.f32 %v641, %v387
  %v706 = vmul.f32 %v642, %v392
  %v707 = vmul.f32 %v643, %v397
  %v708 = vmul.f32 %v644, %v402
  %v709 = vmul.f32 %v645, %v407
  %v710 = vmul.f32 %v646, %v412
  %v711 = vmul.f32 %v647, %v417
  %v712 = vmul.f32 %v648, %v422
  %v713 = vmul.f32 %v649, %v427
  %v714 = vmul.f32 %v650, %v432
  %v715 = vmul.f32 %v651, %v437
  %v716 = vmul.f32 %v652, %v442
  %v717 = vmul.f32 %v653, %v447
  %v718 = vmul.f32 %v654, %v452
  %v719 = vmul.f32 %v655, %v457
  %v720 = vadd.f32 %v656, %v657
  %v721 = vadd.f32 %v720, %v658
  %v722 = vadd.f32 %v721, %v659
  %v723 = vadd.f32 %v722, %v660
  %v724 = vadd.f32 %v723, %v661
  %v725 = vadd.f32 %v724, %v662
  %v726 = vadd.f32 %v725, %v663
  %v727 = vadd.f32 %v726, %v664
  %v728 = vadd.f32 %v727, %v665
  %v729 = vadd.f32 %v728, %v666
  %v730 = vadd.f32 %v729, %v667
  %v731 = vadd.f32 %v730, %v668
  %v732 = vadd.f32 %v731, %v669
  %v733 = vadd.f32 %v732, %v670
  %v734 = vadd.f32 %v733, %v671
  %v735 = vadd.f32 %v734, %v672
  %v736 = vadd.f32 %v735, %v673
  %v737 = vadd.f32 %v736, %v674
  %v738 = vadd.f32 %v737, %v675
  %v739 = vadd.f32 %v738, %v676
  %v740 = vadd.f32 %v739, %v677
  %v741 = vadd.f32 %v740, %v678
  %v742 = vadd.f32 %v741, %v679
  %v743 = vadd.f32 %v742, %v680
  %v744 = vadd.f32 %v743, %v681
  %v745 = vadd.f32 %v744, %v682
  %v746 = vadd.f32 %v745, %v683
  %v747 = vadd.f32 %v746, %v684
  %v748 = vadd.f32 %v747, %v685
  %v749 = vadd.f32 %v748, %v686
  %v750 = vadd.f32 %v749, %v687
  %v751 = vadd.f32 %v750, %v688
  %v752 = vadd.f32 %v751, %v689
  %v753 = vadd.f32 %v752, %v690
  %v754 = vadd.f32 %v753, %v691
  %v755 = vadd.f32 %v754, %v692
  %v756 = vadd.f32 %v755, %v693
  %v757 = vadd.f32 %v756, %v694
  %v758 = vadd.f32 %v757, %v695
  %v759 = vadd.f32 %v758, %v696
  %v760 = vadd.f32 %v759, %v697
  %v761 = vadd.f32 %v760, %v698
  %v762 = vadd.f32 %v761, %v699
  %v763 = vadd.f32 %v762, %v700
  %v764 = vadd.f32 %v763, %v701
  %v765 = vadd.f32 %v764, %v702
  %v766 = vadd.f32 %v765, %v703
  %v767 = vadd.f32 %v766, %v704
  %v768 = vadd.f32 %v767, %v705
  %v769 = vadd.f32 %v768, %v706
  %v770 = vadd.f32 %v769, %v707
  %v771 = vadd.f32 %v770, %v708
  %v772 = vadd.f32 %v771, %v709
  %v773 = vadd.f32 %v772, %v710
  %v774 = vadd.f32 %v773, %v711
  %v775 = vadd.f32 %v774, %v712
  %v776 = vadd.f32 %v775, %v713
  %v777 = vadd.f32 %v776, %v714
  %v778 = vadd.f32 %v777, %v715
  %v779 = vadd.f32 %v778, %v716
  %v780 = vadd.f32 %v779, %v717
  %v781 = vadd.f32 %v780, %v718
  %v782 = vadd.f32 %v781, %v719
  %v783 = vrot.slane %v782, 4
  %v784 = vadd.f32 %v782, %v783
  %v785 = vrot.slane %v784, 2
  %v786 = vadd.f32 %v784, %v785
  %v787 = vrot.slane %v786, 1
  %v788 = vadd.f32 %v786, %v787
  %v789 = vmul.f32 %v591, %v591
  %v790 = vsub.f32 %v788, %v789
  %v791 = vmax.f32 %v790, 0.0
  %v792 = vsub.f32 %v11, %v591
  %v793 = vsub.f32 %v12, %v591
  %v794 = vsub.f32 %v13, %v591
  %v795 = vsub.f32 %v14, %v591
  %v796 = vsub.f32 %v15, %v591
  %v797 = vsub.f32 %v16, %v591
  %v798 = vsub.f32 %v17, %v591
  %v799 = vsub.f32 %v18, %v591
  %v800 = vsub.f32 %v19, %v591
  %v801 = vsub.f32 %v20, %v591
  %v802 = vsub.f32 %v21, %v591
  %v803 = vsub.f32 %v22, %v591
  %v804 = vsub.f32 %v23, %v591
  %v805 = vsub.f32 %v24, %v591
  %v806 = vsub.f32 %v25, %v591
  %v807 = vsub.f32 %v26, %v591
  %v808 = vsub.f32 %v27, %v591
  %v809 = vsub.f32 %v28, %v591
  %v810 = vsub.f32 %v29, %v591
  %v811 = vsub.f32 %v30, %v591
  %v812 = vsub.f32 %v31, %v591
  %v813 = vsub.f32 %v32, %v591
  %v814 = vsub.f32 %v33, %v591
  %v815 = vsub.f32 %v34, %v591
  %v816 = vsub.f32 %v35, %v591
  %v817 = vsub.f32 %v36, %v591
  %v818 = vsub.f32 %v37, %v591
  %v819 = vsub.f32 %v38, %v591
  %v820 = vsub.f32 %v39, %v591
  %v821 = vsub.f32 %v40, %v591
  %v822 = vsub.f32 %v41, %v591
  %v823 = vsub.f32 %v42, %v591
  %v824 = vsub.f32 %v43, %v591
  %v825 = vsub.f32 %v44, %v591
  %v826 = vsub.f32 %v45, %v591
  %v827 = vsub.f32 %v46, %v591
  %v828 = vsub.f32 %v47, %v591
  %v829 = vsub.f32 %v48, %v591
  %v830 = vsub.f32 %v49, %v591
  %v831 = vsub.f32 %v50, %v591
  %v832 = vsub.f32 %v51, %v591
  %v833 = vsub.f32 %v52, %v591
  %v834 = vsub.f32 %v53, %v591
  %v835 = vsub.f32 %v54, %v591
  %v836 = vsub.f32 %v55, %v591
  %v837 = vsub.f32 %v56, %v591
  %v838 = vsub.f32 %v57, %v591
  %v839 = vsub.f32 %v58, %v591
  %v840 = vsub.f32 %v59, %v591
  %v841 = vsub.f32 %v60, %v591
  %v842 = vsub.f32 %v61, %v591
  %v843 = vsub.f32 %v62, %v591
  %v844 = vsub.f32 %v63, %v591
  %v845 = vsub.f32 %v64, %v591
  %v846 = vsub.f32 %v65, %v591
  %v847 = vsub.f32 %v66, %v591
  %v848 = vsub.f32 %v67, %v591
  %v849 = vsub.f32 %v68, %v591
  %v850 = vsub.f32 %v69, %v591
  %v851 = vsub.f32 %v70, %v591
  %v852 = vsub.f32 %v71, %v591
  %v853 = vsub.f32 %v72, %v591
  %v854 = vsub.f32 %v73, %v591
  %v855 = vsub.f32 %v74, %v591
  %v856 = vadd.f32 %v791, 1e-05
  %v857 = vrsqrt.pop %v856
  %v858 = vmul.f32 %v792, %v857
  %v859 = vmul.f32 %v793, %v857
  %v860 = vmul.f32 %v794, %v857
  %v861 = vmul.f32 %v795, %v857
  %v862 = vmul.f32 %v796, %v857
  %v863 = vmul.f32 %v797, %v857
  %v864 = vmul.f32 %v798, %v857
  %v865 = vmul.f32 %v799, %v857
  %v866 = vmul.f32 %v800, %v857
  %v867 = vmul.f32 %v801, %v857
  %v868 = vmul.f32 %v802, %v857
  %v869 = vmul.f32 %v803, %v857
  %v870 = vmul.f32 %v804, %v857
  %v871 = vmul.f32 %v805, %v857
  %v872 = vmul.f32 %v806, %v857
  %v873 = vmul.f32 %v807, %v857
  %v874 = vmul.f32 %v808, %v857
  %v875 = vmul.f32 %v809, %v857
  %v876 = vmul.f32 %v810, %v857
  %v877 = vmul.f32 %v811, %v857
  %v878 = vmul.f32 %v812, %v857
  %v879 = vmul.f32 %v813, %v857
  %v880 = vmul.f32 %v814, %v857
  %v881 = vmul.f32 %v815, %v857
  %v882 = vmul.f32 %v816, %v857
  %v883 = vmul.f32 %v817, %v857
  %v884 = vmul.f32 %v818, %v857
  %v885 = vmul.f32 %v819, %v857
  %v886 = vmul.f32 %v820, %v857
  %v887 = vmul.f32 %v821, %v857
  %v888 = vmul.f32 %v822, %v857
  %v889 = vmul.f32 %v823, %v857
  %v890 = vmul.f32 %v824, %v857
  %v891 = vmul.f32 %v825, %v857
  %v892 = vmul.f32 %v826, %v857
  %v893 = vmul.f32 %v827, %v857
  %v894 = vmul.f32 %v828, %v857
  %v895 = vmul.f32 %v829, %v857
  %v896 = vmul.f32 %v830, %v857
  %v897 = vmul.f32 %v831, %v857
  %v898 = vmul.f32 %v832, %v857
  %v899 = vmul.f32 %v833, %v857
  %v900 = vmul.f32 %v834, %v857
  %v901 = vmul.f32 %v835, %v857
  %v902 = vmul.f32 %v836, %v857
  %v903 = vmul.f32 %v837, %v857
  %v904 = vmul.f32 %v838, %v857
  %v905 = vmul.f32 %v839, %v857
  %v906 = vmul.f32 %v840, %v857
  %v907 = vmul.f32 %v841, %v857
  %v908 = vmul.f32 %v842, %v857
  %v909 = vmul.f32 %v843, %v857
  %v910 = vmul.f32 %v844, %v857
  %v911 = vmul.f32 %v845, %v857
  %v912 = vmul.f32 %v846, %v857
  %v913 = vmul.f32 %v847, %v857
  %v914 = vmul.f32 %v848, %v857
  %v915 = vmul.f32 %v849, %v857
  %v916 = vmul.f32 %v850, %v857
  %v917 = vmul.f32 %v851, %v857
  %v918 = vmul.f32 %v852, %v857
  %v919 = vmul.f32 %v853, %v857
  %v920 = vmul.f32 %v854, %v857
  %v921 = vmul.f32 %v855, %v857
  %922 = vst [vmem:[%s2] sm:$0xff] %v858
  %923 = vst [vmem:[%s2 + $0x8] sm:$0xff] %v859
  %924 = vst [vmem:[%s2 + $0x10] sm:$0xff] %v860
  %925 = vst [vmem:[%s2 + $0x18] sm:$0xff] %v861
  %926 = vst [vmem:[%s2 + $0x20] sm:$0xff] %v862
  %927 = vst [vmem:[%s2 + $0x28] sm:$0xff] %v863
  %928 = vst [vmem:[%s2 + $0x30] sm:$0xff] %v864
  %929 = vst [vmem:[%s2 + $0x38] sm:$0xff] %v865
  %930 = vst [vmem:[%s2 + $0x40] sm:$0xff] %v866
  %931 = vst [vmem:[%s2 + $0x48] sm:$0xff] %v867
  %932 = vst [vmem:[%s2 + $0x50] sm:$0xff] %v868
  %933 = vst [vmem:[%s2 + $0x58] sm:$0xff] %v869
  %934 = vst [vmem:[%s2 + $0x60] sm:$0xff] %v870
  %935 = vst [vmem:[%s2 + $0x68] sm:$0xff] %v871
  %936 = vst [vmem:[%s2 + $0x70] sm:$0xff] %v872
  %937 = vst [vmem:[%s2 + $0x78] sm:$0xff] %v873
  %938 = vst [vmem:[%s2 + $0x80] sm:$0xff] %v874
  %939 = vst [vmem:[%s2 + $0x88] sm:$0xff] %v875
  %940 = vst [vmem:[%s2 + $0x90] sm:$0xff] %v876
  %941 = vst [vmem:[%s2 + $0x98] sm:$0xff] %v877
  %942 = vst [vmem:[%s2 + $0xa0] sm:$0xff] %v878
  %943 = vst [vmem:[%s2 + $0xa8] sm:$0xff] %v879
  %944 = vst [vmem:[%s2 + $0xb0] sm:$0xff] %v880
  %945 = vst [vmem:[%s2 + $0xb8] sm:$0xff] %v881
  %946 = vst [vmem:[%s2 + $0xc0] sm:$0xff] %v882
  %947 = vst [vmem:[%s2 + $0xc8] sm:$0xff] %v883
  %948 = vst [vmem:[%s2 + $0xd0] sm:$0xff] %v884
  %949 = vst [vmem:[%s2 + $0xd8] sm:$0xff] %v885
  %950 = vst [vmem:[%s2 + $0xe0] sm:$0xff] %v886
  %951 = vst [vmem:[%s2 + $0xe8] sm:$0xff] %v887
  %952 = vst [vmem:[%s2 + $0xf0] sm:$0xff] %v888
  %953 = vst [vmem:[%s2 + $0xf8] sm:$0xff] %v889
  %954 = vst [vmem:[%s2 + $0x100] sm:$0xff] %v890
  %955 = vst [vmem:[%s2 + $0x108] sm:$0xff] %v891
  %956 = vst [vmem:[%s2 + $0x110] sm:$0xff] %v892
  %957 = vst [vmem:[%s2 + $0x118] sm:$0xff] %v893
  %958 = vst [vmem:[%s2 + $0x120] sm:$0xff] %v894
  %959 = vst [vmem:[%s2 + $0x128] sm:$0xff] %v895
  %960 = vst [vmem:[%s2 + $0x130] sm:$0xff] %v896
  %961 = vst [vmem:[%s2 + $0x138] sm:$0xff] %v897
  %962 = vst [vmem:[%s2 + $0x140] sm:$0xff] %v898
  %963 = vst [vmem:[%s2 + $0x148] sm:$0xff] %v899
  %964 = vst [vmem:[%s2 + $0x150] sm:$0xff] %v900
  %965 = vst [vmem:[%s2 + $0x158] sm:$0xff] %v901
  %966 = vst [vmem:[%s2 + $0x160] sm:$0xff] %v902
  %967 = vst [vmem:[%s2 + $0x168] sm:$0xff] %v903
  %968 = vst [vmem:[%s2 + $0x170] sm:$0xff] %v904
  %969 = vst [vmem:[%s2 + $0x178] sm:$0xff] %v905
  %970 = vst [vmem:[%s2 + $0x180] sm:$0xff] %v906
  %971 = vst [vmem:[%s2 + $0x188] sm:$0xff] %v907
  %972 = vst [vmem:[%s2 + $0x190] sm:$0xff] %v908
  %973 = vst [vmem:[%s2 + $0x198] sm:$0xff] %v909
  %974 = vst [vmem:[%s2 + $0x1a0] sm:$0xff] %v910
  %975 = vst [vmem:[%s2 + $0x1a8] sm:$0xff] %v911
  %976 = vst [vmem:[%s2 + $0x1b0] sm:$0xff] %v912
  %977 = vst [vmem:[%s2 + $0x1b8] sm:$0xff] %v913
  %978 = vst [vmem:[%s2 + $0x1c0] sm:$0xff] %v914
  %979 = vst [vmem:[%s2 + $0x1c8] sm:$0xff] %v915
  %980 = vst [vmem:[%s2 + $0x1d0] sm:$0xff] %v916
  %981 = vst [vmem:[%s2 + $0x1d8] sm:$0xff] %v917
  %982 = vst [vmem:[%s2 + $0x1e0] sm:$0xff] %v918
  %983 = vst [vmem:[%s2 + $0x1e8] sm:$0xff] %v919
  %984 = vst [vmem:[%s2 + $0x1f0] sm:$0xff] %v920
  %985 = vst [vmem:[%s2 + $0x1f8] sm:$0xff] %v921
  // Predicated region
  $region10: #{gin_forward.8} parent=0 // pred_check
    _
  $region11: #{gin_forward.8} parent=0 // pred_check_branch
    %987 = sbr.rel (0) target = $region13
  $region12: #{gin_forward.8} parent=0 // pred_region
    _
  $region13: #{gin_forward.8} parent=0 // pred_fallthru
    _
  // Predicated region
  $region14: #{gin_forward.8} parent=0 // pred_check
    _
  $region15: #{gin_forward.8} parent=0 // pred_check_branch
    %989 = sbr.rel (0) target = $region17
  $region16: #{gin_forward.8} parent=0 // pred_region
    _
  $region17: #{gin_forward.8} parent=0 // pred_fallthru
    _

// kernel: gin_forward.7
$region0: #{gin_forward.7}
  #allocation0 [shape = 'u32[]', space=smem, size = 0x4, offset = 0x4, fixed_abs, tag = 'smem constant byte address 0x4 - core index']
  #allocation1 [shape = 'u32[144,128]{1,0:T(1,128)}', space=vmem, size = 0x12000, scoped, tag = 'internal scratch']
  #allocation2 [shape = 'f32[256,128]{1,0:T(8,128)}', space=vmem, size = 0x20000, scoped, tag = 'scratch operand']
  %s0 = inlined_call_operand.vmem [shape: bf16[512,512], index: 0, kind: input, shape index: {}]
  %s1 = inlined_call_operand.vmem [shape: f32[512,128], index: 1, kind: input, shape index: {}, may-alias: {1,2}]
  %s2 = inlined_call_operand.vmem [shape: f32[512,128], index: 2, kind: input, shape index: {}, may-alias: {1,2}]
  %s3 = inlined_call_operand.vmem [shape: f32[128,128], index: 3, kind: input, shape index: {}]
  %s4 = inlined_call_operand.vmem [shape: f32[1,128], index: 4, kind: input, shape index: {}]
  %s5 = inlined_call_operand.vmem [shape: f32[128,128], index: 5, kind: input, shape index: {}]
  %s6 = inlined_call_operand.vmem [shape: f32[1,128], index: 6, kind: input, shape index: {}]
  %s7 = inlined_call_operand.vmem [shape: f32[512,128], index: 7, kind: output, shape index: {}]
  %s8 = sld [smem:[#allocation0]]
  $region107: #{gin_forward.7} parent=0
    _
  %s10 = ssub.s32 1, %s8
  %s11 = scalar_select 0, %s10, %s8
  $region1: #{gin_forward.7} parent=0
    #allocation3 [shape = 'u8[262144]{0}', space=vmem, size = 0x40000, scoped, tag = 'input window, operand 0']
    loop: start=0, step=1, limit=6
    $region2: #{gin_forward.7} parent=1 // loop_pre_header
      _
    $region3: #{gin_forward.7} parent=1 // loop_header
      %s13 = sphi 0, %s17
      %p14 = scmp.ge.s32.totalorder %s13, 6
      %s20 = sphi 0, %s32
      %s21 = sphi 0, %s28
      %s22 = sphi 0, %s20
      %s23 = sphi 0, %s21
      %s24 = sphi 0, %s22
      %s25 = sphi 0, %s23
      %s37 = sphi 0, %s39
      %s40 = sphi 0, %s37
      %s41 = sphi 0, %s40
      %s57 = sphi 0, %s41
      %s63 = sphi 0, %s65
      %s66 = sphi 0, %s63
      %s67 = sphi 0, %s66
      %s83 = sphi 0, %s67
      %s89 = sphi 0, %s91
      %s92 = sphi 0, %s89
      %s93 = sphi 0, %s92
      %s109 = sphi 0, %s93
      %s113 = sphi 0, %s113
      %s115 = sphi 0, %s113
      %s116 = sphi 0, %s115
      %s130 = sphi 0, %s116
      %s134 = sphi 0, %s134
      %s136 = sphi 0, %s134
      %s137 = sphi 0, %s136
      %s151 = sphi 0, %s137
      %s155 = sphi 0, %s155
      %s157 = sphi 0, %s155
      %s158 = sphi 0, %s157
      %s172 = sphi 0, %s158
      %s176 = sphi 0, %s176
      %s178 = sphi 0, %s176
      %s179 = sphi 0, %s178
      %s193 = sphi 0, %s179
      %s199 = sphi 0, %s201
      %s202 = sphi 0, %s199
      %s203 = sphi 0, %s202
      %s219 = sphi 0, %s203
    $region4: #{gin_forward.7} parent=1 // loop_header_branch
      %16 = sbr.rel (%p14) target = $region8
    $region5: #{gin_forward.7} parent=1 // loop_body
      %s18 = ssub.s32 %s13, 1
      %s19 = ssub.s32 %s13, 2
      %s26 = sadd.s32 1, %s21
      %p27 = scmp.ge.s32.totalorder %s26, 2
      %s28 = scalar_select %p27, 0, %s26
      %s29 = sadd.s32 1, %s20
      %s30 = scalar_select %p27, %s29, %s20
      %p31 = scmp.ge.s32.totalorder %s30, 2
      %s32 = scalar_select %p31, 0, %s30
      %s33 = ssub.s32 %s20, %s32
      %s34 = ssub.s32 %s21, %s28
      %s35 = sor.u32 %s33, %s34
      %p36 = scmp.eq.s32.totalorder %s35, 0
      %s38 = sadd.s32 %s37, 1
      %s39 = scalar_select %p36, %s37, %s38
      %p42 = pneg %p36
      %p43 = scmp.eq.s32.totalorder %s13, 3
      %p44 = por %p42, %p43
      %p45 = scmp.ne.s32.totalorder %s37, %s40
      %p46 = scmp.eq.s32.totalorder %s13, 0
      %p47 = por %p45, %p46
      %p48 = scmp.ne.s32.totalorder %s37, %s40
      %p49 = scmp.eq.s32.totalorder %s18, 3
      %p50 = por %p48, %p49
      %p51 = scmp.ne.s32.totalorder %s40, %s41
      %p52 = scmp.eq.s32.totalorder %s18, 0
      %p53 = por %p51, %p52
      %p54 = scmp.ne.s32.totalorder %s40, %s41
      %p55 = scmp.eq.s32.totalorder %s19, 3
      %p56 = por %p54, %p55
      %p58 = scmp.ne.s32.totalorder %s41, %s57
      %p59 = scmp.eq.s32.totalorder %s19, 0
      %p60 = por %p58, %p59
      %s61 = ssub.s32 %s21, %s28
      %p62 = scmp.eq.s32.totalorder %s61, 0
      %s64 = sadd.s32 %s63, 1
      %s65 = scalar_select %p62, %s63, %s64
      %p68 = pneg %p62
      %p69 = scmp.eq.s32.totalorder %s13, 3
      %p70 = por %p68, %p69
      %p71 = scmp.ne.s32.totalorder %s63, %s66
      %p72 = scmp.eq.s32.totalorder %s13, 0
      %p73 = por %p71, %p72
      %p74 = scmp.ne.s32.totalorder %s63, %s66
      %p75 = scmp.eq.s32.totalorder %s18, 3
      %p76 = por %p74, %p75
      %p77 = scmp.ne.s32.totalorder %s66, %s67
      %p78 = scmp.eq.s32.totalorder %s18, 0
      %p79 = por %p77, %p78
      %p80 = scmp.ne.s32.totalorder %s66, %s67
      %p81 = scmp.eq.s32.totalorder %s19, 3
      %p82 = por %p80, %p81
      %p84 = scmp.ne.s32.totalorder %s67, %s83
      %p85 = scmp.eq.s32.totalorder %s19, 0
      %p86 = por %p84, %p85
      %s87 = ssub.s32 %s20, %s32
      %p88 = scmp.eq.s32.totalorder %s87, 0
      %s90 = sadd.s32 %s89, 1
      %s91 = scalar_select %p88, %s89, %s90
      %p94 = pneg %p88
      %p95 = scmp.eq.s32.totalorder %s13, 3
      %p96 = por %p94, %p95
      %p97 = scmp.ne.s32.totalorder %s89, %s92
      %p98 = scmp.eq.s32.totalorder %s13, 0
      %p99 = por %p97, %p98
      %p100 = scmp.ne.s32.totalorder %s89, %s92
      %p101 = scmp.eq.s32.totalorder %s18, 3
      %p102 = por %p100, %p101
      %p103 = scmp.ne.s32.totalorder %s92, %s93
      %p104 = scmp.eq.s32.totalorder %s18, 0
      %p105 = por %p103, %p104
      %p106 = scmp.ne.s32.totalorder %s92, %s93
      %p107 = scmp.eq.s32.totalorder %s19, 3
      %p108 = por %p106, %p107
      %p110 = scmp.ne.s32.totalorder %s93, %s109
      %p111 = scmp.eq.s32.totalorder %s19, 0
      %p112 = por %p110, %p111
      %s114 = sadd.s32 %s113, 1
      %p117 = scmp.eq.s32.totalorder %s13, 3
      %p118 = scmp.ne.s32.totalorder %s113, %s115
      %p119 = scmp.eq.s32.totalorder %s13, 0
      %p120 = por %p118, %p119
      %p121 = scmp.ne.s32.totalorder %s113, %s115
      %p122 = scmp.eq.s32.totalorder %s18, 3
      %p123 = por %p121, %p122
      %p124 = scmp.ne.s32.totalorder %s115, %s116
      %p125 = scmp.eq.s32.totalorder %s18, 0
      %p126 = por %p124, %p125
      %p127 = scmp.ne.s32.totalorder %s115, %s116
      %p128 = scmp.eq.s32.totalorder %s19, 3
      %p129 = por %p127, %p128
      %p131 = scmp.ne.s32.totalorder %s116, %s130
      %p132 = scmp.eq.s32.totalorder %s19, 0
      %p133 = por %p131, %p132
      %s135 = sadd.s32 %s134, 1
      %p138 = scmp.eq.s32.totalorder %s13, 3
      %p139 = scmp.ne.s32.totalorder %s134, %s136
      %p140 = scmp.eq.s32.totalorder %s13, 0
      %p141 = por %p139, %p140
      %p142 = scmp.ne.s32.totalorder %s134, %s136
      %p143 = scmp.eq.s32.totalorder %s18, 3
      %p144 = por %p142, %p143
      %p145 = scmp.ne.s32.totalorder %s136, %s137
      %p146 = scmp.eq.s32.totalorder %s18, 0
      %p147 = por %p145, %p146
      %p148 = scmp.ne.s32.totalorder %s136, %s137
      %p149 = scmp.eq.s32.totalorder %s19, 3
      %p150 = por %p148, %p149
      %p152 = scmp.ne.s32.totalorder %s137, %s151
      %p153 = scmp.eq.s32.totalorder %s19, 0
      %p154 = por %p152, %p153
      %s156 = sadd.s32 %s155, 1
      %p159 = scmp.eq.s32.totalorder %s13, 3
      %p160 = scmp.ne.s32.totalorder %s155, %s157
      %p161 = scmp.eq.s32.totalorder %s13, 0
      %p162 = por %p160, %p161
      %p163 = scmp.ne.s32.totalorder %s155, %s157
      %p164 = scmp.eq.s32.totalorder %s18, 3
      %p165 = por %p163, %p164
      %p166 = scmp.ne.s32.totalorder %s157, %s158
      %p167 = scmp.eq.s32.totalorder %s18, 0
      %p168 = por %p166, %p167
      %p169 = scmp.ne.s32.totalorder %s157, %s158
      %p170 = scmp.eq.s32.totalorder %s19, 3
      %p171 = por %p169, %p170
      %p173 = scmp.ne.s32.totalorder %s158, %s172
      %p174 = scmp.eq.s32.totalorder %s19, 0
      %p175 = por %p173, %p174
      %s177 = sadd.s32 %s176, 1
      %p180 = scmp.eq.s32.totalorder %s13, 3
      %p181 = scmp.ne.s32.totalorder %s176, %s178
      %p182 = scmp.eq.s32.totalorder %s13, 0
      %p183 = por %p181, %p182
      %p184 = scmp.ne.s32.totalorder %s176, %s178
      %p185 = scmp.eq.s32.totalorder %s18, 3
      %p186 = por %p184, %p185
      %p187 = scmp.ne.s32.totalorder %s178, %s179
      %p188 = scmp.eq.s32.totalorder %s18, 0
      %p189 = por %p187, %p188
      %p190 = scmp.ne.s32.totalorder %s178, %s179
      %p191 = scmp.eq.s32.totalorder %s19, 3
      %p192 = por %p190, %p191
      %p194 = scmp.ne.s32.totalorder %s179, %s193
      %p195 = scmp.eq.s32.totalorder %s19, 0
      %p196 = por %p194, %p195
      %s197 = ssub.s32 %s20, %s32
      %p198 = scmp.eq.s32.totalorder %s197, 0
      %s200 = sadd.s32 %s199, 1
      %s201 = scalar_select %p198, %s199, %s200
      %p204 = pneg %p198
      %p205 = scmp.eq.s32.totalorder %s13, 3
      %p206 = por %p204, %p205
      %p207 = scmp.ne.s32.totalorder %s199, %s202
      %p208 = scmp.eq.s32.totalorder %s13, 0
      %p209 = por %p207, %p208
      %p210 = scmp.ne.s32.totalorder %s199, %s202
      %p211 = scmp.eq.s32.totalorder %s18, 3
      %p212 = por %p210, %p211
      %p213 = scmp.ne.s32.totalorder %s202, %s203
      %p214 = scmp.eq.s32.totalorder %s18, 0
      %p215 = por %p213, %p214
      %p216 = scmp.ne.s32.totalorder %s202, %s203
      %p217 = scmp.eq.s32.totalorder %s19, 3
      %p218 = por %p216, %p217
      %p220 = scmp.ne.s32.totalorder %s203, %s219
      %p221 = scmp.eq.s32.totalorder %s19, 0
      %p222 = por %p220, %p221
      %p223 = scmp.le.s32.totalorder 1, %s13
      %p224 = scmp.lt.s32.totalorder %s13, 5
      %p225 = pnand %p223, %p224
      %p226 = pneg %p225
      // Predicated region
      $region9: #{gin_forward.7} parent=5 // pred_check
        _
      $region10: #{gin_forward.7} parent=5 // pred_check_branch
        %228 = sbr.rel (%p225) target = $region12
      $region11: #{gin_forward.7} parent=5 // pred_region
        %s229 = ssub.s32 %s13, 1
        // Predicated region
        $region13: #{gin_forward.7} parent=11 // pred_check
          %p230 = pneg %p126
        $region14: #{gin_forward.7} parent=11 // pred_check_branch
          %232 = sbr.rel (%p230) target = $region16
        $region15: #{gin_forward.7} parent=11 // pred_region
          _
        $region16: #{gin_forward.7} parent=11 // pred_fallthru
          _
        // Predicated region
        $region17: #{gin_forward.7} parent=11 // pred_check
          %p233 = pneg %p147
        $region18: #{gin_forward.7} parent=11 // pred_check_branch
          %235 = sbr.rel (%p233) target = $region20
        $region19: #{gin_forward.7} parent=11 // pred_region
          _
        $region20: #{gin_forward.7} parent=11 // pred_fallthru
          _
        // Predicated region
        $region21: #{gin_forward.7} parent=11 // pred_check
          %p236 = pneg %p168
        $region22: #{gin_forward.7} parent=11 // pred_check_branch
          %238 = sbr.rel (%p236) target = $region24
        $region23: #{gin_forward.7} parent=11 // pred_region
          _
        $region24: #{gin_forward.7} parent=11 // pred_fallthru
          _
        // Predicated region
        $region25: #{gin_forward.7} parent=11 // pred_check
          %p239 = pneg %p189
        $region26: #{gin_forward.7} parent=11 // pred_check_branch
          %241 = sbr.rel (%p239) target = $region28
        $region27: #{gin_forward.7} parent=11 // pred_region
          _
        $region28: #{gin_forward.7} parent=11 // pred_fallthru
          _
      $region12: #{gin_forward.7} parent=5 // pred_fallthru
        _
      %p242 = scmp.lt.s32.totalorder %s13, 4
      // Predicated region
      $region29: #{gin_forward.7} parent=5 // pred_check
        %p243 = pneg %p242
      $region30: #{gin_forward.7} parent=5 // pred_check_branch
        %245 = sbr.rel (%p243) target = $region32
      $region31: #{gin_forward.7} parent=5 // pred_region
        // Predicated region
        $region33: #{gin_forward.7} parent=31 // pred_check
          %p246 = pneg %p47
        $region34: #{gin_forward.7} parent=31 // pred_check_branch
          %248 = sbr.rel (%p246) target = $region36
        $region35: #{gin_forward.7} parent=31 // pred_region
          %s249 = sand.u32 %s37, 1
          %s250 = sand.u32 %s37, 1
          %s251 = smul.addr %s250, 256
          %s252 = scalar_lea.vmem [#allocation3], %s251
          %s253 = smul.u32 32, %s20
          %s254 = smul.u32 2, %s21
          %s255 = smul.addr %s253, 4
          %s256 = sadd.s32 %s254, %s255
          %s257 = smul.addr %s256, 4
          %s258 = scalar_lea.vmem %s0, %s257
          // Predicated region
          $region37: #{gin_forward.7} parent=35 // pred_check
            _
          $region38: #{gin_forward.7} parent=35 // pred_check_branch
            %260 = sbr.rel (0) target = $region40
          $region39: #{gin_forward.7} parent=35 // pred_region
            // Predicated region
            $region41: #{gin_forward.7} parent=39 // pred_check
              _
            $region42: #{gin_forward.7} parent=39 // pred_check_branch
              %262 = sbr.rel (0) target = $region44
            $region43: #{gin_forward.7} parent=39 // pred_region
              // Predicated region
              $region56: #{gin_forward.7} parent=43 // pred_check
                _
              $region57: #{gin_forward.7} parent=43 // pred_check_branch
                %340 = sbr.rel (0) target = $region59
              $region58: #{gin_forward.7} parent=43 // pred_region
                loop: start=0, step=1, limit=1
                $region60: #{gin_forward.7} parent=58 // loop_pre_header
                  _
                $region61: #{gin_forward.7} parent=58 // loop_header
                  %s342 = sphi 0, %s346
                  %p343 = scmp.ge.s32.totalorder %s342, 1
                  %s347 = sphi %s258, %s258
                  %s348 = sphi %s252, %s252
                $region62: #{gin_forward.7} parent=58 // loop_header_branch
                  %345 = sbr.rel (%p343) target = $region66
                $region63: #{gin_forward.7} parent=58 // loop_body
                  %v349 = vld [vmem:[%s347] sm:$0xff]
                  %350 = vst [vmem:[%s348] sm:$0xff] %v349
                  %v351 = vld [vmem:[%s347 + $0x10] sm:$0xff]
                  %352 = vst [vmem:[%s348 + $0x8] sm:$0xff] %v351
                  %v353 = vld [vmem:[%s347 + $0x20] sm:$0xff]
                  %354 = vst [vmem:[%s348 + $0x10] sm:$0xff] %v353
                  %v355 = vld [vmem:[%s347 + $0x30] sm:$0xff]
                  %356 = vst [vmem:[%s348 + $0x18] sm:$0xff] %v355
                  %v357 = vld [vmem:[%s347 + $0x40] sm:$0xff]
                  %358 = vst [vmem:[%s348 + $0x20] sm:$0xff] %v357
                  %v359 = vld [vmem:[%s347 + $0x50] sm:$0xff]
                  %360 = vst [vmem:[%s348 + $0x28] sm:$0xff] %v359
                  %v361 = vld [vmem:[%s347 + $0x60] sm:$0xff]
                  %362 = vst [vmem:[%s348 + $0x30] sm:$0xff] %v361
                  %v363 = vld [vmem:[%s347 + $0x70] sm:$0xff]
                  %364 = vst [vmem:[%s348 + $0x38] sm:$0xff] %v363
                  %v365 = vld [vmem:[%s347 + $0x80] sm:$0xff]
                  %366 = vst [vmem:[%s348 + $0x40] sm:$0xff] %v365
                  %v367 = vld [vmem:[%s347 + $0x90] sm:$0xff]
                  %368 = vst [vmem:[%s348 + $0x48] sm:$0xff] %v367
                  %v369 = vld [vmem:[%s347 + $0xa0] sm:$0xff]
                  %370 = vst [vmem:[%s348 + $0x50] sm:$0xff] %v369
                  %v371 = vld [vmem:[%s347 + $0xb0] sm:$0xff]
                  %372 = vst [vmem:[%s348 + $0x58] sm:$0xff] %v371
                  %v373 = vld [vmem:[%s347 + $0xc0] sm:$0xff]
                  %374 = vst [vmem:[%s348 + $0x60] sm:$0xff] %v373
                  %v375 = vld [vmem:[%s347 + $0xd0] sm:$0xff]
                  %376 = vst [vmem:[%s348 + $0x68] sm:$0xff] %v375
                  %v377 = vld [vmem:[%s347 + $0xe0] sm:$0xff]
                  %378 = vst [vmem:[%s348 + $0x70] sm:$0xff] %v377
                  %v379 = vld [vmem:[%s347 + $0xf0] sm:$0xff]
                  %380 = vst [vmem:[%s348 + $0x78] sm:$0xff] %v379
                  %v381 = vld [vmem:[%s347 + $0x100] sm:$0xff]
                  %382 = vst [vmem:[%s348 + $0x80] sm:$0xff] %v381
                  %v383 = vld [vmem:[%s347 + $0x110] sm:$0xff]
                  %384 = vst [vmem:[%s348 + $0x88] sm:$0xff] %v383
                  %v385 = vld [vmem:[%s347 + $0x120] sm:$0xff]
                  %386 = vst [vmem:[%s348 + $0x90] sm:$0xff] %v385
                  %v387 = vld [vmem:[%s347 + $0x130] sm:$0xff]
                  %388 = vst [vmem:[%s348 + $0x98] sm:$0xff] %v387
                  %v389 = vld [vmem:[%s347 + $0x140] sm:$0xff]
                  %390 = vst [vmem:[%s348 + $0xa0] sm:$0xff] %v389
                  %v391 = vld [vmem:[%s347 + $0x150] sm:$0xff]
                  %392 = vst [vmem:[%s348 + $0xa8] sm:$0xff] %v391
                  %v393 = vld [vmem:[%s347 + $0x160] sm:$0xff]
                  %394 = vst [vmem:[%s348 + $0xb0] sm:$0xff] %v393
                  %v395 = vld [vmem:[%s347 + $0x170] sm:$0xff]
                  %396 = vst [vmem:[%s348 + $0xb8] sm:$0xff] %v395
                  %v397 = vld [vmem:[%s347 + $0x180] sm:$0xff]
                  %398 = vst [vmem:[%s348 + $0xc0] sm:$0xff] %v397
                  %v399 = vld [vmem:[%s347 + $0x190] sm:$0xff]
                  %400 = vst [vmem:[%s348 + $0xc8] sm:$0xff] %v399
                  %v401 = vld [vmem:[%s347 + $0x1a0] sm:$0xff]
                  %402 = vst [vmem:[%s348 + $0xd0] sm:$0xff] %v401
                  %v403 = vld [vmem:[%s347 + $0x1b0] sm:$0xff]
                  %404 = vst [vmem:[%s348 + $0xd8] sm:$0xff] %v403
                  %v405 = vld [vmem:[%s347 + $0x1c0] sm:$0xff]
                  %406 = vst [vmem:[%s348 + $0xe0] sm:$0xff] %v405
                  %v407 = vld [vmem:[%s347 + $0x1d0] sm:$0xff]
                  %408 = vst [vmem:[%s348 + $0xe8] sm:$0xff] %v407
                  %v409 = vld [vmem:[%s347 + $0x1e0] sm:$0xff]
                  %410 = vst [vmem:[%s348 + $0xf0] sm:$0xff] %v409
                  %v411 = vld [vmem:[%s347 + $0x1f0] sm:$0xff]
                  %412 = vst [vmem:[%s348 + $0xf8] sm:$0xff] %v411
                $region64: #{gin_forward.7} parent=58 // loop_footer
                  %s346 = sadd.s32 1, %s342
                $region65: #{gin_forward.7} parent=58 // loop_footer_branch
                  %341 = sbr.rel target = $region61
                $region66: #{gin_forward.7} parent=58 // loop_exit
                  _
              $region59: #{gin_forward.7} parent=43 // pred_fallthru
                _
              // Predicated region
              $region67: #{gin_forward.7} parent=43 // pred_check
                _
              $region68: #{gin_forward.7} parent=43 // pred_check_branch
                %414 = sbr.rel target = $region70
              $region69: #{gin_forward.7} parent=43 // pred_region
                _
              $region70: #{gin_forward.7} parent=43 // pred_fallthru
                _
            $region44: #{gin_forward.7} parent=39 // pred_fallthru
              _
            // Predicated region
            $region45: #{gin_forward.7} parent=39 // pred_check
              _
            $region46: #{gin_forward.7} parent=39 // pred_check_branch
              %264 = sbr.rel target = $region48
            $region47: #{gin_forward.7} parent=39 // pred_region
              %s266 = ssub.s32 256, 1
              loop: start=0, step=1, limit=1
              $region49: #{gin_forward.7} parent=47 // loop_pre_header
                _
              $region50: #{gin_forward.7} parent=47 // loop_header
                %s268 = sphi 0, %s272
                %p269 = scmp.ge.s32.totalorder %s268, 1
                %s273 = sphi %s258, %s258
                %s274 = sphi %s252, %s252
              $region51: #{gin_forward.7} parent=47 // loop_header_branch
                %271 = sbr.rel (%p269) target = $region55
              $region52: #{gin_forward.7} parent=47 // loop_body
                %v275 = vld [vmem:[%s273] sm:%s266]
                %276 = vst [vmem:[%s274] sm:%s266] %v275
                %v277 = vld [vmem:[%s273 + $0x10] sm:%s266]
                %278 = vst [vmem:[%s274 + $0x8] sm:%s266] %v277
                %v279 = vld [vmem:[%s273 + $0x20] sm:%s266]
                %280 = vst [vmem:[%s274 + $0x10] sm:%s266] %v279
                %v281 = vld [vmem:[%s273 + $0x30] sm:%s266]
                %282 = vst [vmem:[%s274 + $0x18] sm:%s266] %v281
                %v283 = vld [vmem:[%s273 + $0x40] sm:%s266]
                %284 = vst [vmem:[%s274 + $0x20] sm:%s266] %v283
                %v285 = vld [vmem:[%s273 + $0x50] sm:%s266]
                %286 = vst [vmem:[%s274 + $0x28] sm:%s266] %v285
                %v287 = vld [vmem:[%s273 + $0x60] sm:%s266]
                %288 = vst [vmem:[%s274 + $0x30] sm:%s266] %v287
                %v289 = vld [vmem:[%s273 + $0x70] sm:%s266]
                %290 = vst [vmem:[%s274 + $0x38] sm:%s266] %v289
                %v291 = vld [vmem:[%s273 + $0x80] sm:%s266]
                %292 = vst [vmem:[%s274 + $0x40] sm:%s266] %v291
                %v293 = vld [vmem:[%s273 + $0x90] sm:%s266]
                %294 = vst [vmem:[%s274 + $0x48] sm:%s266] %v293
                %v295 = vld [vmem:[%s273 + $0xa0] sm:%s266]
                %296 = vst [vmem:[%s274 + $0x50] sm:%s266] %v295
                %v297 = vld [vmem:[%s273 + $0xb0] sm:%s266]
                %298 = vst [vmem:[%s274 + $0x58] sm:%s266] %v297
                %v299 = vld [vmem:[%s273 + $0xc0] sm:%s266]
                %300 = vst [vmem:[%s274 + $0x60] sm:%s266] %v299
                %v301 = vld [vmem:[%s273 + $0xd0] sm:%s266]
                %302 = vst [vmem:[%s274 + $0x68] sm:%s266] %v301
                %v303 = vld [vmem:[%s273 + $0xe0] sm:%s266]
                %304 = vst [vmem:[%s274 + $0x70] sm:%s266] %v303
                %v305 = vld [vmem:[%s273 + $0xf0] sm:%s266]
                %306 = vst [vmem:[%s274 + $0x78] sm:%s266] %v305
                %v307 = vld [vmem:[%s273 + $0x100] sm:%s266]
                %308 = vst [vmem:[%s274 + $0x80] sm:%s266] %v307
                %v309 = vld [vmem:[%s273 + $0x110] sm:%s266]
                %310 = vst [vmem:[%s274 + $0x88] sm:%s266] %v309
                %v311 = vld [vmem:[%s273 + $0x120] sm:%s266]
                %312 = vst [vmem:[%s274 + $0x90] sm:%s266] %v311
                %v313 = vld [vmem:[%s273 + $0x130] sm:%s266]
                %314 = vst [vmem:[%s274 + $0x98] sm:%s266] %v313
                %v315 = vld [vmem:[%s273 + $0x140] sm:%s266]
                %316 = vst [vmem:[%s274 + $0xa0] sm:%s266] %v315
                %v317 = vld [vmem:[%s273 + $0x150] sm:%s266]
                %318 = vst [vmem:[%s274 + $0xa8] sm:%s266] %v317
                %v319 = vld [vmem:[%s273 + $0x160] sm:%s266]
                %320 = vst [vmem:[%s274 + $0xb0] sm:%s266] %v319
                %v321 = vld [vmem:[%s273 + $0x170] sm:%s266]
                %322 = vst [vmem:[%s274 + $0xb8] sm:%s266] %v321
                %v323 = vld [vmem:[%s273 + $0x180] sm:%s266]
                %324 = vst [vmem:[%s274 + $0xc0] sm:%s266] %v323
                %v325 = vld [vmem:[%s273 + $0x190] sm:%s266]
                %326 = vst [vmem:[%s274 + $0xc8] sm:%s266] %v325
                %v327 = vld [vmem:[%s273 + $0x1a0] sm:%s266]
                %328 = vst [vmem:[%s274 + $0xd0] sm:%s266] %v327
                %v329 = vld [vmem:[%s273 + $0x1b0] sm:%s266]
                %330 = vst [vmem:[%s274 + $0xd8] sm:%s266] %v329
                %v331 = vld [vmem:[%s273 + $0x1c0] sm:%s266]
                %332 = vst [vmem:[%s274 + $0xe0] sm:%s266] %v331
                %v333 = vld [vmem:[%s273 + $0x1d0] sm:%s266]
                %334 = vst [vmem:[%s274 + $0xe8] sm:%s266] %v333
                %v335 = vld [vmem:[%s273 + $0x1e0] sm:%s266]
                %336 = vst [vmem:[%s274 + $0xf0] sm:%s266] %v335
                %v337 = vld [vmem:[%s273 + $0x1f0] sm:%s266]
                %338 = vst [vmem:[%s274 + $0xf8] sm:%s266] %v337
              $region53: #{gin_forward.7} parent=47 // loop_footer
                %s272 = sadd.s32 1, %s268
              $region54: #{gin_forward.7} parent=47 // loop_footer_branch
                %267 = sbr.rel target = $region50
              $region55: #{gin_forward.7} parent=47 // loop_exit
                _
            $region48: #{gin_forward.7} parent=39 // pred_fallthru
              _
          $region40: #{gin_forward.7} parent=35 // pred_fallthru
            _
          %415 = vnop
        $region36: #{gin_forward.7} parent=31 // pred_fallthru
          _
        // Predicated region
        $region71: #{gin_forward.7} parent=31 // pred_check
          %p416 = pneg %p73
        $region72: #{gin_forward.7} parent=31 // pred_check_branch
          %418 = sbr.rel (%p416) target = $region74
        $region73: #{gin_forward.7} parent=31 // pred_region
          %s419 = smul.u32 32, %s21
          %p420 = scmp.lt.s32.totalorder %s419, 63
          %s421 = scalar_select %p420, %s419, 63
          %s422 = smul.addr %s421, 8
          %s423 = scalar_lea.vmem %s1, %s422
          %s424 = smul.u32 32, %s21
        $region74: #{gin_forward.7} parent=31 // pred_fallthru
          _
        // Predicated region
        $region75: #{gin_forward.7} parent=31 // pred_check
          %p425 = pneg %p99
        $region76: #{gin_forward.7} parent=31 // pred_check_branch
          %427 = sbr.rel (%p425) target = $region78
        $region77: #{gin_forward.7} parent=31 // pred_region
          %s428 = smul.u32 32, %s20
          %p429 = scmp.lt.s32.totalorder %s428, 63
          %s430 = scalar_select %p429, %s428, 63
          %s431 = smul.addr %s430, 8
          %s432 = scalar_lea.vmem %s2, %s431
          %s433 = smul.u32 32, %s20
        $region78: #{gin_forward.7} parent=31 // pred_fallthru
          _
      $region32: #{gin_forward.7} parent=5 // pred_fallthru
        _
      %p434 = scmp.le.s32.totalorder 1, %s13
      %p435 = scmp.lt.s32.totalorder %s13, 5
      %p436 = pnand %p434, %p435
      %p437 = pneg %p436
      // Predicated region
      $region79: #{gin_forward.7} parent=5 // pred_check
        _
      $region80: #{gin_forward.7} parent=5 // pred_check_branch
        %439 = sbr.rel (%p436) target = $region82
      $region81: #{gin_forward.7} parent=5 // pred_region
        %s440 = ssub.s32 %s13, 1
        %s441 = sand.u32 %s40, 1
        %s442 = sand.u32 %s40, 1
        %s443 = smul.addr %s442, 256
        %s444 = scalar_lea.vmem [#allocation3], %s443
        // Predicated region
        $region83: #{gin_forward.7} parent=81 // pred_check
          %p445 = pneg %p53
        $region84: #{gin_forward.7} parent=81 // pred_check_branch
          %447 = sbr.rel (%p445) target = $region86
        $region85: #{gin_forward.7} parent=81 // pred_region
          _
        $region86: #{gin_forward.7} parent=81 // pred_fallthru
          _
        %s448 = sand.u32 %s40, 1
        %s449 = sand.u32 %s40, 1
        %s450 = smul.addr %s449, 256
        %s451 = scalar_lea.vmem [#allocation3], %s450
        %p452 = pneg %p53
        %p453 = pneg %p50
        %s454 = smul.u32 32, %s23
        %p455 = scmp.lt.s32.totalorder %s454, 63
        %s456 = scalar_select %p455, %s454, 63
        %s457 = smul.addr %s456, 8
        %s458 = scalar_lea.vmem %s1, %s457
        %p459 = pneg %p79
        %p460 = pneg %p76
        %s461 = smul.u32 32, %s22
        %p462 = scmp.lt.s32.totalorder %s461, 63
        %s463 = scalar_select %p462, %s461, 63
        %s464 = smul.addr %s463, 8
        %s465 = scalar_lea.vmem %s2, %s464
        %p466 = pneg %p105
        %p467 = pneg %p102
        %p468 = pneg %p126
        %p469 = pneg %p123
        %p470 = pneg %p147
        %p471 = pneg %p144
        %p472 = pneg %p168
        %p473 = pneg %p165
        %p474 = pneg %p189
        %p475 = pneg %p186
        %p476 = pneg %p215
        %p477 = pneg %p212
        %s478 = smul.u32 32, %s22
        %p479 = scmp.lt.s32.totalorder %s478, 63
        %s480 = scalar_select %p479, %s478, 63
        %s481 = smul.addr %s480, 8
        %s482 = scalar_lea.vmem %s7, %s481
        %s483 = smul.u32 32, %s22
        %s484 = smul.u32 2, %s23
        %s485 = smul.u32 32, %s23
        %p486 = scmp.lt.s32.totalorder %s485, 63
        %s487 = scalar_select %p486, %s485, 63
        %s488 = smul.addr %s487, 8
        %s489 = scalar_lea.vmem %s1, %s488
        %s490 = smul.u32 32, %s23
        %s491 = smul.u32 32, %s22
        %p492 = scmp.lt.s32.totalorder %s491, 63
        %s493 = scalar_select %p492, %s491, 63
        %s494 = smul.addr %s493, 8
        %s495 = scalar_lea.vmem %s2, %s494
        %s496 = smul.u32 32, %s22
        %s497 = smul.u32 32, %s22
        %p498 = scmp.lt.s32.totalorder %s497, 63
        %s499 = scalar_select %p498, %s497, 63
        %s500 = smul.addr %s499, 8
        %s501 = scalar_lea.vmem %s7, %s500
        %s502 = smul.u32 32, %s22
        %p503 = scmp.eq.s32.totalorder %s23, 0
        // Predicated region
        $region87: #{gin_forward.7} parent=81 // pred_check
          %p504 = pneg %p503
        $region88: #{gin_forward.7} parent=81 // pred_check_branch
          %506 = sbr.rel (%p504) target = $region90
        $region89: #{gin_forward.7} parent=81 // pred_region
          %507 = vst [vmem:[#allocation2] sm:$0xff] 0.0
          %508 = vst [vmem:[#allocation2 + $0x8] sm:$0xff] 0.0
          %509 = vst [vmem:[#allocation2 + $0x10] sm:$0xff] 0.0
          %510 = vst [vmem:[#allocation2 + $0x18] sm:$0xff] 0.0
          %511 = vst [vmem:[#allocation2 + $0x20] sm:$0xff] 0.0
          %512 = vst [vmem:[#allocation2 + $0x28] sm:$0xff] 0.0
          %513 = vst [vmem:[#allocation2 + $0x30] sm:$0xff] 0.0
          %514 = vst [vmem:[#allocation2 + $0x38] sm:$0xff] 0.0
          %515 = vst [vmem:[#allocation2 + $0x40] sm:$0xff] 0.0
          %516 = vst [vmem:[#allocation2 + $0x48] sm:$0xff] 0.0
          %517 = vst [vmem:[#allocation2 + $0x50] sm:$0xff] 0.0
          %518 = vst [vmem:[#allocation2 + $0x58] sm:$0xff] 0.0
          %519 = vst [vmem:[#allocation2 + $0x60] sm:$0xff] 0.0
          %520 = vst [vmem:[#allocation2 + $0x68] sm:$0xff] 0.0
          %521 = vst [vmem:[#allocation2 + $0x70] sm:$0xff] 0.0
          %522 = vst [vmem:[#allocation2 + $0x78] sm:$0xff] 0.0
          %523 = vst [vmem:[#allocation2 + $0x80] sm:$0xff] 0.0
          %524 = vst [vmem:[#allocation2 + $0x88] sm:$0xff] 0.0
          %525 = vst [vmem:[#allocation2 + $0x90] sm:$0xff] 0.0
          %526 = vst [vmem:[#allocation2 + $0x98] sm:$0xff] 0.0
          %527 = vst [vmem:[#allocation2 + $0xa0] sm:$0xff] 0.0
          %528 = vst [vmem:[#allocation2 + $0xa8] sm:$0xff] 0.0
          %529 = vst [vmem:[#allocation2 + $0xb0] sm:$0xff] 0.0
          %530 = vst [vmem:[#allocation2 + $0xb8] sm:$0xff] 0.0
          %531 = vst [vmem:[#allocation2 + $0xc0] sm:$0xff] 0.0
          %532 = vst [vmem:[#allocation2 + $0xc8] sm:$0xff] 0.0
          %533 = vst [vmem:[#allocation2 + $0xd0] sm:$0xff] 0.0
          %534 = vst [vmem:[#allocation2 + $0xd8] sm:$0xff] 0.0
          %535 = vst [vmem:[#allocation2 + $0xe0] sm:$0xff] 0.0
          %536 = vst [vmem:[#allocation2 + $0xe8] sm:$0xff] 0.0
          %537 = vst [vmem:[#allocation2 + $0xf0] sm:$0xff] 0.0
          %538 = vst [vmem:[#allocation2 + $0xf8] sm:$0xff] 0.0
        $region90: #{gin_forward.7} parent=81 // pred_fallthru
          _
        %v539 = vld [vmem:[%s444] sm:$0xff]
        %v540 = vld [vmem:[%s444 + $0x8] sm:$0xff]
        %v541 = vld [vmem:[%s444 + $0x10] sm:$0xff]
        %v542 = vld [vmem:[%s444 + $0x18] sm:$0xff]
        %v543 = vld [vmem:[%s444 + $0x20] sm:$0xff]
        %v544 = vld [vmem:[%s444 + $0x28] sm:$0xff]
        %v545 = vld [vmem:[%s444 + $0x30] sm:$0xff]
        %v546 = vld [vmem:[%s444 + $0x38] sm:$0xff]
        %v547 = vld [vmem:[%s444 + $0x40] sm:$0xff]
        %v548 = vld [vmem:[%s444 + $0x48] sm:$0xff]
        %v549 = vld [vmem:[%s444 + $0x50] sm:$0xff]
        %v550 = vld [vmem:[%s444 + $0x58] sm:$0xff]
        %v551 = vld [vmem:[%s444 + $0x60] sm:$0xff]
        %v552 = vld [vmem:[%s444 + $0x68] sm:$0xff]
        %v553 = vld [vmem:[%s444 + $0x70] sm:$0xff]
        %v554 = vld [vmem:[%s444 + $0x78] sm:$0xff]
        %v555 = vld [vmem:[%s444 + $0x80] sm:$0xff]
        %v556 = vld [vmem:[%s444 + $0x88] sm:$0xff]
        %v557 = vld [vmem:[%s444 + $0x90] sm:$0xff]
        %v558 = vld [vmem:[%s444 + $0x98] sm:$0xff]
        %v559 = vld [vmem:[%s444 + $0xa0] sm:$0xff]
        %v560 = vld [vmem:[%s444 + $0xa8] sm:$0xff]
        %v561 = vld [vmem:[%s444 + $0xb0] sm:$0xff]
        %v562 = vld [vmem:[%s444 + $0xb8] sm:$0xff]
        %v563 = vld [vmem:[%s444 + $0xc0] sm:$0xff]
        %v564 = vld [vmem:[%s444 + $0xc8] sm:$0xff]
        %v565 = vld [vmem:[%s444 + $0xd0] sm:$0xff]
        %v566 = vld [vmem:[%s444 + $0xd8] sm:$0xff]
        %v567 = vld [vmem:[%s444 + $0xe0] sm:$0xff]
        %v568 = vld [vmem:[%s444 + $0xe8] sm:$0xff]
        %v569 = vld [vmem:[%s444 + $0xf0] sm:$0xff]
        %v570 = vld [vmem:[%s444 + $0xf8] sm:$0xff]
        %v571 = vunpack.c.l.bf16 %v539
        %v572 = vunpack.c.h.bf16 %v539
        %v573 = vunpack.c.l.bf16 %v540
        %v574 = vunpack.c.h.bf16 %v540
        %v575 = vunpack.c.l.bf16 %v541
        %v576 = vunpack.c.h.bf16 %v541
        %v577 = vunpack.c.l.bf16 %v542
        %v578 = vunpack.c.h.bf16 %v542
        %v579 = vunpack.c.l.bf16 %v543
        %v580 = vunpack.c.h.bf16 %v543
        %v581 = vunpack.c.l.bf16 %v544
        %v582 = vunpack.c.h.bf16 %v544
        %v583 = vunpack.c.l.bf16 %v545
        %v584 = vunpack.c.h.bf16 %v545
        %v585 = vunpack.c.l.bf16 %v546
        %v586 = vunpack.c.h.bf16 %v546
        %v587 = vunpack.c.l.bf16 %v547
        %v588 = vunpack.c.h.bf16 %v547
        %v589 = vunpack.c.l.bf16 %v548
        %v590 = vunpack.c.h.bf16 %v548
        %v591 = vunpack.c.l.bf16 %v549
        %v592 = vunpack.c.h.bf16 %v549
        %v593 = vunpack.c.l.bf16 %v550
        %v594 = vunpack.c.h.bf16 %v550
        %v595 = vunpack.c.l.bf16 %v551
        %v596 = vunpack.c.h.bf16 %v551
        %v597 = vunpack.c.l.bf16 %v552
        %v598 = vunpack.c.h.bf16 %v552
        %v599 = vunpack.c.l.bf16 %v553
        %v600 = vunpack.c.h.bf16 %v553
        %v601 = vunpack.c.l.bf16 %v554
        %v602 = vunpack.c.h.bf16 %v554
        %v603 = vunpack.c.l.bf16 %v555
        %v604 = vunpack.c.h.bf16 %v555
        %v605 = vunpack.c.l.bf16 %v556
        %v606 = vunpack.c.h.bf16 %v556
        %v607 = vunpack.c.l.bf16 %v557
        %v608 = vunpack.c.h.bf16 %v557
        %v609 = vunpack.c.l.bf16 %v558
        %v610 = vunpack.c.h.bf16 %v558
        %v611 = vunpack.c.l.bf16 %v559
        %v612 = vunpack.c.h.bf16 %v559
        %v613 = vunpack.c.l.bf16 %v560
        %v614 = vunpack.c.h.bf16 %v560
        %v615 = vunpack.c.l.bf16 %v561
        %v616 = vunpack.c.h.bf16 %v561
        %v617 = vunpack.c.l.bf16 %v562
        %v618 = vunpack.c.h.bf16 %v562
        %v619 = vunpack.c.l.bf16 %v563
        %v620 = vunpack.c.h.bf16 %v563
        %v621 = vunpack.c.l.bf16 %v564
        %v622 = vunpack.c.h.bf16 %v564
        %v623 = vunpack.c.l.bf16 %v565
        %v624 = vunpack.c.h.bf16 %v565
        %v625 = vunpack.c.l.bf16 %v566
        %v626 = vunpack.c.h.bf16 %v566
        %v627 = vunpack.c.l.bf16 %v567
        %v628 = vunpack.c.h.bf16 %v567
        %v629 = vunpack.c.l.bf16 %v568
        %v630 = vunpack.c.h.bf16 %v568
        %v631 = vunpack.c.l.bf16 %v569
        %v632 = vunpack.c.h.bf16 %v569
        %v633 = vunpack.c.l.bf16 %v570
        %v634 = vunpack.c.h.bf16 %v570
        %v635 = vld [vmem:[#allocation2] sm:$0xff]
        %v636 = vld [vmem:[#allocation2 + $0x8] sm:$0xff]
        %v637 = vld [vmem:[#allocation2 + $0x10] sm:$0xff]
        %v638 = vld [vmem:[#allocation2 + $0x18] sm:$0xff]
        %v639 = vld [vmem:[#allocation2 + $0x20] sm:$0xff]
        %v640 = vld [vmem:[#allocation2 + $0x28] sm:$0xff]
        %v641 = vld [vmem:[#allocation2 + $0x30] sm:$0xff]
        %v642 = vld [vmem:[#allocation2 + $0x38] sm:$0xff]
        %v643 = vld [vmem:[#allocation2 + $0x40] sm:$0xff]
        %v644 = vld [vmem:[#allocation2 + $0x48] sm:$0xff]
        %v645 = vld [vmem:[#allocation2 + $0x50] sm:$0xff]
        %v646 = vld [vmem:[#allocation2 + $0x58] sm:$0xff]
        %v647 = vld [vmem:[#allocation2 + $0x60] sm:$0xff]
        %v648 = vld [vmem:[#allocation2 + $0x68] sm:$0xff]
        %v649 = vld [vmem:[#allocation2 + $0x70] sm:$0xff]
        %v650 = vld [vmem:[#allocation2 + $0x78] sm:$0xff]
        %v651 = vld [vmem:[#allocation2 + $0x80] sm:$0xff]
        %v652 = vld [vmem:[#allocation2 + $0x88] sm:$0xff]
        %v653 = vld [vmem:[#allocation2 + $0x90] sm:$0xff]
        %v654 = vld [vmem:[#allocation2 + $0x98] sm:$0xff]
        %v655 = vld [vmem:[#allocation2 + $0xa0] sm:$0xff]
        %v656 = vld [vmem:[#allocation2 + $0xa8] sm:$0xff]
        %v657 = vld [vmem:[#allocation2 + $0xb0] sm:$0xff]
        %v658 = vld [vmem:[#allocation2 + $0xb8] sm:$0xff]
        %v659 = vld [vmem:[#allocation2 + $0xc0] sm:$0xff]
        %v660 = vld [vmem:[#allocation2 + $0xc8] sm:$0xff]
        %v661 = vld [vmem:[#allocation2 + $0xd0] sm:$0xff]
        %v662 = vld [vmem:[#allocation2 + $0xd8] sm:$0xff]
        %v663 = vld [vmem:[#allocation2 + $0xe0] sm:$0xff]
        %v664 = vld [vmem:[#allocation2 + $0xe8] sm:$0xff]
        %v665 = vld [vmem:[#allocation2 + $0xf0] sm:$0xff]
        %v666 = vld [vmem:[#allocation2 + $0xf8] sm:$0xff]
        %v667 = vld [vmem:[%s489] sm:$0xff]
        %v668 = vld [vmem:[%s489 + $0x8] sm:$0xff]
        %v669 = vld [vmem:[%s489 + $0x10] sm:$0xff]
        %v670 = vld [vmem:[%s489 + $0x18] sm:$0xff]
        %v671 = vld [vmem:[%s489 + $0x20] sm:$0xff]
        %v672 = vld [vmem:[%s489 + $0x28] sm:$0xff]
        %v673 = vld [vmem:[%s489 + $0x30] sm:$0xff]
        %v674 = vld [vmem:[%s489 + $0x38] sm:$0xff]
        %v675 = vld [vmem:[%s489 + $0x40] sm:$0xff]
        %v676 = vld [vmem:[%s489 + $0x48] sm:$0xff]
        %v677 = vld [vmem:[%s489 + $0x50] sm:$0xff]
        %v678 = vld [vmem:[%s489 + $0x58] sm:$0xff]
        %v679 = vld [vmem:[%s489 + $0x60] sm:$0xff]
        %v680 = vld [vmem:[%s489 + $0x68] sm:$0xff]
        %v681 = vld [vmem:[%s489 + $0x70] sm:$0xff]
        %v682 = vld [vmem:[%s489 + $0x78] sm:$0xff]
        %v683 = vld [vmem:[%s489 + $0x80] sm:$0xff]
        %v684 = vld [vmem:[%s489 + $0x88] sm:$0xff]
        %v685 = vld [vmem:[%s489 + $0x90] sm:$0xff]
        %v686 = vld [vmem:[%s489 + $0x98] sm:$0xff]
        %v687 = vld [vmem:[%s489 + $0xa0] sm:$0xff]
        %v688 = vld [vmem:[%s489 + $0xa8] sm:$0xff]
        %v689 = vld [vmem:[%s489 + $0xb0] sm:$0xff]
        %v690 = vld [vmem:[%s489 + $0xb8] sm:$0xff]
        %v691 = vld [vmem:[%s489 + $0xc0] sm:$0xff]
        %v692 = vld [vmem:[%s489 + $0xc8] sm:$0xff]
        %v693 = vld [vmem:[%s489 + $0xd0] sm:$0xff]
        %v694 = vld [vmem:[%s489 + $0xd8] sm:$0xff]
        %v695 = vld [vmem:[%s489 + $0xe0] sm:$0xff]
        %v696 = vld [vmem:[%s489 + $0xe8] sm:$0xff]
        %v697 = vld [vmem:[%s489 + $0xf0] sm:$0xff]
        %v698 = vld [vmem:[%s489 + $0xf8] sm:$0xff]
        %699 = vmatprep.subr.mxu0 0.0
        %700 = vmatpush1.msra.mxu0 %v682
        %701 = vmatprep.subr.mxu0 0.0
        %702 = vmatpush1.msra.mxu0 %v681
        %703 = vmatprep.subr.mxu0 0.0
        %704 = vmatpush1.msra.mxu0 %v680
        %705 = vmatprep.subr.mxu0 0.0
        %706 = vmatpush1.msra.mxu0 %v679
        %707 = vmatprep.subr.mxu0 0.0
        %708 = vmatpush1.msra.mxu0 %v678
        %709 = vmatprep.subr.mxu0 0.0
        %710 = vmatpush1.msra.mxu0 %v677
        %711 = vmatprep.subr.mxu0 0.0
        %712 = vmatpush1.msra.mxu0 %v676
        %713 = vmatprep.subr.mxu0 0.0
        %714 = vmatpush1.msra.mxu0 %v675
        %715 = vmatprep.subr.mxu0 0.0
        %716 = vmatpush1.msra.mxu0 %v674
        %717 = vmatprep.subr.mxu0 0.0
        %718 = vmatpush1.msra.mxu0 %v673
        %719 = vmatprep.subr.mxu0 0.0
        %720 = vmatpush1.msra.mxu0 %v672
        %721 = vmatprep.subr.mxu0 0.0
        %722 = vmatpush1.msra.mxu0 %v671
        %723 = vmatprep.subr.mxu0 0.0
        %724 = vmatpush1.msra.mxu0 %v670
        %725 = vmatprep.subr.mxu0 0.0
        %726 = vmatpush1.msra.mxu0 %v669
        %727 = vmatprep.subr.mxu0 0.0
        %728 = vmatpush1.msra.mxu0 %v668
        %729 = vmatprep.subr.mxu0 0.0
        %730 = vmatpush1.msra.mxu0 %v667
        %731 = vmatprep.subr.mxu0 0.0
        %732 = vmatpush2.msra.mxu0 %v698
        %733 = vmatprep.subr.mxu0 0.0
        %734 = vmatpush2.msra.mxu0 %v697
        %735 = vmatprep.subr.mxu0 0.0
        %736 = vmatpush2.msra.mxu0 %v696
        %737 = vmatprep.subr.mxu0 0.0
        %738 = vmatpush2.msra.mxu0 %v695
        %739 = vmatprep.subr.mxu0 0.0
        %740 = vmatpush2.msra.mxu0 %v694
        %741 = vmatprep.subr.mxu0 0.0
        %742 = vmatpush2.msra.mxu0 %v693
        %743 = vmatprep.subr.mxu0 0.0
        %744 = vmatpush2.msra.mxu0 %v692
        %745 = vmatprep.subr.mxu0 0.0
        %746 = vmatpush2.msra.mxu0 %v691
        %747 = vmatprep.subr.mxu0 0.0
        %748 = vmatpush2.msra.mxu0 %v690
        %749 = vmatprep.subr.mxu0 0.0
        %750 = vmatpush2.msra.mxu0 %v689
        %751 = vmatprep.subr.mxu0 0.0
        %752 = vmatpush2.msra.mxu0 %v688
        %753 = vmatprep.subr.mxu0 0.0
        %754 = vmatpush2.msra.mxu0 %v687
        %755 = vmatprep.subr.mxu0 0.0
        %756 = vmatpush2.msra.mxu0 %v686
        %757 = vmatprep.subr.mxu0 0.0
        %758 = vmatpush2.msra.mxu0 %v685
        %759 = vmatprep.subr.mxu0 0.0
        %760 = vmatpush2.msra.mxu0 %v684
        %761 = vmatprep.subr.mxu0 0.0
        %762 = vmatpush2.msra.mxu0 %v683
        %763 = vmatprep.mubr.f32.mxu0 %v572
        %764 = vmatmul.mubr.f32.gmra.mxu0 %v571
        %v765 = vpop.f32.mrf.mxu0
        %v766 = vadd.f32 0.0, %v765
        %v767 = vpop.f32.mrf.mxu0
        %768 = vmatprep.mubr.f32.mxu0 %v574
        %769 = vmatmul.mubr.f32.gmra.mxu0 %v573
        %v770 = vpop.f32.mrf.mxu0
        %v771 = vadd.f32 0.0, %v770
        %v772 = vpop.f32.mrf.mxu0
        %773 = vmatprep.mubr.f32.mxu0 %v576
        %774 = vmatmul.mubr.f32.gmra.mxu0 %v575
        %v775 = vpop.f32.mrf.mxu0
        %v776 = vadd.f32 0.0, %v775
        %v777 = vpop.f32.mrf.mxu0
        %778 = vmatprep.mubr.f32.mxu0 %v578
        %779 = vmatmul.mubr.f32.gmra.mxu0 %v577
        %v780 = vpop.f32.mrf.mxu0
        %v781 = vadd.f32 0.0, %v780
        %v782 = vpop.f32.mrf.mxu0
        %783 = vmatprep.mubr.f32.mxu0 %v580
        %784 = vmatmul.mubr.f32.gmra.mxu0 %v579
        %v785 = vpop.f32.mrf.mxu0
        %v786 = vadd.f32 0.0, %v785
        %v787 = vpop.f32.mrf.mxu0
        %788 = vmatprep.mubr.f32.mxu0 %v582
        %789 = vmatmul.mubr.f32.gmra.mxu0 %v581
        %v790 = vpop.f32.mrf.mxu0
        %v791 = vadd.f32 0.0, %v790
        %v792 = vpop.f32.mrf.mxu0
        %793 = vmatprep.mubr.f32.mxu0 %v584
        %794 = vmatmul.mubr.f32.gmra.mxu0 %v583
        %v795 = vpop.f32.mrf.mxu0
        %v796 = vadd.f32 0.0, %v795
        %v797 = vpop.f32.mrf.mxu0
        %798 = vmatprep.mubr.f32.mxu0 %v586
        %799 = vmatmul.mubr.f32.gmra.mxu0 %v585
        %v800 = vpop.f32.mrf.mxu0
        %v801 = vadd.f32 0.0, %v800
        %v802 = vpop.f32.mrf.mxu0
        %803 = vmatprep.mubr.f32.mxu0 %v588
        %804 = vmatmul.mubr.f32.gmra.mxu0 %v587
        %v805 = vpop.f32.mrf.mxu0
        %v806 = vadd.f32 0.0, %v805
        %v807 = vpop.f32.mrf.mxu0
        %808 = vmatprep.mubr.f32.mxu0 %v590
        %809 = vmatmul.mubr.f32.gmra.mxu0 %v589
        %v810 = vpop.f32.mrf.mxu0
        %v811 = vadd.f32 0.0, %v810
        %v812 = vpop.f32.mrf.mxu0
        %813 = vmatprep.mubr.f32.mxu0 %v592
        %814 = vmatmul.mubr.f32.gmra.mxu0 %v591
        %v815 = vpop.f32.mrf.mxu0
        %v816 = vadd.f32 0.0, %v815
        %v817 = vpop.f32.mrf.mxu0
        %818 = vmatprep.mubr.f32.mxu0 %v594
        %819 = vmatmul.mubr.f32.gmra.mxu0 %v593
        %v820 = vpop.f32.mrf.mxu0
        %v821 = vadd.f32 0.0, %v820
        %v822 = vpop.f32.mrf.mxu0
        %823 = vmatprep.mubr.f32.mxu0 %v596
        %824 = vmatmul.mubr.f32.gmra.mxu0 %v595
        %v825 = vpop.f32.mrf.mxu0
        %v826 = vadd.f32 0.0, %v825
        %v827 = vpop.f32.mrf.mxu0
        %828 = vmatprep.mubr.f32.mxu0 %v598
        %829 = vmatmul.mubr.f32.gmra.mxu0 %v597
        %v830 = vpop.f32.mrf.mxu0
        %v831 = vadd.f32 0.0, %v830
        %v832 = vpop.f32.mrf.mxu0
        %833 = vmatprep.mubr.f32.mxu0 %v600
        %834 = vmatmul.mubr.f32.gmra.mxu0 %v599
        %v835 = vpop.f32.mrf.mxu0
        %v836 = vadd.f32 0.0, %v835
        %v837 = vpop.f32.mrf.mxu0
        %838 = vmatprep.mubr.f32.mxu0 %v602
        %839 = vmatmul.mubr.f32.gmra.mxu0 %v601
        %v840 = vpop.f32.mrf.mxu0
        %v841 = vadd.f32 0.0, %v840
        %v842 = vpop.f32.mrf.mxu0
        %843 = vmatprep.mubr.f32.mxu0 %v604
        %844 = vmatmul.mubr.f32.gmra.mxu0 %v603
        %v845 = vpop.f32.mrf.mxu0
        %v846 = vadd.f32 0.0, %v845
        %v847 = vpop.f32.mrf.mxu0
        %848 = vmatprep.mubr.f32.mxu0 %v606
        %849 = vmatmul.mubr.f32.gmra.mxu0 %v605
        %v850 = vpop.f32.mrf.mxu0
        %v851 = vadd.f32 0.0, %v850
        %v852 = vpop.f32.mrf.mxu0
        %853 = vmatprep.mubr.f32.mxu0 %v608
        %854 = vmatmul.mubr.f32.gmra.mxu0 %v607
        %v855 = vpop.f32.mrf.mxu0
        %v856 = vadd.f32 0.0, %v855
        %v857 = vpop.f32.mrf.mxu0
        %858 = vmatprep.mubr.f32.mxu0 %v610
        %859 = vmatmul.mubr.f32.gmra.mxu0 %v609
        %v860 = vpop.f32.mrf.mxu0
        %v861 = vadd.f32 0.0, %v860
        %v862 = vpop.f32.mrf.mxu0
        %863 = vmatprep.mubr.f32.mxu0 %v612
        %864 = vmatmul.mubr.f32.gmra.mxu0 %v611
        %v865 = vpop.f32.mrf.mxu0
        %v866 = vadd.f32 0.0, %v865
        %v867 = vpop.f32.mrf.mxu0
        %868 = vmatprep.mubr.f32.mxu0 %v614
        %869 = vmatmul.mubr.f32.gmra.mxu0 %v613
        %v870 = vpop.f32.mrf.mxu0
        %v871 = vadd.f32 0.0, %v870
        %v872 = vpop.f32.mrf.mxu0
        %873 = vmatprep.mubr.f32.mxu0 %v616
        %874 = vmatmul.mubr.f32.gmra.mxu0 %v615
        %v875 = vpop.f32.mrf.mxu0
        %v876 = vadd.f32 0.0, %v875
        %v877 = vpop.f32.mrf.mxu0
        %878 = vmatprep.mubr.f32.mxu0 %v618
        %879 = vmatmul.mubr.f32.gmra.mxu0 %v617
        %v880 = vpop.f32.mrf.mxu0
        %v881 = vadd.f32 0.0, %v880
        %v882 = vpop.f32.mrf.mxu0
        %883 = vmatprep.mubr.f32.mxu0 %v620
        %884 = vmatmul.mubr.f32.gmra.mxu0 %v619
        %v885 = vpop.f32.mrf.mxu0
        %v886 = vadd.f32 0.0, %v885
        %v887 = vpop.f32.mrf.mxu0
        %888 = vmatprep.mubr.f32.mxu0 %v622
        %889 = vmatmul.mubr.f32.gmra.mxu0 %v621
        %v890 = vpop.f32.mrf.mxu0
        %v891 = vadd.f32 0.0, %v890
        %v892 = vpop.f32.mrf.mxu0
        %893 = vmatprep.mubr.f32.mxu0 %v624
        %894 = vmatmul.mubr.f32.gmra.mxu0 %v623
        %v895 = vpop.f32.mrf.mxu0
        %v896 = vadd.f32 0.0, %v895
        %v897 = vpop.f32.mrf.mxu0
        %898 = vmatprep.mubr.f32.mxu0 %v626
        %899 = vmatmul.mubr.f32.gmra.mxu0 %v625
        %v900 = vpop.f32.mrf.mxu0
        %v901 = vadd.f32 0.0, %v900
        %v902 = vpop.f32.mrf.mxu0
        %903 = vmatprep.mubr.f32.mxu0 %v628
        %904 = vmatmul.mubr.f32.gmra.mxu0 %v627
        %v905 = vpop.f32.mrf.mxu0
        %v906 = vadd.f32 0.0, %v905
        %v907 = vpop.f32.mrf.mxu0
        %908 = vmatprep.mubr.f32.mxu0 %v630
        %909 = vmatmul.mubr.f32.gmra.mxu0 %v629
        %v910 = vpop.f32.mrf.mxu0
        %v911 = vadd.f32 0.0, %v910
        %v912 = vpop.f32.mrf.mxu0
        %913 = vmatprep.mubr.f32.mxu0 %v632
        %914 = vmatmul.mubr.f32.gmra.mxu0 %v631
        %v915 = vpop.f32.mrf.mxu0
        %v916 = vadd.f32 0.0, %v915
        %v917 = vpop.f32.mrf.mxu0
        %918 = vmatprep.mubr.f32.mxu0 %v634
        %919 = vmatmul.mubr.f32.gmra.mxu0 %v633
        %v920 = vpop.f32.mrf.mxu0
        %v921 = vadd.f32 0.0, %v920
        %v922 = vpop.f32.mrf.mxu0
        %923 = vdwg.mxu0
        %v924 = vadd.f32 %v635, %v766
        %v925 = vadd.f32 %v636, %v771
        %v926 = vadd.f32 %v637, %v776
        %v927 = vadd.f32 %v638, %v781
        %v928 = vadd.f32 %v639, %v786
        %v929 = vadd.f32 %v640, %v791
        %v930 = vadd.f32 %v641, %v796
        %v931 = vadd.f32 %v642, %v801
        %v932 = vadd.f32 %v643, %v806
        %v933 = vadd.f32 %v644, %v811
        %v934 = vadd.f32 %v645, %v816
        %v935 = vadd.f32 %v646, %v821
        %v936 = vadd.f32 %v647, %v826
        %v937 = vadd.f32 %v648, %v831
        %v938 = vadd.f32 %v649, %v836
        %v939 = vadd.f32 %v650, %v841
        %v940 = vadd.f32 %v651, %v846
        %v941 = vadd.f32 %v652, %v851
        %v942 = vadd.f32 %v653, %v856
        %v943 = vadd.f32 %v654, %v861
        %v944 = vadd.f32 %v655, %v866
        %v945 = vadd.f32 %v656, %v871
        %v946 = vadd.f32 %v657, %v876
        %v947 = vadd.f32 %v658, %v881
        %v948 = vadd.f32 %v659, %v886
        %v949 = vadd.f32 %v660, %v891
        %v950 = vadd.f32 %v661, %v896
        %v951 = vadd.f32 %v662, %v901
        %v952 = vadd.f32 %v663, %v906
        %v953 = vadd.f32 %v664, %v911
        %v954 = vadd.f32 %v665, %v916
        %v955 = vadd.f32 %v666, %v921
        %956 = vst [vmem:[#allocation2] sm:$0xff] %v924
        %957 = vst [vmem:[#allocation2 + $0x8] sm:$0xff] %v925
        %958 = vst [vmem:[#allocation2 + $0x10] sm:$0xff] %v926
        %959 = vst [vmem:[#allocation2 + $0x18] sm:$0xff] %v927
        %960 = vst [vmem:[#allocation2 + $0x20] sm:$0xff] %v928
        %961 = vst [vmem:[#allocation2 + $0x28] sm:$0xff] %v929
        %962 = vst [vmem:[#allocation2 + $0x30] sm:$0xff] %v930
        %963 = vst [vmem:[#allocation2 + $0x38] sm:$0xff] %v931
        %964 = vst [vmem:[#allocation2 + $0x40] sm:$0xff] %v932
        %965 = vst [vmem:[#allocation2 + $0x48] sm:$0xff] %v933
        %966 = vst [vmem:[#allocation2 + $0x50] sm:$0xff] %v934
        %967 = vst [vmem:[#allocation2 + $0x58] sm:$0xff] %v935
        %968 = vst [vmem:[#allocation2 + $0x60] sm:$0xff] %v936
        %969 = vst [vmem:[#allocation2 + $0x68] sm:$0xff] %v937
        %970 = vst [vmem:[#allocation2 + $0x70] sm:$0xff] %v938
        %971 = vst [vmem:[#allocation2 + $0x78] sm:$0xff] %v939
        %972 = vst [vmem:[#allocation2 + $0x80] sm:$0xff] %v940
        %973 = vst [vmem:[#allocation2 + $0x88] sm:$0xff] %v941
        %974 = vst [vmem:[#allocation2 + $0x90] sm:$0xff] %v942
        %975 = vst [vmem:[#allocation2 + $0x98] sm:$0xff] %v943
        %976 = vst [vmem:[#allocation2 + $0xa0] sm:$0xff] %v944
        %977 = vst [vmem:[#allocation2 + $0xa8] sm:$0xff] %v945
        %978 = vst [vmem:[#allocation2 + $0xb0] sm:$0xff] %v946
        %979 = vst [vmem:[#allocation2 + $0xb8] sm:$0xff] %v947
        %980 = vst [vmem:[#allocation2 + $0xc0] sm:$0xff] %v948
        %981 = vst [vmem:[#allocation2 + $0xc8] sm:$0xff] %v949
        %982 = vst [vmem:[#allocation2 + $0xd0] sm:$0xff] %v950
        %983 = vst [vmem:[#allocation2 + $0xd8] sm:$0xff] %v951
        %984 = vst [vmem:[#allocation2 + $0xe0] sm:$0xff] %v952
        %985 = vst [vmem:[#allocation2 + $0xe8] sm:$0xff] %v953
        %986 = vst [vmem:[#allocation2 + $0xf0] sm:$0xff] %v954
        %987 = vst [vmem:[#allocation2 + $0xf8] sm:$0xff] %v955
        %p988 = scmp.eq.s32.totalorder %s23, 1
        // Predicated region
        $region91: #{gin_forward.7} parent=81 // pred_check
          %p989 = pneg %p988
        $region92: #{gin_forward.7} parent=81 // pred_check_branch
          %991 = sbr.rel (%p989) target = $region94
        $region93: #{gin_forward.7} parent=81 // pred_region
          %v992 = vld [vmem:[#allocation2] sm:$0xff]
          %v993 = vld [vmem:[#allocation2 + $0x8] sm:$0xff]
          %v994 = vld [vmem:[#allocation2 + $0x10] sm:$0xff]
          %v995 = vld [vmem:[#allocation2 + $0x18] sm:$0xff]
          %v996 = vld [vmem:[#allocation2 + $0x20] sm:$0xff]
          %v997 = vld [vmem:[#allocation2 + $0x28] sm:$0xff]
          %v998 = vld [vmem:[#allocation2 + $0x30] sm:$0xff]
          %v999 = vld [vmem:[#allocation2 + $0x38] sm:$0xff]
          %v1000 = vld [vmem:[#allocation2 + $0x40] sm:$0xff]
          %v1001 = vld [vmem:[#allocation2 + $0x48] sm:$0xff]
          %v1002 = vld [vmem:[#allocation2 + $0x50] sm:$0xff]
          %v1003 = vld [vmem:[#allocation2 + $0x58] sm:$0xff]
          %v1004 = vld [vmem:[#allocation2 + $0x60] sm:$0xff]
          %v1005 = vld [vmem:[#allocation2 + $0x68] sm:$0xff]
          %v1006 = vld [vmem:[#allocation2 + $0x70] sm:$0xff]
          %v1007 = vld [vmem:[#allocation2 + $0x78] sm:$0xff]
          %v1008 = vld [vmem:[#allocation2 + $0x80] sm:$0xff]
          %v1009 = vld [vmem:[#allocation2 + $0x88] sm:$0xff]
          %v1010 = vld [vmem:[#allocation2 + $0x90] sm:$0xff]
          %v1011 = vld [vmem:[#allocation2 + $0x98] sm:$0xff]
          %v1012 = vld [vmem:[#allocation2 + $0xa0] sm:$0xff]
          %v1013 = vld [vmem:[#allocation2 + $0xa8] sm:$0xff]
          %v1014 = vld [vmem:[#allocation2 + $0xb0] sm:$0xff]
          %v1015 = vld [vmem:[#allocation2 + $0xb8] sm:$0xff]
          %v1016 = vld [vmem:[#allocation2 + $0xc0] sm:$0xff]
          %v1017 = vld [vmem:[#allocation2 + $0xc8] sm:$0xff]
          %v1018 = vld [vmem:[#allocation2 + $0xd0] sm:$0xff]
          %v1019 = vld [vmem:[#allocation2 + $0xd8] sm:$0xff]
          %v1020 = vld [vmem:[#allocation2 + $0xe0] sm:$0xff]
          %v1021 = vld [vmem:[#allocation2 + $0xe8] sm:$0xff]
          %v1022 = vld [vmem:[#allocation2 + $0xf0] sm:$0xff]
          %v1023 = vld [vmem:[#allocation2 + $0xf8] sm:$0xff]
          %v1024 = vld [vmem:[%s495] sm:$0xff]
          %v1025 = vld [vmem:[%s495 + $0x8] sm:$0xff]
          %v1026 = vld [vmem:[%s495 + $0x10] sm:$0xff]
          %v1027 = vld [vmem:[%s495 + $0x18] sm:$0xff]
          %v1028 = vld [vmem:[%s495 + $0x20] sm:$0xff]
          %v1029 = vld [vmem:[%s495 + $0x28] sm:$0xff]
          %v1030 = vld [vmem:[%s495 + $0x30] sm:$0xff]
          %v1031 = vld [vmem:[%s495 + $0x38] sm:$0xff]
          %v1032 = vld [vmem:[%s495 + $0x40] sm:$0xff]
          %v1033 = vld [vmem:[%s495 + $0x48] sm:$0xff]
          %v1034 = vld [vmem:[%s495 + $0x50] sm:$0xff]
          %v1035 = vld [vmem:[%s495 + $0x58] sm:$0xff]
          %v1036 = vld [vmem:[%s495 + $0x60] sm:$0xff]
          %v1037 = vld [vmem:[%s495 + $0x68] sm:$0xff]
          %v1038 = vld [vmem:[%s495 + $0x70] sm:$0xff]
          %v1039 = vld [vmem:[%s495 + $0x78] sm:$0xff]
          %v1040 = vld [vmem:[%s495 + $0x80] sm:$0xff]
          %v1041 = vld [vmem:[%s495 + $0x88] sm:$0xff]
          %v1042 = vld [vmem:[%s495 + $0x90] sm:$0xff]
          %v1043 = vld [vmem:[%s495 + $0x98] sm:$0xff]
          %v1044 = vld [vmem:[%s495 + $0xa0] sm:$0xff]
          %v1045 = vld [vmem:[%s495 + $0xa8] sm:$0xff]
          %v1046 = vld [vmem:[%s495 + $0xb0] sm:$0xff]
          %v1047 = vld [vmem:[%s495 + $0xb8] sm:$0xff]
          %v1048 = vld [vmem:[%s495 + $0xc0] sm:$0xff]
          %v1049 = vld [vmem:[%s495 + $0xc8] sm:$0xff]
          %v1050 = vld [vmem:[%s495 + $0xd0] sm:$0xff]
          %v1051 = vld [vmem:[%s495 + $0xd8] sm:$0xff]
          %v1052 = vld [vmem:[%s495 + $0xe0] sm:$0xff]
          %v1053 = vld [vmem:[%s495 + $0xe8] sm:$0xff]
          %v1054 = vld [vmem:[%s495 + $0xf0] sm:$0xff]
          %v1055 = vld [vmem:[%s495 + $0xf8] sm:$0xff]
          %v1056 = vadd.f32 %v992, %v1024
          %v1057 = vadd.f32 %v993, %v1025
          %v1058 = vadd.f32 %v994, %v1026
          %v1059 = vadd.f32 %v995, %v1027
          %v1060 = vadd.f32 %v996, %v1028
          %v1061 = vadd.f32 %v997, %v1029
          %v1062 = vadd.f32 %v998, %v1030
          %v1063 = vadd.f32 %v999, %v1031
          %v1064 = vadd.f32 %v1000, %v1032
          %v1065 = vadd.f32 %v1001, %v1033
          %v1066 = vadd.f32 %v1002, %v1034
          %v1067 = vadd.f32 %v1003, %v1035
          %v1068 = vadd.f32 %v1004, %v1036
          %v1069 = vadd.f32 %v1005, %v1037
          %v1070 = vadd.f32 %v1006, %v1038
          %v1071 = vadd.f32 %v1007, %v1039
          %v1072 = vadd.f32 %v1008, %v1040
          %v1073 = vadd.f32 %v1009, %v1041
          %v1074 = vadd.f32 %v1010, %v1042
          %v1075 = vadd.f32 %v1011, %v1043
          %v1076 = vadd.f32 %v1012, %v1044
          %v1077 = vadd.f32 %v1013, %v1045
          %v1078 = vadd.f32 %v1014, %v1046
          %v1079 = vadd.f32 %v1015, %v1047
          %v1080 = vadd.f32 %v1016, %v1048
          %v1081 = vadd.f32 %v1017, %v1049
          %v1082 = vadd.f32 %v1018, %v1050
          %v1083 = vadd.f32 %v1019, %v1051
          %v1084 = vadd.f32 %v1020, %v1052
          %v1085 = vadd.f32 %v1021, %v1053
          %v1086 = vadd.f32 %v1022, %v1054
          %v1087 = vadd.f32 %v1023, %v1055
          %v1088 = vld [vmem:[%s3] sm:$0xff]
          %v1089 = vld [vmem:[%s3 + $0x8] sm:$0xff]
          %v1090 = vld [vmem:[%s3 + $0x10] sm:$0xff]
          %v1091 = vld [vmem:[%s3 + $0x18] sm:$0xff]
          %v1092 = vld [vmem:[%s3 + $0x20] sm:$0xff]
          %v1093 = vld [vmem:[%s3 + $0x28] sm:$0xff]
          %v1094 = vld [vmem:[%s3 + $0x30] sm:$0xff]
          %v1095 = vld [vmem:[%s3 + $0x38] sm:$0xff]
          %v1096 = vld [vmem:[%s3 + $0x40] sm:$0xff]
          %v1097 = vld [vmem:[%s3 + $0x48] sm:$0xff]
          %v1098 = vld [vmem:[%s3 + $0x50] sm:$0xff]
          %v1099 = vld [vmem:[%s3 + $0x58] sm:$0xff]
          %v1100 = vld [vmem:[%s3 + $0x60] sm:$0xff]
          %v1101 = vld [vmem:[%s3 + $0x68] sm:$0xff]
          %v1102 = vld [vmem:[%s3 + $0x70] sm:$0xff]
          %v1103 = vld [vmem:[%s3 + $0x78] sm:$0xff]
          %v1104 = vld [vmem:[%s4] sm:$0x1]
          %v1106 = vlaneseq
          %v1107 = vshrl.u32 %v1106, 7
          %v1108 = vsub.s32 0, %v1107
          %v1109 = vrot.slane %v1104, %v1108
          %1111 = vmatprep.subr.mxu0 0.0
          %1112 = vmatpush1.msra.mxu0 %v1103
          %1113 = vmatprep.subr.mxu0 0.0
          %1114 = vmatpush1.msra.mxu0 %v1102
          %1115 = vmatprep.subr.mxu0 0.0
          %1116 = vmatpush1.msra.mxu0 %v1101
          %1117 = vmatprep.subr.mxu0 0.0
          %1118 = vmatpush1.msra.mxu0 %v1100
          %1119 = vmatprep.subr.mxu0 0.0
          %1120 = vmatpush1.msra.mxu0 %v1099
          %1121 = vmatprep.subr.mxu0 0.0
          %1122 = vmatpush1.msra.mxu0 %v1098
          %1123 = vmatprep.subr.mxu0 0.0
          %1124 = vmatpush1.msra.mxu0 %v1097
          %1125 = vmatprep.subr.mxu0 0.0
          %1126 = vmatpush1.msra.mxu0 %v1096
          %1127 = vmatprep.subr.mxu0 0.0
          %1128 = vmatpush1.msra.mxu0 %v1095
          %1129 = vmatprep.subr.mxu0 0.0
          %1130 = vmatpush1.msra.mxu0 %v1094
          %1131 = vmatprep.subr.mxu0 0.0
          %1132 = vmatpush1.msra.mxu0 %v1093
          %1133 = vmatprep.subr.mxu0 0.0
          %1134 = vmatpush1.msra.mxu0 %v1092
          %1135 = vmatprep.subr.mxu0 0.0
          %1136 = vmatpush1.msra.mxu0 %v1091
          %1137 = vmatprep.subr.mxu0 0.0
          %1138 = vmatpush1.msra.mxu0 %v1090
          %1139 = vmatprep.subr.mxu0 0.0
          %1140 = vmatpush1.msra.mxu0 %v1089
          %1141 = vmatprep.subr.mxu0 0.0
          %1142 = vmatpush1.msra.mxu0 %v1088
          %1143 = vmatprep.subr.mxu0 0.0
          %1144 = vmatpush2.msra.mxu0 0.0
          %1145 = vmatprep.subr.mxu0 0.0
          %1146 = vmatpush2.msra.mxu0 0.0
          %1147 = vmatprep.subr.mxu0 0.0
          %1148 = vmatpush2.msra.mxu0 0.0
          %1149 = vmatprep.subr.mxu0 0.0
          %1150 = vmatpush2.msra.mxu0 0.0
          %1151 = vmatprep.subr.mxu0 0.0
          %1152 = vmatpush2.msra.mxu0 0.0
          %1153 = vmatprep.subr.mxu0 0.0
          %1154 = vmatpush2.msra.mxu0 0.0
          %1155 = vmatprep.subr.mxu0 0.0
          %1156 = vmatpush2.msra.mxu0 0.0
          %1157 = vmatprep.subr.mxu0 0.0
          %1158 = vmatpush2.msra.mxu0 0.0
          %1159 = vmatprep.subr.mxu0 0.0
          %1160 = vmatpush2.msra.mxu0 0.0
          %1161 = vmatprep.subr.mxu0 0.0
          %1162 = vmatpush2.msra.mxu0 0.0
          %1163 = vmatprep.subr.mxu0 0.0
          %1164 = vmatpush2.msra.mxu0 0.0
          %1165 = vmatprep.subr.mxu0 0.0
          %1166 = vmatpush2.msra.mxu0 0.0
          %1167 = vmatprep.subr.mxu0 0.0
          %1168 = vmatpush2.msra.mxu0 0.0
          %1169 = vmatprep.subr.mxu0 0.0
          %1170 = vmatpush2.msra.mxu0 0.0
          %1171 = vmatprep.subr.mxu0 0.0
          %1172 = vmatpush2.msra.mxu0 0.0
          %1173 = vmatprep.subr.mxu0 0.0
          %1174 = vmatpush2.msra.mxu0 0.0
          %1175 = vmatprep.mubr.f32.mxu0 0.0
          %1176 = vmatmul.mubr.f32.gmra.mxu0 %v1056
          %v1177 = vpop.f32.mrf.mxu0
          %v1178 = vadd.f32 %v1109, %v1177
          %v1179 = vpop.f32.mrf.mxu0
          %1180 = vmatprep.mubr.f32.mxu0 0.0
          %1181 = vmatmul.mubr.f32.gmra.mxu0 %v1057
          %v1182 = vpop.f32.mrf.mxu0
          %v1183 = vadd.f32 %v1109, %v1182
          %v1184 = vpop.f32.mrf.mxu0
          %1185 = vmatprep.mubr.f32.mxu0 0.0
          %1186 = vmatmul.mubr.f32.gmra.mxu0 %v1058
          %v1187 = vpop.f32.mrf.mxu0
          %v1188 = vadd.f32 %v1109, %v1187
          %v1189 = vpop.f32.mrf.mxu0
          %1190 = vmatprep.mubr.f32.mxu0 0.0
          %1191 = vmatmul.mubr.f32.gmra.mxu0 %v1059
          %v1192 = vpop.f32.mrf.mxu0
          %v1193 = vadd.f32 %v1109, %v1192
          %v1194 = vpop.f32.mrf.mxu0
          %1195 = vmatprep.mubr.f32.mxu0 0.0
          %1196 = vmatmul.mubr.f32.gmra.mxu0 %v1060
          %v1197 = vpop.f32.mrf.mxu0
          %v1198 = vadd.f32 %v1109, %v1197
          %v1199 = vpop.f32.mrf.mxu0
          %1200 = vmatprep.mubr.f32.mxu0 0.0
          %1201 = vmatmul.mubr.f32.gmra.mxu0 %v1061
          %v1202 = vpop.f32.mrf.mxu0
          %v1203 = vadd.f32 %v1109, %v1202
          %v1204 = vpop.f32.mrf.mxu0
          %1205 = vmatprep.mubr.f32.mxu0 0.0
          %1206 = vmatmul.mubr.f32.gmra.mxu0 %v1062
          %v1207 = vpop.f32.mrf.mxu0
          %v1208 = vadd.f32 %v1109, %v1207
          %v1209 = vpop.f32.mrf.mxu0
          %1210 = vmatprep.mubr.f32.mxu0 0.0
          %1211 = vmatmul.mubr.f32.gmra.mxu0 %v1063
          %v1212 = vpop.f32.mrf.mxu0
          %v1213 = vadd.f32 %v1109, %v1212
          %v1214 = vpop.f32.mrf.mxu0
          %1215 = vmatprep.mubr.f32.mxu0 0.0
          %1216 = vmatmul.mubr.f32.gmra.mxu0 %v1064
          %v1217 = vpop.f32.mrf.mxu0
          %v1218 = vadd.f32 %v1109, %v1217
          %v1219 = vpop.f32.mrf.mxu0
          %1220 = vmatprep.mubr.f32.mxu0 0.0
          %1221 = vmatmul.mubr.f32.gmra.mxu0 %v1065
          %v1222 = vpop.f32.mrf.mxu0
          %v1223 = vadd.f32 %v1109, %v1222
          %v1224 = vpop.f32.mrf.mxu0
          %1225 = vmatprep.mubr.f32.mxu0 0.0
          %1226 = vmatmul.mubr.f32.gmra.mxu0 %v1066
          %v1227 = vpop.f32.mrf.mxu0
          %v1228 = vadd.f32 %v1109, %v1227
          %v1229 = vpop.f32.mrf.mxu0
          %1230 = vmatprep.mubr.f32.mxu0 0.0
          %1231 = vmatmul.mubr.f32.gmra.mxu0 %v1067
          %v1232 = vpop.f32.mrf.mxu0
          %v1233 = vadd.f32 %v1109, %v1232
          %v1234 = vpop.f32.mrf.mxu0
          %1235 = vmatprep.mubr.f32.mxu0 0.0
          %1236 = vmatmul.mubr.f32.gmra.mxu0 %v1068
          %v1237 = vpop.f32.mrf.mxu0
          %v1238 = vadd.f32 %v1109, %v1237
          %v1239 = vpop.f32.mrf.mxu0
          %1240 = vmatprep.mubr.f32.mxu0 0.0
          %1241 = vmatmul.mubr.f32.gmra.mxu0 %v1069
          %v1242 = vpop.f32.mrf.mxu0
          %v1243 = vadd.f32 %v1109, %v1242
          %v1244 = vpop.f32.mrf.mxu0
          %1245 = vmatprep.mubr.f32.mxu0 0.0
          %1246 = vmatmul.mubr.f32.gmra.mxu0 %v1070
          %v1247 = vpop.f32.mrf.mxu0
          %v1248 = vadd.f32 %v1109, %v1247
          %v1249 = vpop.f32.mrf.mxu0
          %1250 = vmatprep.mubr.f32.mxu0 0.0
          %1251 = vmatmul.mubr.f32.gmra.mxu0 %v1071
          %v1252 = vpop.f32.mrf.mxu0
          %v1253 = vadd.f32 %v1109, %v1252
          %v1254 = vpop.f32.mrf.mxu0
          %1255 = vmatprep.mubr.f32.mxu0 0.0
          %1256 = vmatmul.mubr.f32.gmra.mxu0 %v1072
          %v1257 = vpop.f32.mrf.mxu0
          %v1258 = vadd.f32 %v1109, %v1257
          %v1259 = vpop.f32.mrf.mxu0
          %1260 = vmatprep.mubr.f32.mxu0 0.0
          %1261 = vmatmul.mubr.f32.gmra.mxu0 %v1073
          %v1262 = vpop.f32.mrf.mxu0
          %v1263 = vadd.f32 %v1109, %v1262
          %v1264 = vpop.f32.mrf.mxu0
          %1265 = vmatprep.mubr.f32.mxu0 0.0
          %1266 = vmatmul.mubr.f32.gmra.mxu0 %v1074
          %v1267 = vpop.f32.mrf.mxu0
          %v1268 = vadd.f32 %v1109, %v1267
          %v1269 = vpop.f32.mrf.mxu0
          %1270 = vmatprep.mubr.f32.mxu0 0.0
          %1271 = vmatmul.mubr.f32.gmra.mxu0 %v1075
          %v1272 = vpop.f32.mrf.mxu0
          %v1273 = vadd.f32 %v1109, %v1272
          %v1274 = vpop.f32.mrf.mxu0
          %1275 = vmatprep.mubr.f32.mxu0 0.0
          %1276 = vmatmul.mubr.f32.gmra.mxu0 %v1076
          %v1277 = vpop.f32.mrf.mxu0
          %v1278 = vadd.f32 %v1109, %v1277
          %v1279 = vpop.f32.mrf.mxu0
          %1280 = vmatprep.mubr.f32.mxu0 0.0
          %1281 = vmatmul.mubr.f32.gmra.mxu0 %v1077
          %v1282 = vpop.f32.mrf.mxu0
          %v1283 = vadd.f32 %v1109, %v1282
          %v1284 = vpop.f32.mrf.mxu0
          %1285 = vmatprep.mubr.f32.mxu0 0.0
          %1286 = vmatmul.mubr.f32.gmra.mxu0 %v1078
          %v1287 = vpop.f32.mrf.mxu0
          %v1288 = vadd.f32 %v1109, %v1287
          %v1289 = vpop.f32.mrf.mxu0
          %1290 = vmatprep.mubr.f32.mxu0 0.0
          %1291 = vmatmul.mubr.f32.gmra.mxu0 %v1079
          %v1292 = vpop.f32.mrf.mxu0
          %v1293 = vadd.f32 %v1109, %v1292
          %v1294 = vpop.f32.mrf.mxu0
          %1295 = vmatprep.mubr.f32.mxu0 0.0
          %1296 = vmatmul.mubr.f32.gmra.mxu0 %v1080
          %v1297 = vpop.f32.mrf.mxu0
          %v1298 = vadd.f32 %v1109, %v1297
          %v1299 = vpop.f32.mrf.mxu0
          %1300 = vmatprep.mubr.f32.mxu0 0.0
          %1301 = vmatmul.mubr.f32.gmra.mxu0 %v1081
          %v1302 = vpop.f32.mrf.mxu0
          %v1303 = vadd.f32 %v1109, %v1302
          %v1304 = vpop.f32.mrf.mxu0
          %1305 = vmatprep.mubr.f32.mxu0 0.0
          %1306 = vmatmul.mubr.f32.gmra.mxu0 %v1082
          %v1307 = vpop.f32.mrf.mxu0
          %v1308 = vadd.f32 %v1109, %v1307
          %v1309 = vpop.f32.mrf.mxu0
          %1310 = vmatprep.mubr.f32.mxu0 0.0
          %1311 = vmatmul.mubr.f32.gmra.mxu0 %v1083
          %v1312 = vpop.f32.mrf.mxu0
          %v1313 = vadd.f32 %v1109, %v1312
          %v1314 = vpop.f32.mrf.mxu0
          %1315 = vmatprep.mubr.f32.mxu0 0.0
          %1316 = vmatmul.mubr.f32.gmra.mxu0 %v1084
          %v1317 = vpop.f32.mrf.mxu0
          %v1318 = vadd.f32 %v1109, %v1317
          %v1319 = vpop.f32.mrf.mxu0
          %1320 = vmatprep.mubr.f32.mxu0 0.0
          %1321 = vmatmul.mubr.f32.gmra.mxu0 %v1085
          %v1322 = vpop.f32.mrf.mxu0
          %v1323 = vadd.f32 %v1109, %v1322
          %v1324 = vpop.f32.mrf.mxu0
          %1325 = vmatprep.mubr.f32.mxu0 0.0
          %1326 = vmatmul.mubr.f32.gmra.mxu0 %v1086
          %v1327 = vpop.f32.mrf.mxu0
          %v1328 = vadd.f32 %v1109, %v1327
          %v1329 = vpop.f32.mrf.mxu0
          %1330 = vmatprep.mubr.f32.mxu0 0.0
          %1331 = vmatmul.mubr.f32.gmra.mxu0 %v1087
          %v1332 = vpop.f32.mrf.mxu0
          %v1333 = vadd.f32 %v1109, %v1332
          %v1334 = vpop.f32.mrf.mxu0
          %1335 = vdwg.mxu0
          %v1336 = vmax.f32 %v1178, 0.0
          %v1337 = vmax.f32 %v1183, 0.0
          %v1338 = vmax.f32 %v1188, 0.0
          %v1339 = vmax.f32 %v1193, 0.0
          %v1340 = vmax.f32 %v1198, 0.0
          %v1341 = vmax.f32 %v1203, 0.0
          %v1342 = vmax.f32 %v1208, 0.0
          %v1343 = vmax.f32 %v1213, 0.0
          %v1344 = vmax.f32 %v1218, 0.0
          %v1345 = vmax.f32 %v1223, 0.0
          %v1346 = vmax.f32 %v1228, 0.0
          %v1347 = vmax.f32 %v1233, 0.0
          %v1348 = vmax.f32 %v1238, 0.0
          %v1349 = vmax.f32 %v1243, 0.0
          %v1350 = vmax.f32 %v1248, 0.0
          %v1351 = vmax.f32 %v1253, 0.0
          %v1352 = vmax.f32 %v1258, 0.0
          %v1353 = vmax.f32 %v1263, 0.0
          %v1354 = vmax.f32 %v1268, 0.0
          %v1355 = vmax.f32 %v1273, 0.0
          %v1356 = vmax.f32 %v1278, 0.0
          %v1357 = vmax.f32 %v1283, 0.0
          %v1358 = vmax.f32 %v1288, 0.0
          %v1359 = vmax.f32 %v1293, 0.0
          %v1360 = vmax.f32 %v1298, 0.0
          %v1361 = vmax.f32 %v1303, 0.0
          %v1362 = vmax.f32 %v1308, 0.0
          %v1363 = vmax.f32 %v1313, 0.0
          %v1364 = vmax.f32 %v1318, 0.0
          %v1365 = vmax.f32 %v1323, 0.0
          %v1366 = vmax.f32 %v1328, 0.0
          %v1367 = vmax.f32 %v1333, 0.0
          %v1368 = vld [vmem:[%s5] sm:$0xff]
          %v1369 = vld [vmem:[%s5 + $0x8] sm:$0xff]
          %v1370 = vld [vmem:[%s5 + $0x10] sm:$0xff]
          %v1371 = vld [vmem:[%s5 + $0x18] sm:$0xff]
          %v1372 = vld [vmem:[%s5 + $0x20] sm:$0xff]
          %v1373 = vld [vmem:[%s5 + $0x28] sm:$0xff]
          %v1374 = vld [vmem:[%s5 + $0x30] sm:$0xff]
          %v1375 = vld [vmem:[%s5 + $0x38] sm:$0xff]
          %v1376 = vld [vmem:[%s5 + $0x40] sm:$0xff]
          %v1377 = vld [vmem:[%s5 + $0x48] sm:$0xff]
          %v1378 = vld [vmem:[%s5 + $0x50] sm:$0xff]
          %v1379 = vld [vmem:[%s5 + $0x58] sm:$0xff]
          %v1380 = vld [vmem:[%s5 + $0x60] sm:$0xff]
          %v1381 = vld [vmem:[%s5 + $0x68] sm:$0xff]
          %v1382 = vld [vmem:[%s5 + $0x70] sm:$0xff]
          %v1383 = vld [vmem:[%s5 + $0x78] sm:$0xff]
          %v1384 = vld [vmem:[%s6] sm:$0x1]
          %v1386 = vlaneseq
          %v1387 = vshrl.u32 %v1386, 7
          %v1388 = vsub.s32 0, %v1387
          %v1389 = vrot.slane %v1384, %v1388
          %1391 = vmatprep.subr.mxu0 0.0
          %1392 = vmatpush1.msra.mxu0 %v1383
          %1393 = vmatprep.subr.mxu0 0.0
          %1394 = vmatpush1.msra.mxu0 %v1382
          %1395 = vmatprep.subr.mxu0 0.0
          %1396 = vmatpush1.msra.mxu0 %v1381
          %1397 = vmatprep.subr.mxu0 0.0
          %1398 = vmatpush1.msra.mxu0 %v1380
          %1399 = vmatprep.subr.mxu0 0.0
          %1400 = vmatpush1.msra.mxu0 %v1379
          %1401 = vmatprep.subr.mxu0 0.0
          %1402 = vmatpush1.msra.mxu0 %v1378
          %1403 = vmatprep.subr.mxu0 0.0
          %1404 = vmatpush1.msra.mxu0 %v1377
          %1405 = vmatprep.subr.mxu0 0.0
          %1406 = vmatpush1.msra.mxu0 %v1376
          %1407 = vmatprep.subr.mxu0 0.0
          %1408 = vmatpush1.msra.mxu0 %v1375
          %1409 = vmatprep.subr.mxu0 0.0
          %1410 = vmatpush1.msra.mxu0 %v1374
          %1411 = vmatprep.subr.mxu0 0.0
          %1412 = vmatpush1.msra.mxu0 %v1373
          %1413 = vmatprep.subr.mxu0 0.0
          %1414 = vmatpush1.msra.mxu0 %v1372
          %1415 = vmatprep.subr.mxu0 0.0
          %1416 = vmatpush1.msra.mxu0 %v1371
          %1417 = vmatprep.subr.mxu0 0.0
          %1418 = vmatpush1.msra.mxu0 %v1370
          %1419 = vmatprep.subr.mxu0 0.0
          %1420 = vmatpush1.msra.mxu0 %v1369
          %1421 = vmatprep.subr.mxu0 0.0
          %1422 = vmatpush1.msra.mxu0 %v1368
          %1423 = vmatprep.subr.mxu0 0.0
          %1424 = vmatpush2.msra.mxu0 0.0
          %1425 = vmatprep.subr.mxu0 0.0
          %1426 = vmatpush2.msra.mxu0 0.0
          %1427 = vmatprep.subr.mxu0 0.0
          %1428 = vmatpush2.msra.mxu0 0.0
          %1429 = vmatprep.subr.mxu0 0.0
          %1430 = vmatpush2.msra.mxu0 0.0
          %1431 = vmatprep.subr.mxu0 0.0
          %1432 = vmatpush2.msra.mxu0 0.0
          %1433 = vmatprep.subr.mxu0 0.0
          %1434 = vmatpush2.msra.mxu0 0.0
          %1435 = vmatprep.subr.mxu0 0.0
          %1436 = vmatpush2.msra.mxu0 0.0
          %1437 = vmatprep.subr.mxu0 0.0
          %1438 = vmatpush2.msra.mxu0 0.0
          %1439 = vmatprep.subr.mxu0 0.0
          %1440 = vmatpush2.msra.mxu0 0.0
          %1441 = vmatprep.subr.mxu0 0.0
          %1442 = vmatpush2.msra.mxu0 0.0
          %1443 = vmatprep.subr.mxu0 0.0
          %1444 = vmatpush2.msra.mxu0 0.0
          %1445 = vmatprep.subr.mxu0 0.0
          %1446 = vmatpush2.msra.mxu0 0.0
          %1447 = vmatprep.subr.mxu0 0.0
          %1448 = vmatpush2.msra.mxu0 0.0
          %1449 = vmatprep.subr.mxu0 0.0
          %1450 = vmatpush2.msra.mxu0 0.0
          %1451 = vmatprep.subr.mxu0 0.0
          %1452 = vmatpush2.msra.mxu0 0.0
          %1453 = vmatprep.subr.mxu0 0.0
          %1454 = vmatpush2.msra.mxu0 0.0
          %1455 = vmatprep.mubr.f32.mxu0 0.0
          %1456 = vmatmul.mubr.f32.gmra.mxu0 %v1336
          %v1457 = vpop.f32.mrf.mxu0
          %v1458 = vadd.f32 %v1389, %v1457
          %v1459 = vpop.f32.mrf.mxu0
          %1460 = vmatprep.mubr.f32.mxu0 0.0
          %1461 = vmatmul.mubr.f32.gmra.mxu0 %v1337
          %v1462 = vpop.f32.mrf.mxu0
          %v1463 = vadd.f32 %v1389, %v1462
          %v1464 = vpop.f32.mrf.mxu0
          %1465 = vmatprep.mubr.f32.mxu0 0.0
          %1466 = vmatmul.mubr.f32.gmra.mxu0 %v1338
          %v1467 = vpop.f32.mrf.mxu0
          %v1468 = vadd.f32 %v1389, %v1467
          %v1469 = vpop.f32.mrf.mxu0
          %1470 = vmatprep.mubr.f32.mxu0 0.0
          %1471 = vmatmul.mubr.f32.gmra.mxu0 %v1339
          %v1472 = vpop.f32.mrf.mxu0
          %v1473 = vadd.f32 %v1389, %v1472
          %v1474 = vpop.f32.mrf.mxu0
          %1475 = vmatprep.mubr.f32.mxu0 0.0
          %1476 = vmatmul.mubr.f32.gmra.mxu0 %v1340
          %v1477 = vpop.f32.mrf.mxu0
          %v1478 = vadd.f32 %v1389, %v1477
          %v1479 = vpop.f32.mrf.mxu0
          %1480 = vmatprep.mubr.f32.mxu0 0.0
          %1481 = vmatmul.mubr.f32.gmra.mxu0 %v1341
          %v1482 = vpop.f32.mrf.mxu0
          %v1483 = vadd.f32 %v1389, %v1482
          %v1484 = vpop.f32.mrf.mxu0
          %1485 = vmatprep.mubr.f32.mxu0 0.0
          %1486 = vmatmul.mubr.f32.gmra.mxu0 %v1342
          %v1487 = vpop.f32.mrf.mxu0
          %v1488 = vadd.f32 %v1389, %v1487
          %v1489 = vpop.f32.mrf.mxu0
          %1490 = vmatprep.mubr.f32.mxu0 0.0
          %1491 = vmatmul.mubr.f32.gmra.mxu0 %v1343
          %v1492 = vpop.f32.mrf.mxu0
          %v1493 = vadd.f32 %v1389, %v1492
          %v1494 = vpop.f32.mrf.mxu0
          %1495 = vmatprep.mubr.f32.mxu0 0.0
          %1496 = vmatmul.mubr.f32.gmra.mxu0 %v1344
          %v1497 = vpop.f32.mrf.mxu0
          %v1498 = vadd.f32 %v1389, %v1497
          %v1499 = vpop.f32.mrf.mxu0
          %1500 = vmatprep.mubr.f32.mxu0 0.0
          %1501 = vmatmul.mubr.f32.gmra.mxu0 %v1345
          %v1502 = vpop.f32.mrf.mxu0
          %v1503 = vadd.f32 %v1389, %v1502
          %v1504 = vpop.f32.mrf.mxu0
          %1505 = vmatprep.mubr.f32.mxu0 0.0
          %1506 = vmatmul.mubr.f32.gmra.mxu0 %v1346
          %v1507 = vpop.f32.mrf.mxu0
          %v1508 = vadd.f32 %v1389, %v1507
          %v1509 = vpop.f32.mrf.mxu0
          %1510 = vmatprep.mubr.f32.mxu0 0.0
          %1511 = vmatmul.mubr.f32.gmra.mxu0 %v1347
          %v1512 = vpop.f32.mrf.mxu0
          %v1513 = vadd.f32 %v1389, %v1512
          %v1514 = vpop.f32.mrf.mxu0
          %1515 = vmatprep.mubr.f32.mxu0 0.0
          %1516 = vmatmul.mubr.f32.gmra.mxu0 %v1348
          %v1517 = vpop.f32.mrf.mxu0
          %v1518 = vadd.f32 %v1389, %v1517
          %v1519 = vpop.f32.mrf.mxu0
          %1520 = vmatprep.mubr.f32.mxu0 0.0
          %1521 = vmatmul.mubr.f32.gmra.mxu0 %v1349
          %v1522 = vpop.f32.mrf.mxu0
          %v1523 = vadd.f32 %v1389, %v1522
          %v1524 = vpop.f32.mrf.mxu0
          %1525 = vmatprep.mubr.f32.mxu0 0.0
          %1526 = vmatmul.mubr.f32.gmra.mxu0 %v1350
          %v1527 = vpop.f32.mrf.mxu0
          %v1528 = vadd.f32 %v1389, %v1527
          %v1529 = vpop.f32.mrf.mxu0
          %1530 = vmatprep.mubr.f32.mxu0 0.0
          %1531 = vmatmul.mubr.f32.gmra.mxu0 %v1351
          %v1532 = vpop.f32.mrf.mxu0
          %v1533 = vadd.f32 %v1389, %v1532
          %v1534 = vpop.f32.mrf.mxu0
          %1535 = vmatprep.mubr.f32.mxu0 0.0
          %1536 = vmatmul.mubr.f32.gmra.mxu0 %v1352
          %v1537 = vpop.f32.mrf.mxu0
          %v1538 = vadd.f32 %v1389, %v1537
          %v1539 = vpop.f32.mrf.mxu0
          %1540 = vmatprep.mubr.f32.mxu0 0.0
          %1541 = vmatmul.mubr.f32.gmra.mxu0 %v1353
          %v1542 = vpop.f32.mrf.mxu0
          %v1543 = vadd.f32 %v1389, %v1542
          %v1544 = vpop.f32.mrf.mxu0
          %1545 = vmatprep.mubr.f32.mxu0 0.0
          %1546 = vmatmul.mubr.f32.gmra.mxu0 %v1354
          %v1547 = vpop.f32.mrf.mxu0
          %v1548 = vadd.f32 %v1389, %v1547
          %v1549 = vpop.f32.mrf.mxu0
          %1550 = vmatprep.mubr.f32.mxu0 0.0
          %1551 = vmatmul.mubr.f32.gmra.mxu0 %v1355
          %v1552 = vpop.f32.mrf.mxu0
          %v1553 = vadd.f32 %v1389, %v1552
          %v1554 = vpop.f32.mrf.mxu0
          %1555 = vmatprep.mubr.f32.mxu0 0.0
          %1556 = vmatmul.mubr.f32.gmra.mxu0 %v1356
          %v1557 = vpop.f32.mrf.mxu0
          %v1558 = vadd.f32 %v1389, %v1557
          %v1559 = vpop.f32.mrf.mxu0
          %1560 = vmatprep.mubr.f32.mxu0 0.0
          %1561 = vmatmul.mubr.f32.gmra.mxu0 %v1357
          %v1562 = vpop.f32.mrf.mxu0
          %v1563 = vadd.f32 %v1389, %v1562
          %v1564 = vpop.f32.mrf.mxu0
          %1565 = vmatprep.mubr.f32.mxu0 0.0
          %1566 = vmatmul.mubr.f32.gmra.mxu0 %v1358
          %v1567 = vpop.f32.mrf.mxu0
          %v1568 = vadd.f32 %v1389, %v1567
          %v1569 = vpop.f32.mrf.mxu0
          %1570 = vmatprep.mubr.f32.mxu0 0.0
          %1571 = vmatmul.mubr.f32.gmra.mxu0 %v1359
          %v1572 = vpop.f32.mrf.mxu0
          %v1573 = vadd.f32 %v1389, %v1572
          %v1574 = vpop.f32.mrf.mxu0
          %1575 = vmatprep.mubr.f32.mxu0 0.0
          %1576 = vmatmul.mubr.f32.gmra.mxu0 %v1360
          %v1577 = vpop.f32.mrf.mxu0
          %v1578 = vadd.f32 %v1389, %v1577
          %v1579 = vpop.f32.mrf.mxu0
          %1580 = vmatprep.mubr.f32.mxu0 0.0
          %1581 = vmatmul.mubr.f32.gmra.mxu0 %v1361
          %v1582 = vpop.f32.mrf.mxu0
          %v1583 = vadd.f32 %v1389, %v1582
          %v1584 = vpop.f32.mrf.mxu0
          %1585 = vmatprep.mubr.f32.mxu0 0.0
          %1586 = vmatmul.mubr.f32.gmra.mxu0 %v1362
          %v1587 = vpop.f32.mrf.mxu0
          %v1588 = vadd.f32 %v1389, %v1587
          %v1589 = vpop.f32.mrf.mxu0
          %1590 = vmatprep.mubr.f32.mxu0 0.0
          %1591 = vmatmul.mubr.f32.gmra.mxu0 %v1363
          %v1592 = vpop.f32.mrf.mxu0
          %v1593 = vadd.f32 %v1389, %v1592
          %v1594 = vpop.f32.mrf.mxu0
          %1595 = vmatprep.mubr.f32.mxu0 0.0
          %1596 = vmatmul.mubr.f32.gmra.mxu0 %v1364
          %v1597 = vpop.f32.mrf.mxu0
          %v1598 = vadd.f32 %v1389, %v1597
          %v1599 = vpop.f32.mrf.mxu0
          %1600 = vmatprep.mubr.f32.mxu0 0.0
          %1601 = vmatmul.mubr.f32.gmra.mxu0 %v1365
          %v1602 = vpop.f32.mrf.mxu0
          %v1603 = vadd.f32 %v1389, %v1602
          %v1604 = vpop.f32.mrf.mxu0
          %1605 = vmatprep.mubr.f32.mxu0 0.0
          %1606 = vmatmul.mubr.f32.gmra.mxu0 %v1366
          %v1607 = vpop.f32.mrf.mxu0
          %v1608 = vadd.f32 %v1389, %v1607
          %v1609 = vpop.f32.mrf.mxu0
          %1610 = vmatprep.mubr.f32.mxu0 0.0
          %1611 = vmatmul.mubr.f32.gmra.mxu0 %v1367
          %v1612 = vpop.f32.mrf.mxu0
          %v1613 = vadd.f32 %v1389, %v1612
          %v1614 = vpop.f32.mrf.mxu0
          %1615 = vdwg.mxu0
          %vm1616 = vcmp.gt.f32.partialorder %v1458, 0.0
          %vm1617 = vcmp.gt.f32.partialorder %v1463, 0.0
          %vm1618 = vcmp.gt.f32.partialorder %v1468, 0.0
          %vm1619 = vcmp.gt.f32.partialorder %v1473, 0.0
          %vm1620 = vcmp.gt.f32.partialorder %v1478, 0.0
          %vm1621 = vcmp.gt.f32.partialorder %v1483, 0.0
          %vm1622 = vcmp.gt.f32.partialorder %v1488, 0.0
          %vm1623 = vcmp.gt.f32.partialorder %v1493, 0.0
          %vm1624 = vcmp.gt.f32.partialorder %v1498, 0.0
          %vm1625 = vcmp.gt.f32.partialorder %v1503, 0.0
          %vm1626 = vcmp.gt.f32.partialorder %v1508, 0.0
          %vm1627 = vcmp.gt.f32.partialorder %v1513, 0.0
          %vm1628 = vcmp.gt.f32.partialorder %v1518, 0.0
          %vm1629 = vcmp.gt.f32.partialorder %v1523, 0.0
          %vm1630 = vcmp.gt.f32.partialorder %v1528, 0.0
          %vm1631 = vcmp.gt.f32.partialorder %v1533, 0.0
          %vm1632 = vcmp.gt.f32.partialorder %v1538, 0.0
          %vm1633 = vcmp.gt.f32.partialorder %v1543, 0.0
          %vm1634 = vcmp.gt.f32.partialorder %v1548, 0.0
          %vm1635 = vcmp.gt.f32.partialorder %v1553, 0.0
          %vm1636 = vcmp.gt.f32.partialorder %v1558, 0.0
          %vm1637 = vcmp.gt.f32.partialorder %v1563, 0.0
          %vm1638 = vcmp.gt.f32.partialorder %v1568, 0.0
          %vm1639 = vcmp.gt.f32.partialorder %v1573, 0.0
          %vm1640 = vcmp.gt.f32.partialorder %v1578, 0.0
          %vm1641 = vcmp.gt.f32.partialorder %v1583, 0.0
          %vm1642 = vcmp.gt.f32.partialorder %v1588, 0.0
          %vm1643 = vcmp.gt.f32.partialorder %v1593, 0.0
          %vm1644 = vcmp.gt.f32.partialorder %v1598, 0.0
          %vm1645 = vcmp.gt.f32.partialorder %v1603, 0.0
          %vm1646 = vcmp.gt.f32.partialorder %v1608, 0.0
          %vm1647 = vcmp.gt.f32.partialorder %v1613, 0.0
          %v1648 = vmin.f32 %v1458, 0.0
          %v1649 = vmin.f32 %v1463, 0.0
          %v1650 = vmin.f32 %v1468, 0.0
          %v1651 = vmin.f32 %v1473, 0.0
          %v1652 = vmin.f32 %v1478, 0.0
          %v1653 = vmin.f32 %v1483, 0.0
          %v1654 = vmin.f32 %v1488, 0.0
          %v1655 = vmin.f32 %v1493, 0.0
          %v1656 = vmin.f32 %v1498, 0.0
          %v1657 = vmin.f32 %v1503, 0.0
          %v1658 = vmin.f32 %v1508, 0.0
          %v1659 = vmin.f32 %v1513, 0.0
          %v1660 = vmin.f32 %v1518, 0.0
          %v1661 = vmin.f32 %v1523, 0.0
          %v1662 = vmin.f32 %v1528, 0.0
          %v1663 = vmin.f32 %v1533, 0.0
          %v1664 = vmin.f32 %v1538, 0.0
          %v1665 = vmin.f32 %v1543, 0.0
          %v1666 = vmin.f32 %v1548, 0.0
          %v1667 = vmin.f32 %v1553, 0.0
          %v1668 = vmin.f32 %v1558, 0.0
          %v1669 = vmin.f32 %v1563, 0.0
          %v1670 = vmin.f32 %v1568, 0.0
          %v1671 = vmin.f32 %v1573, 0.0
          %v1672 = vmin.f32 %v1578, 0.0
          %v1673 = vmin.f32 %v1583, 0.0
          %v1674 = vmin.f32 %v1588, 0.0
          %v1675 = vmin.f32 %v1593, 0.0
          %v1676 = vmin.f32 %v1598, 0.0
          %v1677 = vmin.f32 %v1603, 0.0
          %v1678 = vmin.f32 %v1608, 0.0
          %v1679 = vmin.f32 %v1613, 0.0
          %v1680 = vmul.f32 %v1648, 1.442695
          %v1681 = vpow.pop %v1680
          %v1682 = vmul.f32 %v1649, 1.442695
          %v1683 = vpow.pop %v1682
          %v1684 = vmul.f32 %v1650, 1.442695
          %v1685 = vpow.pop %v1684
          %v1686 = vmul.f32 %v1651, 1.442695
          %v1687 = vpow.pop %v1686
          %v1688 = vmul.f32 %v1652, 1.442695
          %v1689 = vpow.pop %v1688
          %v1690 = vmul.f32 %v1653, 1.442695
          %v1691 = vpow.pop %v1690
          %v1692 = vmul.f32 %v1654, 1.442695
          %v1693 = vpow.pop %v1692
          %v1694 = vmul.f32 %v1655, 1.442695
          %v1695 = vpow.pop %v1694
          %v1696 = vmul.f32 %v1656, 1.442695
          %v1697 = vpow.pop %v1696
          %v1698 = vmul.f32 %v1657, 1.442695
          %v1699 = vpow.pop %v1698
          %v1700 = vmul.f32 %v1658, 1.442695
          %v1701 = vpow.pop %v1700
          %v1702 = vmul.f32 %v1659, 1.442695
          %v1703 = vpow.pop %v1702
          %v1704 = vmul.f32 %v1660, 1.442695
          %v1705 = vpow.pop %v1704
          %v1706 = vmul.f32 %v1661, 1.442695
          %v1707 = vpow.pop %v1706
          %v1708 = vmul.f32 %v1662, 1.442695
          %v1709 = vpow.pop %v1708
          %v1710 = vmul.f32 %v1663, 1.442695
          %v1711 = vpow.pop %v1710
          %v1712 = vmul.f32 %v1664, 1.442695
          %v1713 = vpow.pop %v1712
          %v1714 = vmul.f32 %v1665, 1.442695
          %v1715 = vpow.pop %v1714
          %v1716 = vmul.f32 %v1666, 1.442695
          %v1717 = vpow.pop %v1716
          %v1718 = vmul.f32 %v1667, 1.442695
          %v1719 = vpow.pop %v1718
          %v1720 = vmul.f32 %v1668, 1.442695
          %v1721 = vpow.pop %v1720
          %v1722 = vmul.f32 %v1669, 1.442695
          %v1723 = vpow.pop %v1722
          %v1724 = vmul.f32 %v1670, 1.442695
          %v1725 = vpow.pop %v1724
          %v1726 = vmul.f32 %v1671, 1.442695
          %v1727 = vpow.pop %v1726
          %v1728 = vmul.f32 %v1672, 1.442695
          %v1729 = vpow.pop %v1728
          %v1730 = vmul.f32 %v1673, 1.442695
          %v1731 = vpow.pop %v1730
          %v1732 = vmul.f32 %v1674, 1.442695
          %v1733 = vpow.pop %v1732
          %v1734 = vmul.f32 %v1675, 1.442695
          %v1735 = vpow.pop %v1734
          %v1736 = vmul.f32 %v1676, 1.442695
          %v1737 = vpow.pop %v1736
          %v1738 = vmul.f32 %v1677, 1.442695
          %v1739 = vpow.pop %v1738
          %v1740 = vmul.f32 %v1678, 1.442695
          %v1741 = vpow.pop %v1740
          %v1742 = vmul.f32 %v1679, 1.442695
          %v1743 = vpow.pop %v1742
          %v1744 = vsub.f32 %v1681, 1.0
          %v1745 = vsub.f32 %v1683, 1.0
          %v1746 = vsub.f32 %v1685, 1.0
          %v1747 = vsub.f32 %v1687, 1.0
          %v1748 = vsub.f32 %v1689, 1.0
          %v1749 = vsub.f32 %v1691, 1.0
          %v1750 = vsub.f32 %v1693, 1.0
          %v1751 = vsub.f32 %v1695, 1.0
          %v1752 = vsub.f32 %v1697, 1.0
          %v1753 = vsub.f32 %v1699, 1.0
          %v1754 = vsub.f32 %v1701, 1.0
          %v1755 = vsub.f32 %v1703, 1.0
          %v1756 = vsub.f32 %v1705, 1.0
          %v1757 = vsub.f32 %v1707, 1.0
          %v1758 = vsub.f32 %v1709, 1.0
          %v1759 = vsub.f32 %v1711, 1.0
          %v1760 = vsub.f32 %v1713, 1.0
          %v1761 = vsub.f32 %v1715, 1.0
          %v1762 = vsub.f32 %v1717, 1.0
          %v1763 = vsub.f32 %v1719, 1.0
          %v1764 = vsub.f32 %v1721, 1.0
          %v1765 = vsub.f32 %v1723, 1.0
          %v1766 = vsub.f32 %v1725, 1.0
          %v1767 = vsub.f32 %v1727, 1.0
          %v1768 = vsub.f32 %v1729, 1.0
          %v1769 = vsub.f32 %v1731, 1.0
          %v1770 = vsub.f32 %v1733, 1.0
          %v1771 = vsub.f32 %v1735, 1.0
          %v1772 = vsub.f32 %v1737, 1.0
          %v1773 = vsub.f32 %v1739, 1.0
          %v1774 = vsub.f32 %v1741, 1.0
          %v1775 = vsub.f32 %v1743, 1.0
          %v1776 = vsel %vm1616, %v1458, %v1744
          %v1777 = vsel %vm1617, %v1463, %v1745
          %v1778 = vsel %vm1618, %v1468, %v1746
          %v1779 = vsel %vm1619, %v1473, %v1747
          %v1780 = vsel %vm1620, %v1478, %v1748
          %v1781 = vsel %vm1621, %v1483, %v1749
          %v1782 = vsel %vm1622, %v1488, %v1750
          %v1783 = vsel %vm1623, %v1493, %v1751
          %v1784 = vsel %vm1624, %v1498, %v1752
          %v1785 = vsel %vm1625, %v1503, %v1753
          %v1786 = vsel %vm1626, %v1508, %v1754
          %v1787 = vsel %vm1627, %v1513, %v1755
          %v1788 = vsel %vm1628, %v1518, %v1756
          %v1789 = vsel %vm1629, %v1523, %v1757
          %v1790 = vsel %vm1630, %v1528, %v1758
          %v1791 = vsel %vm1631, %v1533, %v1759
          %v1792 = vsel %vm1632, %v1538, %v1760
          %v1793 = vsel %vm1633, %v1543, %v1761
          %v1794 = vsel %vm1634, %v1548, %v1762
          %v1795 = vsel %vm1635, %v1553, %v1763
          %v1796 = vsel %vm1636, %v1558, %v1764
          %v1797 = vsel %vm1637, %v1563, %v1765
          %v1798 = vsel %vm1638, %v1568, %v1766
          %v1799 = vsel %vm1639, %v1573, %v1767
          %v1800 = vsel %vm1640, %v1578, %v1768
          %v1801 = vsel %vm1641, %v1583, %v1769
          %v1802 = vsel %vm1642, %v1588, %v1770
          %v1803 = vsel %vm1643, %v1593, %v1771
          %v1804 = vsel %vm1644, %v1598, %v1772
          %v1805 = vsel %vm1645, %v1603, %v1773
          %v1806 = vsel %vm1646, %v1608, %v1774
          %v1807 = vsel %vm1647, %v1613, %v1775
          %1808 = vst [vmem:[%s501] sm:$0xff] %v1776
          %1809 = vst [vmem:[%s501 + $0x8] sm:$0xff] %v1777
          %1810 = vst [vmem:[%s501 + $0x10] sm:$0xff] %v1778
          %1811 = vst [vmem:[%s501 + $0x18] sm:$0xff] %v1779
          %1812 = vst [vmem:[%s501 + $0x20] sm:$0xff] %v1780
          %1813 = vst [vmem:[%s501 + $0x28] sm:$0xff] %v1781
          %1814 = vst [vmem:[%s501 + $0x30] sm:$0xff] %v1782
          %1815 = vst [vmem:[%s501 + $0x38] sm:$0xff] %v1783
          %1816 = vst [vmem:[%s501 + $0x40] sm:$0xff] %v1784
          %1817 = vst [vmem:[%s501 + $0x48] sm:$0xff] %v1785
          %1818 = vst [vmem:[%s501 + $0x50] sm:$0xff] %v1786
          %1819 = vst [vmem:[%s501 + $0x58] sm:$0xff] %v1787
          %1820 = vst [vmem:[%s501 + $0x60] sm:$0xff] %v1788
          %1821 = vst [vmem:[%s501 + $0x68] sm:$0xff] %v1789
          %1822 = vst [vmem:[%s501 + $0x70] sm:$0xff] %v1790
          %1823 = vst [vmem:[%s501 + $0x78] sm:$0xff] %v1791
          %1824 = vst [vmem:[%s501 + $0x80] sm:$0xff] %v1792
          %1825 = vst [vmem:[%s501 + $0x88] sm:$0xff] %v1793
          %1826 = vst [vmem:[%s501 + $0x90] sm:$0xff] %v1794
          %1827 = vst [vmem:[%s501 + $0x98] sm:$0xff] %v1795
          %1828 = vst [vmem:[%s501 + $0xa0] sm:$0xff] %v1796
          %1829 = vst [vmem:[%s501 + $0xa8] sm:$0xff] %v1797
          %1830 = vst [vmem:[%s501 + $0xb0] sm:$0xff] %v1798
          %1831 = vst [vmem:[%s501 + $0xb8] sm:$0xff] %v1799
          %1832 = vst [vmem:[%s501 + $0xc0] sm:$0xff] %v1800
          %1833 = vst [vmem:[%s501 + $0xc8] sm:$0xff] %v1801
          %1834 = vst [vmem:[%s501 + $0xd0] sm:$0xff] %v1802
          %1835 = vst [vmem:[%s501 + $0xd8] sm:$0xff] %v1803
          %1836 = vst [vmem:[%s501 + $0xe0] sm:$0xff] %v1804
          %1837 = vst [vmem:[%s501 + $0xe8] sm:$0xff] %v1805
          %1838 = vst [vmem:[%s501 + $0xf0] sm:$0xff] %v1806
          %1839 = vst [vmem:[%s501 + $0xf8] sm:$0xff] %v1807
        $region94: #{gin_forward.7} parent=81 // pred_fallthru
          _
        %s1840 = smul.u32 32, %s22
        %p1841 = scmp.lt.s32.totalorder %s1840, 63
        %s1842 = scalar_select %p1841, %s1840, 63
        %s1843 = smul.addr %s1842, 8
        %s1844 = scalar_lea.vmem %s7, %s1843
        // Predicated region
        $region95: #{gin_forward.7} parent=81 // pred_check
          %p1845 = pneg %p212
        $region96: #{gin_forward.7} parent=81 // pred_check_branch
          %1847 = sbr.rel (%p1845) target = $region98
        $region97: #{gin_forward.7} parent=81 // pred_region
          %s1848 = smul.u32 32, %s22
        $region98: #{gin_forward.7} parent=81 // pred_fallthru
          _
      $region82: #{gin_forward.7} parent=5 // pred_fallthru
        _
      %p1849 = scmp.le.s32.totalorder 2, %s13
      // Predicated region
      $region99: #{gin_forward.7} parent=5 // pred_check
        %p1850 = pneg %p1849
      $region100: #{gin_forward.7} parent=5 // pred_check_branch
        %1852 = sbr.rel (%p1850) target = $region102
      $region101: #{gin_forward.7} parent=5 // pred_region
        %s1853 = ssub.s32 %s13, 2
        // Predicated region
        $region103: #{gin_forward.7} parent=101 // pred_check
          %p1854 = pneg %p218
        $region104: #{gin_forward.7} parent=101 // pred_check_branch
          %1856 = sbr.rel (%p1854) target = $region106
        $region105: #{gin_forward.7} parent=101 // pred_region
          %s1857 = smul.u32 32, %s24
          %p1858 = scmp.lt.s32.totalorder %s1857, 63
          %s1859 = scalar_select %p1858, %s1857, 63
          %s1860 = smul.addr %s1859, 8
          %s1861 = scalar_lea.vmem %s7, %s1860
        $region106: #{gin_forward.7} parent=101 // pred_fallthru
          _
      $region102: #{gin_forward.7} parent=5 // pred_fallthru
        _
    $region6: #{gin_forward.7} parent=1 // loop_footer
      %s17 = sadd.s32 1, %s13
    $region7: #{gin_forward.7} parent=1 // loop_footer_branch
      %12 = sbr.rel target = $region3
    $region8: #{gin_forward.7} parent=1 // loop_exit
      _

// kernel: gin_forward.9
$region0: #{gin_forward.9}
  #allocation0 [shape = 'u32[]', space=smem, size = 0x4, offset = 0x4, fixed_abs, tag = 'smem constant byte address 0x4 - core index']
  #allocation1 [shape = 'u32[144,128]{1,0:T(1,128)}', space=vmem, size = 0x12000, scoped, tag = 'internal scratch']
  #allocation2 [shape = 'f32[256,128]{1,0:T(8,128)}', space=vmem, size = 0x20000, scoped, tag = 'scratch operand']
  %s0 = inlined_call_operand.vmem [shape: bf16[512,512], index: 0, kind: input, shape index: {}]
  %s1 = inlined_call_operand.vmem [shape: f32[512,128], index: 1, kind: input, shape index: {}, may-alias: {1,2}]
  %s2 = inlined_call_operand.vmem [shape: f32[512,128], index: 2, kind: input, shape index: {}, may-alias: {1,2}]
  %s3 = inlined_call_operand.vmem [shape: f32[128,128], index: 3, kind: input, shape index: {}]
  %s4 = inlined_call_operand.vmem [shape: f32[1,128], index: 4, kind: input, shape index: {}]
  %s5 = inlined_call_operand.vmem [shape: f32[128,128], index: 5, kind: input, shape index: {}]
  %s6 = inlined_call_operand.vmem [shape: f32[1,128], index: 6, kind: input, shape index: {}]
  %s7 = inlined_call_operand.vmem [shape: f32[512,128], index: 7, kind: output, shape index: {}]
  %s8 = sld [smem:[#allocation0]]
  $region107: #{gin_forward.9} parent=0
    _
  %s10 = ssub.s32 1, %s8
  %s11 = scalar_select 0, %s10, %s8
  $region1: #{gin_forward.9} parent=0
    #allocation3 [shape = 'u8[262144]{0}', space=vmem, size = 0x40000, scoped, tag = 'input window, operand 0']
    loop: start=0, step=1, limit=6
    $region2: #{gin_forward.9} parent=1 // loop_pre_header
      _
    $region3: #{gin_forward.9} parent=1 // loop_header
      %s13 = sphi 0, %s17
      %p14 = scmp.ge.s32.totalorder %s13, 6
      %s20 = sphi 0, %s32
      %s21 = sphi 0, %s28
      %s22 = sphi 0, %s20
      %s23 = sphi 0, %s21
      %s24 = sphi 0, %s22
      %s25 = sphi 0, %s23
      %s37 = sphi 0, %s39
      %s40 = sphi 0, %s37
      %s41 = sphi 0, %s40
      %s57 = sphi 0, %s41
      %s63 = sphi 0, %s65
      %s66 = sphi 0, %s63
      %s67 = sphi 0, %s66
      %s83 = sphi 0, %s67
      %s89 = sphi 0, %s91
      %s92 = sphi 0, %s89
      %s93 = sphi 0, %s92
      %s109 = sphi 0, %s93
      %s113 = sphi 0, %s113
      %s115 = sphi 0, %s113
      %s116 = sphi 0, %s115
      %s130 = sphi 0, %s116
      %s134 = sphi 0, %s134
      %s136 = sphi 0, %s134
      %s137 = sphi 0, %s136
      %s151 = sphi 0, %s137
      %s155 = sphi 0, %s155
      %s157 = sphi 0, %s155
      %s158 = sphi 0, %s157
      %s172 = sphi 0, %s158
      %s176 = sphi 0, %s176
      %s178 = sphi 0, %s176
      %s179 = sphi 0, %s178
      %s193 = sphi 0, %s179
      %s199 = sphi 0, %s201
      %s202 = sphi 0, %s199
      %s203 = sphi 0, %s202
      %s219 = sphi 0, %s203
    $region4: #{gin_forward.9} parent=1 // loop_header_branch
      %16 = sbr.rel (%p14) target = $region8
    $region5: #{gin_forward.9} parent=1 // loop_body
      %s18 = ssub.s32 %s13, 1
      %s19 = ssub.s32 %s13, 2
      %s26 = sadd.s32 1, %s21
      %p27 = scmp.ge.s32.totalorder %s26, 2
      %s28 = scalar_select %p27, 0, %s26
      %s29 = sadd.s32 1, %s20
      %s30 = scalar_select %p27, %s29, %s20
      %p31 = scmp.ge.s32.totalorder %s30, 2
      %s32 = scalar_select %p31, 0, %s30
      %s33 = ssub.s32 %s20, %s32
      %s34 = ssub.s32 %s21, %s28
      %s35 = sor.u32 %s33, %s34
      %p36 = scmp.eq.s32.totalorder %s35, 0
      %s38 = sadd.s32 %s37, 1
      %s39 = scalar_select %p36, %s37, %s38
      %p42 = pneg %p36
      %p43 = scmp.eq.s32.totalorder %s13, 3
      %p44 = por %p42, %p43
      %p45 = scmp.ne.s32.totalorder %s37, %s40
      %p46 = scmp.eq.s32.totalorder %s13, 0
      %p47 = por %p45, %p46
      %p48 = scmp.ne.s32.totalorder %s37, %s40
      %p49 = scmp.eq.s32.totalorder %s18, 3
      %p50 = por %p48, %p49
      %p51 = scmp.ne.s32.totalorder %s40, %s41
      %p52 = scmp.eq.s32.totalorder %s18, 0
      %p53 = por %p51, %p52
      %p54 = scmp.ne.s32.totalorder %s40, %s41
      %p55 = scmp.eq.s32.totalorder %s19, 3
      %p56 = por %p54, %p55
      %p58 = scmp.ne.s32.totalorder %s41, %s57
      %p59 = scmp.eq.s32.totalorder %s19, 0
      %p60 = por %p58, %p59
      %s61 = ssub.s32 %s21, %s28
      %p62 = scmp.eq.s32.totalorder %s61, 0
      %s64 = sadd.s32 %s63, 1
      %s65 = scalar_select %p62, %s63, %s64
      %p68 = pneg %p62
      %p69 = scmp.eq.s32.totalorder %s13, 3
      %p70 = por %p68, %p69
      %p71 = scmp.ne.s32.totalorder %s63, %s66
      %p72 = scmp.eq.s32.totalorder %s13, 0
      %p73 = por %p71, %p72
      %p74 = scmp.ne.s32.totalorder %s63, %s66
      %p75 = scmp.eq.s32.totalorder %s18, 3
      %p76 = por %p74, %p75
      %p77 = scmp.ne.s32.totalorder %s66, %s67
      %p78 = scmp.eq.s32.totalorder %s18, 0
      %p79 = por %p77, %p78
      %p80 = scmp.ne.s32.totalorder %s66, %s67
      %p81 = scmp.eq.s32.totalorder %s19, 3
      %p82 = por %p80, %p81
      %p84 = scmp.ne.s32.totalorder %s67, %s83
      %p85 = scmp.eq.s32.totalorder %s19, 0
      %p86 = por %p84, %p85
      %s87 = ssub.s32 %s20, %s32
      %p88 = scmp.eq.s32.totalorder %s87, 0
      %s90 = sadd.s32 %s89, 1
      %s91 = scalar_select %p88, %s89, %s90
      %p94 = pneg %p88
      %p95 = scmp.eq.s32.totalorder %s13, 3
      %p96 = por %p94, %p95
      %p97 = scmp.ne.s32.totalorder %s89, %s92
      %p98 = scmp.eq.s32.totalorder %s13, 0
      %p99 = por %p97, %p98
      %p100 = scmp.ne.s32.totalorder %s89, %s92
      %p101 = scmp.eq.s32.totalorder %s18, 3
      %p102 = por %p100, %p101
      %p103 = scmp.ne.s32.totalorder %s92, %s93
      %p104 = scmp.eq.s32.totalorder %s18, 0
      %p105 = por %p103, %p104
      %p106 = scmp.ne.s32.totalorder %s92, %s93
      %p107 = scmp.eq.s32.totalorder %s19, 3
      %p108 = por %p106, %p107
      %p110 = scmp.ne.s32.totalorder %s93, %s109
      %p111 = scmp.eq.s32.totalorder %s19, 0
      %p112 = por %p110, %p111
      %s114 = sadd.s32 %s113, 1
      %p117 = scmp.eq.s32.totalorder %s13, 3
      %p118 = scmp.ne.s32.totalorder %s113, %s115
      %p119 = scmp.eq.s32.totalorder %s13, 0
      %p120 = por %p118, %p119
      %p121 = scmp.ne.s32.totalorder %s113, %s115
      %p122 = scmp.eq.s32.totalorder %s18, 3
      %p123 = por %p121, %p122
      %p124 = scmp.ne.s32.totalorder %s115, %s116
      %p125 = scmp.eq.s32.totalorder %s18, 0
      %p126 = por %p124, %p125
      %p127 = scmp.ne.s32.totalorder %s115, %s116
      %p128 = scmp.eq.s32.totalorder %s19, 3
      %p129 = por %p127, %p128
      %p131 = scmp.ne.s32.totalorder %s116, %s130
      %p132 = scmp.eq.s32.totalorder %s19, 0
      %p133 = por %p131, %p132
      %s135 = sadd.s32 %s134, 1
      %p138 = scmp.eq.s32.totalorder %s13, 3
      %p139 = scmp.ne.s32.totalorder %s134, %s136
      %p140 = scmp.eq.s32.totalorder %s13, 0
      %p141 = por %p139, %p140
      %p142 = scmp.ne.s32.totalorder %s134, %s136
      %p143 = scmp.eq.s32.totalorder %s18, 3
      %p144 = por %p142, %p143
      %p145 = scmp.ne.s32.totalorder %s136, %s137
      %p146 = scmp.eq.s32.totalorder %s18, 0
      %p147 = por %p145, %p146
      %p148 = scmp.ne.s32.totalorder %s136, %s137
      %p149 = scmp.eq.s32.totalorder %s19, 3
      %p150 = por %p148, %p149
      %p152 = scmp.ne.s32.totalorder %s137, %s151
      %p153 = scmp.eq.s32.totalorder %s19, 0
      %p154 = por %p152, %p153
      %s156 = sadd.s32 %s155, 1
      %p159 = scmp.eq.s32.totalorder %s13, 3
      %p160 = scmp.ne.s32.totalorder %s155, %s157
      %p161 = scmp.eq.s32.totalorder %s13, 0
      %p162 = por %p160, %p161
      %p163 = scmp.ne.s32.totalorder %s155, %s157
      %p164 = scmp.eq.s32.totalorder %s18, 3
      %p165 = por %p163, %p164
      %p166 = scmp.ne.s32.totalorder %s157, %s158
      %p167 = scmp.eq.s32.totalorder %s18, 0
      %p168 = por %p166, %p167
      %p169 = scmp.ne.s32.totalorder %s157, %s158
      %p170 = scmp.eq.s32.totalorder %s19, 3
      %p171 = por %p169, %p170
      %p173 = scmp.ne.s32.totalorder %s158, %s172
      %p174 = scmp.eq.s32.totalorder %s19, 0
      %p175 = por %p173, %p174
      %s177 = sadd.s32 %s176, 1
      %p180 = scmp.eq.s32.totalorder %s13, 3
      %p181 = scmp.ne.s32.totalorder %s176, %s178
      %p182 = scmp.eq.s32.totalorder %s13, 0
      %p183 = por %p181, %p182
      %p184 = scmp.ne.s32.totalorder %s176, %s178
      %p185 = scmp.eq.s32.totalorder %s18, 3
      %p186 = por %p184, %p185
      %p187 = scmp.ne.s32.totalorder %s178, %s179
      %p188 = scmp.eq.s32.totalorder %s18, 0
      %p189 = por %p187, %p188
      %p190 = scmp.ne.s32.totalorder %s178, %s179
      %p191 = scmp.eq.s32.totalorder %s19, 3
      %p192 = por %p190, %p191
      %p194 = scmp.ne.s32.totalorder %s179, %s193
      %p195 = scmp.eq.s32.totalorder %s19, 0
      %p196 = por %p194, %p195
      %s197 = ssub.s32 %s20, %s32
      %p198 = scmp.eq.s32.totalorder %s197, 0
      %s200 = sadd.s32 %s199, 1
      %s201 = scalar_select %p198, %s199, %s200
      %p204 = pneg %p198
      %p205 = scmp.eq.s32.totalorder %s13, 3
      %p206 = por %p204, %p205
      %p207 = scmp.ne.s32.totalorder %s199, %s202
      %p208 = scmp.eq.s32.totalorder %s13, 0
      %p209 = por %p207, %p208
      %p210 = scmp.ne.s32.totalorder %s199, %s202
      %p211 = scmp.eq.s32.totalorder %s18, 3
      %p212 = por %p210, %p211
      %p213 = scmp.ne.s32.totalorder %s202, %s203
      %p214 = scmp.eq.s32.totalorder %s18, 0
      %p215 = por %p213, %p214
      %p216 = scmp.ne.s32.totalorder %s202, %s203
      %p217 = scmp.eq.s32.totalorder %s19, 3
      %p218 = por %p216, %p217
      %p220 = scmp.ne.s32.totalorder %s203, %s219
      %p221 = scmp.eq.s32.totalorder %s19, 0
      %p222 = por %p220, %p221
      %p223 = scmp.le.s32.totalorder 1, %s13
      %p224 = scmp.lt.s32.totalorder %s13, 5
      %p225 = pnand %p223, %p224
      %p226 = pneg %p225
      // Predicated region
      $region9: #{gin_forward.9} parent=5 // pred_check
        _
      $region10: #{gin_forward.9} parent=5 // pred_check_branch
        %228 = sbr.rel (%p225) target = $region12
      $region11: #{gin_forward.9} parent=5 // pred_region
        %s229 = ssub.s32 %s13, 1
        // Predicated region
        $region13: #{gin_forward.9} parent=11 // pred_check
          %p230 = pneg %p126
        $region14: #{gin_forward.9} parent=11 // pred_check_branch
          %232 = sbr.rel (%p230) target = $region16
        $region15: #{gin_forward.9} parent=11 // pred_region
          _
        $region16: #{gin_forward.9} parent=11 // pred_fallthru
          _
        // Predicated region
        $region17: #{gin_forward.9} parent=11 // pred_check
          %p233 = pneg %p147
        $region18: #{gin_forward.9} parent=11 // pred_check_branch
          %235 = sbr.rel (%p233) target = $region20
        $region19: #{gin_forward.9} parent=11 // pred_region
          _
        $region20: #{gin_forward.9} parent=11 // pred_fallthru
          _
        // Predicated region
        $region21: #{gin_forward.9} parent=11 // pred_check
          %p236 = pneg %p168
        $region22: #{gin_forward.9} parent=11 // pred_check_branch
          %238 = sbr.rel (%p236) target = $region24
        $region23: #{gin_forward.9} parent=11 // pred_region
          _
        $region24: #{gin_forward.9} parent=11 // pred_fallthru
          _
        // Predicated region
        $region25: #{gin_forward.9} parent=11 // pred_check
          %p239 = pneg %p189
        $region26: #{gin_forward.9} parent=11 // pred_check_branch
          %241 = sbr.rel (%p239) target = $region28
        $region27: #{gin_forward.9} parent=11 // pred_region
          _
        $region28: #{gin_forward.9} parent=11 // pred_fallthru
          _
      $region12: #{gin_forward.9} parent=5 // pred_fallthru
        _
      %p242 = scmp.lt.s32.totalorder %s13, 4
      // Predicated region
      $region29: #{gin_forward.9} parent=5 // pred_check
        %p243 = pneg %p242
      $region30: #{gin_forward.9} parent=5 // pred_check_branch
        %245 = sbr.rel (%p243) target = $region32
      $region31: #{gin_forward.9} parent=5 // pred_region
        // Predicated region
        $region33: #{gin_forward.9} parent=31 // pred_check
          %p246 = pneg %p47
        $region34: #{gin_forward.9} parent=31 // pred_check_branch
          %248 = sbr.rel (%p246) target = $region36
        $region35: #{gin_forward.9} parent=31 // pred_region
          %s249 = sand.u32 %s37, 1
          %s250 = sand.u32 %s37, 1
          %s251 = smul.addr %s250, 256
          %s252 = scalar_lea.vmem [#allocation3], %s251
          %s253 = smul.u32 32, %s20
          %s254 = smul.u32 2, %s21
          %s255 = smul.addr %s253, 4
          %s256 = sadd.s32 %s254, %s255
          %s257 = smul.addr %s256, 4
          %s258 = scalar_lea.vmem %s0, %s257
          // Predicated region
          $region37: #{gin_forward.9} parent=35 // pred_check
            _
          $region38: #{gin_forward.9} parent=35 // pred_check_branch
            %260 = sbr.rel (0) target = $region40
          $region39: #{gin_forward.9} parent=35 // pred_region
            // Predicated region
            $region41: #{gin_forward.9} parent=39 // pred_check
              _
            $region42: #{gin_forward.9} parent=39 // pred_check_branch
              %262 = sbr.rel (0) target = $region44
            $region43: #{gin_forward.9} parent=39 // pred_region
              // Predicated region
              $region56: #{gin_forward.9} parent=43 // pred_check
                _
              $region57: #{gin_forward.9} parent=43 // pred_check_branch
                %340 = sbr.rel (0) target = $region59
              $region58: #{gin_forward.9} parent=43 // pred_region
                loop: start=0, step=1, limit=1
                $region60: #{gin_forward.9} parent=58 // loop_pre_header
                  _
                $region61: #{gin_forward.9} parent=58 // loop_header
                  %s342 = sphi 0, %s346
                  %p343 = scmp.ge.s32.totalorder %s342, 1
                  %s347 = sphi %s258, %s258
                  %s348 = sphi %s252, %s252
                $region62: #{gin_forward.9} parent=58 // loop_header_branch
                  %345 = sbr.rel (%p343) target = $region66
                $region63: #{gin_forward.9} parent=58 // loop_body
                  %v349 = vld [vmem:[%s347] sm:$0xff]
                  %350 = vst [vmem:[%s348] sm:$0xff] %v349
                  %v351 = vld [vmem:[%s347 + $0x10] sm:$0xff]
                  %352 = vst [vmem:[%s348 + $0x8] sm:$0xff] %v351
                  %v353 = vld [vmem:[%s347 + $0x20] sm:$0xff]
                  %354 = vst [vmem:[%s348 + $0x10] sm:$0xff] %v353
                  %v355 = vld [vmem:[%s347 + $0x30] sm:$0xff]
                  %356 = vst [vmem:[%s348 + $0x18] sm:$0xff] %v355
                  %v357 = vld [vmem:[%s347 + $0x40] sm:$0xff]
                  %358 = vst [vmem:[%s348 + $0x20] sm:$0xff] %v357
                  %v359 = vld [vmem:[%s347 + $0x50] sm:$0xff]
                  %360 = vst [vmem:[%s348 + $0x28] sm:$0xff] %v359
                  %v361 = vld [vmem:[%s347 + $0x60] sm:$0xff]
                  %362 = vst [vmem:[%s348 + $0x30] sm:$0xff] %v361
                  %v363 = vld [vmem:[%s347 + $0x70] sm:$0xff]
                  %364 = vst [vmem:[%s348 + $0x38] sm:$0xff] %v363
                  %v365 = vld [vmem:[%s347 + $0x80] sm:$0xff]
                  %366 = vst [vmem:[%s348 + $0x40] sm:$0xff] %v365
                  %v367 = vld [vmem:[%s347 + $0x90] sm:$0xff]
                  %368 = vst [vmem:[%s348 + $0x48] sm:$0xff] %v367
                  %v369 = vld [vmem:[%s347 + $0xa0] sm:$0xff]
                  %370 = vst [vmem:[%s348 + $0x50] sm:$0xff] %v369
                  %v371 = vld [vmem:[%s347 + $0xb0] sm:$0xff]
                  %372 = vst [vmem:[%s348 + $0x58] sm:$0xff] %v371
                  %v373 = vld [vmem:[%s347 + $0xc0] sm:$0xff]
                  %374 = vst [vmem:[%s348 + $0x60] sm:$0xff] %v373
                  %v375 = vld [vmem:[%s347 + $0xd0] sm:$0xff]
                  %376 = vst [vmem:[%s348 + $0x68] sm:$0xff] %v375
                  %v377 = vld [vmem:[%s347 + $0xe0] sm:$0xff]
                  %378 = vst [vmem:[%s348 + $0x70] sm:$0xff] %v377
                  %v379 = vld [vmem:[%s347 + $0xf0] sm:$0xff]
                  %380 = vst [vmem:[%s348 + $0x78] sm:$0xff] %v379
                  %v381 = vld [vmem:[%s347 + $0x100] sm:$0xff]
                  %382 = vst [vmem:[%s348 + $0x80] sm:$0xff] %v381
                  %v383 = vld [vmem:[%s347 + $0x110] sm:$0xff]
                  %384 = vst [vmem:[%s348 + $0x88] sm:$0xff] %v383
                  %v385 = vld [vmem:[%s347 + $0x120] sm:$0xff]
                  %386 = vst [vmem:[%s348 + $0x90] sm:$0xff] %v385
                  %v387 = vld [vmem:[%s347 + $0x130] sm:$0xff]
                  %388 = vst [vmem:[%s348 + $0x98] sm:$0xff] %v387
                  %v389 = vld [vmem:[%s347 + $0x140] sm:$0xff]
                  %390 = vst [vmem:[%s348 + $0xa0] sm:$0xff] %v389
                  %v391 = vld [vmem:[%s347 + $0x150] sm:$0xff]
                  %392 = vst [vmem:[%s348 + $0xa8] sm:$0xff] %v391
                  %v393 = vld [vmem:[%s347 + $0x160] sm:$0xff]
                  %394 = vst [vmem:[%s348 + $0xb0] sm:$0xff] %v393
                  %v395 = vld [vmem:[%s347 + $0x170] sm:$0xff]
                  %396 = vst [vmem:[%s348 + $0xb8] sm:$0xff] %v395
                  %v397 = vld [vmem:[%s347 + $0x180] sm:$0xff]
                  %398 = vst [vmem:[%s348 + $0xc0] sm:$0xff] %v397
                  %v399 = vld [vmem:[%s347 + $0x190] sm:$0xff]
                  %400 = vst [vmem:[%s348 + $0xc8] sm:$0xff] %v399
                  %v401 = vld [vmem:[%s347 + $0x1a0] sm:$0xff]
                  %402 = vst [vmem:[%s348 + $0xd0] sm:$0xff] %v401
                  %v403 = vld [vmem:[%s347 + $0x1b0] sm:$0xff]
                  %404 = vst [vmem:[%s348 + $0xd8] sm:$0xff] %v403
                  %v405 = vld [vmem:[%s347 + $0x1c0] sm:$0xff]
                  %406 = vst [vmem:[%s348 + $0xe0] sm:$0xff] %v405
                  %v407 = vld [vmem:[%s347 + $0x1d0] sm:$0xff]
                  %408 = vst [vmem:[%s348 + $0xe8] sm:$0xff] %v407
                  %v409 = vld [vmem:[%s347 + $0x1e0] sm:$0xff]
                  %410 = vst [vmem:[%s348 + $0xf0] sm:$0xff] %v409
                  %v411 = vld [vmem:[%s347 + $0x1f0] sm:$0xff]
                  %412 = vst [vmem:[%s348 + $0xf8] sm:$0xff] %v411
                $region64: #{gin_forward.9} parent=58 // loop_footer
                  %s346 = sadd.s32 1, %s342
                $region65: #{gin_forward.9} parent=58 // loop_footer_branch
                  %341 = sbr.rel target = $region61
                $region66: #{gin_forward.9} parent=58 // loop_exit
                  _
              $region59: #{gin_forward.9} parent=43 // pred_fallthru
                _
              // Predicated region
              $region67: #{gin_forward.9} parent=43 // pred_check
                _
              $region68: #{gin_forward.9} parent=43 // pred_check_branch
                %414 = sbr.rel target = $region70
              $region69: #{gin_forward.9} parent=43 // pred_region
                _
              $region70: #{gin_forward.9} parent=43 // pred_fallthru
                _
            $region44: #{gin_forward.9} parent=39 // pred_fallthru
              _
            // Predicated region
            $region45: #{gin_forward.9} parent=39 // pred_check
              _
            $region46: #{gin_forward.9} parent=39 // pred_check_branch
              %264 = sbr.rel target = $region48
            $region47: #{gin_forward.9} parent=39 // pred_region
              %s266 = ssub.s32 256, 1
              loop: start=0, step=1, limit=1
              $region49: #{gin_forward.9} parent=47 // loop_pre_header
                _
              $region50: #{gin_forward.9} parent=47 // loop_header
                %s268 = sphi 0, %s272
                %p269 = scmp.ge.s32.totalorder %s268, 1
                %s273 = sphi %s258, %s258
                %s274 = sphi %s252, %s252
              $region51: #{gin_forward.9} parent=47 // loop_header_branch
                %271 = sbr.rel (%p269) target = $region55
              $region52: #{gin_forward.9} parent=47 // loop_body
                %v275 = vld [vmem:[%s273] sm:%s266]
                %276 = vst [vmem:[%s274] sm:%s266] %v275
                %v277 = vld [vmem:[%s273 + $0x10] sm:%s266]
                %278 = vst [vmem:[%s274 + $0x8] sm:%s266] %v277
                %v279 = vld [vmem:[%s273 + $0x20] sm:%s266]
                %280 = vst [vmem:[%s274 + $0x10] sm:%s266] %v279
                %v281 = vld [vmem:[%s273 + $0x30] sm:%s266]
                %282 = vst [vmem:[%s274 + $0x18] sm:%s266] %v281
                %v283 = vld [vmem:[%s273 + $0x40] sm:%s266]
                %284 = vst [vmem:[%s274 + $0x20] sm:%s266] %v283
                %v285 = vld [vmem:[%s273 + $0x50] sm:%s266]
                %286 = vst [vmem:[%s274 + $0x28] sm:%s266] %v285
                %v287 = vld [vmem:[%s273 + $0x60] sm:%s266]
                %288 = vst [vmem:[%s274 + $0x30] sm:%s266] %v287
                %v289 = vld [vmem:[%s273 + $0x70] sm:%s266]
                %290 = vst [vmem:[%s274 + $0x38] sm:%s266] %v289
                %v291 = vld [vmem:[%s273 + $0x80] sm:%s266]
                %292 = vst [vmem:[%s274 + $0x40] sm:%s266] %v291
                %v293 = vld [vmem:[%s273 + $0x90] sm:%s266]
                %294 = vst [vmem:[%s274 + $0x48] sm:%s266] %v293
                %v295 = vld [vmem:[%s273 + $0xa0] sm:%s266]
                %296 = vst [vmem:[%s274 + $0x50] sm:%s266] %v295
                %v297 = vld [vmem:[%s273 + $0xb0] sm:%s266]
                %298 = vst [vmem:[%s274 + $0x58] sm:%s266] %v297
                %v299 = vld [vmem:[%s273 + $0xc0] sm:%s266]
                %300 = vst [vmem:[%s274 + $0x60] sm:%s266] %v299
                %v301 = vld [vmem:[%s273 + $0xd0] sm:%s266]
                %302 = vst [vmem:[%s274 + $0x68] sm:%s266] %v301
                %v303 = vld [vmem:[%s273 + $0xe0] sm:%s266]
                %304 = vst [vmem:[%s274 + $0x70] sm:%s266] %v303
                %v305 = vld [vmem:[%s273 + $0xf0] sm:%s266]
                %306 = vst [vmem:[%s274 + $0x78] sm:%s266] %v305
                %v307 = vld [vmem:[%s273 + $0x100] sm:%s266]
                %308 = vst [vmem:[%s274 + $0x80] sm:%s266] %v307
                %v309 = vld [vmem:[%s273 + $0x110] sm:%s266]
                %310 = vst [vmem:[%s274 + $0x88] sm:%s266] %v309
                %v311 = vld [vmem:[%s273 + $0x120] sm:%s266]
                %312 = vst [vmem:[%s274 + $0x90] sm:%s266] %v311
                %v313 = vld [vmem:[%s273 + $0x130] sm:%s266]
                %314 = vst [vmem:[%s274 + $0x98] sm:%s266] %v313
                %v315 = vld [vmem:[%s273 + $0x140] sm:%s266]
                %316 = vst [vmem:[%s274 + $0xa0] sm:%s266] %v315
                %v317 = vld [vmem:[%s273 + $0x150] sm:%s266]
                %318 = vst [vmem:[%s274 + $0xa8] sm:%s266] %v317
                %v319 = vld [vmem:[%s273 + $0x160] sm:%s266]
                %320 = vst [vmem:[%s274 + $0xb0] sm:%s266] %v319
                %v321 = vld [vmem:[%s273 + $0x170] sm:%s266]
                %322 = vst [vmem:[%s274 + $0xb8] sm:%s266] %v321
                %v323 = vld [vmem:[%s273 + $0x180] sm:%s266]
                %324 = vst [vmem:[%s274 + $0xc0] sm:%s266] %v323
                %v325 = vld [vmem:[%s273 + $0x190] sm:%s266]
                %326 = vst [vmem:[%s274 + $0xc8] sm:%s266] %v325
                %v327 = vld [vmem:[%s273 + $0x1a0] sm:%s266]
                %328 = vst [vmem:[%s274 + $0xd0] sm:%s266] %v327
                %v329 = vld [vmem:[%s273 + $0x1b0] sm:%s266]
                %330 = vst [vmem:[%s274 + $0xd8] sm:%s266] %v329
                %v331 = vld [vmem:[%s273 + $0x1c0] sm:%s266]
                %332 = vst [vmem:[%s274 + $0xe0] sm:%s266] %v331
                %v333 = vld [vmem:[%s273 + $0x1d0] sm:%s266]
                %334 = vst [vmem:[%s274 + $0xe8] sm:%s266] %v333
                %v335 = vld [vmem:[%s273 + $0x1e0] sm:%s266]
                %336 = vst [vmem:[%s274 + $0xf0] sm:%s266] %v335
                %v337 = vld [vmem:[%s273 + $0x1f0] sm:%s266]
                %338 = vst [vmem:[%s274 + $0xf8] sm:%s266] %v337
              $region53: #{gin_forward.9} parent=47 // loop_footer
                %s272 = sadd.s32 1, %s268
              $region54: #{gin_forward.9} parent=47 // loop_footer_branch
                %267 = sbr.rel target = $region50
              $region55: #{gin_forward.9} parent=47 // loop_exit
                _
            $region48: #{gin_forward.9} parent=39 // pred_fallthru
              _
          $region40: #{gin_forward.9} parent=35 // pred_fallthru
            _
          %415 = vnop
        $region36: #{gin_forward.9} parent=31 // pred_fallthru
          _
        // Predicated region
        $region71: #{gin_forward.9} parent=31 // pred_check
          %p416 = pneg %p73
        $region72: #{gin_forward.9} parent=31 // pred_check_branch
          %418 = sbr.rel (%p416) target = $region74
        $region73: #{gin_forward.9} parent=31 // pred_region
          %s419 = smul.u32 32, %s21
          %p420 = scmp.lt.s32.totalorder %s419, 63
          %s421 = scalar_select %p420, %s419, 63
          %s422 = smul.addr %s421, 8
          %s423 = scalar_lea.vmem %s1, %s422
          %s424 = smul.u32 32, %s21
        $region74: #{gin_forward.9} parent=31 // pred_fallthru
          _
        // Predicated region
        $region75: #{gin_forward.9} parent=31 // pred_check
          %p425 = pneg %p99
        $region76: #{gin_forward.9} parent=31 // pred_check_branch
          %427 = sbr.rel (%p425) target = $region78
        $region77: #{gin_forward.9} parent=31 // pred_region
          %s428 = smul.u32 32, %s20
          %p429 = scmp.lt.s32.totalorder %s428, 63
          %s430 = scalar_select %p429, %s428, 63
          %s431 = smul.addr %s430, 8
          %s432 = scalar_lea.vmem %s2, %s431
          %s433 = smul.u32 32, %s20
        $region78: #{gin_forward.9} parent=31 // pred_fallthru
          _
      $region32: #{gin_forward.9} parent=5 // pred_fallthru
        _
      %p434 = scmp.le.s32.totalorder 1, %s13
      %p435 = scmp.lt.s32.totalorder %s13, 5
      %p436 = pnand %p434, %p435
      %p437 = pneg %p436
      // Predicated region
      $region79: #{gin_forward.9} parent=5 // pred_check
        _
      $region80: #{gin_forward.9} parent=5 // pred_check_branch
        %439 = sbr.rel (%p436) target = $region82
      $region81: #{gin_forward.9} parent=5 // pred_region
        %s440 = ssub.s32 %s13, 1
        %s441 = sand.u32 %s40, 1
        %s442 = sand.u32 %s40, 1
        %s443 = smul.addr %s442, 256
        %s444 = scalar_lea.vmem [#allocation3], %s443
        // Predicated region
        $region83: #{gin_forward.9} parent=81 // pred_check
          %p445 = pneg %p53
        $region84: #{gin_forward.9} parent=81 // pred_check_branch
          %447 = sbr.rel (%p445) target = $region86
        $region85: #{gin_forward.9} parent=81 // pred_region
          _
        $region86: #{gin_forward.9} parent=81 // pred_fallthru
          _
        %s448 = sand.u32 %s40, 1
        %s449 = sand.u32 %s40, 1
        %s450 = smul.addr %s449, 256
        %s451 = scalar_lea.vmem [#allocation3], %s450
        %p452 = pneg %p53
        %p453 = pneg %p50
        %s454 = smul.u32 32, %s23
        %p455 = scmp.lt.s32.totalorder %s454, 63
        %s456 = scalar_select %p455, %s454, 63
        %s457 = smul.addr %s456, 8
        %s458 = scalar_lea.vmem %s1, %s457
        %p459 = pneg %p79
        %p460 = pneg %p76
        %s461 = smul.u32 32, %s22
        %p462 = scmp.lt.s32.totalorder %s461, 63
        %s463 = scalar_select %p462, %s461, 63
        %s464 = smul.addr %s463, 8
        %s465 = scalar_lea.vmem %s2, %s464
        %p466 = pneg %p105
        %p467 = pneg %p102
        %p468 = pneg %p126
        %p469 = pneg %p123
        %p470 = pneg %p147
        %p471 = pneg %p144
        %p472 = pneg %p168
        %p473 = pneg %p165
        %p474 = pneg %p189
        %p475 = pneg %p186
        %p476 = pneg %p215
        %p477 = pneg %p212
        %s478 = smul.u32 32, %s22
        %p479 = scmp.lt.s32.totalorder %s478, 63
        %s480 = scalar_select %p479, %s478, 63
        %s481 = smul.addr %s480, 8
        %s482 = scalar_lea.vmem %s7, %s481
        %s483 = smul.u32 32, %s22
        %s484 = smul.u32 2, %s23
        %s485 = smul.u32 32, %s23
        %p486 = scmp.lt.s32.totalorder %s485, 63
        %s487 = scalar_select %p486, %s485, 63
        %s488 = smul.addr %s487, 8
        %s489 = scalar_lea.vmem %s1, %s488
        %s490 = smul.u32 32, %s23
        %s491 = smul.u32 32, %s22
        %p492 = scmp.lt.s32.totalorder %s491, 63
        %s493 = scalar_select %p492, %s491, 63
        %s494 = smul.addr %s493, 8
        %s495 = scalar_lea.vmem %s2, %s494
        %s496 = smul.u32 32, %s22
        %s497 = smul.u32 32, %s22
        %p498 = scmp.lt.s32.totalorder %s497, 63
        %s499 = scalar_select %p498, %s497, 63
        %s500 = smul.addr %s499, 8
        %s501 = scalar_lea.vmem %s7, %s500
        %s502 = smul.u32 32, %s22
        %p503 = scmp.eq.s32.totalorder %s23, 0
        // Predicated region
        $region87: #{gin_forward.9} parent=81 // pred_check
          %p504 = pneg %p503
        $region88: #{gin_forward.9} parent=81 // pred_check_branch
          %506 = sbr.rel (%p504) target = $region90
        $region89: #{gin_forward.9} parent=81 // pred_region
          %507 = vst [vmem:[#allocation2] sm:$0xff] 0.0
          %508 = vst [vmem:[#allocation2 + $0x8] sm:$0xff] 0.0
          %509 = vst [vmem:[#allocation2 + $0x10] sm:$0xff] 0.0
          %510 = vst [vmem:[#allocation2 + $0x18] sm:$0xff] 0.0
          %511 = vst [vmem:[#allocation2 + $0x20] sm:$0xff] 0.0
          %512 = vst [vmem:[#allocation2 + $0x28] sm:$0xff] 0.0
          %513 = vst [vmem:[#allocation2 + $0x30] sm:$0xff] 0.0
          %514 = vst [vmem:[#allocation2 + $0x38] sm:$0xff] 0.0
          %515 = vst [vmem:[#allocation2 + $0x40] sm:$0xff] 0.0
          %516 = vst [vmem:[#allocation2 + $0x48] sm:$0xff] 0.0
          %517 = vst [vmem:[#allocation2 + $0x50] sm:$0xff] 0.0
          %518 = vst [vmem:[#allocation2 + $0x58] sm:$0xff] 0.0
          %519 = vst [vmem:[#allocation2 + $0x60] sm:$0xff] 0.0
          %520 = vst [vmem:[#allocation2 + $0x68] sm:$0xff] 0.0
          %521 = vst [vmem:[#allocation2 + $0x70] sm:$0xff] 0.0
          %522 = vst [vmem:[#allocation2 + $0x78] sm:$0xff] 0.0
          %523 = vst [vmem:[#allocation2 + $0x80] sm:$0xff] 0.0
          %524 = vst [vmem:[#allocation2 + $0x88] sm:$0xff] 0.0
          %525 = vst [vmem:[#allocation2 + $0x90] sm:$0xff] 0.0
          %526 = vst [vmem:[#allocation2 + $0x98] sm:$0xff] 0.0
          %527 = vst [vmem:[#allocation2 + $0xa0] sm:$0xff] 0.0
          %528 = vst [vmem:[#allocation2 + $0xa8] sm:$0xff] 0.0
          %529 = vst [vmem:[#allocation2 + $0xb0] sm:$0xff] 0.0
          %530 = vst [vmem:[#allocation2 + $0xb8] sm:$0xff] 0.0
          %531 = vst [vmem:[#allocation2 + $0xc0] sm:$0xff] 0.0
          %532 = vst [vmem:[#allocation2 + $0xc8] sm:$0xff] 0.0
          %533 = vst [vmem:[#allocation2 + $0xd0] sm:$0xff] 0.0
          %534 = vst [vmem:[#allocation2 + $0xd8] sm:$0xff] 0.0
          %535 = vst [vmem:[#allocation2 + $0xe0] sm:$0xff] 0.0
          %536 = vst [vmem:[#allocation2 + $0xe8] sm:$0xff] 0.0
          %537 = vst [vmem:[#allocation2 + $0xf0] sm:$0xff] 0.0
          %538 = vst [vmem:[#allocation2 + $0xf8] sm:$0xff] 0.0
        $region90: #{gin_forward.9} parent=81 // pred_fallthru
          _
        %v539 = vld [vmem:[%s444] sm:$0xff]
        %v540 = vld [vmem:[%s444 + $0x8] sm:$0xff]
        %v541 = vld [vmem:[%s444 + $0x10] sm:$0xff]
        %v542 = vld [vmem:[%s444 + $0x18] sm:$0xff]
        %v543 = vld [vmem:[%s444 + $0x20] sm:$0xff]
        %v544 = vld [vmem:[%s444 + $0x28] sm:$0xff]
        %v545 = vld [vmem:[%s444 + $0x30] sm:$0xff]
        %v546 = vld [vmem:[%s444 + $0x38] sm:$0xff]
        %v547 = vld [vmem:[%s444 + $0x40] sm:$0xff]
        %v548 = vld [vmem:[%s444 + $0x48] sm:$0xff]
        %v549 = vld [vmem:[%s444 + $0x50] sm:$0xff]
        %v550 = vld [vmem:[%s444 + $0x58] sm:$0xff]
        %v551 = vld [vmem:[%s444 + $0x60] sm:$0xff]
        %v552 = vld [vmem:[%s444 + $0x68] sm:$0xff]
        %v553 = vld [vmem:[%s444 + $0x70] sm:$0xff]
        %v554 = vld [vmem:[%s444 + $0x78] sm:$0xff]
        %v555 = vld [vmem:[%s444 + $0x80] sm:$0xff]
        %v556 = vld [vmem:[%s444 + $0x88] sm:$0xff]
        %v557 = vld [vmem:[%s444 + $0x90] sm:$0xff]
        %v558 = vld [vmem:[%s444 + $0x98] sm:$0xff]
        %v559 = vld [vmem:[%s444 + $0xa0] sm:$0xff]
        %v560 = vld [vmem:[%s444 + $0xa8] sm:$0xff]
        %v561 = vld [vmem:[%s444 + $0xb0] sm:$0xff]
        %v562 = vld [vmem:[%s444 + $0xb8] sm:$0xff]
        %v563 = vld [vmem:[%s444 + $0xc0] sm:$0xff]
        %v564 = vld [vmem:[%s444 + $0xc8] sm:$0xff]
        %v565 = vld [vmem:[%s444 + $0xd0] sm:$0xff]
        %v566 = vld [vmem:[%s444 + $0xd8] sm:$0xff]
        %v567 = vld [vmem:[%s444 + $0xe0] sm:$0xff]
        %v568 = vld [vmem:[%s444 + $0xe8] sm:$0xff]
        %v569 = vld [vmem:[%s444 + $0xf0] sm:$0xff]
        %v570 = vld [vmem:[%s444 + $0xf8] sm:$0xff]
        %v571 = vunpack.c.l.bf16 %v539
        %v572 = vunpack.c.h.bf16 %v539
        %v573 = vunpack.c.l.bf16 %v540
        %v574 = vunpack.c.h.bf16 %v540
        %v575 = vunpack.c.l.bf16 %v541
        %v576 = vunpack.c.h.bf16 %v541
        %v577 = vunpack.c.l.bf16 %v542
        %v578 = vunpack.c.h.bf16 %v542
        %v579 = vunpack.c.l.bf16 %v543
        %v580 = vunpack.c.h.bf16 %v543
        %v581 = vunpack.c.l.bf16 %v544
        %v582 = vunpack.c.h.bf16 %v544
        %v583 = vunpack.c.l.bf16 %v545
        %v584 = vunpack.c.h.bf16 %v545
        %v585 = vunpack.c.l.bf16 %v546
        %v586 = vunpack.c.h.bf16 %v546
        %v587 = vunpack.c.l.bf16 %v547
        %v588 = vunpack.c.h.bf16 %v547
        %v589 = vunpack.c.l.bf16 %v548
        %v590 = vunpack.c.h.bf16 %v548
        %v591 = vunpack.c.l.bf16 %v549
        %v592 = vunpack.c.h.bf16 %v549
        %v593 = vunpack.c.l.bf16 %v550
        %v594 = vunpack.c.h.bf16 %v550
        %v595 = vunpack.c.l.bf16 %v551
        %v596 = vunpack.c.h.bf16 %v551
        %v597 = vunpack.c.l.bf16 %v552
        %v598 = vunpack.c.h.bf16 %v552
        %v599 = vunpack.c.l.bf16 %v553
        %v600 = vunpack.c.h.bf16 %v553
        %v601 = vunpack.c.l.bf16 %v554
        %v602 = vunpack.c.h.bf16 %v554
        %v603 = vunpack.c.l.bf16 %v555
        %v604 = vunpack.c.h.bf16 %v555
        %v605 = vunpack.c.l.bf16 %v556
        %v606 = vunpack.c.h.bf16 %v556
        %v607 = vunpack.c.l.bf16 %v557
        %v608 = vunpack.c.h.bf16 %v557
        %v609 = vunpack.c.l.bf16 %v558
        %v610 = vunpack.c.h.bf16 %v558
        %v611 = vunpack.c.l.bf16 %v559
        %v612 = vunpack.c.h.bf16 %v559
        %v613 = vunpack.c.l.bf16 %v560
        %v614 = vunpack.c.h.bf16 %v560
        %v615 = vunpack.c.l.bf16 %v561
        %v616 = vunpack.c.h.bf16 %v561
        %v617 = vunpack.c.l.bf16 %v562
        %v618 = vunpack.c.h.bf16 %v562
        %v619 = vunpack.c.l.bf16 %v563
        %v620 = vunpack.c.h.bf16 %v563
        %v621 = vunpack.c.l.bf16 %v564
        %v622 = vunpack.c.h.bf16 %v564
        %v623 = vunpack.c.l.bf16 %v565
        %v624 = vunpack.c.h.bf16 %v565
        %v625 = vunpack.c.l.bf16 %v566
        %v626 = vunpack.c.h.bf16 %v566
        %v627 = vunpack.c.l.bf16 %v567
        %v628 = vunpack.c.h.bf16 %v567
        %v629 = vunpack.c.l.bf16 %v568
        %v630 = vunpack.c.h.bf16 %v568
        %v631 = vunpack.c.l.bf16 %v569
        %v632 = vunpack.c.h.bf16 %v569
        %v633 = vunpack.c.l.bf16 %v570
        %v634 = vunpack.c.h.bf16 %v570
        %v635 = vld [vmem:[#allocation2] sm:$0xff]
        %v636 = vld [vmem:[#allocation2 + $0x8] sm:$0xff]
        %v637 = vld [vmem:[#allocation2 + $0x10] sm:$0xff]
        %v638 = vld [vmem:[#allocation2 + $0x18] sm:$0xff]
        %v639 = vld [vmem:[#allocation2 + $0x20] sm:$0xff]
        %v640 = vld [vmem:[#allocation2 + $0x28] sm:$0xff]
        %v641 = vld [vmem:[#allocation2 + $0x30] sm:$0xff]
        %v642 = vld [vmem:[#allocation2 + $0x38] sm:$0xff]
        %v643 = vld [vmem:[#allocation2 + $0x40] sm:$0xff]
        %v644 = vld [vmem:[#allocation2 + $0x48] sm:$0xff]
        %v645 = vld [vmem:[#allocation2 + $0x50] sm:$0xff]
        %v646 = vld [vmem:[#allocation2 + $0x58] sm:$0xff]
        %v647 = vld [vmem:[#allocation2 + $0x60] sm:$0xff]
        %v648 = vld [vmem:[#allocation2 + $0x68] sm:$0xff]
        %v649 = vld [vmem:[#allocation2 + $0x70] sm:$0xff]
        %v650 = vld [vmem:[#allocation2 + $0x78] sm:$0xff]
        %v651 = vld [vmem:[#allocation2 + $0x80] sm:$0xff]
        %v652 = vld [vmem:[#allocation2 + $0x88] sm:$0xff]
        %v653 = vld [vmem:[#allocation2 + $0x90] sm:$0xff]
        %v654 = vld [vmem:[#allocation2 + $0x98] sm:$0xff]
        %v655 = vld [vmem:[#allocation2 + $0xa0] sm:$0xff]
        %v656 = vld [vmem:[#allocation2 + $0xa8] sm:$0xff]
        %v657 = vld [vmem:[#allocation2 + $0xb0] sm:$0xff]
        %v658 = vld [vmem:[#allocation2 + $0xb8] sm:$0xff]
        %v659 = vld [vmem:[#allocation2 + $0xc0] sm:$0xff]
        %v660 = vld [vmem:[#allocation2 + $0xc8] sm:$0xff]
        %v661 = vld [vmem:[#allocation2 + $0xd0] sm:$0xff]
        %v662 = vld [vmem:[#allocation2 + $0xd8] sm:$0xff]
        %v663 = vld [vmem:[#allocation2 + $0xe0] sm:$0xff]
        %v664 = vld [vmem:[#allocation2 + $0xe8] sm:$0xff]
        %v665 = vld [vmem:[#allocation2 + $0xf0] sm:$0xff]
        %v666 = vld [vmem:[#allocation2 + $0xf8] sm:$0xff]
        %v667 = vld [vmem:[%s489] sm:$0xff]
        %v668 = vld [vmem:[%s489 + $0x8] sm:$0xff]
        %v669 = vld [vmem:[%s489 + $0x10] sm:$0xff]
        %v670 = vld [vmem:[%s489 + $0x18] sm:$0xff]
        %v671 = vld [vmem:[%s489 + $0x20] sm:$0xff]
        %v672 = vld [vmem:[%s489 + $0x28] sm:$0xff]
        %v673 = vld [vmem:[%s489 + $0x30] sm:$0xff]
        %v674 = vld [vmem:[%s489 + $0x38] sm:$0xff]
        %v675 = vld [vmem:[%s489 + $0x40] sm:$0xff]
        %v676 = vld [vmem:[%s489 + $0x48] sm:$0xff]
        %v677 = vld [vmem:[%s489 + $0x50] sm:$0xff]
        %v678 = vld [vmem:[%s489 + $0x58] sm:$0xff]
        %v679 = vld [vmem:[%s489 + $0x60] sm:$0xff]
        %v680 = vld [vmem:[%s489 + $0x68] sm:$0xff]
        %v681 = vld [vmem:[%s489 + $0x70] sm:$0xff]
        %v682 = vld [vmem:[%s489 + $0x78] sm:$0xff]
        %v683 = vld [vmem:[%s489 + $0x80] sm:$0xff]
        %v684 = vld [vmem:[%s489 + $0x88] sm:$0xff]
        %v685 = vld [vmem:[%s489 + $0x90] sm:$0xff]
        %v686 = vld [vmem:[%s489 + $0x98] sm:$0xff]
        %v687 = vld [vmem:[%s489 + $0xa0] sm:$0xff]
        %v688 = vld [vmem:[%s489 + $0xa8] sm:$0xff]
        %v689 = vld [vmem:[%s489 + $0xb0] sm:$0xff]
        %v690 = vld [vmem:[%s489 + $0xb8] sm:$0xff]
        %v691 = vld [vmem:[%s489 + $0xc0] sm:$0xff]
        %v692 = vld [vmem:[%s489 + $0xc8] sm:$0xff]
        %v693 = vld [vmem:[%s489 + $0xd0] sm:$0xff]
        %v694 = vld [vmem:[%s489 + $0xd8] sm:$0xff]
        %v695 = vld [vmem:[%s489 + $0xe0] sm:$0xff]
        %v696 = vld [vmem:[%s489 + $0xe8] sm:$0xff]
        %v697 = vld [vmem:[%s489 + $0xf0] sm:$0xff]
        %v698 = vld [vmem:[%s489 + $0xf8] sm:$0xff]
        %699 = vmatprep.subr.mxu0 0.0
        %700 = vmatpush1.msra.mxu0 %v682
        %701 = vmatprep.subr.mxu0 0.0
        %702 = vmatpush1.msra.mxu0 %v681
        %703 = vmatprep.subr.mxu0 0.0
        %704 = vmatpush1.msra.mxu0 %v680
        %705 = vmatprep.subr.mxu0 0.0
        %706 = vmatpush1.msra.mxu0 %v679
        %707 = vmatprep.subr.mxu0 0.0
        %708 = vmatpush1.msra.mxu0 %v678
        %709 = vmatprep.subr.mxu0 0.0
        %710 = vmatpush1.msra.mxu0 %v677
        %711 = vmatprep.subr.mxu0 0.0
        %712 = vmatpush1.msra.mxu0 %v676
        %713 = vmatprep.subr.mxu0 0.0
        %714 = vmatpush1.msra.mxu0 %v675
        %715 = vmatprep.subr.mxu0 0.0
        %716 = vmatpush1.msra.mxu0 %v674
        %717 = vmatprep.subr.mxu0 0.0
        %718 = vmatpush1.msra.mxu0 %v673
        %719 = vmatprep.subr.mxu0 0.0
        %720 = vmatpush1.msra.mxu0 %v672
        %721 = vmatprep.subr.mxu0 0.0
        %722 = vmatpush1.msra.mxu0 %v671
        %723 = vmatprep.subr.mxu0 0.0
        %724 = vmatpush1.msra.mxu0 %v670
        %725 = vmatprep.subr.mxu0 0.0
        %726 = vmatpush1.msra.mxu0 %v669
        %727 = vmatprep.subr.mxu0 0.0
        %728 = vmatpush1.msra.mxu0 %v668
        %729 = vmatprep.subr.mxu0 0.0
        %730 = vmatpush1.msra.mxu0 %v667
        %731 = vmatprep.subr.mxu0 0.0
        %732 = vmatpush2.msra.mxu0 %v698
        %733 = vmatprep.subr.mxu0 0.0
        %734 = vmatpush2.msra.mxu0 %v697
        %735 = vmatprep.subr.mxu0 0.0
        %736 = vmatpush2.msra.mxu0 %v696
        %737 = vmatprep.subr.mxu0 0.0
        %738 = vmatpush2.msra.mxu0 %v695
        %739 = vmatprep.subr.mxu0 0.0
        %740 = vmatpush2.msra.mxu0 %v694
        %741 = vmatprep.subr.mxu0 0.0
        %742 = vmatpush2.msra.mxu0 %v693
        %743 = vmatprep.subr.mxu0 0.0
        %744 = vmatpush2.msra.mxu0 %v692
        %745 = vmatprep.subr.mxu0 0.0
        %746 = vmatpush2.msra.mxu0 %v691
        %747 = vmatprep.subr.mxu0 0.0
        %748 = vmatpush2.msra.mxu0 %v690
        %749 = vmatprep.subr.mxu0 0.0
        %750 = vmatpush2.msra.mxu0 %v689
        %751 = vmatprep.subr.mxu0 0.0
        %752 = vmatpush2.msra.mxu0 %v688
        %753 = vmatprep.subr.mxu0 0.0
        %754 = vmatpush2.msra.mxu0 %v687
        %755 = vmatprep.subr.mxu0 0.0
        %756 = vmatpush2.msra.mxu0 %v686
        %757 = vmatprep.subr.mxu0 0.0
        %758 = vmatpush2.msra.mxu0 %v685
        %759 = vmatprep.subr.mxu0 0.0
        %760 = vmatpush2.msra.mxu0 %v684
        %761 = vmatprep.subr.mxu0 0.0
        %762 = vmatpush2.msra.mxu0 %v683
        %763 = vmatprep.mubr.f32.mxu0 %v572
        %764 = vmatmul.mubr.f32.gmra.mxu0 %v571
        %v765 = vpop.f32.mrf.mxu0
        %v766 = vadd.f32 0.0, %v765
        %v767 = vpop.f32.mrf.mxu0
        %768 = vmatprep.mubr.f32.mxu0 %v574
        %769 = vmatmul.mubr.f32.gmra.mxu0 %v573
        %v770 = vpop.f32.mrf.mxu0
        %v771 = vadd.f32 0.0, %v770
        %v772 = vpop.f32.mrf.mxu0
        %773 = vmatprep.mubr.f32.mxu0 %v576
        %774 = vmatmul.mubr.f32.gmra.mxu0 %v575
        %v775 = vpop.f32.mrf.mxu0
        %v776 = vadd.f32 0.0, %v775
        %v777 = vpop.f32.mrf.mxu0
        %778 = vmatprep.mubr.f32.mxu0 %v578
        %779 = vmatmul.mubr.f32.gmra.mxu0 %v577
        %v780 = vpop.f32.mrf.mxu0
        %v781 = vadd.f32 0.0, %v780
        %v782 = vpop.f32.mrf.mxu0
        %783 = vmatprep.mubr.f32.mxu0 %v580
        %784 = vmatmul.mubr.f32.gmra.mxu0 %v579
        %v785 = vpop.f32.mrf.mxu0
        %v786 = vadd.f32 0.0, %v785
        %v787 = vpop.f32.mrf.mxu0
        %788 = vmatprep.mubr.f32.mxu0 %v582
        %789 = vmatmul.mubr.f32.gmra.mxu0 %v581
        %v790 = vpop.f32.mrf.mxu0
        %v791 = vadd.f32 0.0, %v790
        %v792 = vpop.f32.mrf.mxu0
        %793 = vmatprep.mubr.f32.mxu0 %v584
        %794 = vmatmul.mubr.f32.gmra.mxu0 %v583
        %v795 = vpop.f32.mrf.mxu0
        %v796 = vadd.f32 0.0, %v795
        %v797 = vpop.f32.mrf.mxu0
        %798 = vmatprep.mubr.f32.mxu0 %v586
        %799 = vmatmul.mubr.f32.gmra.mxu0 %v585
        %v800 = vpop.f32.mrf.mxu0
        %v801 = vadd.f32 0.0, %v800
        %v802 = vpop.f32.mrf.mxu0
        %803 = vmatprep.mubr.f32.mxu0 %v588
        %804 = vmatmul.mubr.f32.gmra.mxu0 %v587
        %v805 = vpop.f32.mrf.mxu0
        %v806 = vadd.f32 0.0, %v805
        %v807 = vpop.f32.mrf.mxu0
        %808 = vmatprep.mubr.f32.mxu0 %v590
        %809 = vmatmul.mubr.f32.gmra.mxu0 %v589
        %v810 = vpop.f32.mrf.mxu0
        %v811 = vadd.f32 0.0, %v810
        %v812 = vpop.f32.mrf.mxu0
        %813 = vmatprep.mubr.f32.mxu0 %v592
        %814 = vmatmul.mubr.f32.gmra.mxu0 %v591
        %v815 = vpop.f32.mrf.mxu0
        %v816 = vadd.f32 0.0, %v815
        %v817 = vpop.f32.mrf.mxu0
        %818 = vmatprep.mubr.f32.mxu0 %v594
        %819 = vmatmul.mubr.f32.gmra.mxu0 %v593
        %v820 = vpop.f32.mrf.mxu0
        %v821 = vadd.f32 0.0, %v820
        %v822 = vpop.f32.mrf.mxu0
        %823 = vmatprep.mubr.f32.mxu0 %v596
        %824 = vmatmul.mubr.f32.gmra.mxu0 %v595
        %v825 = vpop.f32.mrf.mxu0
        %v826 = vadd.f32 0.0, %v825
        %v827 = vpop.f32.mrf.mxu0
        %828 = vmatprep.mubr.f32.mxu0 %v598
        %829 = vmatmul.mubr.f32.gmra.mxu0 %v597
        %v830 = vpop.f32.mrf.mxu0
        %v831 = vadd.f32 0.0, %v830
        %v832 = vpop.f32.mrf.mxu0
        %833 = vmatprep.mubr.f32.mxu0 %v600
        %834 = vmatmul.mubr.f32.gmra.mxu0 %v599
        %v835 = vpop.f32.mrf.mxu0
        %v836 = vadd.f32 0.0, %v835
        %v837 = vpop.f32.mrf.mxu0
        %838 = vmatprep.mubr.f32.mxu0 %v602
        %839 = vmatmul.mubr.f32.gmra.mxu0 %v601
        %v840 = vpop.f32.mrf.mxu0
        %v841 = vadd.f32 0.0, %v840
        %v842 = vpop.f32.mrf.mxu0
        %843 = vmatprep.mubr.f32.mxu0 %v604
        %844 = vmatmul.mubr.f32.gmra.mxu0 %v603
        %v845 = vpop.f32.mrf.mxu0
        %v846 = vadd.f32 0.0, %v845
        %v847 = vpop.f32.mrf.mxu0
        %848 = vmatprep.mubr.f32.mxu0 %v606
        %849 = vmatmul.mubr.f32.gmra.mxu0 %v605
        %v850 = vpop.f32.mrf.mxu0
        %v851 = vadd.f32 0.0, %v850
        %v852 = vpop.f32.mrf.mxu0
        %853 = vmatprep.mubr.f32.mxu0 %v608
        %854 = vmatmul.mubr.f32.gmra.mxu0 %v607
        %v855 = vpop.f32.mrf.mxu0
        %v856 = vadd.f32 0.0, %v855
        %v857 = vpop.f32.mrf.mxu0
        %858 = vmatprep.mubr.f32.mxu0 %v610
        %859 = vmatmul.mubr.f32.gmra.mxu0 %v609
        %v860 = vpop.f32.mrf.mxu0
        %v861 = vadd.f32 0.0, %v860
        %v862 = vpop.f32.mrf.mxu0
        %863 = vmatprep.mubr.f32.mxu0 %v612
        %864 = vmatmul.mubr.f32.gmra.mxu0 %v611
        %v865 = vpop.f32.mrf.mxu0
        %v866 = vadd.f32 0.0, %v865
        %v867 = vpop.f32.mrf.mxu0
        %868 = vmatprep.mubr.f32.mxu0 %v614
        %869 = vmatmul.mubr.f32.gmra.mxu0 %v613
        %v870 = vpop.f32.mrf.mxu0
        %v871 = vadd.f32 0.0, %v870
        %v872 = vpop.f32.mrf.mxu0
        %873 = vmatprep.mubr.f32.mxu0 %v616
        %874 = vmatmul.mubr.f32.gmra.mxu0 %v615
        %v875 = vpop.f32.mrf.mxu0
        %v876 = vadd.f32 0.0, %v875
        %v877 = vpop.f32.mrf.mxu0
        %878 = vmatprep.mubr.f32.mxu0 %v618
        %879 = vmatmul.mubr.f32.gmra.mxu0 %v617
        %v880 = vpop.f32.mrf.mxu0
        %v881 = vadd.f32 0.0, %v880
        %v882 = vpop.f32.mrf.mxu0
        %883 = vmatprep.mubr.f32.mxu0 %v620
        %884 = vmatmul.mubr.f32.gmra.mxu0 %v619
        %v885 = vpop.f32.mrf.mxu0
        %v886 = vadd.f32 0.0, %v885
        %v887 = vpop.f32.mrf.mxu0
        %888 = vmatprep.mubr.f32.mxu0 %v622
        %889 = vmatmul.mubr.f32.gmra.mxu0 %v621
        %v890 = vpop.f32.mrf.mxu0
        %v891 = vadd.f32 0.0, %v890
        %v892 = vpop.f32.mrf.mxu0
        %893 = vmatprep.mubr.f32.mxu0 %v624
        %894 = vmatmul.mubr.f32.gmra.mxu0 %v623
        %v895 = vpop.f32.mrf.mxu0
        %v896 = vadd.f32 0.0, %v895
        %v897 = vpop.f32.mrf.mxu0
        %898 = vmatprep.mubr.f32.mxu0 %v626
        %899 = vmatmul.mubr.f32.gmra.mxu0 %v625
        %v900 = vpop.f32.mrf.mxu0
        %v901 = vadd.f32 0.0, %v900
        %v902 = vpop.f32.mrf.mxu0
        %903 = vmatprep.mubr.f32.mxu0 %v628
        %904 = vmatmul.mubr.f32.gmra.mxu0 %v627
        %v905 = vpop.f32.mrf.mxu0
        %v906 = vadd.f32 0.0, %v905
        %v907 = vpop.f32.mrf.mxu0
        %908 = vmatprep.mubr.f32.mxu0 %v630
        %909 = vmatmul.mubr.f32.gmra.mxu0 %v629
        %v910 = vpop.f32.mrf.mxu0
        %v911 = vadd.f32 0.0, %v910
        %v912 = vpop.f32.mrf.mxu0
        %913 = vmatprep.mubr.f32.mxu0 %v632
        %914 = vmatmul.mubr.f32.gmra.mxu0 %v631
        %v915 = vpop.f32.mrf.mxu0
        %v916 = vadd.f32 0.0, %v915
        %v917 = vpop.f32.mrf.mxu0
        %918 = vmatprep.mubr.f32.mxu0 %v634
        %919 = vmatmul.mubr.f32.gmra.mxu0 %v633
        %v920 = vpop.f32.mrf.mxu0
        %v921 = vadd.f32 0.0, %v920
        %v922 = vpop.f32.mrf.mxu0
        %923 = vdwg.mxu0
        %v924 = vadd.f32 %v635, %v766
        %v925 = vadd.f32 %v636, %v771
        %v926 = vadd.f32 %v637, %v776
        %v927 = vadd.f32 %v638, %v781
        %v928 = vadd.f32 %v639, %v786
        %v929 = vadd.f32 %v640, %v791
        %v930 = vadd.f32 %v641, %v796
        %v931 = vadd.f32 %v642, %v801
        %v932 = vadd.f32 %v643, %v806
        %v933 = vadd.f32 %v644, %v811
        %v934 = vadd.f32 %v645, %v816
        %v935 = vadd.f32 %v646, %v821
        %v936 = vadd.f32 %v647, %v826
        %v937 = vadd.f32 %v648, %v831
        %v938 = vadd.f32 %v649, %v836
        %v939 = vadd.f32 %v650, %v841
        %v940 = vadd.f32 %v651, %v846
        %v941 = vadd.f32 %v652, %v851
        %v942 = vadd.f32 %v653, %v856
        %v943 = vadd.f32 %v654, %v861
        %v944 = vadd.f32 %v655, %v866
        %v945 = vadd.f32 %v656, %v871
        %v946 = vadd.f32 %v657, %v876
        %v947 = vadd.f32 %v658, %v881
        %v948 = vadd.f32 %v659, %v886
        %v949 = vadd.f32 %v660, %v891
        %v950 = vadd.f32 %v661, %v896
        %v951 = vadd.f32 %v662, %v901
        %v952 = vadd.f32 %v663, %v906
        %v953 = vadd.f32 %v664, %v911
        %v954 = vadd.f32 %v665, %v916
        %v955 = vadd.f32 %v666, %v921
        %956 = vst [vmem:[#allocation2] sm:$0xff] %v924
        %957 = vst [vmem:[#allocation2 + $0x8] sm:$0xff] %v925
        %958 = vst [vmem:[#allocation2 + $0x10] sm:$0xff] %v926
        %959 = vst [vmem:[#allocation2 + $0x18] sm:$0xff] %v927
        %960 = vst [vmem:[#allocation2 + $0x20] sm:$0xff] %v928
        %961 = vst [vmem:[#allocation2 + $0x28] sm:$0xff] %v929
        %962 = vst [vmem:[#allocation2 + $0x30] sm:$0xff] %v930
        %963 = vst [vmem:[#allocation2 + $0x38] sm:$0xff] %v931
        %964 = vst [vmem:[#allocation2 + $0x40] sm:$0xff] %v932
        %965 = vst [vmem:[#allocation2 + $0x48] sm:$0xff] %v933
        %966 = vst [vmem:[#allocation2 + $0x50] sm:$0xff] %v934
        %967 = vst [vmem:[#allocation2 + $0x58] sm:$0xff] %v935
        %968 = vst [vmem:[#allocation2 + $0x60] sm:$0xff] %v936
        %969 = vst [vmem:[#allocation2 + $0x68] sm:$0xff] %v937
        %970 = vst [vmem:[#allocation2 + $0x70] sm:$0xff] %v938
        %971 = vst [vmem:[#allocation2 + $0x78] sm:$0xff] %v939
        %972 = vst [vmem:[#allocation2 + $0x80] sm:$0xff] %v940
        %973 = vst [vmem:[#allocation2 + $0x88] sm:$0xff] %v941
        %974 = vst [vmem:[#allocation2 + $0x90] sm:$0xff] %v942
        %975 = vst [vmem:[#allocation2 + $0x98] sm:$0xff] %v943
        %976 = vst [vmem:[#allocation2 + $0xa0] sm:$0xff] %v944
        %977 = vst [vmem:[#allocation2 + $0xa8] sm:$0xff] %v945
        %978 = vst [vmem:[#allocation2 + $0xb0] sm:$0xff] %v946
        %979 = vst [vmem:[#allocation2 + $0xb8] sm:$0xff] %v947
        %980 = vst [vmem:[#allocation2 + $0xc0] sm:$0xff] %v948
        %981 = vst [vmem:[#allocation2 + $0xc8] sm:$0xff] %v949
        %982 = vst [vmem:[#allocation2 + $0xd0] sm:$0xff] %v950
        %983 = vst [vmem:[#allocation2 + $0xd8] sm:$0xff] %v951
        %984 = vst [vmem:[#allocation2 + $0xe0] sm:$0xff] %v952
        %985 = vst [vmem:[#allocation2 + $0xe8] sm:$0xff] %v953
        %986 = vst [vmem:[#allocation2 + $0xf0] sm:$0xff] %v954
        %987 = vst [vmem:[#allocation2 + $0xf8] sm:$0xff] %v955
        %p988 = scmp.eq.s32.totalorder %s23, 1
        // Predicated region
        $region91: #{gin_forward.9} parent=81 // pred_check
          %p989 = pneg %p988
        $region92: #{gin_forward.9} parent=81 // pred_check_branch
          %991 = sbr.rel (%p989) target = $region94
        $region93: #{gin_forward.9} parent=81 // pred_region
          %v992 = vld [vmem:[#allocation2] sm:$0xff]
          %v993 = vld [vmem:[#allocation2 + $0x8] sm:$0xff]
          %v994 = vld [vmem:[#allocation2 + $0x10] sm:$0xff]
          %v995 = vld [vmem:[#allocation2 + $0x18] sm:$0xff]
          %v996 = vld [vmem:[#allocation2 + $0x20] sm:$0xff]
          %v997 = vld [vmem:[#allocation2 + $0x28] sm:$0xff]
          %v998 = vld [vmem:[#allocation2 + $0x30] sm:$0xff]
          %v999 = vld [vmem:[#allocation2 + $0x38] sm:$0xff]
          %v1000 = vld [vmem:[#allocation2 + $0x40] sm:$0xff]
          %v1001 = vld [vmem:[#allocation2 + $0x48] sm:$0xff]
          %v1002 = vld [vmem:[#allocation2 + $0x50] sm:$0xff]
          %v1003 = vld [vmem:[#allocation2 + $0x58] sm:$0xff]
          %v1004 = vld [vmem:[#allocation2 + $0x60] sm:$0xff]
          %v1005 = vld [vmem:[#allocation2 + $0x68] sm:$0xff]
          %v1006 = vld [vmem:[#allocation2 + $0x70] sm:$0xff]
          %v1007 = vld [vmem:[#allocation2 + $0x78] sm:$0xff]
          %v1008 = vld [vmem:[#allocation2 + $0x80] sm:$0xff]
          %v1009 = vld [vmem:[#allocation2 + $0x88] sm:$0xff]
          %v1010 = vld [vmem:[#allocation2 + $0x90] sm:$0xff]
          %v1011 = vld [vmem:[#allocation2 + $0x98] sm:$0xff]
          %v1012 = vld [vmem:[#allocation2 + $0xa0] sm:$0xff]
          %v1013 = vld [vmem:[#allocation2 + $0xa8] sm:$0xff]
          %v1014 = vld [vmem:[#allocation2 + $0xb0] sm:$0xff]
          %v1015 = vld [vmem:[#allocation2 + $0xb8] sm:$0xff]
          %v1016 = vld [vmem:[#allocation2 + $0xc0] sm:$0xff]
          %v1017 = vld [vmem:[#allocation2 + $0xc8] sm:$0xff]
          %v1018 = vld [vmem:[#allocation2 + $0xd0] sm:$0xff]
          %v1019 = vld [vmem:[#allocation2 + $0xd8] sm:$0xff]
          %v1020 = vld [vmem:[#allocation2 + $0xe0] sm:$0xff]
          %v1021 = vld [vmem:[#allocation2 + $0xe8] sm:$0xff]
          %v1022 = vld [vmem:[#allocation2 + $0xf0] sm:$0xff]
          %v1023 = vld [vmem:[#allocation2 + $0xf8] sm:$0xff]
          %v1024 = vld [vmem:[%s495] sm:$0xff]
          %v1025 = vld [vmem:[%s495 + $0x8] sm:$0xff]
          %v1026 = vld [vmem:[%s495 + $0x10] sm:$0xff]
          %v1027 = vld [vmem:[%s495 + $0x18] sm:$0xff]
          %v1028 = vld [vmem:[%s495 + $0x20] sm:$0xff]
          %v1029 = vld [vmem:[%s495 + $0x28] sm:$0xff]
          %v1030 = vld [vmem:[%s495 + $0x30] sm:$0xff]
          %v1031 = vld [vmem:[%s495 + $0x38] sm:$0xff]
          %v1032 = vld [vmem:[%s495 + $0x40] sm:$0xff]
          %v1033 = vld [vmem:[%s495 + $0x48] sm:$0xff]
          %v1034 = vld [vmem:[%s495 + $0x50] sm:$0xff]
          %v1035 = vld [vmem:[%s495 + $0x58] sm:$0xff]
          %v1036 = vld [vmem:[%s495 + $0x60] sm:$0xff]
          %v1037 = vld [vmem:[%s495 + $0x68] sm:$0xff]
          %v1038 = vld [vmem:[%s495 + $0x70] sm:$0xff]
          %v1039 = vld [vmem:[%s495 + $0x78] sm:$0xff]
          %v1040 = vld [vmem:[%s495 + $0x80] sm:$0xff]
          %v1041 = vld [vmem:[%s495 + $0x88] sm:$0xff]
          %v1042 = vld [vmem:[%s495 + $0x90] sm:$0xff]
          %v1043 = vld [vmem:[%s495 + $0x98] sm:$0xff]
          %v1044 = vld [vmem:[%s495 + $0xa0] sm:$0xff]
          %v1045 = vld [vmem:[%s495 + $0xa8] sm:$0xff]
          %v1046 = vld [vmem:[%s495 + $0xb0] sm:$0xff]
          %v1047 = vld [vmem:[%s495 + $0xb8] sm:$0xff]
          %v1048 = vld [vmem:[%s495 + $0xc0] sm:$0xff]
          %v1049 = vld [vmem:[%s495 + $0xc8] sm:$0xff]
          %v1050 = vld [vmem:[%s495 + $0xd0] sm:$0xff]
          %v1051 = vld [vmem:[%s495 + $0xd8] sm:$0xff]
          %v1052 = vld [vmem:[%s495 + $0xe0] sm:$0xff]
          %v1053 = vld [vmem:[%s495 + $0xe8] sm:$0xff]
          %v1054 = vld [vmem:[%s495 + $0xf0] sm:$0xff]
          %v1055 = vld [vmem:[%s495 + $0xf8] sm:$0xff]
          %v1056 = vadd.f32 %v992, %v1024
          %v1057 = vadd.f32 %v993, %v1025
          %v1058 = vadd.f32 %v994, %v1026
          %v1059 = vadd.f32 %v995, %v1027
          %v1060 = vadd.f32 %v996, %v1028
          %v1061 = vadd.f32 %v997, %v1029
          %v1062 = vadd.f32 %v998, %v1030
          %v1063 = vadd.f32 %v999, %v1031
          %v1064 = vadd.f32 %v1000, %v1032
          %v1065 = vadd.f32 %v1001, %v1033
          %v1066 = vadd.f32 %v1002, %v1034
          %v1067 = vadd.f32 %v1003, %v1035
          %v1068 = vadd.f32 %v1004, %v1036
          %v1069 = vadd.f32 %v1005, %v1037
          %v1070 = vadd.f32 %v1006, %v1038
          %v1071 = vadd.f32 %v1007, %v1039
          %v1072 = vadd.f32 %v1008, %v1040
          %v1073 = vadd.f32 %v1009, %v1041
          %v1074 = vadd.f32 %v1010, %v1042
          %v1075 = vadd.f32 %v1011, %v1043
          %v1076 = vadd.f32 %v1012, %v1044
          %v1077 = vadd.f32 %v1013, %v1045
          %v1078 = vadd.f32 %v1014, %v1046
          %v1079 = vadd.f32 %v1015, %v1047
          %v1080 = vadd.f32 %v1016, %v1048
          %v1081 = vadd.f32 %v1017, %v1049
          %v1082 = vadd.f32 %v1018, %v1050
          %v1083 = vadd.f32 %v1019, %v1051
          %v1084 = vadd.f32 %v1020, %v1052
          %v1085 = vadd.f32 %v1021, %v1053
          %v1086 = vadd.f32 %v1022, %v1054
          %v1087 = vadd.f32 %v1023, %v1055
          %v1088 = vld [vmem:[%s3] sm:$0xff]
          %v1089 = vld [vmem:[%s3 + $0x8] sm:$0xff]
          %v1090 = vld [vmem:[%s3 + $0x10] sm:$0xff]
          %v1091 = vld [vmem:[%s3 + $0x18] sm:$0xff]
          %v1092 = vld [vmem:[%s3 + $0x20] sm:$0xff]
          %v1093 = vld [vmem:[%s3 + $0x28] sm:$0xff]
          %v1094 = vld [vmem:[%s3 + $0x30] sm:$0xff]
          %v1095 = vld [vmem:[%s3 + $0x38] sm:$0xff]
          %v1096 = vld [vmem:[%s3 + $0x40] sm:$0xff]
          %v1097 = vld [vmem:[%s3 + $0x48] sm:$0xff]
          %v1098 = vld [vmem:[%s3 + $0x50] sm:$0xff]
          %v1099 = vld [vmem:[%s3 + $0x58] sm:$0xff]
          %v1100 = vld [vmem:[%s3 + $0x60] sm:$0xff]
          %v1101 = vld [vmem:[%s3 + $0x68] sm:$0xff]
          %v1102 = vld [vmem:[%s3 + $0x70] sm:$0xff]
          %v1103 = vld [vmem:[%s3 + $0x78] sm:$0xff]
          %v1104 = vld [vmem:[%s4] sm:$0x1]
          %v1106 = vlaneseq
          %v1107 = vshrl.u32 %v1106, 7
          %v1108 = vsub.s32 0, %v1107
          %v1109 = vrot.slane %v1104, %v1108
          %1111 = vmatprep.subr.mxu0 0.0
          %1112 = vmatpush1.msra.mxu0 %v1103
          %1113 = vmatprep.subr.mxu0 0.0
          %1114 = vmatpush1.msra.mxu0 %v1102
          %1115 = vmatprep.subr.mxu0 0.0
          %1116 = vmatpush1.msra.mxu0 %v1101
          %1117 = vmatprep.subr.mxu0 0.0
          %1118 = vmatpush1.msra.mxu0 %v1100
          %1119 = vmatprep.subr.mxu0 0.0
          %1120 = vmatpush1.msra.mxu0 %v1099
          %1121 = vmatprep.subr.mxu0 0.0
          %1122 = vmatpush1.msra.mxu0 %v1098
          %1123 = vmatprep.subr.mxu0 0.0
          %1124 = vmatpush1.msra.mxu0 %v1097
          %1125 = vmatprep.subr.mxu0 0.0
          %1126 = vmatpush1.msra.mxu0 %v1096
          %1127 = vmatprep.subr.mxu0 0.0
          %1128 = vmatpush1.msra.mxu0 %v1095
          %1129 = vmatprep.subr.mxu0 0.0
          %1130 = vmatpush1.msra.mxu0 %v1094
          %1131 = vmatprep.subr.mxu0 0.0
          %1132 = vmatpush1.msra.mxu0 %v1093
          %1133 = vmatprep.subr.mxu0 0.0
          %1134 = vmatpush1.msra.mxu0 %v1092
          %1135 = vmatprep.subr.mxu0 0.0
          %1136 = vmatpush1.msra.mxu0 %v1091
          %1137 = vmatprep.subr.mxu0 0.0
          %1138 = vmatpush1.msra.mxu0 %v1090
          %1139 = vmatprep.subr.mxu0 0.0
          %1140 = vmatpush1.msra.mxu0 %v1089
          %1141 = vmatprep.subr.mxu0 0.0
          %1142 = vmatpush1.msra.mxu0 %v1088
          %1143 = vmatprep.subr.mxu0 0.0
          %1144 = vmatpush2.msra.mxu0 0.0
          %1145 = vmatprep.subr.mxu0 0.0
          %1146 = vmatpush2.msra.mxu0 0.0
          %1147 = vmatprep.subr.mxu0 0.0
          %1148 = vmatpush2.msra.mxu0 0.0
          %1149 = vmatprep.subr.mxu0 0.0
          %1150 = vmatpush2.msra.mxu0 0.0
          %1151 = vmatprep.subr.mxu0 0.0
          %1152 = vmatpush2.msra.mxu0 0.0
          %1153 = vmatprep.subr.mxu0 0.0
          %1154 = vmatpush2.msra.mxu0 0.0
          %1155 = vmatprep.subr.mxu0 0.0
          %1156 = vmatpush2.msra.mxu0 0.0
          %1157 = vmatprep.subr.mxu0 0.0
          %1158 = vmatpush2.msra.mxu0 0.0
          %1159 = vmatprep.subr.mxu0 0.0
          %1160 = vmatpush2.msra.mxu0 0.0
          %1161 = vmatprep.subr.mxu0 0.0
          %1162 = vmatpush2.msra.mxu0 0.0
          %1163 = vmatprep.subr.mxu0 0.0
          %1164 = vmatpush2.msra.mxu0 0.0
          %1165 = vmatprep.subr.mxu0 0.0
          %1166 = vmatpush2.msra.mxu0 0.0
          %1167 = vmatprep.subr.mxu0 0.0
          %1168 = vmatpush2.msra.mxu0 0.0
          %1169 = vmatprep.subr.mxu0 0.0
          %1170 = vmatpush2.msra.mxu0 0.0
          %1171 = vmatprep.subr.mxu0 0.0
          %1172 = vmatpush2.msra.mxu0 0.0
          %1173 = vmatprep.subr.mxu0 0.0
          %1174 = vmatpush2.msra.mxu0 0.0
          %1175 = vmatprep.mubr.f32.mxu0 0.0
          %1176 = vmatmul.mubr.f32.gmra.mxu0 %v1056
          %v1177 = vpop.f32.mrf.mxu0
          %v1178 = vadd.f32 %v1109, %v1177
          %v1179 = vpop.f32.mrf.mxu0
          %1180 = vmatprep.mubr.f32.mxu0 0.0
          %1181 = vmatmul.mubr.f32.gmra.mxu0 %v1057
          %v1182 = vpop.f32.mrf.mxu0
          %v1183 = vadd.f32 %v1109, %v1182
          %v1184 = vpop.f32.mrf.mxu0
          %1185 = vmatprep.mubr.f32.mxu0 0.0
          %1186 = vmatmul.mubr.f32.gmra.mxu0 %v1058
          %v1187 = vpop.f32.mrf.mxu0
          %v1188 = vadd.f32 %v1109, %v1187
          %v1189 = vpop.f32.mrf.mxu0
          %1190 = vmatprep.mubr.f32.mxu0 0.0
          %1191 = vmatmul.mubr.f32.gmra.mxu0 %v1059
          %v1192 = vpop.f32.mrf.mxu0
          %v1193 = vadd.f32 %v1109, %v1192
          %v1194 = vpop.f32.mrf.mxu0
          %1195 = vmatprep.mubr.f32.mxu0 0.0
          %1196 = vmatmul.mubr.f32.gmra.mxu0 %v1060
          %v1197 = vpop.f32.mrf.mxu0
          %v1198 = vadd.f32 %v1109, %v1197
          %v1199 = vpop.f32.mrf.mxu0
          %1200 = vmatprep.mubr.f32.mxu0 0.0
          %1201 = vmatmul.mubr.f32.gmra.mxu0 %v1061
          %v1202 = vpop.f32.mrf.mxu0
          %v1203 = vadd.f32 %v1109, %v1202
          %v1204 = vpop.f32.mrf.mxu0
          %1205 = vmatprep.mubr.f32.mxu0 0.0
          %1206 = vmatmul.mubr.f32.gmra.mxu0 %v1062
          %v1207 = vpop.f32.mrf.mxu0
          %v1208 = vadd.f32 %v1109, %v1207
          %v1209 = vpop.f32.mrf.mxu0
          %1210 = vmatprep.mubr.f32.mxu0 0.0
          %1211 = vmatmul.mubr.f32.gmra.mxu0 %v1063
          %v1212 = vpop.f32.mrf.mxu0
          %v1213 = vadd.f32 %v1109, %v1212
          %v1214 = vpop.f32.mrf.mxu0
          %1215 = vmatprep.mubr.f32.mxu0 0.0
          %1216 = vmatmul.mubr.f32.gmra.mxu0 %v1064
          %v1217 = vpop.f32.mrf.mxu0
          %v1218 = vadd.f32 %v1109, %v1217
          %v1219 = vpop.f32.mrf.mxu0
          %1220 = vmatprep.mubr.f32.mxu0 0.0
          %1221 = vmatmul.mubr.f32.gmra.mxu0 %v1065
          %v1222 = vpop.f32.mrf.mxu0
          %v1223 = vadd.f32 %v1109, %v1222
          %v1224 = vpop.f32.mrf.mxu0
          %1225 = vmatprep.mubr.f32.mxu0 0.0
          %1226 = vmatmul.mubr.f32.gmra.mxu0 %v1066
          %v1227 = vpop.f32.mrf.mxu0
          %v1228 = vadd.f32 %v1109, %v1227
          %v1229 = vpop.f32.mrf.mxu0
          %1230 = vmatprep.mubr.f32.mxu0 0.0
          %1231 = vmatmul.mubr.f32.gmra.mxu0 %v1067
          %v1232 = vpop.f32.mrf.mxu0
          %v1233 = vadd.f32 %v1109, %v1232
          %v1234 = vpop.f32.mrf.mxu0
          %1235 = vmatprep.mubr.f32.mxu0 0.0
          %1236 = vmatmul.mubr.f32.gmra.mxu0 %v1068
          %v1237 = vpop.f32.mrf.mxu0
          %v1238 = vadd.f32 %v1109, %v1237
          %v1239 = vpop.f32.mrf.mxu0
          %1240 = vmatprep.mubr.f32.mxu0 0.0
          %1241 = vmatmul.mubr.f32.gmra.mxu0 %v1069
          %v1242 = vpop.f32.mrf.mxu0
          %v1243 = vadd.f32 %v1109, %v1242
          %v1244 = vpop.f32.mrf.mxu0
          %1245 = vmatprep.mubr.f32.mxu0 0.0
          %1246 = vmatmul.mubr.f32.gmra.mxu0 %v1070
          %v1247 = vpop.f32.mrf.mxu0
          %v1248 = vadd.f32 %v1109, %v1247
          %v1249 = vpop.f32.mrf.mxu0
          %1250 = vmatprep.mubr.f32.mxu0 0.0
          %1251 = vmatmul.mubr.f32.gmra.mxu0 %v1071
          %v1252 = vpop.f32.mrf.mxu0
          %v1253 = vadd.f32 %v1109, %v1252
          %v1254 = vpop.f32.mrf.mxu0
          %1255 = vmatprep.mubr.f32.mxu0 0.0
          %1256 = vmatmul.mubr.f32.gmra.mxu0 %v1072
          %v1257 = vpop.f32.mrf.mxu0
          %v1258 = vadd.f32 %v1109, %v1257
          %v1259 = vpop.f32.mrf.mxu0
          %1260 = vmatprep.mubr.f32.mxu0 0.0
          %1261 = vmatmul.mubr.f32.gmra.mxu0 %v1073
          %v1262 = vpop.f32.mrf.mxu0
          %v1263 = vadd.f32 %v1109, %v1262
          %v1264 = vpop.f32.mrf.mxu0
          %1265 = vmatprep.mubr.f32.mxu0 0.0
          %1266 = vmatmul.mubr.f32.gmra.mxu0 %v1074
          %v1267 = vpop.f32.mrf.mxu0
          %v1268 = vadd.f32 %v1109, %v1267
          %v1269 = vpop.f32.mrf.mxu0
          %1270 = vmatprep.mubr.f32.mxu0 0.0
          %1271 = vmatmul.mubr.f32.gmra.mxu0 %v1075
          %v1272 = vpop.f32.mrf.mxu0
          %v1273 = vadd.f32 %v1109, %v1272
          %v1274 = vpop.f32.mrf.mxu0
          %1275 = vmatprep.mubr.f32.mxu0 0.0
          %1276 = vmatmul.mubr.f32.gmra.mxu0 %v1076
          %v1277 = vpop.f32.mrf.mxu0
          %v1278 = vadd.f32 %v1109, %v1277
          %v1279 = vpop.f32.mrf.mxu0
          %1280 = vmatprep.mubr.f32.mxu0 0.0
          %1281 = vmatmul.mubr.f32.gmra.mxu0 %v1077
          %v1282 = vpop.f32.mrf.mxu0
          %v1283 = vadd.f32 %v1109, %v1282
          %v1284 = vpop.f32.mrf.mxu0
          %1285 = vmatprep.mubr.f32.mxu0 0.0
          %1286 = vmatmul.mubr.f32.gmra.mxu0 %v1078
          %v1287 = vpop.f32.mrf.mxu0
          %v1288 = vadd.f32 %v1109, %v1287
          %v1289 = vpop.f32.mrf.mxu0
          %1290 = vmatprep.mubr.f32.mxu0 0.0
          %1291 = vmatmul.mubr.f32.gmra.mxu0 %v1079
          %v1292 = vpop.f32.mrf.mxu0
          %v1293 = vadd.f32 %v1109, %v1292
          %v1294 = vpop.f32.mrf.mxu0
          %1295 = vmatprep.mubr.f32.mxu0 0.0
          %1296 = vmatmul.mubr.f32.gmra.mxu0 %v1080
          %v1297 = vpop.f32.mrf.mxu0
          %v1298 = vadd.f32 %v1109, %v1297
          %v1299 = vpop.f32.mrf.mxu0
          %1300 = vmatprep.mubr.f32.mxu0 0.0
          %1301 = vmatmul.mubr.f32.gmra.mxu0 %v1081
          %v1302 = vpop.f32.mrf.mxu0
          %v1303 = vadd.f32 %v1109, %v1302
          %v1304 = vpop.f32.mrf.mxu0
          %1305 = vmatprep.mubr.f32.mxu0 0.0
          %1306 = vmatmul.mubr.f32.gmra.mxu0 %v1082
          %v1307 = vpop.f32.mrf.mxu0
          %v1308 = vadd.f32 %v1109, %v1307
          %v1309 = vpop.f32.mrf.mxu0
          %1310 = vmatprep.mubr.f32.mxu0 0.0
          %1311 = vmatmul.mubr.f32.gmra.mxu0 %v1083
          %v1312 = vpop.f32.mrf.mxu0
          %v1313 = vadd.f32 %v1109, %v1312
          %v1314 = vpop.f32.mrf.mxu0
          %1315 = vmatprep.mubr.f32.mxu0 0.0
          %1316 = vmatmul.mubr.f32.gmra.mxu0 %v1084
          %v1317 = vpop.f32.mrf.mxu0
          %v1318 = vadd.f32 %v1109, %v1317
          %v1319 = vpop.f32.mrf.mxu0
          %1320 = vmatprep.mubr.f32.mxu0 0.0
          %1321 = vmatmul.mubr.f32.gmra.mxu0 %v1085
          %v1322 = vpop.f32.mrf.mxu0
          %v1323 = vadd.f32 %v1109, %v1322
          %v1324 = vpop.f32.mrf.mxu0
          %1325 = vmatprep.mubr.f32.mxu0 0.0
          %1326 = vmatmul.mubr.f32.gmra.mxu0 %v1086
          %v1327 = vpop.f32.mrf.mxu0
          %v1328 = vadd.f32 %v1109, %v1327
          %v1329 = vpop.f32.mrf.mxu0
          %1330 = vmatprep.mubr.f32.mxu0 0.0
          %1331 = vmatmul.mubr.f32.gmra.mxu0 %v1087
          %v1332 = vpop.f32.mrf.mxu0
          %v1333 = vadd.f32 %v1109, %v1332
          %v1334 = vpop.f32.mrf.mxu0
          %1335 = vdwg.mxu0
          %v1336 = vmax.f32 %v1178, 0.0
          %v1337 = vmax.f32 %v1183, 0.0
          %v1338 = vmax.f32 %v1188, 0.0
          %v1339 = vmax.f32 %v1193, 0.0
          %v1340 = vmax.f32 %v1198, 0.0
          %v1341 = vmax.f32 %v1203, 0.0
          %v1342 = vmax.f32 %v1208, 0.0
          %v1343 = vmax.f32 %v1213, 0.0
          %v1344 = vmax.f32 %v1218, 0.0
          %v1345 = vmax.f32 %v1223, 0.0
          %v1346 = vmax.f32 %v1228, 0.0
          %v1347 = vmax.f32 %v1233, 0.0
          %v1348 = vmax.f32 %v1238, 0.0
          %v1349 = vmax.f32 %v1243, 0.0
          %v1350 = vmax.f32 %v1248, 0.0
          %v1351 = vmax.f32 %v1253, 0.0
          %v1352 = vmax.f32 %v1258, 0.0
          %v1353 = vmax.f32 %v1263, 0.0
          %v1354 = vmax.f32 %v1268, 0.0
          %v1355 = vmax.f32 %v1273, 0.0
          %v1356 = vmax.f32 %v1278, 0.0
          %v1357 = vmax.f32 %v1283, 0.0
          %v1358 = vmax.f32 %v1288, 0.0
          %v1359 = vmax.f32 %v1293, 0.0
          %v1360 = vmax.f32 %v1298, 0.0
          %v1361 = vmax.f32 %v1303, 0.0
          %v1362 = vmax.f32 %v1308, 0.0
          %v1363 = vmax.f32 %v1313, 0.0
          %v1364 = vmax.f32 %v1318, 0.0
          %v1365 = vmax.f32 %v1323, 0.0
          %v1366 = vmax.f32 %v1328, 0.0
          %v1367 = vmax.f32 %v1333, 0.0
          %v1368 = vld [vmem:[%s5] sm:$0xff]
          %v1369 = vld [vmem:[%s5 + $0x8] sm:$0xff]
          %v1370 = vld [vmem:[%s5 + $0x10] sm:$0xff]
          %v1371 = vld [vmem:[%s5 + $0x18] sm:$0xff]
          %v1372 = vld [vmem:[%s5 + $0x20] sm:$0xff]
          %v1373 = vld [vmem:[%s5 + $0x28] sm:$0xff]
          %v1374 = vld [vmem:[%s5 + $0x30] sm:$0xff]
          %v1375 = vld [vmem:[%s5 + $0x38] sm:$0xff]
          %v1376 = vld [vmem:[%s5 + $0x40] sm:$0xff]
          %v1377 = vld [vmem:[%s5 + $0x48] sm:$0xff]
          %v1378 = vld [vmem:[%s5 + $0x50] sm:$0xff]
          %v1379 = vld [vmem:[%s5 + $0x58] sm:$0xff]
          %v1380 = vld [vmem:[%s5 + $0x60] sm:$0xff]
          %v1381 = vld [vmem:[%s5 + $0x68] sm:$0xff]
          %v1382 = vld [vmem:[%s5 + $0x70] sm:$0xff]
          %v1383 = vld [vmem:[%s5 + $0x78] sm:$0xff]
          %v1384 = vld [vmem:[%s6] sm:$0x1]
          %v1386 = vlaneseq
          %v1387 = vshrl.u32 %v1386, 7
          %v1388 = vsub.s32 0, %v1387
          %v1389 = vrot.slane %v1384, %v1388
          %1391 = vmatprep.subr.mxu0 0.0
          %1392 = vmatpush1.msra.mxu0 %v1383
          %1393 = vmatprep.subr.mxu0 0.0
          %1394 = vmatpush1.msra.mxu0 %v1382
          %1395 = vmatprep.subr.mxu0 0.0
          %1396 = vmatpush1.msra.mxu0 %v1381
          %1397 = vmatprep.subr.mxu0 0.0
          %1398 = vmatpush1.msra.mxu0 %v1380
          %1399 = vmatprep.subr.mxu0 0.0
          %1400 = vmatpush1.msra.mxu0 %v1379
          %1401 = vmatprep.subr.mxu0 0.0
          %1402 = vmatpush1.msra.mxu0 %v1378
          %1403 = vmatprep.subr.mxu0 0.0
          %1404 = vmatpush1.msra.mxu0 %v1377
          %1405 = vmatprep.subr.mxu0 0.0
          %1406 = vmatpush1.msra.mxu0 %v1376
          %1407 = vmatprep.subr.mxu0 0.0
          %1408 = vmatpush1.msra.mxu0 %v1375
          %1409 = vmatprep.subr.mxu0 0.0
          %1410 = vmatpush1.msra.mxu0 %v1374
          %1411 = vmatprep.subr.mxu0 0.0
          %1412 = vmatpush1.msra.mxu0 %v1373
          %1413 = vmatprep.subr.mxu0 0.0
          %1414 = vmatpush1.msra.mxu0 %v1372
          %1415 = vmatprep.subr.mxu0 0.0
          %1416 = vmatpush1.msra.mxu0 %v1371
          %1417 = vmatprep.subr.mxu0 0.0
          %1418 = vmatpush1.msra.mxu0 %v1370
          %1419 = vmatprep.subr.mxu0 0.0
          %1420 = vmatpush1.msra.mxu0 %v1369
          %1421 = vmatprep.subr.mxu0 0.0
          %1422 = vmatpush1.msra.mxu0 %v1368
          %1423 = vmatprep.subr.mxu0 0.0
          %1424 = vmatpush2.msra.mxu0 0.0
          %1425 = vmatprep.subr.mxu0 0.0
          %1426 = vmatpush2.msra.mxu0 0.0
          %1427 = vmatprep.subr.mxu0 0.0
          %1428 = vmatpush2.msra.mxu0 0.0
          %1429 = vmatprep.subr.mxu0 0.0
          %1430 = vmatpush2.msra.mxu0 0.0
          %1431 = vmatprep.subr.mxu0 0.0
          %1432 = vmatpush2.msra.mxu0 0.0
          %1433 = vmatprep.subr.mxu0 0.0
          %1434 = vmatpush2.msra.mxu0 0.0
          %1435 = vmatprep.subr.mxu0 0.0
          %1436 = vmatpush2.msra.mxu0 0.0
          %1437 = vmatprep.subr.mxu0 0.0
          %1438 = vmatpush2.msra.mxu0 0.0
          %1439 = vmatprep.subr.mxu0 0.0
          %1440 = vmatpush2.msra.mxu0 0.0
          %1441 = vmatprep.subr.mxu0 0.0
          %1442 = vmatpush2.msra.mxu0 0.0
          %1443 = vmatprep.subr.mxu0 0.0
          %1444 = vmatpush2.msra.mxu0 0.0
          %1445 = vmatprep.subr.mxu0 0.0
          %1446 = vmatpush2.msra.mxu0 0.0
          %1447 = vmatprep.subr.mxu0 0.0
          %1448 = vmatpush2.msra.mxu0 0.0
          %1449 = vmatprep.subr.mxu0 0.0
          %1450 = vmatpush2.msra.mxu0 0.0
          %1451 = vmatprep.subr.mxu0 0.0
          %1452 = vmatpush2.msra.mxu0 0.0
          %1453 = vmatprep.subr.mxu0 0.0
          %1454 = vmatpush2.msra.mxu0 0.0
          %1455 = vmatprep.mubr.f32.mxu0 0.0
          %1456 = vmatmul.mubr.f32.gmra.mxu0 %v1336
          %v1457 = vpop.f32.mrf.mxu0
          %v1458 = vadd.f32 %v1389, %v1457
          %v1459 = vpop.f32.mrf.mxu0
          %1460 = vmatprep.mubr.f32.mxu0 0.0
          %1461 = vmatmul.mubr.f32.gmra.mxu0 %v1337
          %v1462 = vpop.f32.mrf.mxu0
          %v1463 = vadd.f32 %v1389, %v1462
          %v1464 = vpop.f32.mrf.mxu0
          %1465 = vmatprep.mubr.f32.mxu0 0.0
          %1466 = vmatmul.mubr.f32.gmra.mxu0 %v1338
          %v1467 = vpop.f32.mrf.mxu0
          %v1468 = vadd.f32 %v1389, %v1467
          %v1469 = vpop.f32.mrf.mxu0
          %1470 = vmatprep.mubr.f32.mxu0 0.0
          %1471 = vmatmul.mubr.f32.gmra.mxu0 %v1339
          %v1472 = vpop.f32.mrf.mxu0
          %v1473 = vadd.f32 %v1389, %v1472
          %v1474 = vpop.f32.mrf.mxu0
          %1475 = vmatprep.mubr.f32.mxu0 0.0
          %1476 = vmatmul.mubr.f32.gmra.mxu0 %v1340
          %v1477 = vpop.f32.mrf.mxu0
          %v1478 = vadd.f32 %v1389, %v1477
          %v1479 = vpop.f32.mrf.mxu0
          %1480 = vmatprep.mubr.f32.mxu0 0.0
          %1481 = vmatmul.mubr.f32.gmra.mxu0 %v1341
          %v1482 = vpop.f32.mrf.mxu0
          %v1483 = vadd.f32 %v1389, %v1482
          %v1484 = vpop.f32.mrf.mxu0
          %1485 = vmatprep.mubr.f32.mxu0 0.0
          %1486 = vmatmul.mubr.f32.gmra.mxu0 %v1342
          %v1487 = vpop.f32.mrf.mxu0
          %v1488 = vadd.f32 %v1389, %v1487
          %v1489 = vpop.f32.mrf.mxu0
          %1490 = vmatprep.mubr.f32.mxu0 0.0
          %1491 = vmatmul.mubr.f32.gmra.mxu0 %v1343
          %v1492 = vpop.f32.mrf.mxu0
          %v1493 = vadd.f32 %v1389, %v1492
          %v1494 = vpop.f32.mrf.mxu0
          %1495 = vmatprep.mubr.f32.mxu0 0.0
          %1496 = vmatmul.mubr.f32.gmra.mxu0 %v1344
          %v1497 = vpop.f32.mrf.mxu0
          %v1498 = vadd.f32 %v1389, %v1497
          %v1499 = vpop.f32.mrf.mxu0
          %1500 = vmatprep.mubr.f32.mxu0 0.0
          %1501 = vmatmul.mubr.f32.gmra.mxu0 %v1345
          %v1502 = vpop.f32.mrf.mxu0
          %v1503 = vadd.f32 %v1389, %v1502
          %v1504 = vpop.f32.mrf.mxu0
          %1505 = vmatprep.mubr.f32.mxu0 0.0
          %1506 = vmatmul.mubr.f32.gmra.mxu0 %v1346
          %v1507 = vpop.f32.mrf.mxu0
          %v1508 = vadd.f32 %v1389, %v1507
          %v1509 = vpop.f32.mrf.mxu0
          %1510 = vmatprep.mubr.f32.mxu0 0.0
          %1511 = vmatmul.mubr.f32.gmra.mxu0 %v1347
          %v1512 = vpop.f32.mrf.mxu0
          %v1513 = vadd.f32 %v1389, %v1512
          %v1514 = vpop.f32.mrf.mxu0
          %1515 = vmatprep.mubr.f32.mxu0 0.0
          %1516 = vmatmul.mubr.f32.gmra.mxu0 %v1348
          %v1517 = vpop.f32.mrf.mxu0
          %v1518 = vadd.f32 %v1389, %v1517
          %v1519 = vpop.f32.mrf.mxu0
          %1520 = vmatprep.mubr.f32.mxu0 0.0
          %1521 = vmatmul.mubr.f32.gmra.mxu0 %v1349
          %v1522 = vpop.f32.mrf.mxu0
          %v1523 = vadd.f32 %v1389, %v1522
          %v1524 = vpop.f32.mrf.mxu0
          %1525 = vmatprep.mubr.f32.mxu0 0.0
          %1526 = vmatmul.mubr.f32.gmra.mxu0 %v1350
          %v1527 = vpop.f32.mrf.mxu0
          %v1528 = vadd.f32 %v1389, %v1527
          %v1529 = vpop.f32.mrf.mxu0
          %1530 = vmatprep.mubr.f32.mxu0 0.0
          %1531 = vmatmul.mubr.f32.gmra.mxu0 %v1351
          %v1532 = vpop.f32.mrf.mxu0
          %v1533 = vadd.f32 %v1389, %v1532
          %v1534 = vpop.f32.mrf.mxu0
          %1535 = vmatprep.mubr.f32.mxu0 0.0
          %1536 = vmatmul.mubr.f32.gmra.mxu0 %v1352
          %v1537 = vpop.f32.mrf.mxu0
          %v1538 = vadd.f32 %v1389, %v1537
          %v1539 = vpop.f32.mrf.mxu0
          %1540 = vmatprep.mubr.f32.mxu0 0.0
          %1541 = vmatmul.mubr.f32.gmra.mxu0 %v1353
          %v1542 = vpop.f32.mrf.mxu0
          %v1543 = vadd.f32 %v1389, %v1542
          %v1544 = vpop.f32.mrf.mxu0
          %1545 = vmatprep.mubr.f32.mxu0 0.0
          %1546 = vmatmul.mubr.f32.gmra.mxu0 %v1354
          %v1547 = vpop.f32.mrf.mxu0
          %v1548 = vadd.f32 %v1389, %v1547
          %v1549 = vpop.f32.mrf.mxu0
          %1550 = vmatprep.mubr.f32.mxu0 0.0
          %1551 = vmatmul.mubr.f32.gmra.mxu0 %v1355
          %v1552 = vpop.f32.mrf.mxu0
          %v1553 = vadd.f32 %v1389, %v1552
          %v1554 = vpop.f32.mrf.mxu0
          %1555 = vmatprep.mubr.f32.mxu0 0.0
          %1556 = vmatmul.mubr.f32.gmra.mxu0 %v1356
          %v1557 = vpop.f32.mrf.mxu0
          %v1558 = vadd.f32 %v1389, %v1557
          %v1559 = vpop.f32.mrf.mxu0
          %1560 = vmatprep.mubr.f32.mxu0 0.0
          %1561 = vmatmul.mubr.f32.gmra.mxu0 %v1357
          %v1562 = vpop.f32.mrf.mxu0
          %v1563 = vadd.f32 %v1389, %v1562
          %v1564 = vpop.f32.mrf.mxu0
          %1565 = vmatprep.mubr.f32.mxu0 0.0
          %1566 = vmatmul.mubr.f32.gmra.mxu0 %v1358
          %v1567 = vpop.f32.mrf.mxu0
          %v1568 = vadd.f32 %v1389, %v1567
          %v1569 = vpop.f32.mrf.mxu0
          %1570 = vmatprep.mubr.f32.mxu0 0.0
          %1571 = vmatmul.mubr.f32.gmra.mxu0 %v1359
          %v1572 = vpop.f32.mrf.mxu0
          %v1573 = vadd.f32 %v1389, %v1572
          %v1574 = vpop.f32.mrf.mxu0
          %1575 = vmatprep.mubr.f32.mxu0 0.0
          %1576 = vmatmul.mubr.f32.gmra.mxu0 %v1360
          %v1577 = vpop.f32.mrf.mxu0
          %v1578 = vadd.f32 %v1389, %v1577
          %v1579 = vpop.f32.mrf.mxu0
          %1580 = vmatprep.mubr.f32.mxu0 0.0
          %1581 = vmatmul.mubr.f32.gmra.mxu0 %v1361
          %v1582 = vpop.f32.mrf.mxu0
          %v1583 = vadd.f32 %v1389, %v1582
          %v1584 = vpop.f32.mrf.mxu0
          %1585 = vmatprep.mubr.f32.mxu0 0.0
          %1586 = vmatmul.mubr.f32.gmra.mxu0 %v1362
          %v1587 = vpop.f32.mrf.mxu0
          %v1588 = vadd.f32 %v1389, %v1587
          %v1589 = vpop.f32.mrf.mxu0
          %1590 = vmatprep.mubr.f32.mxu0 0.0
          %1591 = vmatmul.mubr.f32.gmra.mxu0 %v1363
          %v1592 = vpop.f32.mrf.mxu0
          %v1593 = vadd.f32 %v1389, %v1592
          %v1594 = vpop.f32.mrf.mxu0
          %1595 = vmatprep.mubr.f32.mxu0 0.0
          %1596 = vmatmul.mubr.f32.gmra.mxu0 %v1364
          %v1597 = vpop.f32.mrf.mxu0
          %v1598 = vadd.f32 %v1389, %v1597
          %v1599 = vpop.f32.mrf.mxu0
          %1600 = vmatprep.mubr.f32.mxu0 0.0
          %1601 = vmatmul.mubr.f32.gmra.mxu0 %v1365
          %v1602 = vpop.f32.mrf.mxu0
          %v1603 = vadd.f32 %v1389, %v1602
          %v1604 = vpop.f32.mrf.mxu0
          %1605 = vmatprep.mubr.f32.mxu0 0.0
          %1606 = vmatmul.mubr.f32.gmra.mxu0 %v1366
          %v1607 = vpop.f32.mrf.mxu0
          %v1608 = vadd.f32 %v1389, %v1607
          %v1609 = vpop.f32.mrf.mxu0
          %1610 = vmatprep.mubr.f32.mxu0 0.0
          %1611 = vmatmul.mubr.f32.gmra.mxu0 %v1367
          %v1612 = vpop.f32.mrf.mxu0
          %v1613 = vadd.f32 %v1389, %v1612
          %v1614 = vpop.f32.mrf.mxu0
          %1615 = vdwg.mxu0
          %v1616 = vmax.f32 %v1458, 0.0
          %v1617 = vmax.f32 %v1463, 0.0
          %v1618 = vmax.f32 %v1468, 0.0
          %v1619 = vmax.f32 %v1473, 0.0
          %v1620 = vmax.f32 %v1478, 0.0
          %v1621 = vmax.f32 %v1483, 0.0
          %v1622 = vmax.f32 %v1488, 0.0
          %v1623 = vmax.f32 %v1493, 0.0
          %v1624 = vmax.f32 %v1498, 0.0
          %v1625 = vmax.f32 %v1503, 0.0
          %v1626 = vmax.f32 %v1508, 0.0
          %v1627 = vmax.f32 %v1513, 0.0
          %v1628 = vmax.f32 %v1518, 0.0
          %v1629 = vmax.f32 %v1523, 0.0
          %v1630 = vmax.f32 %v1528, 0.0
          %v1631 = vmax.f32 %v1533, 0.0
          %v1632 = vmax.f32 %v1538, 0.0
          %v1633 = vmax.f32 %v1543, 0.0
          %v1634 = vmax.f32 %v1548, 0.0
          %v1635 = vmax.f32 %v1553, 0.0
          %v1636 = vmax.f32 %v1558, 0.0
          %v1637 = vmax.f32 %v1563, 0.0
          %v1638 = vmax.f32 %v1568, 0.0
          %v1639 = vmax.f32 %v1573, 0.0
          %v1640 = vmax.f32 %v1578, 0.0
          %v1641 = vmax.f32 %v1583, 0.0
          %v1642 = vmax.f32 %v1588, 0.0
          %v1643 = vmax.f32 %v1593, 0.0
          %v1644 = vmax.f32 %v1598, 0.0
          %v1645 = vmax.f32 %v1603, 0.0
          %v1646 = vmax.f32 %v1608, 0.0
          %v1647 = vmax.f32 %v1613, 0.0
          %1648 = vst [vmem:[%s501] sm:$0xff] %v1616
          %1649 = vst [vmem:[%s501 + $0x8] sm:$0xff] %v1617
          %1650 = vst [vmem:[%s501 + $0x10] sm:$0xff] %v1618
          %1651 = vst [vmem:[%s501 + $0x18] sm:$0xff] %v1619
          %1652 = vst [vmem:[%s501 + $0x20] sm:$0xff] %v1620
          %1653 = vst [vmem:[%s501 + $0x28] sm:$0xff] %v1621
          %1654 = vst [vmem:[%s501 + $0x30] sm:$0xff] %v1622
          %1655 = vst [vmem:[%s501 + $0x38] sm:$0xff] %v1623
          %1656 = vst [vmem:[%s501 + $0x40] sm:$0xff] %v1624
          %1657 = vst [vmem:[%s501 + $0x48] sm:$0xff] %v1625
          %1658 = vst [vmem:[%s501 + $0x50] sm:$0xff] %v1626
          %1659 = vst [vmem:[%s501 + $0x58] sm:$0xff] %v1627
          %1660 = vst [vmem:[%s501 + $0x60] sm:$0xff] %v1628
          %1661 = vst [vmem:[%s501 + $0x68] sm:$0xff] %v1629
          %1662 = vst [vmem:[%s501 + $0x70] sm:$0xff] %v1630
          %1663 = vst [vmem:[%s501 + $0x78] sm:$0xff] %v1631
          %1664 = vst [vmem:[%s501 + $0x80] sm:$0xff] %v1632
          %1665 = vst [vmem:[%s501 + $0x88] sm:$0xff] %v1633
          %1666 = vst [vmem:[%s501 + $0x90] sm:$0xff] %v1634
          %1667 = vst [vmem:[%s501 + $0x98] sm:$0xff] %v1635
          %1668 = vst [vmem:[%s501 + $0xa0] sm:$0xff] %v1636
          %1669 = vst [vmem:[%s501 + $0xa8] sm:$0xff] %v1637
          %1670 = vst [vmem:[%s501 + $0xb0] sm:$0xff] %v1638
          %1671 = vst [vmem:[%s501 + $0xb8] sm:$0xff] %v1639
          %1672 = vst [vmem:[%s501 + $0xc0] sm:$0xff] %v1640
          %1673 = vst [vmem:[%s501 + $0xc8] sm:$0xff] %v1641
          %1674 = vst [vmem:[%s501 + $0xd0] sm:$0xff] %v1642
          %1675 = vst [vmem:[%s501 + $0xd8] sm:$0xff] %v1643
          %1676 = vst [vmem:[%s501 + $0xe0] sm:$0xff] %v1644
          %1677 = vst [vmem:[%s501 + $0xe8] sm:$0xff] %v1645
          %1678 = vst [vmem:[%s501 + $0xf0] sm:$0xff] %v1646
          %1679 = vst [vmem:[%s501 + $0xf8] sm:$0xff] %v1647
        $region94: #{gin_forward.9} parent=81 // pred_fallthru
          _
        %s1680 = smul.u32 32, %s22
        %p1681 = scmp.lt.s32.totalorder %s1680, 63
        %s1682 = scalar_select %p1681, %s1680, 63
        %s1683 = smul.addr %s1682, 8
        %s1684 = scalar_lea.vmem %s7, %s1683
        // Predicated region
        $region95: #{gin_forward.9} parent=81 // pred_check
          %p1685 = pneg %p212
        $region96: #{gin_forward.9} parent=81 // pred_check_branch
          %1687 = sbr.rel (%p1685) target = $region98
        $region97: #{gin_forward.9} parent=81 // pred_region
          %s1688 = smul.u32 32, %s22
        $region98: #{gin_forward.9} parent=81 // pred_fallthru
          _
      $region82: #{gin_forward.9} parent=5 // pred_fallthru
        _
      %p1689 = scmp.le.s32.totalorder 2, %s13
      // Predicated region
      $region99: #{gin_forward.9} parent=5 // pred_check
        %p1690 = pneg %p1689
      $region100: #{gin_forward.9} parent=5 // pred_check_branch
        %1692 = sbr.rel (%p1690) target = $region102
      $region101: #{gin_forward.9} parent=5 // pred_region
        %s1693 = ssub.s32 %s13, 2
        // Predicated region
        $region103: #{gin_forward.9} parent=101 // pred_check
          %p1694 = pneg %p218
        $region104: #{gin_forward.9} parent=101 // pred_check_branch
          %1696 = sbr.rel (%p1694) target = $region106
        $region105: #{gin_forward.9} parent=101 // pred_region
          %s1697 = smul.u32 32, %s24
          %p1698 = scmp.lt.s32.totalorder %s1697, 63
          %s1699 = scalar_select %p1698, %s1697, 63
          %s1700 = smul.addr %s1699, 8
          %s1701 = scalar_lea.vmem %s7, %s1700
        $region106: #{gin_forward.9} parent=101 // pred_fallthru
          _
      $region102: #{gin_forward.9} parent=5 // pred_fallthru
        _
    $region6: #{gin_forward.9} parent=1 // loop_footer
      %s17 = sadd.s32 1, %s13
    $region7: #{gin_forward.9} parent=1 // loop_footer_branch
      %12 = sbr.rel target = $region3
    $region8: #{gin_forward.9} parent=1 // loop_exit
      _

// kernel: gin_forward.13
$region0: #{gin_forward.13}
  #allocation0 [shape = 'u32[]', space=smem, size = 0x4, offset = 0x4, fixed_abs, tag = 'smem constant byte address 0x4 - core index']
  #allocation1 [shape = 'u32[144,128]{1,0:T(1,128)}', space=vmem, size = 0x12000, scoped, tag = 'internal scratch']
  #allocation2 [shape = 'f32[4,128]{1,0:T(4,128)}', space=vmem, size = 0x800, scoped, tag = 'scratch operand']
  #allocation3 [shape = 'f32[1,1]{1,0:T(1,128)S(1)}', space=vmem, size = 0x200, scoped, tag = 'scoped memory for gin_forward.13']
  %s0 = inlined_call_operand.vmem [shape: bf16[4,512], index: 0, kind: input, shape index: {}]
  %s1 = inlined_call_operand.vmem [shape: f32[512,128], index: 1, kind: input, shape index: {}]
  %s2 = inlined_call_operand.vmem [shape: f32[4,256], index: 2, kind: input, shape index: {}]
  %s3 = inlined_call_operand.vmem [shape: f32[128,128], index: 3, kind: input, shape index: {}]
  %s4 = inlined_call_operand.vmem [shape: f32[1,128], index: 4, kind: input, shape index: {}]
  %s5 = inlined_call_operand.vmem [shape: f32[256,256], index: 5, kind: input, shape index: {}]
  %s6 = inlined_call_operand.vmem [shape: f32[1,256], index: 6, kind: input, shape index: {}]
  %s7 = inlined_call_operand.vmem [shape: f32[256,128], index: 7, kind: input, shape index: {}]
  %s8 = inlined_call_operand.vmem [shape: f32[1,128], index: 8, kind: input, shape index: {}]
  %s9 = inlined_call_operand.vmem [shape: f32[128,128], index: 9, kind: input, shape index: {}]
  %s10 = inlined_call_operand.vmem [shape: f32[128,128], index: 10, kind: input, shape index: {}]
  %s11 = inlined_call_operand.vmem [shape: f32[1,128], index: 11, kind: input, shape index: {}]
  %s12 = inlined_call_operand.vmem [shape: f32[1,128], index: 12, kind: input, shape index: {}]
  %s13 = inlined_call_operand.<no memory space> [shape: f32[1,1], index: 13, kind: input, shape index: {}]
  %s14 = inlined_call_operand.hbm [shape: f32[4,128], index: 14, kind: output, shape index: {0}]
  %s15 = inlined_call_operand.vmem [shape: f32[4,1], index: 15, kind: output, shape index: {1}]
  %16 = xla_tuple %s14, %s15
  %s17 = sld [smem:[#allocation0]]
  $region105: #{gin_forward.13} parent=0
    _
  %s19 = ssub.s32 1, %s17
  %s20 = scalar_select 0, %s19, %s17
  %v21 = vstv %s13
  %22 = vst [vmem:[#allocation3] sm:$0x1] %v21
  $region1: #{gin_forward.13} parent=0
    #allocation4 [shape = 'u8[2048]{0}', space=vmem, size = 0x800, scoped, tag = 'output window, operand 0, single buffered']
    #allocation5 [shape = 's32[2]{0}', space=sflag, size = 0x8, scoped, tag = 'scoped memory for gin_forward.13']
    %23 = vsyncpa [#allocation5], 0
    loop: start=0, step=1, limit=4
    $region2: #{gin_forward.13} parent=1 // loop_pre_header
      _
    $region3: #{gin_forward.13} parent=1 // loop_header
      %s25 = sphi 0, %s29
      %p26 = scmp.ge.s32.totalorder %s25, 4
      %s35 = sphi 0, %s37
      %s38 = sphi 0, %s35
      %s39 = sphi 0, %s38
      %s55 = sphi 0, %s39
      %s61 = sphi 0, %s63
      %s64 = sphi 0, %s61
      %s65 = sphi 0, %s64
      %s81 = sphi 0, %s65
      %s85 = sphi 0, %s85
      %s87 = sphi 0, %s85
      %s88 = sphi 0, %s87
      %s102 = sphi 0, %s88
      %s106 = sphi 0, %s106
      %s108 = sphi 0, %s106
      %s109 = sphi 0, %s108
      %s123 = sphi 0, %s109
      %s127 = sphi 0, %s127
      %s129 = sphi 0, %s127
      %s130 = sphi 0, %s129
      %s144 = sphi 0, %s130
      %s148 = sphi 0, %s148
      %s150 = sphi 0, %s148
      %s151 = sphi 0, %s150
      %s165 = sphi 0, %s151
      %s169 = sphi 0, %s169
      %s171 = sphi 0, %s169
      %s172 = sphi 0, %s171
      %s186 = sphi 0, %s172
      %s190 = sphi 0, %s190
      %s192 = sphi 0, %s190
      %s193 = sphi 0, %s192
      %s207 = sphi 0, %s193
      %s211 = sphi 0, %s211
      %s213 = sphi 0, %s211
      %s214 = sphi 0, %s213
      %s228 = sphi 0, %s214
      %s232 = sphi 0, %s232
      %s234 = sphi 0, %s232
      %s235 = sphi 0, %s234
      %s249 = sphi 0, %s235
      %s253 = sphi 0, %s253
      %s255 = sphi 0, %s253
      %s256 = sphi 0, %s255
      %s270 = sphi 0, %s256
      %s274 = sphi 0, %s274
      %s276 = sphi 0, %s274
      %s277 = sphi 0, %s276
      %s291 = sphi 0, %s277
      %s295 = sphi 0, %s295
      %s297 = sphi 0, %s295
      %s298 = sphi 0, %s297
      %s312 = sphi 0, %s298
      %s316 = sphi 0, %s316
      %s318 = sphi 0, %s316
      %s319 = sphi 0, %s318
      %s333 = sphi 0, %s319
      %s337 = sphi 0, %s337
      %s339 = sphi 0, %s337
      %s340 = sphi 0, %s339
      %s354 = sphi 0, %s340
      %s358 = sphi 0, %s358
      %s360 = sphi 0, %s358
      %s361 = sphi 0, %s360
      %s375 = sphi 0, %s361
    $region4: #{gin_forward.13} parent=1 // loop_header_branch
      %28 = sbr.rel (%p26) target = $region8
    $region5: #{gin_forward.13} parent=1 // loop_body
      %s30 = ssub.s32 %s25, 1
      %s31 = ssub.s32 %s25, 2
      %s32 = sadd.s32 %s25, 1
      %s33 = ssub.s32 %s25, %s32
      %p34 = scmp.eq.s32.totalorder %s33, 0
      %s36 = sadd.s32 %s35, 1
      %s37 = scalar_select %p34, %s35, %s36
      %p40 = pneg %p34
      %p41 = scmp.eq.s32.totalorder %s25, 1
      %p42 = por %p40, %p41
      %p43 = scmp.ne.s32.totalorder %s35, %s38
      %p44 = scmp.eq.s32.totalorder %s25, 0
      %p45 = por %p43, %p44
      %p46 = scmp.ne.s32.totalorder %s35, %s38
      %p47 = scmp.eq.s32.totalorder %s30, 1
      %p48 = por %p46, %p47
      %p49 = scmp.ne.s32.totalorder %s38, %s39
      %p50 = scmp.eq.s32.totalorder %s30, 0
      %p51 = por %p49, %p50
      %p52 = scmp.ne.s32.totalorder %s38, %s39
      %p53 = scmp.eq.s32.totalorder %s31, 1
      %p54 = por %p52, %p53
      %p56 = scmp.ne.s32.totalorder %s39, %s55
      %p57 = scmp.eq.s32.totalorder %s31, 0
      %p58 = por %p56, %p57
      %s59 = ssub.s32 %s25, %s32
      %p60 = scmp.eq.s32.totalorder %s59, 0
      %s62 = sadd.s32 %s61, 1
      %s63 = scalar_select %p60, %s61, %s62
      %p66 = pneg %p60
      %p67 = scmp.eq.s32.totalorder %s25, 1
      %p68 = por %p66, %p67
      %p69 = scmp.ne.s32.totalorder %s61, %s64
      %p70 = scmp.eq.s32.totalorder %s25, 0
      %p71 = por %p69, %p70
      %p72 = scmp.ne.s32.totalorder %s61, %s64
      %p73 = scmp.eq.s32.totalorder %s30, 1
      %p74 = por %p72, %p73
      %p75 = scmp.ne.s32.totalorder %s64, %s65
      %p76 = scmp.eq.s32.totalorder %s30, 0
      %p77 = por %p75, %p76
      %p78 = scmp.ne.s32.totalorder %s64, %s65
      %p79 = scmp.eq.s32.totalorder %s31, 1
      %p80 = por %p78, %p79
      %p82 = scmp.ne.s32.totalorder %s65, %s81
      %p83 = scmp.eq.s32.totalorder %s31, 0
      %p84 = por %p82, %p83
      %s86 = sadd.s32 %s85, 1
      %p89 = scmp.eq.s32.totalorder %s25, 1
      %p90 = scmp.ne.s32.totalorder %s85, %s87
      %p91 = scmp.eq.s32.totalorder %s25, 0
      %p92 = por %p90, %p91
      %p93 = scmp.ne.s32.totalorder %s85, %s87
      %p94 = scmp.eq.s32.totalorder %s30, 1
      %p95 = por %p93, %p94
      %p96 = scmp.ne.s32.totalorder %s87, %s88
      %p97 = scmp.eq.s32.totalorder %s30, 0
      %p98 = por %p96, %p97
      %p99 = scmp.ne.s32.totalorder %s87, %s88
      %p100 = scmp.eq.s32.totalorder %s31, 1
      %p101 = por %p99, %p100
      %p103 = scmp.ne.s32.totalorder %s88, %s102
      %p104 = scmp.eq.s32.totalorder %s31, 0
      %p105 = por %p103, %p104
      %s107 = sadd.s32 %s106, 1
      %p110 = scmp.eq.s32.totalorder %s25, 1
      %p111 = scmp.ne.s32.totalorder %s106, %s108
      %p112 = scmp.eq.s32.totalorder %s25, 0
      %p113 = por %p111, %p112
      %p114 = scmp.ne.s32.totalorder %s106, %s108
      %p115 = scmp.eq.s32.totalorder %s30, 1
      %p116 = por %p114, %p115
      %p117 = scmp.ne.s32.totalorder %s108, %s109
      %p118 = scmp.eq.s32.totalorder %s30, 0
      %p119 = por %p117, %p118
      %p120 = scmp.ne.s32.totalorder %s108, %s109
      %p121 = scmp.eq.s32.totalorder %s31, 1
      %p122 = por %p120, %p121
      %p124 = scmp.ne.s32.totalorder %s109, %s123
      %p125 = scmp.eq.s32.totalorder %s31, 0
      %p126 = por %p124, %p125
      %s128 = sadd.s32 %s127, 1
      %p131 = scmp.eq.s32.totalorder %s25, 1
      %p132 = scmp.ne.s32.totalorder %s127, %s129
      %p133 = scmp.eq.s32.totalorder %s25, 0
      %p134 = por %p132, %p133
      %p135 = scmp.ne.s32.totalorder %s127, %s129
      %p136 = scmp.eq.s32.totalorder %s30, 1
      %p137 = por %p135, %p136
      %p138 = scmp.ne.s32.totalorder %s129, %s130
      %p139 = scmp.eq.s32.totalorder %s30, 0
      %p140 = por %p138, %p139
      %p141 = scmp.ne.s32.totalorder %s129, %s130
      %p142 = scmp.eq.s32.totalorder %s31, 1
      %p143 = por %p141, %p142
      %p145 = scmp.ne.s32.totalorder %s130, %s144
      %p146 = scmp.eq.s32.totalorder %s31, 0
      %p147 = por %p145, %p146
      %s149 = sadd.s32 %s148, 1
      %p152 = scmp.eq.s32.totalorder %s25, 1
      %p153 = scmp.ne.s32.totalorder %s148, %s150
      %p154 = scmp.eq.s32.totalorder %s25, 0
      %p155 = por %p153, %p154
      %p156 = scmp.ne.s32.totalorder %s148, %s150
      %p157 = scmp.eq.s32.totalorder %s30, 1
      %p158 = por %p156, %p157
      %p159 = scmp.ne.s32.totalorder %s150, %s151
      %p160 = scmp.eq.s32.totalorder %s30, 0
      %p161 = por %p159, %p160
      %p162 = scmp.ne.s32.totalorder %s150, %s151
      %p163 = scmp.eq.s32.totalorder %s31, 1
      %p164 = por %p162, %p163
      %p166 = scmp.ne.s32.totalorder %s151, %s165
      %p167 = scmp.eq.s32.totalorder %s31, 0
      %p168 = por %p166, %p167
      %s170 = sadd.s32 %s169, 1
      %p173 = scmp.eq.s32.totalorder %s25, 1
      %p174 = scmp.ne.s32.totalorder %s169, %s171
      %p175 = scmp.eq.s32.totalorder %s25, 0
      %p176 = por %p174, %p175
      %p177 = scmp.ne.s32.totalorder %s169, %s171
      %p178 = scmp.eq.s32.totalorder %s30, 1
      %p179 = por %p177, %p178
      %p180 = scmp.ne.s32.totalorder %s171, %s172
      %p181 = scmp.eq.s32.totalorder %s30, 0
      %p182 = por %p180, %p181
      %p183 = scmp.ne.s32.totalorder %s171, %s172
      %p184 = scmp.eq.s32.totalorder %s31, 1
      %p185 = por %p183, %p184
      %p187 = scmp.ne.s32.totalorder %s172, %s186
      %p188 = scmp.eq.s32.totalorder %s31, 0
      %p189 = por %p187, %p188
      %s191 = sadd.s32 %s190, 1
      %p194 = scmp.eq.s32.totalorder %s25, 1
      %p195 = scmp.ne.s32.totalorder %s190, %s192
      %p196 = scmp.eq.s32.totalorder %s25, 0
      %p197 = por %p195, %p196
      %p198 = scmp.ne.s32.totalorder %s190, %s192
      %p199 = scmp.eq.s32.totalorder %s30, 1
      %p200 = por %p198, %p199
      %p201 = scmp.ne.s32.totalorder %s192, %s193
      %p202 = scmp.eq.s32.totalorder %s30, 0
      %p203 = por %p201, %p202
      %p204 = scmp.ne.s32.totalorder %s192, %s193
      %p205 = scmp.eq.s32.totalorder %s31, 1
      %p206 = por %p204, %p205
      %p208 = scmp.ne.s32.totalorder %s193, %s207
      %p209 = scmp.eq.s32.totalorder %s31, 0
      %p210 = por %p208, %p209
      %s212 = sadd.s32 %s211, 1
      %p215 = scmp.eq.s32.totalorder %s25, 1
      %p216 = scmp.ne.s32.totalorder %s211, %s213
      %p217 = scmp.eq.s32.totalorder %s25, 0
      %p218 = por %p216, %p217
      %p219 = scmp.ne.s32.totalorder %s211, %s213
      %p220 = scmp.eq.s32.totalorder %s30, 1
      %p221 = por %p219, %p220
      %p222 = scmp.ne.s32.totalorder %s213, %s214
      %p223 = scmp.eq.s32.totalorder %s30, 0
      %p224 = por %p222, %p223
      %p225 = scmp.ne.s32.totalorder %s213, %s214
      %p226 = scmp.eq.s32.totalorder %s31, 1
      %p227 = por %p225, %p226
      %p229 = scmp.ne.s32.totalorder %s214, %s228
      %p230 = scmp.eq.s32.totalorder %s31, 0
      %p231 = por %p229, %p230
      %s233 = sadd.s32 %s232, 1
      %p236 = scmp.eq.s32.totalorder %s25, 1
      %p237 = scmp.ne.s32.totalorder %s232, %s234
      %p238 = scmp.eq.s32.totalorder %s25, 0
      %p239 = por %p237, %p238
      %p240 = scmp.ne.s32.totalorder %s232, %s234
      %p241 = scmp.eq.s32.totalorder %s30, 1
      %p242 = por %p240, %p241
      %p243 = scmp.ne.s32.totalorder %s234, %s235
      %p244 = scmp.eq.s32.totalorder %s30, 0
      %p245 = por %p243, %p244
      %p246 = scmp.ne.s32.totalorder %s234, %s235
      %p247 = scmp.eq.s32.totalorder %s31, 1
      %p248 = por %p246, %p247
      %p250 = scmp.ne.s32.totalorder %s235, %s249
      %p251 = scmp.eq.s32.totalorder %s31, 0
      %p252 = por %p250, %p251
      %s254 = sadd.s32 %s253, 1
      %p257 = scmp.eq.s32.totalorder %s25, 1
      %p258 = scmp.ne.s32.totalorder %s253, %s255
      %p259 = scmp.eq.s32.totalorder %s25, 0
      %p260 = por %p258, %p259
      %p261 = scmp.ne.s32.totalorder %s253, %s255
      %p262 = scmp.eq.s32.totalorder %s30, 1
      %p263 = por %p261, %p262
      %p264 = scmp.ne.s32.totalorder %s255, %s256
      %p265 = scmp.eq.s32.totalorder %s30, 0
      %p266 = por %p264, %p265
      %p267 = scmp.ne.s32.totalorder %s255, %s256
      %p268 = scmp.eq.s32.totalorder %s31, 1
      %p269 = por %p267, %p268
      %p271 = scmp.ne.s32.totalorder %s256, %s270
      %p272 = scmp.eq.s32.totalorder %s31, 0
      %p273 = por %p271, %p272
      %s275 = sadd.s32 %s274, 1
      %p278 = scmp.eq.s32.totalorder %s25, 1
      %p279 = scmp.ne.s32.totalorder %s274, %s276
      %p280 = scmp.eq.s32.totalorder %s25, 0
      %p281 = por %p279, %p280
      %p282 = scmp.ne.s32.totalorder %s274, %s276
      %p283 = scmp.eq.s32.totalorder %s30, 1
      %p284 = por %p282, %p283
      %p285 = scmp.ne.s32.totalorder %s276, %s277
      %p286 = scmp.eq.s32.totalorder %s30, 0
      %p287 = por %p285, %p286
      %p288 = scmp.ne.s32.totalorder %s276, %s277
      %p289 = scmp.eq.s32.totalorder %s31, 1
      %p290 = por %p288, %p289
      %p292 = scmp.ne.s32.totalorder %s277, %s291
      %p293 = scmp.eq.s32.totalorder %s31, 0
      %p294 = por %p292, %p293
      %s296 = sadd.s32 %s295, 1
      %p299 = scmp.eq.s32.totalorder %s25, 1
      %p300 = scmp.ne.s32.totalorder %s295, %s297
      %p301 = scmp.eq.s32.totalorder %s25, 0
      %p302 = por %p300, %p301
      %p303 = scmp.ne.s32.totalorder %s295, %s297
      %p304 = scmp.eq.s32.totalorder %s30, 1
      %p305 = por %p303, %p304
      %p306 = scmp.ne.s32.totalorder %s297, %s298
      %p307 = scmp.eq.s32.totalorder %s30, 0
      %p308 = por %p306, %p307
      %p309 = scmp.ne.s32.totalorder %s297, %s298
      %p310 = scmp.eq.s32.totalorder %s31, 1
      %p311 = por %p309, %p310
      %p313 = scmp.ne.s32.totalorder %s298, %s312
      %p314 = scmp.eq.s32.totalorder %s31, 0
      %p315 = por %p313, %p314
      %s317 = sadd.s32 %s316, 1
      %p320 = scmp.eq.s32.totalorder %s25, 1
      %p321 = scmp.ne.s32.totalorder %s316, %s318
      %p322 = scmp.eq.s32.totalorder %s25, 0
      %p323 = por %p321, %p322
      %p324 = scmp.ne.s32.totalorder %s316, %s318
      %p325 = scmp.eq.s32.totalorder %s30, 1
      %p326 = por %p324, %p325
      %p327 = scmp.ne.s32.totalorder %s318, %s319
      %p328 = scmp.eq.s32.totalorder %s30, 0
      %p329 = por %p327, %p328
      %p330 = scmp.ne.s32.totalorder %s318, %s319
      %p331 = scmp.eq.s32.totalorder %s31, 1
      %p332 = por %p330, %p331
      %p334 = scmp.ne.s32.totalorder %s319, %s333
      %p335 = scmp.eq.s32.totalorder %s31, 0
      %p336 = por %p334, %p335
      %s338 = sadd.s32 %s337, 1
      %p341 = scmp.eq.s32.totalorder %s25, 1
      %p342 = scmp.ne.s32.totalorder %s337, %s339
      %p343 = scmp.eq.s32.totalorder %s25, 0
      %p344 = por %p342, %p343
      %p345 = scmp.ne.s32.totalorder %s337, %s339
      %p346 = scmp.eq.s32.totalorder %s30, 1
      %p347 = por %p345, %p346
      %p348 = scmp.ne.s32.totalorder %s339, %s340
      %p349 = scmp.eq.s32.totalorder %s30, 0
      %p350 = por %p348, %p349
      %p351 = scmp.ne.s32.totalorder %s339, %s340
      %p352 = scmp.eq.s32.totalorder %s31, 1
      %p353 = por %p351, %p352
      %p355 = scmp.ne.s32.totalorder %s340, %s354
      %p356 = scmp.eq.s32.totalorder %s31, 0
      %p357 = por %p355, %p356
      %s359 = sadd.s32 %s358, 1
      %p362 = scmp.eq.s32.totalorder %s25, 1
      %p363 = scmp.ne.s32.totalorder %s358, %s360
      %p364 = scmp.eq.s32.totalorder %s25, 0
      %p365 = por %p363, %p364
      %p366 = scmp.ne.s32.totalorder %s358, %s360
      %p367 = scmp.eq.s32.totalorder %s30, 1
      %p368 = por %p366, %p367
      %p369 = scmp.ne.s32.totalorder %s360, %s361
      %p370 = scmp.eq.s32.totalorder %s30, 0
      %p371 = por %p369, %p370
      %p372 = scmp.ne.s32.totalorder %s360, %s361
      %p373 = scmp.eq.s32.totalorder %s31, 1
      %p374 = por %p372, %p373
      %p376 = scmp.ne.s32.totalorder %s361, %s375
      %p377 = scmp.eq.s32.totalorder %s31, 0
      %p378 = por %p376, %p377
      %p379 = scmp.le.s32.totalorder 1, %s25
      %p380 = scmp.lt.s32.totalorder %s25, 3
      %p381 = pnand %p379, %p380
      %p382 = pneg %p381
      // Predicated region
      $region9: #{gin_forward.13} parent=5 // pred_check
        _
      $region10: #{gin_forward.13} parent=5 // pred_check_branch
        %384 = sbr.rel (%p381) target = $region12
      $region11: #{gin_forward.13} parent=5 // pred_region
        %s385 = ssub.s32 %s25, 1
        // Predicated region
        $region13: #{gin_forward.13} parent=11 // pred_check
          %p386 = pneg %p98
        $region14: #{gin_forward.13} parent=11 // pred_check_branch
          %388 = sbr.rel (%p386) target = $region16
        $region15: #{gin_forward.13} parent=11 // pred_region
          _
        $region16: #{gin_forward.13} parent=11 // pred_fallthru
          _
        // Predicated region
        $region17: #{gin_forward.13} parent=11 // pred_check
          %p389 = pneg %p119
        $region18: #{gin_forward.13} parent=11 // pred_check_branch
          %391 = sbr.rel (%p389) target = $region20
        $region19: #{gin_forward.13} parent=11 // pred_region
          _
        $region20: #{gin_forward.13} parent=11 // pred_fallthru
          _
        // Predicated region
        $region21: #{gin_forward.13} parent=11 // pred_check
          %p392 = pneg %p140
        $region22: #{gin_forward.13} parent=11 // pred_check_branch
          %394 = sbr.rel (%p392) target = $region24
        $region23: #{gin_forward.13} parent=11 // pred_region
          _
        $region24: #{gin_forward.13} parent=11 // pred_fallthru
          _
        // Predicated region
        $region25: #{gin_forward.13} parent=11 // pred_check
          %p395 = pneg %p161
        $region26: #{gin_forward.13} parent=11 // pred_check_branch
          %397 = sbr.rel (%p395) target = $region28
        $region27: #{gin_forward.13} parent=11 // pred_region
          _
        $region28: #{gin_forward.13} parent=11 // pred_fallthru
          _
        // Predicated region
        $region29: #{gin_forward.13} parent=11 // pred_check
          %p398 = pneg %p182
        $region30: #{gin_forward.13} parent=11 // pred_check_branch
          %400 = sbr.rel (%p398) target = $region32
        $region31: #{gin_forward.13} parent=11 // pred_region
          _
        $region32: #{gin_forward.13} parent=11 // pred_fallthru
          _
        // Predicated region
        $region33: #{gin_forward.13} parent=11 // pred_check
          %p401 = pneg %p203
        $region34: #{gin_forward.13} parent=11 // pred_check_branch
          %403 = sbr.rel (%p401) target = $region36
        $region35: #{gin_forward.13} parent=11 // pred_region
          _
        $region36: #{gin_forward.13} parent=11 // pred_fallthru
          _
        // Predicated region
        $region37: #{gin_forward.13} parent=11 // pred_check
          %p404 = pneg %p224
        $region38: #{gin_forward.13} parent=11 // pred_check_branch
          %406 = sbr.rel (%p404) target = $region40
        $region39: #{gin_forward.13} parent=11 // pred_region
          _
        $region40: #{gin_forward.13} parent=11 // pred_fallthru
          _
        // Predicated region
        $region41: #{gin_forward.13} parent=11 // pred_check
          %p407 = pneg %p245
        $region42: #{gin_forward.13} parent=11 // pred_check_branch
          %409 = sbr.rel (%p407) target = $region44
        $region43: #{gin_forward.13} parent=11 // pred_region
          _
        $region44: #{gin_forward.13} parent=11 // pred_fallthru
          _
        // Predicated region
        $region45: #{gin_forward.13} parent=11 // pred_check
          %p410 = pneg %p266
        $region46: #{gin_forward.13} parent=11 // pred_check_branch
          %412 = sbr.rel (%p410) target = $region48
        $region47: #{gin_forward.13} parent=11 // pred_region
          _
        $region48: #{gin_forward.13} parent=11 // pred_fallthru
          _
        // Predicated region
        $region49: #{gin_forward.13} parent=11 // pred_check
          %p413 = pneg %p287
        $region50: #{gin_forward.13} parent=11 // pred_check_branch
          %415 = sbr.rel (%p413) target = $region52
        $region51: #{gin_forward.13} parent=11 // pred_region
          _
        $region52: #{gin_forward.13} parent=11 // pred_fallthru
          _
        // Predicated region
        $region53: #{gin_forward.13} parent=11 // pred_check
          %p416 = pneg %p308
        $region54: #{gin_forward.13} parent=11 // pred_check_branch
          %418 = sbr.rel (%p416) target = $region56
        $region55: #{gin_forward.13} parent=11 // pred_region
          _
        $region56: #{gin_forward.13} parent=11 // pred_fallthru
          _
        // Predicated region
        $region57: #{gin_forward.13} parent=11 // pred_check
          %p419 = pneg %p329
        $region58: #{gin_forward.13} parent=11 // pred_check_branch
          %421 = sbr.rel (%p419) target = $region60
        $region59: #{gin_forward.13} parent=11 // pred_region
          _
        $region60: #{gin_forward.13} parent=11 // pred_fallthru
          _
      $region12: #{gin_forward.13} parent=5 // pred_fallthru
        _
      %p422 = scmp.lt.s32.totalorder %s25, 2
      // Predicated region
      $region61: #{gin_forward.13} parent=5 // pred_check
        %p423 = pneg %p422
      $region62: #{gin_forward.13} parent=5 // pred_check_branch
        %425 = sbr.rel (%p423) target = $region64
      $region63: #{gin_forward.13} parent=5 // pred_region
        // Predicated region
        $region65: #{gin_forward.13} parent=63 // pred_check
          %p426 = pneg %p45
        $region66: #{gin_forward.13} parent=63 // pred_check_branch
          %428 = sbr.rel (%p426) target = $region68
        $region67: #{gin_forward.13} parent=63 // pred_region
          %s429 = smul.u32 2, %s25
          %p430 = scmp.lt.s32.totalorder %s429, 3
          %s431 = scalar_select %p430, %s429, 3
          %s432 = smul.addr %s431, 2
          %s433 = scalar_lea.vmem %s0, %s432
          %s434 = smul.u32 2, %s25
        $region68: #{gin_forward.13} parent=63 // pred_fallthru
          _
        // Predicated region
        $region69: #{gin_forward.13} parent=63 // pred_check
          %p435 = pneg %p71
        $region70: #{gin_forward.13} parent=63 // pred_check_branch
          %437 = sbr.rel (%p435) target = $region72
        $region71: #{gin_forward.13} parent=63 // pred_region
          %s438 = smul.u32 32, %s25
          %p439 = scmp.lt.s32.totalorder %s438, 63
          %s440 = scalar_select %p439, %s438, 63
          %s441 = smul.addr %s440, 8
          %s442 = scalar_lea.vmem %s1, %s441
          %s443 = smul.u32 32, %s25
        $region72: #{gin_forward.13} parent=63 // pred_fallthru
          _
      $region64: #{gin_forward.13} parent=5 // pred_fallthru
        _
      %p444 = scmp.le.s32.totalorder 1, %s25
      %p445 = scmp.lt.s32.totalorder %s25, 3
      %p446 = pnand %p444, %p445
      %p447 = pneg %p446
      // Predicated region
      $region73: #{gin_forward.13} parent=5 // pred_check
        _
      $region74: #{gin_forward.13} parent=5 // pred_check_branch
        %449 = sbr.rel (%p446) target = $region76
      $region75: #{gin_forward.13} parent=5 // pred_region
        %s450 = ssub.s32 %s25, 1
        %s451 = smul.u32 2, %s30
        %p452 = scmp.lt.s32.totalorder %s451, 3
        %s453 = scalar_select %p452, %s451, 3
        %s454 = smul.addr %s453, 2
        %s455 = scalar_lea.vmem %s0, %s454
        %p456 = pneg %p51
        %p457 = pneg %p48
        %s458 = smul.u32 32, %s30
        %p459 = scmp.lt.s32.totalorder %s458, 63
        %s460 = scalar_select %p459, %s458, 63
        %s461 = smul.addr %s460, 8
        %s462 = scalar_lea.vmem %s1, %s461
        %p463 = pneg %p77
        %p464 = pneg %p74
        %p465 = pneg %p98
        %p466 = pneg %p95
        %p467 = pneg %p119
        %p468 = pneg %p116
        %p469 = pneg %p140
        %p470 = pneg %p137
        %p471 = pneg %p161
        %p472 = pneg %p158
        %p473 = pneg %p182
        %p474 = pneg %p179
        %p475 = pneg %p203
        %p476 = pneg %p200
        %p477 = pneg %p224
        %p478 = pneg %p221
        %p479 = pneg %p245
        %p480 = pneg %p242
        %p481 = pneg %p266
        %p482 = pneg %p263
        %p483 = pneg %p287
        %p484 = pneg %p284
        %p485 = pneg %p308
        %p486 = pneg %p305
        %p487 = pneg %p329
        %p488 = pneg %p326
        %p489 = pneg %p350
        %p490 = pneg %p347
        %p491 = pneg %p371
        %p492 = pneg %p368
        %s493 = smul.u32 2, %s30
        %p494 = scmp.lt.s32.totalorder %s493, 3
        %s495 = scalar_select %p494, %s493, 3
        %s496 = smul.addr %s495, 2
        %s497 = scalar_lea.vmem %s0, %s496
        %s498 = smul.u32 2, %s30
        %s499 = smul.u32 32, %s30
        %p500 = scmp.lt.s32.totalorder %s499, 63
        %s501 = scalar_select %p500, %s499, 63
        %s502 = smul.addr %s501, 8
        %s503 = scalar_lea.vmem %s1, %s502
        %s504 = smul.u32 32, %s30
        %p505 = scmp.eq.s32.totalorder %s30, 0
        // Predicated region
        $region77: #{gin_forward.13} parent=75 // pred_check
          %p506 = pneg %p505
        $region78: #{gin_forward.13} parent=75 // pred_check_branch
          %508 = sbr.rel (%p506) target = $region80
        $region79: #{gin_forward.13} parent=75 // pred_region
          %509 = vst [vmem:[#allocation2] sm:$0xf] 0.0
        $region80: #{gin_forward.13} parent=75 // pred_fallthru
          _
        %v510 = vld [vmem:[%s497] sm:$0xf]
        %v511 = vunpack.c.l.bf16 %v510
        %v512 = vld [vmem:[#allocation2] sm:$0xf]
        %v513 = vld [vmem:[%s503] sm:$0xff]
        %v514 = vld [vmem:[%s503 + $0x8] sm:$0xff]
        %v515 = vld [vmem:[%s503 + $0x10] sm:$0xff]
        %v516 = vld [vmem:[%s503 + $0x18] sm:$0xff]
        %v517 = vld [vmem:[%s503 + $0x20] sm:$0xff]
        %v518 = vld [vmem:[%s503 + $0x28] sm:$0xff]
        %v519 = vld [vmem:[%s503 + $0x30] sm:$0xff]
        %v520 = vld [vmem:[%s503 + $0x38] sm:$0xff]
        %v521 = vld [vmem:[%s503 + $0x40] sm:$0xff]
        %v522 = vld [vmem:[%s503 + $0x48] sm:$0xff]
        %v523 = vld [vmem:[%s503 + $0x50] sm:$0xff]
        %v524 = vld [vmem:[%s503 + $0x58] sm:$0xff]
        %v525 = vld [vmem:[%s503 + $0x60] sm:$0xff]
        %v526 = vld [vmem:[%s503 + $0x68] sm:$0xff]
        %v527 = vld [vmem:[%s503 + $0x70] sm:$0xff]
        %v528 = vld [vmem:[%s503 + $0x78] sm:$0xff]
        %v529 = vld [vmem:[%s503 + $0x80] sm:$0xff]
        %v530 = vld [vmem:[%s503 + $0x88] sm:$0xff]
        %v531 = vld [vmem:[%s503 + $0x90] sm:$0xff]
        %v532 = vld [vmem:[%s503 + $0x98] sm:$0xff]
        %v533 = vld [vmem:[%s503 + $0xa0] sm:$0xff]
        %v534 = vld [vmem:[%s503 + $0xa8] sm:$0xff]
        %v535 = vld [vmem:[%s503 + $0xb0] sm:$0xff]
        %v536 = vld [vmem:[%s503 + $0xb8] sm:$0xff]
        %v537 = vld [vmem:[%s503 + $0xc0] sm:$0xff]
        %v538 = vld [vmem:[%s503 + $0xc8] sm:$0xff]
        %v539 = vld [vmem:[%s503 + $0xd0] sm:$0xff]
        %v540 = vld [vmem:[%s503 + $0xd8] sm:$0xff]
        %v541 = vld [vmem:[%s503 + $0xe0] sm:$0xff]
        %v542 = vld [vmem:[%s503 + $0xe8] sm:$0xff]
        %v543 = vld [vmem:[%s503 + $0xf0] sm:$0xff]
        %v544 = vld [vmem:[%s503 + $0xf8] sm:$0xff]
        %v546 = vcombine.high %v511, %v511
        %548 = vmatprep.subr.mxu0 0.0
        %549 = vmatpush1.msra.mxu0 %v528
        %550 = vmatprep.subr.mxu0 0.0
        %551 = vmatpush1.msra.mxu0 %v527
        %552 = vmatprep.subr.mxu0 0.0
        %553 = vmatpush1.msra.mxu0 %v526
        %554 = vmatprep.subr.mxu0 0.0
        %555 = vmatpush1.msra.mxu0 %v525
        %556 = vmatprep.subr.mxu0 0.0
        %557 = vmatpush1.msra.mxu0 %v524
        %558 = vmatprep.subr.mxu0 0.0
        %559 = vmatpush1.msra.mxu0 %v523
        %560 = vmatprep.subr.mxu0 0.0
        %561 = vmatpush1.msra.mxu0 %v522
        %562 = vmatprep.subr.mxu0 0.0
        %563 = vmatpush1.msra.mxu0 %v521
        %564 = vmatprep.subr.mxu0 0.0
        %565 = vmatpush1.msra.mxu0 %v520
        %566 = vmatprep.subr.mxu0 0.0
        %567 = vmatpush1.msra.mxu0 %v519
        %568 = vmatprep.subr.mxu0 0.0
        %569 = vmatpush1.msra.mxu0 %v518
        %570 = vmatprep.subr.mxu0 0.0
        %571 = vmatpush1.msra.mxu0 %v517
        %572 = vmatprep.subr.mxu0 0.0
        %573 = vmatpush1.msra.mxu0 %v516
        %574 = vmatprep.subr.mxu0 0.0
        %575 = vmatpush1.msra.mxu0 %v515
        %576 = vmatprep.subr.mxu0 0.0
        %577 = vmatpush1.msra.mxu0 %v514
        %578 = vmatprep.subr.mxu0 0.0
        %579 = vmatpush1.msra.mxu0 %v513
        %580 = vmatprep.subr.mxu0 0.0
        %581 = vmatpush2.msra.mxu0 %v544
        %582 = vmatprep.subr.mxu0 0.0
        %583 = vmatpush2.msra.mxu0 %v543
        %584 = vmatprep.subr.mxu0 0.0
        %585 = vmatpush2.msra.mxu0 %v542
        %586 = vmatprep.subr.mxu0 0.0
        %587 = vmatpush2.msra.mxu0 %v541
        %588 = vmatprep.subr.mxu0 0.0
        %589 = vmatpush2.msra.mxu0 %v540
        %590 = vmatprep.subr.mxu0 0.0
        %591 = vmatpush2.msra.mxu0 %v539
        %592 = vmatprep.subr.mxu0 0.0
        %593 = vmatpush2.msra.mxu0 %v538
        %594 = vmatprep.subr.mxu0 0.0
        %595 = vmatpush2.msra.mxu0 %v537
        %596 = vmatprep.subr.mxu0 0.0
        %597 = vmatpush2.msra.mxu0 %v536
        %598 = vmatprep.subr.mxu0 0.0
        %599 = vmatpush2.msra.mxu0 %v535
        %600 = vmatprep.subr.mxu0 0.0
        %601 = vmatpush2.msra.mxu0 %v534
        %602 = vmatprep.subr.mxu0 0.0
        %603 = vmatpush2.msra.mxu0 %v533
        %604 = vmatprep.subr.mxu0 0.0
        %605 = vmatpush2.msra.mxu0 %v532
        %606 = vmatprep.subr.mxu0 0.0
        %607 = vmatpush2.msra.mxu0 %v531
        %608 = vmatprep.subr.mxu0 0.0
        %609 = vmatpush2.msra.mxu0 %v530
        %610 = vmatprep.subr.mxu0 0.0
        %611 = vmatpush2.msra.mxu0 %v529
        %612 = vmatprep.mubr.f32.mxu0 %v546
        %613 = vmatmul.mubr.f32.gmra.mxu0 %v511
        %v614 = vpop.f32.mrf.mxu0
        %v615 = vadd.f32 0.0, %v614
        %v616 = vpop.f32.mrf.mxu0
        %617 = vdwg.mxu0
        %v618 = vadd.f32 %v512, %v615
        %619 = vst [vmem:[#allocation2] sm:$0xf] %v618
        %p620 = scmp.eq.s32.totalorder %s30, 1
        // Predicated region
        $region81: #{gin_forward.13} parent=75 // pred_check
          %p621 = pneg %p620
        $region82: #{gin_forward.13} parent=75 // pred_check_branch
          %623 = sbr.rel (%p621) target = $region84
        $region83: #{gin_forward.13} parent=75 // pred_region
          %v624 = vld [vmem:[#allocation2] sm:$0xf]
          %v625 = vld [vmem:[%s3] sm:$0xff]
          %v626 = vld [vmem:[%s3 + $0x8] sm:$0xff]
          %v627 = vld [vmem:[%s3 + $0x10] sm:$0xff]
          %v628 = vld [vmem:[%s3 + $0x18] sm:$0xff]
          %v629 = vld [vmem:[%s3 + $0x20] sm:$0xff]
          %v630 = vld [vmem:[%s3 + $0x28] sm:$0xff]
          %v631 = vld [vmem:[%s3 + $0x30] sm:$0xff]
          %v632 = vld [vmem:[%s3 + $0x38] sm:$0xff]
          %v633 = vld [vmem:[%s3 + $0x40] sm:$0xff]
          %v634 = vld [vmem:[%s3 + $0x48] sm:$0xff]
          %v635 = vld [vmem:[%s3 + $0x50] sm:$0xff]
          %v636 = vld [vmem:[%s3 + $0x58] sm:$0xff]
          %v637 = vld [vmem:[%s3 + $0x60] sm:$0xff]
          %v638 = vld [vmem:[%s3 + $0x68] sm:$0xff]
          %v639 = vld [vmem:[%s3 + $0x70] sm:$0xff]
          %v640 = vld [vmem:[%s3 + $0x78] sm:$0xff]
          %v641 = vld [vmem:[%s4] sm:$0x1]
          %v643 = vlaneseq
          %v644 = vshrl.u32 %v643, 7
          %v645 = vsub.s32 0, %v644
          %v646 = vrot.slane %v641, %v645
          %648 = vmatprep.subr.mxu0 0.0
          %649 = vmatpush1.msra.mxu0 %v640
          %650 = vmatprep.subr.mxu0 0.0
          %651 = vmatpush1.msra.mxu0 %v639
          %652 = vmatprep.subr.mxu0 0.0
          %653 = vmatpush1.msra.mxu0 %v638
          %654 = vmatprep.subr.mxu0 0.0
          %655 = vmatpush1.msra.mxu0 %v637
          %656 = vmatprep.subr.mxu0 0.0
          %657 = vmatpush1.msra.mxu0 %v636
          %658 = vmatprep.subr.mxu0 0.0
          %659 = vmatpush1.msra.mxu0 %v635
          %660 = vmatprep.subr.mxu0 0.0
          %661 = vmatpush1.msra.mxu0 %v634
          %662 = vmatprep.subr.mxu0 0.0
          %663 = vmatpush1.msra.mxu0 %v633
          %664 = vmatprep.subr.mxu0 0.0
          %665 = vmatpush1.msra.mxu0 %v632
          %666 = vmatprep.subr.mxu0 0.0
          %667 = vmatpush1.msra.mxu0 %v631
          %668 = vmatprep.subr.mxu0 0.0
          %669 = vmatpush1.msra.mxu0 %v630
          %670 = vmatprep.subr.mxu0 0.0
          %671 = vmatpush1.msra.mxu0 %v629
          %672 = vmatprep.subr.mxu0 0.0
          %673 = vmatpush1.msra.mxu0 %v628
          %674 = vmatprep.subr.mxu0 0.0
          %675 = vmatpush1.msra.mxu0 %v627
          %676 = vmatprep.subr.mxu0 0.0
          %677 = vmatpush1.msra.mxu0 %v626
          %678 = vmatprep.subr.mxu0 0.0
          %679 = vmatpush1.msra.mxu0 %v625
          %680 = vmatprep.subr.mxu0 0.0
          %681 = vmatpush2.msra.mxu0 0.0
          %682 = vmatprep.subr.mxu0 0.0
          %683 = vmatpush2.msra.mxu0 0.0
          %684 = vmatprep.subr.mxu0 0.0
          %685 = vmatpush2.msra.mxu0 0.0
          %686 = vmatprep.subr.mxu0 0.0
          %687 = vmatpush2.msra.mxu0 0.0
          %688 = vmatprep.subr.mxu0 0.0
          %689 = vmatpush2.msra.mxu0 0.0
          %690 = vmatprep.subr.mxu0 0.0
          %691 = vmatpush2.msra.mxu0 0.0
          %692 = vmatprep.subr.mxu0 0.0
          %693 = vmatpush2.msra.mxu0 0.0
          %694 = vmatprep.subr.mxu0 0.0
          %695 = vmatpush2.msra.mxu0 0.0
          %696 = vmatprep.subr.mxu0 0.0
          %697 = vmatpush2.msra.mxu0 0.0
          %698 = vmatprep.subr.mxu0 0.0
          %699 = vmatpush2.msra.mxu0 0.0
          %700 = vmatprep.subr.mxu0 0.0
          %701 = vmatpush2.msra.mxu0 0.0
          %702 = vmatprep.subr.mxu0 0.0
          %703 = vmatpush2.msra.mxu0 0.0
          %704 = vmatprep.subr.mxu0 0.0
          %705 = vmatpush2.msra.mxu0 0.0
          %706 = vmatprep.subr.mxu0 0.0
          %707 = vmatpush2.msra.mxu0 0.0
          %708 = vmatprep.subr.mxu0 0.0
          %709 = vmatpush2.msra.mxu0 0.0
          %710 = vmatprep.subr.mxu0 0.0
          %711 = vmatpush2.msra.mxu0 0.0
          %712 = vmatprep.mubr.f32.mxu0 0.0
          %713 = vmatmul.mubr.f32.gmra.mxu0 %v624
          %v714 = vpop.f32.mrf.mxu0
          %v715 = vadd.f32 %v646, %v714
          %v716 = vpop.f32.mrf.mxu0
          %717 = vdwg.mxu0
          %v718 = vmax.f32 %v715, 0.0
          %719 = vst [vmem:[#allocation4] sm:$0xf] %v718
          %v720 = vld [vmem:[%s2] sm:$0xff]
          %v722 = vcombine.high %v720, %v720
          %vm724 = vcmask 1043456
          %v725 = vsel %vm724, %v720, 0.0
          %v726 = vrot.slane %v725, 4
          %v727 = vadd.f32 %v725, %v726
          %v728 = vrot.slane %v727, 2
          %v729 = vadd.f32 %v727, %v728
          %v730 = vrot.slane %v729, 1
          %v731 = vadd.f32 %v729, %v730
          %v732 = vsel %vm724, %v722, 0.0
          %v733 = vrot.slane %v732, 4
          %v734 = vadd.f32 %v732, %v733
          %v735 = vrot.slane %v734, 2
          %v736 = vadd.f32 %v734, %v735
          %v737 = vrot.slane %v736, 1
          %v738 = vadd.f32 %v736, %v737
          %v739 = vrcp.pop 4.0
          %v740 = vmul.f32 %v731, %v739
          %v741 = vmul.f32 %v738, %v739
          %v742 = vmul.f32 %v720, %v720
          %v744 = vcombine.high %v742, %v742
          %v746 = vsel %vm724, %v742, 0.0
          %v747 = vrot.slane %v746, 4
          %v748 = vadd.f32 %v746, %v747
          %v749 = vrot.slane %v748, 2
          %v750 = vadd.f32 %v748, %v749
          %v751 = vrot.slane %v750, 1
          %v752 = vadd.f32 %v750, %v751
          %v753 = vsel %vm724, %v744, 0.0
          %v754 = vrot.slane %v753, 4
          %v755 = vadd.f32 %v753, %v754
          %v756 = vrot.slane %v755, 2
          %v757 = vadd.f32 %v755, %v756
          %v758 = vrot.slane %v757, 1
          %v759 = vadd.f32 %v757, %v758
          %v760 = vmul.f32 %v752, %v739
          %v761 = vmul.f32 %v759, %v739
          %v762 = vmul.f32 %v740, %v740
          %v763 = vmul.f32 %v741, %v741
          %v764 = vsub.f32 %v760, %v762
          %v765 = vsub.f32 %v761, %v763
          %v766 = vmax.f32 %v764, 0.0
          %v767 = vmax.f32 %v765, 0.0
          %v770 = vcombine.low %v740, %v741
          %v772 = vsub.f32 %v720, %v770
          %v773 = vadd.f32 %v766, 1e-05
          %v774 = vadd.f32 %v767, 1e-05
          %v775 = vrsqrt.pop %v773
          %v776 = vrsqrt.pop %v774
          %v779 = vcombine.low %v775, %v776
          %v781 = vmul.f32 %v772, %v779
          %v782 = vld [vmem:[%s5] sm:$0xff]
          %v783 = vld [vmem:[%s5 + $0x8] sm:$0xff]
          %v784 = vld [vmem:[%s5 + $0x10] sm:$0xff]
          %v785 = vld [vmem:[%s5 + $0x18] sm:$0xff]
          %v786 = vld [vmem:[%s5 + $0x20] sm:$0xff]
          %v787 = vld [vmem:[%s5 + $0x28] sm:$0xff]
          %v788 = vld [vmem:[%s5 + $0x30] sm:$0xff]
          %v789 = vld [vmem:[%s5 + $0x38] sm:$0xff]
          %v790 = vld [vmem:[%s5 + $0x40] sm:$0xff]
          %v791 = vld [vmem:[%s5 + $0x48] sm:$0xff]
          %v792 = vld [vmem:[%s5 + $0x50] sm:$0xff]
          %v793 = vld [vmem:[%s5 + $0x58] sm:$0xff]
          %v794 = vld [vmem:[%s5 + $0x60] sm:$0xff]
          %v795 = vld [vmem:[%s5 + $0x68] sm:$0xff]
          %v796 = vld [vmem:[%s5 + $0x70] sm:$0xff]
          %v797 = vld [vmem:[%s5 + $0x78] sm:$0xff]
          %v798 = vld [vmem:[%s5 + $0x80] sm:$0xff]
          %v799 = vld [vmem:[%s5 + $0x88] sm:$0xff]
          %v800 = vld [vmem:[%s5 + $0x90] sm:$0xff]
          %v801 = vld [vmem:[%s5 + $0x98] sm:$0xff]
          %v802 = vld [vmem:[%s5 + $0xa0] sm:$0xff]
          %v803 = vld [vmem:[%s5 + $0xa8] sm:$0xff]
          %v804 = vld [vmem:[%s5 + $0xb0] sm:$0xff]
          %v805 = vld [vmem:[%s5 + $0xb8] sm:$0xff]
          %v806 = vld [vmem:[%s5 + $0xc0] sm:$0xff]
          %v807 = vld [vmem:[%s5 + $0xc8] sm:$0xff]
          %v808 = vld [vmem:[%s5 + $0xd0] sm:$0xff]
          %v809 = vld [vmem:[%s5 + $0xd8] sm:$0xff]
          %v810 = vld [vmem:[%s5 + $0xe0] sm:$0xff]
          %v811 = vld [vmem:[%s5 + $0xe8] sm:$0xff]
          %v812 = vld [vmem:[%s5 + $0xf0] sm:$0xff]
          %v813 = vld [vmem:[%s5 + $0xf8] sm:$0xff]
          %v814 = vld [vmem:[%s5 + $0x100] sm:$0xff]
          %v815 = vld [vmem:[%s5 + $0x108] sm:$0xff]
          %v816 = vld [vmem:[%s5 + $0x110] sm:$0xff]
          %v817 = vld [vmem:[%s5 + $0x118] sm:$0xff]
          %v818 = vld [vmem:[%s5 + $0x120] sm:$0xff]
          %v819 = vld [vmem:[%s5 + $0x128] sm:$0xff]
          %v820 = vld [vmem:[%s5 + $0x130] sm:$0xff]
          %v821 = vld [vmem:[%s5 + $0x138] sm:$0xff]
          %v822 = vld [vmem:[%s5 + $0x140] sm:$0xff]
          %v823 = vld [vmem:[%s5 + $0x148] sm:$0xff]
          %v824 = vld [vmem:[%s5 + $0x150] sm:$0xff]
          %v825 = vld [vmem:[%s5 + $0x158] sm:$0xff]
          %v826 = vld [vmem:[%s5 + $0x160] sm:$0xff]
          %v827 = vld [vmem:[%s5 + $0x168] sm:$0xff]
          %v828 = vld [vmem:[%s5 + $0x170] sm:$0xff]
          %v829 = vld [vmem:[%s5 + $0x178] sm:$0xff]
          %v830 = vld [vmem:[%s5 + $0x180] sm:$0xff]
          %v831 = vld [vmem:[%s5 + $0x188] sm:$0xff]
          %v832 = vld [vmem:[%s5 + $0x190] sm:$0xff]
          %v833 = vld [vmem:[%s5 + $0x198] sm:$0xff]
          %v834 = vld [vmem:[%s5 + $0x1a0] sm:$0xff]
          %v835 = vld [vmem:[%s5 + $0x1a8] sm:$0xff]
          %v836 = vld [vmem:[%s5 + $0x1b0] sm:$0xff]
          %v837 = vld [vmem:[%s5 + $0x1b8] sm:$0xff]
          %v838 = vld [vmem:[%s5 + $0x1c0] sm:$0xff]
          %v839 = vld [vmem:[%s5 + $0x1c8] sm:$0xff]
          %v840 = vld [vmem:[%s5 + $0x1d0] sm:$0xff]
          %v841 = vld [vmem:[%s5 + $0x1d8] sm:$0xff]
          %v842 = vld [vmem:[%s5 + $0x1e0] sm:$0xff]
          %v843 = vld [vmem:[%s5 + $0x1e8] sm:$0xff]
          %v844 = vld [vmem:[%s5 + $0x1f0] sm:$0xff]
          %v845 = vld [vmem:[%s5 + $0x1f8] sm:$0xff]
          %v846 = vld [vmem:[%s6] sm:$0x3]
          %v848 = vlaneseq
          %v849 = vshrl.u32 %v848, 7
          %v850 = vsub.s32 0, %v849
          %v851 = vrot.slane %v846, %v850
          %v852 = vlaneseq
          %v853 = vshrl.u32 %v852, 7
          %v854 = vsub.s32 1, %v853
          %v855 = vrot.slane %v846, %v854
          %v859 = vcombine.high %v781, %v781
          %861 = vmatprep.subr.mxu0 %v813
          %862 = vmatpush1.msra.mxu0 %v812
          %863 = vmatprep.subr.mxu0 %v811
          %864 = vmatpush1.msra.mxu0 %v810
          %865 = vmatprep.subr.mxu0 %v809
          %866 = vmatpush1.msra.mxu0 %v808
          %867 = vmatprep.subr.mxu0 %v807
          %868 = vmatpush1.msra.mxu0 %v806
          %869 = vmatprep.subr.mxu0 %v805
          %870 = vmatpush1.msra.mxu0 %v804
          %871 = vmatprep.subr.mxu0 %v803
          %872 = vmatpush1.msra.mxu0 %v802
          %873 = vmatprep.subr.mxu0 %v801
          %874 = vmatpush1.msra.mxu0 %v800
          %875 = vmatprep.subr.mxu0 %v799
          %876 = vmatpush1.msra.mxu0 %v798
          %877 = vmatprep.subr.mxu0 %v797
          %878 = vmatpush1.msra.mxu0 %v796
          %879 = vmatprep.subr.mxu0 %v795
          %880 = vmatpush1.msra.mxu0 %v794
          %881 = vmatprep.subr.mxu0 %v793
          %882 = vmatpush1.msra.mxu0 %v792
          %883 = vmatprep.subr.mxu0 %v791
          %884 = vmatpush1.msra.mxu0 %v790
          %885 = vmatprep.subr.mxu0 %v789
          %886 = vmatpush1.msra.mxu0 %v788
          %887 = vmatprep.subr.mxu0 %v787
          %888 = vmatpush1.msra.mxu0 %v786
          %889 = vmatprep.subr.mxu0 %v785
          %890 = vmatpush1.msra.mxu0 %v784
          %891 = vmatprep.subr.mxu0 %v783
          %892 = vmatpush1.msra.mxu0 %v782
          %893 = vmatprep.subr.mxu0 %v845
          %894 = vmatpush2.msra.mxu0 %v844
          %895 = vmatprep.subr.mxu0 %v843
          %896 = vmatpush2.msra.mxu0 %v842
          %897 = vmatprep.subr.mxu0 %v841
          %898 = vmatpush2.msra.mxu0 %v840
          %899 = vmatprep.subr.mxu0 %v839
          %900 = vmatpush2.msra.mxu0 %v838
          %901 = vmatprep.subr.mxu0 %v837
          %902 = vmatpush2.msra.mxu0 %v836
          %903 = vmatprep.subr.mxu0 %v835
          %904 = vmatpush2.msra.mxu0 %v834
          %905 = vmatprep.subr.mxu0 %v833
          %906 = vmatpush2.msra.mxu0 %v832
          %907 = vmatprep.subr.mxu0 %v831
          %908 = vmatpush2.msra.mxu0 %v830
          %909 = vmatprep.subr.mxu0 %v829
          %910 = vmatpush2.msra.mxu0 %v828
          %911 = vmatprep.subr.mxu0 %v827
          %912 = vmatpush2.msra.mxu0 %v826
          %913 = vmatprep.subr.mxu0 %v825
          %914 = vmatpush2.msra.mxu0 %v824
          %915 = vmatprep.subr.mxu0 %v823
          %916 = vmatpush2.msra.mxu0 %v822
          %917 = vmatprep.subr.mxu0 %v821
          %918 = vmatpush2.msra.mxu0 %v820
          %919 = vmatprep.subr.mxu0 %v819
          %920 = vmatpush2.msra.mxu0 %v818
          %921 = vmatprep.subr.mxu0 %v817
          %922 = vmatpush2.msra.mxu0 %v816
          %923 = vmatprep.subr.mxu0 %v815
          %924 = vmatpush2.msra.mxu0 %v814
          %925 = vmatprep.mubr.f32.mxu0 %v859
          %926 = vmatmul.mubr.f32.gmra.mxu0 %v781
          %v927 = vpop.f32.mrf.mxu0
          %v928 = vadd.f32 %v851, %v927
          %v929 = vpop.f32.mrf.mxu0
          %v930 = vadd.f32 %v855, %v929
          %931 = vdwg.mxu0
          %v932 = vld [vmem:[%s7] sm:$0xff]
          %v933 = vld [vmem:[%s7 + $0x8] sm:$0xff]
          %v934 = vld [vmem:[%s7 + $0x10] sm:$0xff]
          %v935 = vld [vmem:[%s7 + $0x18] sm:$0xff]
          %v936 = vld [vmem:[%s7 + $0x20] sm:$0xff]
          %v937 = vld [vmem:[%s7 + $0x28] sm:$0xff]
          %v938 = vld [vmem:[%s7 + $0x30] sm:$0xff]
          %v939 = vld [vmem:[%s7 + $0x38] sm:$0xff]
          %v940 = vld [vmem:[%s7 + $0x40] sm:$0xff]
          %v941 = vld [vmem:[%s7 + $0x48] sm:$0xff]
          %v942 = vld [vmem:[%s7 + $0x50] sm:$0xff]
          %v943 = vld [vmem:[%s7 + $0x58] sm:$0xff]
          %v944 = vld [vmem:[%s7 + $0x60] sm:$0xff]
          %v945 = vld [vmem:[%s7 + $0x68] sm:$0xff]
          %v946 = vld [vmem:[%s7 + $0x70] sm:$0xff]
          %v947 = vld [vmem:[%s7 + $0x78] sm:$0xff]
          %v948 = vld [vmem:[%s7 + $0x80] sm:$0xff]
          %v949 = vld [vmem:[%s7 + $0x88] sm:$0xff]
          %v950 = vld [vmem:[%s7 + $0x90] sm:$0xff]
          %v951 = vld [vmem:[%s7 + $0x98] sm:$0xff]
          %v952 = vld [vmem:[%s7 + $0xa0] sm:$0xff]
          %v953 = vld [vmem:[%s7 + $0xa8] sm:$0xff]
          %v954 = vld [vmem:[%s7 + $0xb0] sm:$0xff]
          %v955 = vld [vmem:[%s7 + $0xb8] sm:$0xff]
          %v956 = vld [vmem:[%s7 + $0xc0] sm:$0xff]
          %v957 = vld [vmem:[%s7 + $0xc8] sm:$0xff]
          %v958 = vld [vmem:[%s7 + $0xd0] sm:$0xff]
          %v959 = vld [vmem:[%s7 + $0xd8] sm:$0xff]
          %v960 = vld [vmem:[%s7 + $0xe0] sm:$0xff]
          %v961 = vld [vmem:[%s7 + $0xe8] sm:$0xff]
          %v962 = vld [vmem:[%s7 + $0xf0] sm:$0xff]
          %v963 = vld [vmem:[%s7 + $0xf8] sm:$0xff]
          %v964 = vld [vmem:[%s8] sm:$0x1]
          %v966 = vlaneseq
          %v967 = vshrl.u32 %v966, 7
          %v968 = vsub.s32 0, %v967
          %v969 = vrot.slane %v964, %v968
          %971 = vmatprep.subr.mxu0 0.0
          %972 = vmatpush1.msra.mxu0 %v947
          %973 = vmatprep.subr.mxu0 0.0
          %974 = vmatpush1.msra.mxu0 %v946
          %975 = vmatprep.subr.mxu0 0.0
          %976 = vmatpush1.msra.mxu0 %v945
          %977 = vmatprep.subr.mxu0 0.0
          %978 = vmatpush1.msra.mxu0 %v944
          %979 = vmatprep.subr.mxu0 0.0
          %980 = vmatpush1.msra.mxu0 %v943
          %981 = vmatprep.subr.mxu0 0.0
          %982 = vmatpush1.msra.mxu0 %v942
          %983 = vmatprep.subr.mxu0 0.0
          %984 = vmatpush1.msra.mxu0 %v941
          %985 = vmatprep.subr.mxu0 0.0
          %986 = vmatpush1.msra.mxu0 %v940
          %987 = vmatprep.subr.mxu0 0.0
          %988 = vmatpush1.msra.mxu0 %v939
          %989 = vmatprep.subr.mxu0 0.0
          %990 = vmatpush1.msra.mxu0 %v938
          %991 = vmatprep.subr.mxu0 0.0
          %992 = vmatpush1.msra.mxu0 %v937
          %993 = vmatprep.subr.mxu0 0.0
          %994 = vmatpush1.msra.mxu0 %v936
          %995 = vmatprep.subr.mxu0 0.0
          %996 = vmatpush1.msra.mxu0 %v935
          %997 = vmatprep.subr.mxu0 0.0
          %998 = vmatpush1.msra.mxu0 %v934
          %999 = vmatprep.subr.mxu0 0.0
          %1000 = vmatpush1.msra.mxu0 %v933
          %1001 = vmatprep.subr.mxu0 0.0
          %1002 = vmatpush1.msra.mxu0 %v932
          %1003 = vmatprep.subr.mxu0 0.0
          %1004 = vmatpush2.msra.mxu0 %v963
          %1005 = vmatprep.subr.mxu0 0.0
          %1006 = vmatpush2.msra.mxu0 %v962
          %1007 = vmatprep.subr.mxu0 0.0
          %1008 = vmatpush2.msra.mxu0 %v961
          %1009 = vmatprep.subr.mxu0 0.0
          %1010 = vmatpush2.msra.mxu0 %v960
          %1011 = vmatprep.subr.mxu0 0.0
          %1012 = vmatpush2.msra.mxu0 %v959
          %1013 = vmatprep.subr.mxu0 0.0
          %1014 = vmatpush2.msra.mxu0 %v958
          %1015 = vmatprep.subr.mxu0 0.0
          %1016 = vmatpush2.msra.mxu0 %v957
          %1017 = vmatprep.subr.mxu0 0.0
          %1018 = vmatpush2.msra.mxu0 %v956
          %1019 = vmatprep.subr.mxu0 0.0
          %1020 = vmatpush2.msra.mxu0 %v955
          %1021 = vmatprep.subr.mxu0 0.0
          %1022 = vmatpush2.msra.mxu0 %v954
          %1023 = vmatprep.subr.mxu0 0.0
          %1024 = vmatpush2.msra.mxu0 %v953
          %1025 = vmatprep.subr.mxu0 0.0
          %1026 = vmatpush2.msra.mxu0 %v952
          %1027 = vmatprep.subr.mxu0 0.0
          %1028 = vmatpush2.msra.mxu0 %v951
          %1029 = vmatprep.subr.mxu0 0.0
          %1030 = vmatpush2.msra.mxu0 %v950
          %1031 = vmatprep.subr.mxu0 0.0
          %1032 = vmatpush2.msra.mxu0 %v949
          %1033 = vmatprep.subr.mxu0 0.0
          %1034 = vmatpush2.msra.mxu0 %v948
          %1035 = vmatprep.mubr.f32.mxu0 %v930
          %1036 = vmatmul.mubr.f32.gmra.mxu0 %v928
          %v1037 = vpop.f32.mrf.mxu0
          %v1038 = vadd.f32 %v969, %v1037
          %v1039 = vpop.f32.mrf.mxu0
          %1040 = vdwg.mxu0
          %v1041 = vsel %vm724, %v1038, -inf
          %1042 = vmax.xlane.f32.xlu0 %v1041
          %v1043 = vpop.xlane.xlu0 %1042
          %v1044 = vsub.f32 %v1038, %v1043
          %v1045 = vmul.f32 %v1044, 1.442695
          %v1046 = vpow.pop %v1045
          %v1047 = vsel %vm724, %v1046, 0.0
          %1048 = vadd.xlane.f32.xlu0 %v1047
          %v1049 = vpop.xlane.xlu0 %1048
          %v1050 = vrcp.pop %v1049
          %v1051 = vmul.f32 %v1046, %v1050
          %v1052 = vld [vmem:[%s9] sm:$0xff]
          %v1053 = vld [vmem:[%s9 + $0x8] sm:$0xff]
          %v1054 = vld [vmem:[%s9 + $0x10] sm:$0xff]
          %v1055 = vld [vmem:[%s9 + $0x18] sm:$0xff]
          %v1056 = vld [vmem:[%s9 + $0x20] sm:$0xff]
          %v1057 = vld [vmem:[%s9 + $0x28] sm:$0xff]
          %v1058 = vld [vmem:[%s9 + $0x30] sm:$0xff]
          %v1059 = vld [vmem:[%s9 + $0x38] sm:$0xff]
          %v1060 = vld [vmem:[%s9 + $0x40] sm:$0xff]
          %v1061 = vld [vmem:[%s9 + $0x48] sm:$0xff]
          %v1062 = vld [vmem:[%s9 + $0x50] sm:$0xff]
          %v1063 = vld [vmem:[%s9 + $0x58] sm:$0xff]
          %v1064 = vld [vmem:[%s9 + $0x60] sm:$0xff]
          %v1065 = vld [vmem:[%s9 + $0x68] sm:$0xff]
          %v1066 = vld [vmem:[%s9 + $0x70] sm:$0xff]
          %v1067 = vld [vmem:[%s9 + $0x78] sm:$0xff]
          %v1068 = vld [vmem:[%s10] sm:$0xff]
          %v1069 = vld [vmem:[%s10 + $0x8] sm:$0xff]
          %v1070 = vld [vmem:[%s10 + $0x10] sm:$0xff]
          %v1071 = vld [vmem:[%s10 + $0x18] sm:$0xff]
          %v1072 = vld [vmem:[%s10 + $0x20] sm:$0xff]
          %v1073 = vld [vmem:[%s10 + $0x28] sm:$0xff]
          %v1074 = vld [vmem:[%s10 + $0x30] sm:$0xff]
          %v1075 = vld [vmem:[%s10 + $0x38] sm:$0xff]
          %v1076 = vld [vmem:[%s10 + $0x40] sm:$0xff]
          %v1077 = vld [vmem:[%s10 + $0x48] sm:$0xff]
          %v1078 = vld [vmem:[%s10 + $0x50] sm:$0xff]
          %v1079 = vld [vmem:[%s10 + $0x58] sm:$0xff]
          %v1080 = vld [vmem:[%s10 + $0x60] sm:$0xff]
          %v1081 = vld [vmem:[%s10 + $0x68] sm:$0xff]
          %v1082 = vld [vmem:[%s10 + $0x70] sm:$0xff]
          %v1083 = vld [vmem:[%s10 + $0x78] sm:$0xff]
          %1084 = vmatprep.subr.mxu0 0.0
          %1085 = vmatpush1.msra.mxu0 %v1083
          %1086 = vmatprep.subr.mxu0 0.0
          %1087 = vmatpush1.msra.mxu0 %v1082
          %1088 = vmatprep.subr.mxu0 0.0
          %1089 = vmatpush1.msra.mxu0 %v1081
          %1090 = vmatprep.subr.mxu0 0.0
          %1091 = vmatpush1.msra.mxu0 %v1080
          %1092 = vmatprep.subr.mxu0 0.0
          %1093 = vmatpush1.msra.mxu0 %v1079
          %1094 = vmatprep.subr.mxu0 0.0
          %1095 = vmatpush1.msra.mxu0 %v1078
          %1096 = vmatprep.subr.mxu0 0.0
          %1097 = vmatpush1.msra.mxu0 %v1077
          %1098 = vmatprep.subr.mxu0 0.0
          %1099 = vmatpush1.msra.mxu0 %v1076
          %1100 = vmatprep.subr.mxu0 0.0
          %1101 = vmatpush1.msra.mxu0 %v1075
          %1102 = vmatprep.subr.mxu0 0.0
          %1103 = vmatpush1.msra.mxu0 %v1074
          %1104 = vmatprep.subr.mxu0 0.0
          %1105 = vmatpush1.msra.mxu0 %v1073
          %1106 = vmatprep.subr.mxu0 0.0
          %1107 = vmatpush1.msra.mxu0 %v1072
          %1108 = vmatprep.subr.mxu0 0.0
          %1109 = vmatpush1.msra.mxu0 %v1071
          %1110 = vmatprep.subr.mxu0 0.0
          %1111 = vmatpush1.msra.mxu0 %v1070
          %1112 = vmatprep.subr.mxu0 0.0
          %1113 = vmatpush1.msra.mxu0 %v1069
          %1114 = vmatprep.subr.mxu0 0.0
          %1115 = vmatpush1.msra.mxu0 %v1068
          %1116 = vmatprep.subr.mxu0 0.0
          %1117 = vmatpush2.msra.mxu0 0.0
          %1118 = vmatprep.subr.mxu0 0.0
          %1119 = vmatpush2.msra.mxu0 0.0
          %1120 = vmatprep.subr.mxu0 0.0
          %1121 = vmatpush2.msra.mxu0 0.0
          %1122 = vmatprep.subr.mxu0 0.0
          %1123 = vmatpush2.msra.mxu0 0.0
          %1124 = vmatprep.subr.mxu0 0.0
          %1125 = vmatpush2.msra.mxu0 0.0
          %1126 = vmatprep.subr.mxu0 0.0
          %1127 = vmatpush2.msra.mxu0 0.0
          %1128 = vmatprep.subr.mxu0 0.0
          %1129 = vmatpush2.msra.mxu0 0.0
          %1130 = vmatprep.subr.mxu0 0.0
          %1131 = vmatpush2.msra.mxu0 0.0
          %1132 = vmatprep.subr.mxu0 0.0
          %1133 = vmatpush2.msra.mxu0 0.0
          %1134 = vmatprep.subr.mxu0 0.0
          %1135 = vmatpush2.msra.mxu0 0.0
          %1136 = vmatprep.subr.mxu0 0.0
          %1137 = vmatpush2.msra.mxu0 0.0
          %1138 = vmatprep.subr.mxu0 0.0
          %1139 = vmatpush2.msra.mxu0 0.0
          %1140 = vmatprep.subr.mxu0 0.0
          %1141 = vmatpush2.msra.mxu0 0.0
          %1142 = vmatprep.subr.mxu0 0.0
          %1143 = vmatpush2.msra.mxu0 0.0
          %1144 = vmatprep.subr.mxu0 0.0
          %1145 = vmatpush2.msra.mxu0 0.0
          %1146 = vmatprep.subr.mxu0 0.0
          %1147 = vmatpush2.msra.mxu0 0.0
          %1148 = vmatprep.mubr.f32.mxu0 0.0
          %1149 = vmatmul.mubr.f32.gmra.mxu0 %v1051
          %v1150 = vpop.f32.mrf.mxu0
          %v1151 = vadd.f32 0.0, %v1150
          %v1152 = vpop.f32.mrf.mxu0
          %1153 = vdwg.mxu0
          %1154 = vmatprep.subr.mxu0 0.0
          %1155 = vmatpush1.msra.mxu0 %v1067
          %1156 = vmatprep.subr.mxu0 0.0
          %1157 = vmatpush1.msra.mxu0 %v1066
          %1158 = vmatprep.subr.mxu0 0.0
          %1159 = vmatpush1.msra.mxu0 %v1065
          %1160 = vmatprep.subr.mxu0 0.0
          %1161 = vmatpush1.msra.mxu0 %v1064
          %1162 = vmatprep.subr.mxu0 0.0
          %1163 = vmatpush1.msra.mxu0 %v1063
          %1164 = vmatprep.subr.mxu0 0.0
          %1165 = vmatpush1.msra.mxu0 %v1062
          %1166 = vmatprep.subr.mxu0 0.0
          %1167 = vmatpush1.msra.mxu0 %v1061
          %1168 = vmatprep.subr.mxu0 0.0
          %1169 = vmatpush1.msra.mxu0 %v1060
          %1170 = vmatprep.subr.mxu0 0.0
          %1171 = vmatpush1.msra.mxu0 %v1059
          %1172 = vmatprep.subr.mxu0 0.0
          %1173 = vmatpush1.msra.mxu0 %v1058
          %1174 = vmatprep.subr.mxu0 0.0
          %1175 = vmatpush1.msra.mxu0 %v1057
          %1176 = vmatprep.subr.mxu0 0.0
          %1177 = vmatpush1.msra.mxu0 %v1056
          %1178 = vmatprep.subr.mxu0 0.0
          %1179 = vmatpush1.msra.mxu0 %v1055
          %1180 = vmatprep.subr.mxu0 0.0
          %1181 = vmatpush1.msra.mxu0 %v1054
          %1182 = vmatprep.subr.mxu0 0.0
          %1183 = vmatpush1.msra.mxu0 %v1053
          %1184 = vmatprep.subr.mxu0 0.0
          %1185 = vmatpush1.msra.mxu0 %v1052
          %1186 = vmatprep.subr.mxu0 0.0
          %1187 = vmatpush2.msra.mxu0 0.0
          %1188 = vmatprep.subr.mxu0 0.0
          %1189 = vmatpush2.msra.mxu0 0.0
          %1190 = vmatprep.subr.mxu0 0.0
          %1191 = vmatpush2.msra.mxu0 0.0
          %1192 = vmatprep.subr.mxu0 0.0
          %1193 = vmatpush2.msra.mxu0 0.0
          %1194 = vmatprep.subr.mxu0 0.0
          %1195 = vmatpush2.msra.mxu0 0.0
          %1196 = vmatprep.subr.mxu0 0.0
          %1197 = vmatpush2.msra.mxu0 0.0
          %1198 = vmatprep.subr.mxu0 0.0
          %1199 = vmatpush2.msra.mxu0 0.0
          %1200 = vmatprep.subr.mxu0 0.0
          %1201 = vmatpush2.msra.mxu0 0.0
          %1202 = vmatprep.subr.mxu0 0.0
          %1203 = vmatpush2.msra.mxu0 0.0
          %1204 = vmatprep.subr.mxu0 0.0
          %1205 = vmatpush2.msra.mxu0 0.0
          %1206 = vmatprep.subr.mxu0 0.0
          %1207 = vmatpush2.msra.mxu0 0.0
          %1208 = vmatprep.subr.mxu0 0.0
          %1209 = vmatpush2.msra.mxu0 0.0
          %1210 = vmatprep.subr.mxu0 0.0
          %1211 = vmatpush2.msra.mxu0 0.0
          %1212 = vmatprep.subr.mxu0 0.0
          %1213 = vmatpush2.msra.mxu0 0.0
          %1214 = vmatprep.subr.mxu0 0.0
          %1215 = vmatpush2.msra.mxu0 0.0
          %1216 = vmatprep.subr.mxu0 0.0
          %1217 = vmatpush2.msra.mxu0 0.0
          %1218 = vmatprep.mubr.f32.mxu0 0.0
          %1219 = vmatmul.mubr.f32.gmra.mxu0 %v718
          %v1220 = vpop.f32.mrf.mxu0
          %v1221 = vadd.f32 %v1151, %v1220
          %v1222 = vpop.f32.mrf.mxu0
          %1223 = vdwg.mxu0
          %v1224 = vld [vmem:[%s11] sm:$0x1]
          %v1226 = vlaneseq
          %v1227 = vshrl.u32 %v1226, 7
          %v1228 = vsub.s32 0, %v1227
          %v1229 = vrot.slane %v1224, %v1228
          %v1231 = vadd.f32 %v1221, %v1229
          %v1232 = vmax.f32 %v1231, 0.0
          %v1233 = vld [vmem:[%s12] sm:$0x1]
          %v1235 = vlaneseq
          %v1236 = vshrl.u32 %v1235, 7
          %v1237 = vsub.s32 0, %v1236
          %v1238 = vrot.slane %v1233, %v1237
          %v1240 = vmul.f32 %v1232, %v1238
          %v1241 = vsel %vm724, %v1240, 0.0
          %1242 = vadd.xlane.f32.xlu0 %v1241
          %v1243 = vpop.xlane.xlu0 %1242
          %v1244 = vld [vmem:[#allocation3] sm:$0x1]
          %v1246 = vlaneseq
          %v1247 = vshrl.u32 %v1246, 7
          %v1248 = vsub.s32 0, %v1247
          %v1249 = vrot.slane %v1244, %v1248
          %v1251 = vadd.f32 %v1243, %v1249
          %v1252 = vsub.f32 0.0, %v1251
          %v1253 = vmul.f32 %v1252, 1.442695
          %v1254 = vpow.pop %v1253
          %v1255 = vadd.f32 %v1254, 1.0
          %v1256 = vrcp.pop %v1255
          %vm1257 = vcmask 3072
          %1258 = vst.msk [vmem:[%s15] sm:$0xf] %vm1257, %v1256
        $region84: #{gin_forward.13} parent=75 // pred_fallthru
          _
        // Predicated region
        $region85: #{gin_forward.13} parent=75 // pred_check
          %p1259 = pneg %p347
        $region86: #{gin_forward.13} parent=75 // pred_check_branch
          %1261 = sbr.rel (%p1259) target = $region88
        $region87: #{gin_forward.13} parent=75 // pred_region
          %s1263 = ssub.s32 64, 64
          %1264 = vsyncadd [#allocation5], %s1263
          %s1266 = sshll.u32 [#allocation4], 4
          %s1267 = int_to_ptr.vmem [resolvable:$true] %s1266
          %1269 = dma.vmem_to_hbm [thread:$0]  %s1267, 64, %s14, [#allocation5]
        $region88: #{gin_forward.13} parent=75 // pred_fallthru
          _
        // Predicated region
        $region89: #{gin_forward.13} parent=75 // pred_check
          %p1270 = pneg %p368
        $region90: #{gin_forward.13} parent=75 // pred_check_branch
          %1272 = sbr.rel (%p1270) target = $region92
        $region91: #{gin_forward.13} parent=75 // pred_region
          _
        $region92: #{gin_forward.13} parent=75 // pred_fallthru
          _
        // Predicated region
        $region93: #{gin_forward.13} parent=75 // pred_check
          %p1273 = pneg %p347
        $region94: #{gin_forward.13} parent=75 // pred_check_branch
          %1275 = sbr.rel (%p1273) target = $region96
        $region95: #{gin_forward.13} parent=75 // pred_region
          %1276 = dma.done [#allocation5], 64
        $region96: #{gin_forward.13} parent=75 // pred_fallthru
          _
        // Predicated region
        $region97: #{gin_forward.13} parent=75 // pred_check
          %p1277 = pneg %p368
        $region98: #{gin_forward.13} parent=75 // pred_check_branch
          %1279 = sbr.rel (%p1277) target = $region100
        $region99: #{gin_forward.13} parent=75 // pred_region
          _
        $region100: #{gin_forward.13} parent=75 // pred_fallthru
          _
      $region76: #{gin_forward.13} parent=5 // pred_fallthru
        _
      %p1280 = scmp.le.s32.totalorder 2, %s25
      // Predicated region
      $region101: #{gin_forward.13} parent=5 // pred_check
        %p1281 = pneg %p1280
      $region102: #{gin_forward.13} parent=5 // pred_check_branch
        %1283 = sbr.rel (%p1281) target = $region104
      $region103: #{gin_forward.13} parent=5 // pred_region
        %s1284 = ssub.s32 %s25, 2
      $region104: #{gin_forward.13} parent=5 // pred_fallthru
        _
    $region6: #{gin_forward.13} parent=1 // loop_footer
      %s29 = sadd.s32 1, %s25
    $region7: #{gin_forward.13} parent=1 // loop_footer_branch
      %24 = sbr.rel target = $region3
    $region8: #{gin_forward.13} parent=1 // loop_exit
      _
    %1285 = vsyncpa [#allocation5], 1
    %s1286 = scalar_lea.sflag [#allocation5], 1
    %1287 = vsyncpa %s1286, 1

</llo_original>
